<compile_context>
chip_gen: v6e
topology: v6e:2x2x1
jax: 0.10.0
libtpu: 0.0.40
codegen_flags: <defaults>
</compile_context>

<pallas_src>
import functools

import jax
import jax.numpy as jnp
import numpy as np
from jax import lax
from jax.experimental import pallas as pl
from jax.experimental.pallas import tpu as pltpu


def _residual_kernel(x_ref, w1_ref, b1_ref, w2_ref, b2_ref, ws_ref, bs_ref,
                     out_ref, relu1_ref, *, TH, W, Ci, Co):
    """One (batch, row-tile) per grid step.  stride=1 residual block.

    x_ref     : (1, H+4, W+4, Ci)    bf16 full zero-padded image (resident per batch)
    w1_ref    : (3, 3, Ci, Co)       bf16 conv1 weight (BN1 scale folded in)
    w2_ref    : (3, 3*Co, Co)        bf16 conv2 weight (dx flattened into K)
    ws_ref    : (Ci, Co)             bf16 1x1 skip weight (BN scale folded in)
    b*_ref    : (1, Co)              f32 folded BN biases
    out_ref   : (1, TH, W, Co)       f32 output tile
    relu1_ref : VMEM (TH+2, W+2, Co) bf16 relu1 (+ conv2 halo) scratch
    """
    h = pl.program_id(1)
    n_h = pl.num_programs(1)
    R = TH + 2          # relu1 rows needed by conv2 (incl. 1-row halo)
    Wp = W + 2          # relu1 cols needed by conv2 (incl. 1-col halo)

    # Halo slab for this row tile: padded rows [h*TH, h*TH + TH + 4).
    row0 = pl.multiple_of(h * TH, TH)
    x = x_ref[0, pl.ds(row0, TH + 4), :, :]             # (TH+4, W+4, Ci) bf16

    # ---- conv1 (3x3, pad 1) over the (R, Wp) relu1 region: 9 shifted matmuls ----
    acc1 = jnp.zeros((R * Wp, Co), jnp.float32)
    for dy in range(3):
        for dx in range(3):
            patch = x[dy:dy + R, dx:dx + Wp, :].reshape(R * Wp, Ci)
            acc1 = acc1 + jnp.dot(patch, w1_ref[dy, dx],
                                  preferred_element_type=jnp.float32)

    # ---- bn1 (scale already folded into w1) + relu1; store as bf16 ----
    relu1 = jnp.maximum(acc1 + b1_ref[0], 0.0).reshape(R, Wp, Co)
    relu1_ref[...] = relu1.astype(relu1_ref.dtype)

    # conv2's zero padding: zero the relu1 halo wherever it falls OUTSIDE the
    # image (columns always; rows only at the first/last row tile).
    zero_col = jnp.zeros((R, 1, Co), relu1_ref.dtype)
    relu1_ref[:, 0:1, :] = zero_col
    relu1_ref[:, Wp - 1:Wp, :] = zero_col

    @pl.when(h == 0)
    def _():                                             # top image border
        relu1_ref[0:1, :, :] = jnp.zeros((1, Wp, Co), relu1_ref.dtype)

    @pl.when(h == n_h - 1)
    def _():                                             # bottom image border
        relu1_ref[R - 1:R, :, :] = jnp.zeros((1, Wp, Co), relu1_ref.dtype)

    # ---- conv2 (3x3, pad 1): concat the 3 dx-shifts once -> K = 3*Co per dy ----
    r1 = relu1_ref[...]                                  # (R, Wp, Co) bf16
    rcat = jnp.concatenate(
        [r1[:, 0:W, :], r1[:, 1:W + 1, :], r1[:, 2:W + 2, :]], axis=-1)
    acc2 = jnp.zeros((TH * W, Co), jnp.float32)
    for dy in range(3):
        lhs = rcat[dy:dy + TH].reshape(TH * W, 3 * Co)
        acc2 = acc2 + jnp.dot(lhs, w2_ref[dy],
                              preferred_element_type=jnp.float32)
    bn2 = acc2 + b2_ref[0]

    # ---- skip: 1x1 conv + bn on the center (un-halo'd) view of the slab ----
    xc = x[2:2 + TH, 2:2 + W, :].reshape(TH * W, Ci)
    skip = jnp.dot(xc, ws_ref[...],
                   preferred_element_type=jnp.float32) + bs_ref[0]

    # ---- residual add + final relu ----
    out = jnp.maximum(bn2 + skip, 0.0)
    out_ref[...] = out.reshape(1, TH, W, Co).astype(out_ref.dtype)


def _fold_bn(gamma, beta, mean, var, eps=1e-5):
    scale = gamma / jnp.sqrt(var + eps)
    bias = beta - mean * scale
    return scale, bias


def _round_up(v, m):
    return (v + m - 1) // m * m


def residual_forward(x_nchw, params, row_tile=8):
    """Forward pass of residual(k=3, inp_dim, out_dim, stride=1), eval-mode BN."""
    x = jnp.transpose(x_nchw, (0, 2, 3, 1)).astype(jnp.float32)  # NCHW -> NHWC
    N, H, W, Ci = x.shape
    Co = params["w1"].shape[-1]
    Co_p = _round_up(Co, 128)          # lane-dense channel count
    pc = Co_p - Co

    # largest row-tile that divides H (keeps the halo logic exact)
    TH = max(1, min(row_tile, H))
    while H % TH:
        TH -= 1
    nH = H // TH

    # ---- fold eval-mode BN: scale into the conv weights, keep bias separate ----
    s1, b1 = _fold_bn(params["bn1_gamma"], params["bn1_beta"],
                      params["bn1_mean"], params["bn1_var"])
    s2, b2 = _fold_bn(params["bn2_gamma"], params["bn2_beta"],
                      params["bn2_mean"], params["bn2_var"])
    if params.get("wskip") is not None:
        ss, bsv = _fold_bn(params["bns_gamma"], params["bns_beta"],
                           params["bns_mean"], params["bns_var"])
        wskip = params["wskip"] * ss
    else:
        # identity skip (inp_dim == out_dim, stride == 1) as a 1x1 identity conv
        wskip = jnp.eye(Ci, Co, dtype=jnp.float32)
        bsv = jnp.zeros((Co,), jnp.float32)

    w1f = jnp.pad(params["w1"] * s1,
                  ((0, 0), (0, 0), (0, 0), (0, pc))).astype(jnp.bfloat16)
    w2f = jnp.pad(params["w2"] * s2,
                  ((0, 0), (0, 0), (0, pc), (0, pc)))
    w2f = w2f.reshape(3, 3 * Co_p, Co_p).astype(jnp.bfloat16)
    wsf = jnp.pad(wskip, ((0, 0), (0, pc))).astype(jnp.bfloat16)
    b1p = jnp.pad(b1, (0, pc)).reshape(1, Co_p).astype(jnp.float32)
    b2p = jnp.pad(b2, (0, pc)).reshape(1, Co_p).astype(jnp.float32)
    bsp = jnp.pad(bsv, (0, pc)).reshape(1, Co_p).astype(jnp.float32)

    # ---- bf16 activations with a 2-row/col zero halo; read once per batch ----
    xb = x.astype(jnp.bfloat16)
    xp = jnp.pad(xb, ((0, 0), (2, 2), (2, 2), (0, 0)))   # (N, H+4, W+4, Ci)

    kernel = functools.partial(_residual_kernel, TH=TH, W=W, Ci=Ci, Co=Co_p)

    flops = 2 * N * H * W * (9 * Ci * Co_p + 9 * Co_p * Co_p + Ci * Co_p)
    bytes_accessed = (xp.size * 2 + N * H * W * Co_p * 4
                      + w1f.size * 2 + w2f.size * 2 + wsf.size * 2 + 3 * Co_p * 4)
    cost = pl.CostEstimate(flops=int(flops), transcendentals=0,
                           bytes_accessed=int(bytes_accessed))

    grid_spec = pltpu.PrefetchScalarGridSpec(
        num_scalar_prefetch=0,
        grid=(N, nH),
        in_specs=[
            # full padded image per batch; constant block across the h axis ->
            # DMA'd from HBM once per batch element, sliced in-kernel with pl.ds
            pl.BlockSpec((1, H + 4, W + 4, Ci), lambda n, h: (n, 0, 0, 0)),
            pl.BlockSpec((3, 3, Ci, Co_p), lambda n, h: (0, 0, 0, 0)),
            pl.BlockSpec((1, Co_p), lambda n, h: (0, 0)),
            pl.BlockSpec((3, 3 * Co_p, Co_p), lambda n, h: (0, 0, 0)),
            pl.BlockSpec((1, Co_p), lambda n, h: (0, 0)),
            pl.BlockSpec((Ci, Co_p), lambda n, h: (0, 0)),
            pl.BlockSpec((1, Co_p), lambda n, h: (0, 0)),
        ],
        out_specs=pl.BlockSpec((1, TH, W, Co_p), lambda n, h: (n, h, 0, 0)),
        scratch_shapes=[pltpu.VMEM((TH + 2, W + 2, Co_p), jnp.bfloat16)],
    )

    out = pl.pallas_call(
        kernel,
        out_shape=jax.ShapeDtypeStruct((N, H, W, Co_p), jnp.float32),
        grid_spec=grid_spec,
        compiler_params=pltpu.CompilerParams(
            dimension_semantics=("parallel", "arbitrary"),
            vmem_limit_bytes=48 * 1024 * 1024),
        cost_estimate=cost,
    )(xp, w1f, b1p, w2f, b2p, wsf, bsp)

    out = out[..., :Co]                      # drop lane-padding channels
    return jnp.transpose(out, (0, 3, 1, 2))  # NHWC -> NCHW


# -------------------- pure-JAX reference (correctness check) --------------------
def _conv2d_nhwc(x, w_hwio, stride=1, pad=0):
    return lax.conv_general_dilated(
        x, w_hwio, (stride, stride), ((pad, pad), (pad, pad)),
        dimension_numbers=("NHWC", "HWIO", "NHWC"),
        precision=lax.Precision.HIGHEST)


def residual_reference(x_nchw, params):
    x = jnp.transpose(x_nchw, (0, 2, 3, 1)).astype(jnp.float32)
    s1, b1 = _fold_bn(params["bn1_gamma"], params["bn1_beta"],
                      params["bn1_mean"], params["bn1_var"])
    s2, b2 = _fold_bn(params["bn2_gamma"], params["bn2_beta"],
                      params["bn2_mean"], params["bn2_var"])
    c1 = _conv2d_nhwc(x, params["w1"], stride=1, pad=1)
    r1 = jnp.maximum(c1 * s1 + b1, 0.0)
    c2 = _conv2d_nhwc(r1, params["w2"], stride=1, pad=1)
    bn2 = c2 * s2 + b2
    if params.get("wskip") is not None:
        ss, bs = _fold_bn(params["bns_gamma"], params["bns_beta"],
                          params["bns_mean"], params["bns_var"])
        wskip_hwio = params["wskip"].reshape(1, 1, *params["wskip"].shape)
        skip = _conv2d_nhwc(x, wskip_hwio, stride=1, pad=0) * ss + bs
    else:
        skip = x
    out = jnp.maximum(bn2 + skip, 0.0)
    return jnp.transpose(out, (0, 3, 1, 2))


def make_params(key, Cin, Cout):
    ks = jax.random.split(key, 12)
    p = {
        # HWIO conv weights (torch stores OIHW; generated directly in HWIO here)
        "w1": 0.1 * jax.random.normal(ks[0], (3, 3, Cin, Cout), jnp.float32),
        "w2": 0.1 * jax.random.normal(ks[1], (3, 3, Cout, Cout), jnp.float32),
        "wskip": 0.1 * jax.random.normal(ks[2], (Cin, Cout), jnp.float32),
        "bn1_gamma": 1.0 + 0.1 * jax.random.normal(ks[3], (Cout,), jnp.float32),
        "bn1_beta": 0.1 * jax.random.normal(ks[4], (Cout,), jnp.float32),
        "bn1_mean": 0.1 * jax.random.normal(ks[5], (Cout,), jnp.float32),
        "bn1_var": jax.random.uniform(ks[6], (Cout,), jnp.float32, 0.5, 1.5),
        "bn2_gamma": 1.0 + 0.1 * jax.random.normal(ks[7], (Cout,), jnp.float32),
        "bn2_beta": 0.1 * jax.random.normal(ks[8], (Cout,), jnp.float32),
        "bn2_mean": 0.1 * jax.random.normal(ks[9], (Cout,), jnp.float32),
        "bn2_var": jax.random.uniform(ks[10], (Cout,), jnp.float32, 0.5, 1.5),
        "bns_gamma": jnp.ones((Cout,), jnp.float32),
        "bns_beta": jnp.zeros((Cout,), jnp.float32),
        "bns_mean": jnp.zeros((Cout,), jnp.float32),
        "bns_var": jnp.ones((Cout,), jnp.float32),
    }
    # slight perturbation of the skip BN so it's not a trivial identity affine
    p["bns_gamma"] = p["bns_gamma"] + 0.05 * jax.random.normal(
        ks[11], (Cout,), jnp.float32)
    return p


if __name__ == "__main__":
    # residual(k=3, inp_dim=4, out_dim=8, stride=1) -> skip path is 1x1 conv + BN
    N, Cin, Cout, H, W = 2, 4, 8, 16, 16
    key = jax.random.PRNGKey(0)
    kx, kp = jax.random.split(key)
    x = jax.random.normal(kx, (N, Cin, H, W), jnp.float32)  # NCHW like PyTorch
    params = make_params(kp, Cin, Cout)

    out = jax.block_until_ready(residual_forward(x, params, row_tile=8))
    ref = jax.block_until_ready(residual_reference(x, params))

    # bf16 matmul operands (f32 accumulation) -> loosened tolerance vs f32 reference
    np.testing.assert_allclose(np.asarray(out), np.asarray(ref),
                               rtol=5e-2, atol=5e-2)
    assert out.shape == (N, Cout, H, W)
    print("KERNEL_OK")
</pallas_src>

<mosaic_0001>
module attributes {stable_mosaic.version = 11 : i64} {
  func.func @_residual_kernel(%arg0: i32, %arg1: i32, %arg2: memref<1x20x20x4xbf16, #tpu.memory_space<vmem>>, %arg3: memref<3x3x4x128xbf16, #tpu.memory_space<vmem>>, %arg4: memref<1x128xf32, #tpu.memory_space<vmem>>, %arg5: memref<3x384x128xbf16, #tpu.memory_space<vmem>>, %arg6: memref<1x128xf32, #tpu.memory_space<vmem>>, %arg7: memref<4x128xbf16, #tpu.memory_space<vmem>>, %arg8: memref<1x128xf32, #tpu.memory_space<vmem>>, %arg9: memref<1x8x16x128xf32, #tpu.memory_space<vmem>>, %arg10: memref<10x18x128xbf16, #tpu.memory_space<vmem>>) attributes {dimension_semantics = [#tpu.dimension_semantics<parallel>, #tpu.dimension_semantics<arbitrary>], iteration_bounds = array<i64: 2, 2>, scalar_prefetch = 0 : i64, scratch_operands = 1 : i64, tpu.core_type = #tpu.core_type<tc>, window_params = [{transform_indices = @transform_0, window_bounds = array<i64: 1, 20, 20, 4>}, {pipeline_mode = #tpu.pipeline_mode<synchronous>, transform_indices = @transform_1, window_bounds = array<i64: 3, 3, 4, 128>}, {pipeline_mode = #tpu.pipeline_mode<synchronous>, transform_indices = @transform_2, window_bounds = array<i64: 1, 128>}, {pipeline_mode = #tpu.pipeline_mode<synchronous>, transform_indices = @transform_3, window_bounds = array<i64: 3, 384, 128>}, {pipeline_mode = #tpu.pipeline_mode<synchronous>, transform_indices = @transform_4, window_bounds = array<i64: 1, 128>}, {pipeline_mode = #tpu.pipeline_mode<synchronous>, transform_indices = @transform_5, window_bounds = array<i64: 4, 128>}, {pipeline_mode = #tpu.pipeline_mode<synchronous>, transform_indices = @transform_6, window_bounds = array<i64: 1, 128>}, {transform_indices = @transform_7, window_bounds = array<i64: 1, 8, 16, 128>}]} {
    %c8_i32 = arith.constant 8 : i32
    %0 = arith.muli %arg1, %c8_i32 : i32
    %1 = tpu.assume_multiple %0, 8 : i32
    %c0 = arith.constant 0 : index
    %2 = arith.index_cast %1 : i32 to index
    %c0_0 = arith.constant 0 : index
    %c0_1 = arith.constant 0 : index
    %3 = vector.load %arg2[%c0, %2, %c0_0, %c0_1] : memref<1x20x20x4xbf16, #tpu.memory_space<vmem>>, vector<1x12x20x4xbf16>
    %4 = vector.shape_cast %3 : vector<1x12x20x4xbf16> to vector<12x20x4xbf16>
    %cst = arith.constant 0.000000e+00 : f32
    %5 = vector.broadcast %cst : f32 to vector<180x128xf32>
    %6 = vector.extract_strided_slice %4 {offsets = [0, 0, 0], sizes = [10, 18, 4], strides = [1, 1, 1]} : vector<12x20x4xbf16> to vector<10x18x4xbf16>
    %7 = vector.shape_cast %6 : vector<10x18x4xbf16> to vector<180x4xbf16>
    %c0_2 = arith.constant 0 : index
    %c0_3 = arith.constant 0 : index
    %c0_4 = arith.constant 0 : index
    %c0_5 = arith.constant 0 : index
    %8 = vector.load %arg3[%c0_2, %c0_3, %c0_4, %c0_5] : memref<3x3x4x128xbf16, #tpu.memory_space<vmem>>, vector<1x1x4x128xbf16>
    %9 = vector.shape_cast %8 : vector<1x1x4x128xbf16> to vector<4x128xbf16>
    %cst_6 = arith.constant dense<0.000000e+00> : vector<180x128xf32>
    %10 = tpu.matmul %7, %9, %cst_6 {dimension_numbers = #tpu.dot_dimension_numbers<[1], [0], [0], [1], [0, 0, 1, 1], [], []>} : vector<180x4xbf16>, vector<4x128xbf16>, vector<180x128xf32> -> vector<180x128xf32>
    %11 = arith.addf %5, %10 : vector<180x128xf32>
    %12 = vector.extract_strided_slice %4 {offsets = [0, 1, 0], sizes = [10, 18, 4], strides = [1, 1, 1]} : vector<12x20x4xbf16> to vector<10x18x4xbf16>
    %13 = vector.shape_cast %12 : vector<10x18x4xbf16> to vector<180x4xbf16>
    %c0_7 = arith.constant 0 : index
    %c1 = arith.constant 1 : index
    %c0_8 = arith.constant 0 : index
    %c0_9 = arith.constant 0 : index
    %14 = vector.load %arg3[%c0_7, %c1, %c0_8, %c0_9] : memref<3x3x4x128xbf16, #tpu.memory_space<vmem>>, vector<1x1x4x128xbf16>
    %15 = vector.shape_cast %14 : vector<1x1x4x128xbf16> to vector<4x128xbf16>
    %cst_10 = arith.constant dense<0.000000e+00> : vector<180x128xf32>
    %16 = tpu.matmul %13, %15, %cst_10 {dimension_numbers = #tpu.dot_dimension_numbers<[1], [0], [0], [1], [0, 0, 1, 1], [], []>} : vector<180x4xbf16>, vector<4x128xbf16>, vector<180x128xf32> -> vector<180x128xf32>
    %17 = arith.addf %11, %16 : vector<180x128xf32>
    %18 = vector.extract_strided_slice %4 {offsets = [0, 2, 0], sizes = [10, 18, 4], strides = [1, 1, 1]} : vector<12x20x4xbf16> to vector<10x18x4xbf16>
    %19 = vector.shape_cast %18 : vector<10x18x4xbf16> to vector<180x4xbf16>
    %c0_11 = arith.constant 0 : index
    %c2 = arith.constant 2 : index
    %c0_12 = arith.constant 0 : index
    %c0_13 = arith.constant 0 : index
    %20 = vector.load %arg3[%c0_11, %c2, %c0_12, %c0_13] : memref<3x3x4x128xbf16, #tpu.memory_space<vmem>>, vector<1x1x4x128xbf16>
    %21 = vector.shape_cast %20 : vector<1x1x4x128xbf16> to vector<4x128xbf16>
    %cst_14 = arith.constant dense<0.000000e+00> : vector<180x128xf32>
    %22 = tpu.matmul %19, %21, %cst_14 {dimension_numbers = #tpu.dot_dimension_numbers<[1], [0], [0], [1], [0, 0, 1, 1], [], []>} : vector<180x4xbf16>, vector<4x128xbf16>, vector<180x128xf32> -> vector<180x128xf32>
    %23 = arith.addf %17, %22 : vector<180x128xf32>
    %24 = vector.extract_strided_slice %4 {offsets = [1, 0, 0], sizes = [10, 18, 4], strides = [1, 1, 1]} : vector<12x20x4xbf16> to vector<10x18x4xbf16>
    %25 = vector.shape_cast %24 : vector<10x18x4xbf16> to vector<180x4xbf16>
    %c1_15 = arith.constant 1 : index
    %c0_16 = arith.constant 0 : index
    %c0_17 = arith.constant 0 : index
    %c0_18 = arith.constant 0 : index
    %26 = vector.load %arg3[%c1_15, %c0_16, %c0_17, %c0_18] : memref<3x3x4x128xbf16, #tpu.memory_space<vmem>>, vector<1x1x4x128xbf16>
    %27 = vector.shape_cast %26 : vector<1x1x4x128xbf16> to vector<4x128xbf16>
    %cst_19 = arith.constant dense<0.000000e+00> : vector<180x128xf32>
    %28 = tpu.matmul %25, %27, %cst_19 {dimension_numbers = #tpu.dot_dimension_numbers<[1], [0], [0], [1], [0, 0, 1, 1], [], []>} : vector<180x4xbf16>, vector<4x128xbf16>, vector<180x128xf32> -> vector<180x128xf32>
    %29 = arith.addf %23, %28 : vector<180x128xf32>
    %30 = vector.extract_strided_slice %4 {offsets = [1, 1, 0], sizes = [10, 18, 4], strides = [1, 1, 1]} : vector<12x20x4xbf16> to vector<10x18x4xbf16>
    %31 = vector.shape_cast %30 : vector<10x18x4xbf16> to vector<180x4xbf16>
    %c1_20 = arith.constant 1 : index
    %c1_21 = arith.constant 1 : index
    %c0_22 = arith.constant 0 : index
    %c0_23 = arith.constant 0 : index
    %32 = vector.load %arg3[%c1_20, %c1_21, %c0_22, %c0_23] : memref<3x3x4x128xbf16, #tpu.memory_space<vmem>>, vector<1x1x4x128xbf16>
    %33 = vector.shape_cast %32 : vector<1x1x4x128xbf16> to vector<4x128xbf16>
    %cst_24 = arith.constant dense<0.000000e+00> : vector<180x128xf32>
    %34 = tpu.matmul %31, %33, %cst_24 {dimension_numbers = #tpu.dot_dimension_numbers<[1], [0], [0], [1], [0, 0, 1, 1], [], []>} : vector<180x4xbf16>, vector<4x128xbf16>, vector<180x128xf32> -> vector<180x128xf32>
    %35 = arith.addf %29, %34 : vector<180x128xf32>
    %36 = vector.extract_strided_slice %4 {offsets = [1, 2, 0], sizes = [10, 18, 4], strides = [1, 1, 1]} : vector<12x20x4xbf16> to vector<10x18x4xbf16>
    %37 = vector.shape_cast %36 : vector<10x18x4xbf16> to vector<180x4xbf16>
    %c1_25 = arith.constant 1 : index
    %c2_26 = arith.constant 2 : index
    %c0_27 = arith.constant 0 : index
    %c0_28 = arith.constant 0 : index
    %38 = vector.load %arg3[%c1_25, %c2_26, %c0_27, %c0_28] : memref<3x3x4x128xbf16, #tpu.memory_space<vmem>>, vector<1x1x4x128xbf16>
    %39 = vector.shape_cast %38 : vector<1x1x4x128xbf16> to vector<4x128xbf16>
    %cst_29 = arith.constant dense<0.000000e+00> : vector<180x128xf32>
    %40 = tpu.matmul %37, %39, %cst_29 {dimension_numbers = #tpu.dot_dimension_numbers<[1], [0], [0], [1], [0, 0, 1, 1], [], []>} : vector<180x4xbf16>, vector<4x128xbf16>, vector<180x128xf32> -> vector<180x128xf32>
    %41 = arith.addf %35, %40 : vector<180x128xf32>
    %42 = vector.extract_strided_slice %4 {offsets = [2, 0, 0], sizes = [10, 18, 4], strides = [1, 1, 1]} : vector<12x20x4xbf16> to vector<10x18x4xbf16>
    %43 = vector.shape_cast %42 : vector<10x18x4xbf16> to vector<180x4xbf16>
    %c2_30 = arith.constant 2 : index
    %c0_31 = arith.constant 0 : index
    %c0_32 = arith.constant 0 : index
    %c0_33 = arith.constant 0 : index
    %44 = vector.load %arg3[%c2_30, %c0_31, %c0_32, %c0_33] : memref<3x3x4x128xbf16, #tpu.memory_space<vmem>>, vector<1x1x4x128xbf16>
    %45 = vector.shape_cast %44 : vector<1x1x4x128xbf16> to vector<4x128xbf16>
    %cst_34 = arith.constant dense<0.000000e+00> : vector<180x128xf32>
    %46 = tpu.matmul %43, %45, %cst_34 {dimension_numbers = #tpu.dot_dimension_numbers<[1], [0], [0], [1], [0, 0, 1, 1], [], []>} : vector<180x4xbf16>, vector<4x128xbf16>, vector<180x128xf32> -> vector<180x128xf32>
    %47 = arith.addf %41, %46 : vector<180x128xf32>
    %48 = vector.extract_strided_slice %4 {offsets = [2, 1, 0], sizes = [10, 18, 4], strides = [1, 1, 1]} : vector<12x20x4xbf16> to vector<10x18x4xbf16>
    %49 = vector.shape_cast %48 : vector<10x18x4xbf16> to vector<180x4xbf16>
    %c2_35 = arith.constant 2 : index
    %c1_36 = arith.constant 1 : index
    %c0_37 = arith.constant 0 : index
    %c0_38 = arith.constant 0 : index
    %50 = vector.load %arg3[%c2_35, %c1_36, %c0_37, %c0_38] : memref<3x3x4x128xbf16, #tpu.memory_space<vmem>>, vector<1x1x4x128xbf16>
    %51 = vector.shape_cast %50 : vector<1x1x4x128xbf16> to vector<4x128xbf16>
    %cst_39 = arith.constant dense<0.000000e+00> : vector<180x128xf32>
    %52 = tpu.matmul %49, %51, %cst_39 {dimension_numbers = #tpu.dot_dimension_numbers<[1], [0], [0], [1], [0, 0, 1, 1], [], []>} : vector<180x4xbf16>, vector<4x128xbf16>, vector<180x128xf32> -> vector<180x128xf32>
    %53 = arith.addf %47, %52 : vector<180x128xf32>
    %54 = vector.extract_strided_slice %4 {offsets = [2, 2, 0], sizes = [10, 18, 4], strides = [1, 1, 1]} : vector<12x20x4xbf16> to vector<10x18x4xbf16>
    %55 = vector.shape_cast %54 : vector<10x18x4xbf16> to vector<180x4xbf16>
    %c2_40 = arith.constant 2 : index
    %c2_41 = arith.constant 2 : index
    %c0_42 = arith.constant 0 : index
    %c0_43 = arith.constant 0 : index
    %56 = vector.load %arg3[%c2_40, %c2_41, %c0_42, %c0_43] : memref<3x3x4x128xbf16, #tpu.memory_space<vmem>>, vector<1x1x4x128xbf16>
    %57 = vector.shape_cast %56 : vector<1x1x4x128xbf16> to vector<4x128xbf16>
    %cst_44 = arith.constant dense<0.000000e+00> : vector<180x128xf32>
    %58 = tpu.matmul %55, %57, %cst_44 {dimension_numbers = #tpu.dot_dimension_numbers<[1], [0], [0], [1], [0, 0, 1, 1], [], []>} : vector<180x4xbf16>, vector<4x128xbf16>, vector<180x128xf32> -> vector<180x128xf32>
    %59 = arith.addf %53, %58 : vector<180x128xf32>
    %c0_45 = arith.constant 0 : index
    %c0_46 = arith.constant 0 : index
    %60 = vector.load %arg4[%c0_45, %c0_46] : memref<1x128xf32, #tpu.memory_space<vmem>>, vector<1x128xf32>
    %61 = vector.shape_cast %60 : vector<1x128xf32> to vector<128xf32>
    %62 = vector.shape_cast %61 : vector<128xf32> to vector<1x128xf32>
    %63 = vector.broadcast %62 : vector<1x128xf32> to vector<180x128xf32>
    %64 = arith.addf %59, %63 : vector<180x128xf32>
    %cst_47 = arith.constant 0.000000e+00 : f32
    %65 = vector.broadcast %cst_47 : f32 to vector<180x128xf32>
    %66 = arith.maximumf %64, %65 : vector<180x128xf32>
    %67 = vector.shape_cast %66 : vector<180x128xf32> to vector<10x18x128xf32>
    %68 = arith.truncf %67 : vector<10x18x128xf32> to vector<10x18x128xbf16>
    %c0_48 = arith.constant 0 : index
    %c0_49 = arith.constant 0 : index
    %c0_50 = arith.constant 0 : index
    %69 = vector.load %arg10[%c0_48, %c0_49, %c0_50] : memref<10x18x128xbf16, #tpu.memory_space<vmem>>, vector<10x18x128xbf16>
    tpu.vector_store %arg10[%c0_48, %c0_49, %c0_50], %68 {strides = array<i32>} : memref<10x18x128xbf16, #tpu.memory_space<vmem>>, vector<10x18x128xbf16>,
    %cst_51 = arith.constant 0.000000e+00 : bf16
    %70 = vector.broadcast %cst_51 : bf16 to vector<10x1x128xbf16>
    %c0_52 = arith.constant 0 : index
    %c0_53 = arith.constant 0 : index
    %c0_54 = arith.constant 0 : index
    %71 = vector.load %arg10[%c0_52, %c0_53, %c0_54] : memref<10x18x128xbf16, #tpu.memory_space<vmem>>, vector<10x1x128xbf16>
    tpu.vector_store %arg10[%c0_52, %c0_53, %c0_54], %70 {strides = array<i32>} : memref<10x18x128xbf16, #tpu.memory_space<vmem>>, vector<10x1x128xbf16>,
    %c0_55 = arith.constant 0 : index
    %c17 = arith.constant 17 : index
    %c0_56 = arith.constant 0 : index
    %72 = vector.load %arg10[%c0_55, %c17, %c0_56] : memref<10x18x128xbf16, #tpu.memory_space<vmem>>, vector<10x1x128xbf16>
    tpu.vector_store %arg10[%c0_55, %c17, %c0_56], %70 {strides = array<i32>} : memref<10x18x128xbf16, #tpu.memory_space<vmem>>, vector<10x1x128xbf16>,
    %c0_i32 = arith.constant 0 : i32
    %73 = arith.cmpi eq, %arg1, %c0_i32 : i32
    %74 = arith.extui %73 : i1 to i32
    %c0_i32_57 = arith.constant 0 : i32
    %75 = arith.cmpi ne, %74, %c0_i32_57 : i32
    scf.if %75 {
      %cst_87 = arith.constant 0.000000e+00 : bf16
      %122 = vector.broadcast %cst_87 : bf16 to vector<1x18x128xbf16>
      %c0_88 = arith.constant 0 : index
      %c0_89 = arith.constant 0 : index
      %c0_90 = arith.constant 0 : index
      %123 = vector.load %arg10[%c0_88, %c0_89, %c0_90] : memref<10x18x128xbf16, #tpu.memory_space<vmem>>, vector<1x18x128xbf16>
      tpu.vector_store %arg10[%c0_88, %c0_89, %c0_90], %122 {strides = array<i32>} : memref<10x18x128xbf16, #tpu.memory_space<vmem>>, vector<1x18x128xbf16>,
    } else {
    }
    %c1_i32 = arith.constant 1 : i32
    %76 = arith.cmpi eq, %arg1, %c1_i32 : i32
    %77 = arith.extui %76 : i1 to i32
    %c0_i32_58 = arith.constant 0 : i32
    %78 = arith.cmpi ne, %77, %c0_i32_58 : i32
    scf.if %78 {
      %cst_87 = arith.constant 0.000000e+00 : bf16
      %122 = vector.broadcast %cst_87 : bf16 to vector<1x18x128xbf16>
      %c9 = arith.constant 9 : index
      %c0_88 = arith.constant 0 : index
      %c0_89 = arith.constant 0 : index
      %123 = vector.load %arg10[%c9, %c0_88, %c0_89] : memref<10x18x128xbf16, #tpu.memory_space<vmem>>, vector<1x18x128xbf16>
      tpu.vector_store %arg10[%c9, %c0_88, %c0_89], %122 {strides = array<i32>} : memref<10x18x128xbf16, #tpu.memory_space<vmem>>, vector<1x18x128xbf16>,
    } else {
    }
    %c0_59 = arith.constant 0 : index
    %c0_60 = arith.constant 0 : index
    %c0_61 = arith.constant 0 : index
    %79 = vector.load %arg10[%c0_59, %c0_60, %c0_61] : memref<10x18x128xbf16, #tpu.memory_space<vmem>>, vector<10x18x128xbf16>
    %80 = vector.extract_strided_slice %79 {offsets = [0, 0, 0], sizes = [10, 16, 128], strides = [1, 1, 1]} : vector<10x18x128xbf16> to vector<10x16x128xbf16>
    %81 = vector.extract_strided_slice %79 {offsets = [0, 1, 0], sizes = [10, 16, 128], strides = [1, 1, 1]} : vector<10x18x128xbf16> to vector<10x16x128xbf16>
    %82 = vector.extract_strided_slice %79 {offsets = [0, 2, 0], sizes = [10, 16, 128], strides = [1, 1, 1]} : vector<10x18x128xbf16> to vector<10x16x128xbf16>
    %83 = tpu.concatenate %80, %81, %82 in 2 : vector<10x16x128xbf16>, vector<10x16x128xbf16>, vector<10x16x128xbf16> -> vector<10x16x384xbf16>
    %cst_62 = arith.constant 0.000000e+00 : f32
    %84 = vector.broadcast %cst_62 : f32 to vector<128x128xf32>
    %85 = vector.extract_strided_slice %83 {offsets = [0, 0, 0], sizes = [8, 16, 384], strides = [1, 1, 1]} : vector<10x16x384xbf16> to vector<8x16x384xbf16>
    %86 = vector.shape_cast %85 : vector<8x16x384xbf16> to vector<128x384xbf16>
    %c0_63 = arith.constant 0 : index
    %c0_64 = arith.constant 0 : index
    %c0_65 = arith.constant 0 : index
    %87 = vector.load %arg5[%c0_63, %c0_64, %c0_65] : memref<3x384x128xbf16, #tpu.memory_space<vmem>>, vector<1x384x128xbf16>
    %88 = vector.shape_cast %87 : vector<1x384x128xbf16> to vector<384x128xbf16>
    %cst_66 = arith.constant dense<0.000000e+00> : vector<128x128xf32>
    %89 = tpu.matmul %86, %88, %cst_66 {dimension_numbers = #tpu.dot_dimension_numbers<[1], [0], [0], [1], [0, 0, 1, 1], [], []>} : vector<128x384xbf16>, vector<384x128xbf16>, vector<128x128xf32> -> vector<128x128xf32>
    %90 = arith.addf %84, %89 : vector<128x128xf32>
    %91 = vector.extract_strided_slice %83 {offsets = [1, 0, 0], sizes = [8, 16, 384], strides = [1, 1, 1]} : vector<10x16x384xbf16> to vector<8x16x384xbf16>
    %92 = vector.shape_cast %91 : vector<8x16x384xbf16> to vector<128x384xbf16>
    %c1_67 = arith.constant 1 : index
    %c0_68 = arith.constant 0 : index
    %c0_69 = arith.constant 0 : index
    %93 = vector.load %arg5[%c1_67, %c0_68, %c0_69] : memref<3x384x128xbf16, #tpu.memory_space<vmem>>, vector<1x384x128xbf16>
    %94 = vector.shape_cast %93 : vector<1x384x128xbf16> to vector<384x128xbf16>
    %cst_70 = arith.constant dense<0.000000e+00> : vector<128x128xf32>
    %95 = tpu.matmul %92, %94, %cst_70 {dimension_numbers = #tpu.dot_dimension_numbers<[1], [0], [0], [1], [0, 0, 1, 1], [], []>} : vector<128x384xbf16>, vector<384x128xbf16>, vector<128x128xf32> -> vector<128x128xf32>
    %96 = arith.addf %90, %95 : vector<128x128xf32>
    %97 = vector.extract_strided_slice %83 {offsets = [2, 0, 0], sizes = [8, 16, 384], strides = [1, 1, 1]} : vector<10x16x384xbf16> to vector<8x16x384xbf16>
    %98 = vector.shape_cast %97 : vector<8x16x384xbf16> to vector<128x384xbf16>
    %c2_71 = arith.constant 2 : index
    %c0_72 = arith.constant 0 : index
    %c0_73 = arith.constant 0 : index
    %99 = vector.load %arg5[%c2_71, %c0_72, %c0_73] : memref<3x384x128xbf16, #tpu.memory_space<vmem>>, vector<1x384x128xbf16>
    %100 = vector.shape_cast %99 : vector<1x384x128xbf16> to vector<384x128xbf16>
    %cst_74 = arith.constant dense<0.000000e+00> : vector<128x128xf32>
    %101 = tpu.matmul %98, %100, %cst_74 {dimension_numbers = #tpu.dot_dimension_numbers<[1], [0], [0], [1], [0, 0, 1, 1], [], []>} : vector<128x384xbf16>, vector<384x128xbf16>, vector<128x128xf32> -> vector<128x128xf32>
    %102 = arith.addf %96, %101 : vector<128x128xf32>
    %c0_75 = arith.constant 0 : index
    %c0_76 = arith.constant 0 : index
    %103 = vector.load %arg6[%c0_75, %c0_76] : memref<1x128xf32, #tpu.memory_space<vmem>>, vector<1x128xf32>
    %104 = vector.shape_cast %103 : vector<1x128xf32> to vector<128xf32>
    %105 = vector.shape_cast %104 : vector<128xf32> to vector<1x128xf32>
    %106 = vector.broadcast %105 : vector<1x128xf32> to vector<128x128xf32>
    %107 = arith.addf %102, %106 : vector<128x128xf32>
    %108 = vector.extract_strided_slice %4 {offsets = [2, 2, 0], sizes = [8, 16, 4], strides = [1, 1, 1]} : vector<12x20x4xbf16> to vector<8x16x4xbf16>
    %109 = vector.shape_cast %108 : vector<8x16x4xbf16> to vector<128x4xbf16>
    %c0_77 = arith.constant 0 : index
    %c0_78 = arith.constant 0 : index
    %110 = vector.load %arg7[%c0_77, %c0_78] : memref<4x128xbf16, #tpu.memory_space<vmem>>, vector<4x128xbf16>
    %cst_79 = arith.constant dense<0.000000e+00> : vector<128x128xf32>
    %111 = tpu.matmul %109, %110, %cst_79 {dimension_numbers = #tpu.dot_dimension_numbers<[1], [0], [0], [1], [0, 0, 1, 1], [], []>} : vector<128x4xbf16>, vector<4x128xbf16>, vector<128x128xf32> -> vector<128x128xf32>
    %c0_80 = arith.constant 0 : index
    %c0_81 = arith.constant 0 : index
    %112 = vector.load %arg8[%c0_80, %c0_81] : memref<1x128xf32, #tpu.memory_space<vmem>>, vector<1x128xf32>
    %113 = vector.shape_cast %112 : vector<1x128xf32> to vector<128xf32>
    %114 = vector.shape_cast %113 : vector<128xf32> to vector<1x128xf32>
    %115 = vector.broadcast %114 : vector<1x128xf32> to vector<128x128xf32>
    %116 = arith.addf %111, %115 : vector<128x128xf32>
    %117 = arith.addf %107, %116 : vector<128x128xf32>
    %cst_82 = arith.constant 0.000000e+00 : f32
    %118 = vector.broadcast %cst_82 : f32 to vector<128x128xf32>
    %119 = arith.maximumf %117, %118 : vector<128x128xf32>
    %120 = vector.shape_cast %119 : vector<128x128xf32> to vector<1x8x16x128xf32>
    %c0_83 = arith.constant 0 : index
    %c0_84 = arith.constant 0 : index
    %c0_85 = arith.constant 0 : index
    %c0_86 = arith.constant 0 : index
    %121 = vector.load %arg9[%c0_83, %c0_84, %c0_85, %c0_86] : memref<1x8x16x128xf32, #tpu.memory_space<vmem>>, vector<1x8x16x128xf32>
    tpu.vector_store %arg9[%c0_83, %c0_84, %c0_85, %c0_86], %120 {strides = array<i32>} : memref<1x8x16x128xf32, #tpu.memory_space<vmem>>, vector<1x8x16x128xf32>,
    return
  }
  func.func @transform_0(%arg0: i32, %arg1: i32) -> (i32, i32, i32, i32) {
    %c0_i32 = arith.constant 0 : i32
    %c0_i32_0 = arith.constant 0 : i32
    %c0_i32_1 = arith.constant 0 : i32
    %c0_i32_2 = arith.constant 0 : i32
    return %arg0, %c0_i32, %c0_i32_0, %c0_i32_1 : i32, i32, i32, i32
  }
  func.func @transform_1(%arg0: i32, %arg1: i32) -> (i32, i32, i32, i32) {
    %c0_i32 = arith.constant 0 : i32
    %c0_i32_0 = arith.constant 0 : i32
    %c0_i32_1 = arith.constant 0 : i32
    %c0_i32_2 = arith.constant 0 : i32
    %c0_i32_3 = arith.constant 0 : i32
    return %c0_i32, %c0_i32_0, %c0_i32_1, %c0_i32_2 : i32, i32, i32, i32
  }
  func.func @transform_2(%arg0: i32, %arg1: i32) -> (i32, i32) {
    %c0_i32 = arith.constant 0 : i32
    %c0_i32_0 = arith.constant 0 : i32
    %c0_i32_1 = arith.constant 0 : i32
    return %c0_i32, %c0_i32_0 : i32, i32
  }
  func.func @transform_3(%arg0: i32, %arg1: i32) -> (i32, i32, i32) {
    %c0_i32 = arith.constant 0 : i32
    %c0_i32_0 = arith.constant 0 : i32
    %c0_i32_1 = arith.constant 0 : i32
    %c0_i32_2 = arith.constant 0 : i32
    return %c0_i32, %c0_i32_0, %c0_i32_1 : i32, i32, i32
  }
  func.func @transform_4(%arg0: i32, %arg1: i32) -> (i32, i32) {
    %c0_i32 = arith.constant 0 : i32
    %c0_i32_0 = arith.constant 0 : i32
    %c0_i32_1 = arith.constant 0 : i32
    return %c0_i32, %c0_i32_0 : i32, i32
  }
  func.func @transform_5(%arg0: i32, %arg1: i32) -> (i32, i32) {
    %c0_i32 = arith.constant 0 : i32
    %c0_i32_0 = arith.constant 0 : i32
    %c0_i32_1 = arith.constant 0 : i32
    return %c0_i32, %c0_i32_0 : i32, i32
  }
  func.func @transform_6(%arg0: i32, %arg1: i32) -> (i32, i32) {
    %c0_i32 = arith.constant 0 : i32
    %c0_i32_0 = arith.constant 0 : i32
    %c0_i32_1 = arith.constant 0 : i32
    return %c0_i32, %c0_i32_0 : i32, i32
  }
  func.func @transform_7(%arg0: i32, %arg1: i32) -> (i32, i32, i32, i32) {
    %c0_i32 = arith.constant 0 : i32
    %c0_i32_0 = arith.constant 0 : i32
    %c0_i32_1 = arith.constant 0 : i32
    return %arg0, %arg1, %c0_i32, %c0_i32_0 : i32, i32, i32, i32
  }
}

</mosaic_0001>

<llo_original>
// kernel: tpu_custom_call.1
$region0: #{tpu_custom_call.1}
  #allocation0 [shape = 'u32[]', space=smem, size = 0x4, offset = 0x4, fixed_abs, tag = 'smem constant byte address 0x4 - core index']
  #allocation1 [shape = 'u32[144,128]{1,0:T(1,128)}', space=vmem, size = 0x12000, scoped, tag = 'internal scratch']
  #allocation2 [shape = 'bf16[10,18,128]{2,1,0:T(8,128)(2,1)}', space=vmem, size = 0xf000, scoped, tag = 'scratch operand']
  %s0 = inlined_call_operand.vmem [shape: bf16[2,20,20,4], index: 0, kind: input, shape index: {}]
  %s1 = inlined_call_operand.vmem [shape: bf16[3,3,4,128], index: 1, kind: input, shape index: {}]
  %s2 = inlined_call_operand.vmem [shape: f32[1,128], index: 2, kind: input, shape index: {}]
  %s3 = inlined_call_operand.hbm [shape: bf16[3,384,128], index: 3, kind: input, shape index: {}]
  %s4 = inlined_call_operand.vmem [shape: f32[1,128], index: 4, kind: input, shape index: {}]
  %s5 = inlined_call_operand.vmem [shape: bf16[4,128], index: 5, kind: input, shape index: {}]
  %s6 = inlined_call_operand.vmem [shape: f32[1,128], index: 6, kind: input, shape index: {}]
  %s7 = inlined_call_operand.hbm [shape: f32[2,16,16,128], index: 7, kind: output, shape index: {}]
  %s8 = sld [smem:[#allocation0]]
  $region73: #{tpu_custom_call.1} parent=0
    _
  %s10 = ssub.s32 1, %s8
  %s11 = scalar_select 0, %s10, %s8
  $region1: #{tpu_custom_call.1} parent=0
    #allocation3 [shape = 'u8[294912]{0}', space=vmem, size = 0x48000, scoped, tag = 'input window, operand 3, single buffered']
    #allocation4 [shape = 's32[2]{0}', space=sflag, size = 0x8, scoped, tag = 'scoped memory for tpu_custom_call.1']
    #allocation5 [shape = 's32[2]{0}', space=sflag, size = 0x8, scoped, tag = 'scoped memory for tpu_custom_call.1']
    #allocation6 [shape = 'u8[131072]{0}', space=vmem, size = 0x20000, scoped, tag = 'output window, operand 0']
    %12 = vsyncpa [#allocation4], 0
    %13 = vsyncpa [#allocation5], 0
    %s14 = scalar_lea.sflag [#allocation5], 1
    %15 = vsyncpa %s14, 0
    loop: start=0, step=1, limit=6
    $region2: #{tpu_custom_call.1} parent=1 // loop_pre_header
      _
    $region3: #{tpu_custom_call.1} parent=1 // loop_header
      %s17 = sphi 0, %s21
      %p18 = scmp.ge.s32.totalorder %s17, 6
      %s24 = sphi 0, %s36
      %s25 = sphi 0, %s32
      %s26 = sphi 0, %s24
      %s27 = sphi 0, %s25
      %s28 = sphi 0, %s26
      %s29 = sphi 0, %s27
      %s39 = sphi 0, %s41
      %s42 = sphi 0, %s39
      %s43 = sphi 0, %s42
      %s59 = sphi 0, %s43
      %s63 = sphi 0, %s63
      %s65 = sphi 0, %s63
      %s66 = sphi 0, %s65
      %s80 = sphi 0, %s66
      %s84 = sphi 0, %s84
      %s86 = sphi 0, %s84
      %s87 = sphi 0, %s86
      %s101 = sphi 0, %s87
      %s105 = sphi 0, %s105
      %s107 = sphi 0, %s105
      %s108 = sphi 0, %s107
      %s122 = sphi 0, %s108
      %s126 = sphi 0, %s126
      %s128 = sphi 0, %s126
      %s129 = sphi 0, %s128
      %s143 = sphi 0, %s129
      %s147 = sphi 0, %s147
      %s149 = sphi 0, %s147
      %s150 = sphi 0, %s149
      %s164 = sphi 0, %s150
      %s168 = sphi 0, %s168
      %s170 = sphi 0, %s168
      %s171 = sphi 0, %s170
      %s185 = sphi 0, %s171
      %s193 = sphi 0, %s195
      %s196 = sphi 0, %s193
      %s197 = sphi 0, %s196
      %s213 = sphi 0, %s197
    $region4: #{tpu_custom_call.1} parent=1 // loop_header_branch
      %20 = sbr.rel (%p18) target = $region8
    $region5: #{tpu_custom_call.1} parent=1 // loop_body
      %s22 = ssub.s32 %s17, 1
      %s23 = ssub.s32 %s17, 2
      %s30 = sadd.s32 1, %s25
      %p31 = scmp.ge.s32.totalorder %s30, 2
      %s32 = scalar_select %p31, 0, %s30
      %s33 = sadd.s32 1, %s24
      %s34 = scalar_select %p31, %s33, %s24
      %p35 = scmp.ge.s32.totalorder %s34, 2
      %s36 = scalar_select %p35, 0, %s34
      %s37 = ssub.s32 %s24, %s36
      %p38 = scmp.eq.s32.totalorder %s37, 0
      %s40 = sadd.s32 %s39, 1
      %s41 = scalar_select %p38, %s39, %s40
      %p44 = pneg %p38
      %p45 = scmp.eq.s32.totalorder %s17, 3
      %p46 = por %p44, %p45
      %p47 = scmp.ne.s32.totalorder %s39, %s42
      %p48 = scmp.eq.s32.totalorder %s17, 0
      %p49 = por %p47, %p48
      %p50 = scmp.ne.s32.totalorder %s39, %s42
      %p51 = scmp.eq.s32.totalorder %s22, 3
      %p52 = por %p50, %p51
      %p53 = scmp.ne.s32.totalorder %s42, %s43
      %p54 = scmp.eq.s32.totalorder %s22, 0
      %p55 = por %p53, %p54
      %p56 = scmp.ne.s32.totalorder %s42, %s43
      %p57 = scmp.eq.s32.totalorder %s23, 3
      %p58 = por %p56, %p57
      %p60 = scmp.ne.s32.totalorder %s43, %s59
      %p61 = scmp.eq.s32.totalorder %s23, 0
      %p62 = por %p60, %p61
      %s64 = sadd.s32 %s63, 1
      %p67 = scmp.eq.s32.totalorder %s17, 3
      %p68 = scmp.ne.s32.totalorder %s63, %s65
      %p69 = scmp.eq.s32.totalorder %s17, 0
      %p70 = por %p68, %p69
      %p71 = scmp.ne.s32.totalorder %s63, %s65
      %p72 = scmp.eq.s32.totalorder %s22, 3
      %p73 = por %p71, %p72
      %p74 = scmp.ne.s32.totalorder %s65, %s66
      %p75 = scmp.eq.s32.totalorder %s22, 0
      %p76 = por %p74, %p75
      %p77 = scmp.ne.s32.totalorder %s65, %s66
      %p78 = scmp.eq.s32.totalorder %s23, 3
      %p79 = por %p77, %p78
      %p81 = scmp.ne.s32.totalorder %s66, %s80
      %p82 = scmp.eq.s32.totalorder %s23, 0
      %p83 = por %p81, %p82
      %s85 = sadd.s32 %s84, 1
      %p88 = scmp.eq.s32.totalorder %s17, 3
      %p89 = scmp.ne.s32.totalorder %s84, %s86
      %p90 = scmp.eq.s32.totalorder %s17, 0
      %p91 = por %p89, %p90
      %p92 = scmp.ne.s32.totalorder %s84, %s86
      %p93 = scmp.eq.s32.totalorder %s22, 3
      %p94 = por %p92, %p93
      %p95 = scmp.ne.s32.totalorder %s86, %s87
      %p96 = scmp.eq.s32.totalorder %s22, 0
      %p97 = por %p95, %p96
      %p98 = scmp.ne.s32.totalorder %s86, %s87
      %p99 = scmp.eq.s32.totalorder %s23, 3
      %p100 = por %p98, %p99
      %p102 = scmp.ne.s32.totalorder %s87, %s101
      %p103 = scmp.eq.s32.totalorder %s23, 0
      %p104 = por %p102, %p103
      %s106 = sadd.s32 %s105, 1
      %p109 = scmp.eq.s32.totalorder %s17, 3
      %p110 = scmp.ne.s32.totalorder %s105, %s107
      %p111 = scmp.eq.s32.totalorder %s17, 0
      %p112 = por %p110, %p111
      %p113 = scmp.ne.s32.totalorder %s105, %s107
      %p114 = scmp.eq.s32.totalorder %s22, 3
      %p115 = por %p113, %p114
      %p116 = scmp.ne.s32.totalorder %s107, %s108
      %p117 = scmp.eq.s32.totalorder %s22, 0
      %p118 = por %p116, %p117
      %p119 = scmp.ne.s32.totalorder %s107, %s108
      %p120 = scmp.eq.s32.totalorder %s23, 3
      %p121 = por %p119, %p120
      %p123 = scmp.ne.s32.totalorder %s108, %s122
      %p124 = scmp.eq.s32.totalorder %s23, 0
      %p125 = por %p123, %p124
      %s127 = sadd.s32 %s126, 1
      %p130 = scmp.eq.s32.totalorder %s17, 3
      %p131 = scmp.ne.s32.totalorder %s126, %s128
      %p132 = scmp.eq.s32.totalorder %s17, 0
      %p133 = por %p131, %p132
      %p134 = scmp.ne.s32.totalorder %s126, %s128
      %p135 = scmp.eq.s32.totalorder %s22, 3
      %p136 = por %p134, %p135
      %p137 = scmp.ne.s32.totalorder %s128, %s129
      %p138 = scmp.eq.s32.totalorder %s22, 0
      %p139 = por %p137, %p138
      %p140 = scmp.ne.s32.totalorder %s128, %s129
      %p141 = scmp.eq.s32.totalorder %s23, 3
      %p142 = por %p140, %p141
      %p144 = scmp.ne.s32.totalorder %s129, %s143
      %p145 = scmp.eq.s32.totalorder %s23, 0
      %p146 = por %p144, %p145
      %s148 = sadd.s32 %s147, 1
      %p151 = scmp.eq.s32.totalorder %s17, 3
      %p152 = scmp.ne.s32.totalorder %s147, %s149
      %p153 = scmp.eq.s32.totalorder %s17, 0
      %p154 = por %p152, %p153
      %p155 = scmp.ne.s32.totalorder %s147, %s149
      %p156 = scmp.eq.s32.totalorder %s22, 3
      %p157 = por %p155, %p156
      %p158 = scmp.ne.s32.totalorder %s149, %s150
      %p159 = scmp.eq.s32.totalorder %s22, 0
      %p160 = por %p158, %p159
      %p161 = scmp.ne.s32.totalorder %s149, %s150
      %p162 = scmp.eq.s32.totalorder %s23, 3
      %p163 = por %p161, %p162
      %p165 = scmp.ne.s32.totalorder %s150, %s164
      %p166 = scmp.eq.s32.totalorder %s23, 0
      %p167 = por %p165, %p166
      %s169 = sadd.s32 %s168, 1
      %p172 = scmp.eq.s32.totalorder %s17, 3
      %p173 = scmp.ne.s32.totalorder %s168, %s170
      %p174 = scmp.eq.s32.totalorder %s17, 0
      %p175 = por %p173, %p174
      %p176 = scmp.ne.s32.totalorder %s168, %s170
      %p177 = scmp.eq.s32.totalorder %s22, 3
      %p178 = por %p176, %p177
      %p179 = scmp.ne.s32.totalorder %s170, %s171
      %p180 = scmp.eq.s32.totalorder %s22, 0
      %p181 = por %p179, %p180
      %p182 = scmp.ne.s32.totalorder %s170, %s171
      %p183 = scmp.eq.s32.totalorder %s23, 3
      %p184 = por %p182, %p183
      %p186 = scmp.ne.s32.totalorder %s171, %s185
      %p187 = scmp.eq.s32.totalorder %s23, 0
      %p188 = por %p186, %p187
      %s189 = ssub.s32 %s24, %s36
      %s190 = ssub.s32 %s25, %s32
      %s191 = sor.u32 %s189, %s190
      %p192 = scmp.eq.s32.totalorder %s191, 0
      %s194 = sadd.s32 %s193, 1
      %s195 = scalar_select %p192, %s193, %s194
      %p198 = pneg %p192
      %p199 = scmp.eq.s32.totalorder %s17, 3
      %p200 = por %p198, %p199
      %p201 = scmp.ne.s32.totalorder %s193, %s196
      %p202 = scmp.eq.s32.totalorder %s17, 0
      %p203 = por %p201, %p202
      %p204 = scmp.ne.s32.totalorder %s193, %s196
      %p205 = scmp.eq.s32.totalorder %s22, 3
      %p206 = por %p204, %p205
      %p207 = scmp.ne.s32.totalorder %s196, %s197
      %p208 = scmp.eq.s32.totalorder %s22, 0
      %p209 = por %p207, %p208
      %p210 = scmp.ne.s32.totalorder %s196, %s197
      %p211 = scmp.eq.s32.totalorder %s23, 3
      %p212 = por %p210, %p211
      %p214 = scmp.ne.s32.totalorder %s197, %s213
      %p215 = scmp.eq.s32.totalorder %s23, 0
      %p216 = por %p214, %p215
      %p217 = scmp.le.s32.totalorder 1, %s17
      %p218 = scmp.lt.s32.totalorder %s17, 5
      %p219 = pnand %p217, %p218
      %p220 = pneg %p219
      // Predicated region
      $region9: #{tpu_custom_call.1} parent=5 // pred_check
        _
      $region10: #{tpu_custom_call.1} parent=5 // pred_check_branch
        %222 = sbr.rel (%p219) target = $region12
      $region11: #{tpu_custom_call.1} parent=5 // pred_region
        %s223 = ssub.s32 %s17, 1
        // Predicated region
        $region13: #{tpu_custom_call.1} parent=11 // pred_check
          %p224 = pneg %p76
        $region14: #{tpu_custom_call.1} parent=11 // pred_check_branch
          %226 = sbr.rel (%p224) target = $region16
        $region15: #{tpu_custom_call.1} parent=11 // pred_region
          _
        $region16: #{tpu_custom_call.1} parent=11 // pred_fallthru
          _
        // Predicated region
        $region17: #{tpu_custom_call.1} parent=11 // pred_check
          %p227 = pneg %p97
        $region18: #{tpu_custom_call.1} parent=11 // pred_check_branch
          %229 = sbr.rel (%p227) target = $region20
        $region19: #{tpu_custom_call.1} parent=11 // pred_region
          _
        $region20: #{tpu_custom_call.1} parent=11 // pred_fallthru
          _
        // Predicated region
        $region21: #{tpu_custom_call.1} parent=11 // pred_check
          %p230 = pneg %p118
        $region22: #{tpu_custom_call.1} parent=11 // pred_check_branch
          %232 = sbr.rel (%p230) target = $region24
        $region23: #{tpu_custom_call.1} parent=11 // pred_region
          %s234 = ssub.s32 9216, 9216
          %235 = vsyncadd [#allocation4], %s234
          %s236 = sshll.u32 [#allocation3], 4
          %s237 = int_to_ptr.vmem [resolvable:$true] %s236
          %242 = dma.hbm_to_vmem [thread:$0]  %s3, 9216, %s237, [#allocation4], 64, 64, 4
        $region24: #{tpu_custom_call.1} parent=11 // pred_fallthru
          _
        // Predicated region
        $region25: #{tpu_custom_call.1} parent=11 // pred_check
          %p243 = pneg %p139
        $region26: #{tpu_custom_call.1} parent=11 // pred_check_branch
          %245 = sbr.rel (%p243) target = $region28
        $region27: #{tpu_custom_call.1} parent=11 // pred_region
          _
        $region28: #{tpu_custom_call.1} parent=11 // pred_fallthru
          _
        // Predicated region
        $region29: #{tpu_custom_call.1} parent=11 // pred_check
          %p246 = pneg %p160
        $region30: #{tpu_custom_call.1} parent=11 // pred_check_branch
          %248 = sbr.rel (%p246) target = $region32
        $region31: #{tpu_custom_call.1} parent=11 // pred_region
          _
        $region32: #{tpu_custom_call.1} parent=11 // pred_fallthru
          _
        // Predicated region
        $region33: #{tpu_custom_call.1} parent=11 // pred_check
          %p249 = pneg %p181
        $region34: #{tpu_custom_call.1} parent=11 // pred_check_branch
          %251 = sbr.rel (%p249) target = $region36
        $region35: #{tpu_custom_call.1} parent=11 // pred_region
          _
        $region36: #{tpu_custom_call.1} parent=11 // pred_fallthru
          _
      $region12: #{tpu_custom_call.1} parent=5 // pred_fallthru
        _
      %p252 = scmp.lt.s32.totalorder %s17, 4
      // Predicated region
      $region37: #{tpu_custom_call.1} parent=5 // pred_check
        %p253 = pneg %p252
      $region38: #{tpu_custom_call.1} parent=5 // pred_check_branch
        %255 = sbr.rel (%p253) target = $region40
      $region39: #{tpu_custom_call.1} parent=5 // pred_region
        // Predicated region
        $region41: #{tpu_custom_call.1} parent=39 // pred_check
          %p256 = pneg %p49
        $region42: #{tpu_custom_call.1} parent=39 // pred_check_branch
          %258 = sbr.rel (%p256) target = $region44
        $region43: #{tpu_custom_call.1} parent=39 // pred_region
          %p259 = scmp.lt.s32.totalorder %s24, 1
          %s260 = scalar_select %p259, %s24, 1
          %s261 = smul.addr %s260, 60
          %s262 = smul.addr %s261, 4
          %s263 = scalar_lea.vmem %s0, %s262
        $region44: #{tpu_custom_call.1} parent=39 // pred_fallthru
          _
      $region40: #{tpu_custom_call.1} parent=5 // pred_fallthru
        _
      %p264 = scmp.le.s32.totalorder 1, %s17
      %p265 = scmp.lt.s32.totalorder %s17, 5
      %p266 = pnand %p264, %p265
      %p267 = pneg %p266
      // Predicated region
      $region45: #{tpu_custom_call.1} parent=5 // pred_check
        _
      $region46: #{tpu_custom_call.1} parent=5 // pred_check_branch
        %269 = sbr.rel (%p266) target = $region48
      $region47: #{tpu_custom_call.1} parent=5 // pred_region
        %s270 = ssub.s32 %s17, 1
        // Predicated region
        $region49: #{tpu_custom_call.1} parent=47 // pred_check
          %p271 = pneg %p118
        $region50: #{tpu_custom_call.1} parent=47 // pred_check_branch
          %273 = sbr.rel (%p271) target = $region52
        $region51: #{tpu_custom_call.1} parent=47 // pred_region
          %274 = dma.done [#allocation4], 9216
        $region52: #{tpu_custom_call.1} parent=47 // pred_fallthru
          _
        %p275 = scmp.lt.s32.totalorder %s26, 1
        %s276 = scalar_select %p275, %s26, 1
        %s277 = smul.addr %s276, 60
        %s278 = smul.addr %s277, 4
        %s279 = scalar_lea.vmem %s0, %s278
        %p280 = pneg %p55
        %p281 = pneg %p52
        %p282 = pneg %p76
        %p283 = pneg %p73
        %p284 = pneg %p97
        %p285 = pneg %p94
        %p286 = pneg %p118
        %p287 = pneg %p115
        %p288 = pneg %p139
        %p289 = pneg %p136
        %p290 = pneg %p160
        %p291 = pneg %p157
        %p292 = pneg %p181
        %p293 = pneg %p178
        %p294 = pneg %p209
        %p295 = pneg %p206
        %s296 = sand.u32 %s196, 1
        %s297 = scalar_lea.sflag [#allocation5], %s296
        %s298 = sand.u32 %s196, 1
        %s299 = smul.addr %s298, 128
        %s300 = scalar_lea.vmem [#allocation6], %s299
        %p301 = scmp.lt.s32.totalorder %s26, 1
        %s302 = scalar_select %p301, %s26, 1
        %s303 = smul.addr %s302, 60
        %s304 = smul.addr %s303, 4
        %s305 = scalar_lea.vmem %s0, %s304
        %s306 = smul.u32 8, %s27
        %s308 = smul.u32 %s27, 8
        %s309 = smul.u32 %s308, 3
        %s310 = smul.addr %s309, 4
        %s311 = scalar_lea.vmem %s305, %s310
        %v312 = vld [vmem:[%s311] sm:$0xf]
        %v313 = vld [vmem:[%s311 + $0x4] sm:$0xf]
        %v314 = vld [vmem:[%s311 + $0x8] sm:$0x3]
        %v315 = vld [vmem:[%s311 + $0xc] sm:$0xf]
        %v316 = vld [vmem:[%s311 + $0x10] sm:$0xf]
        %v317 = vld [vmem:[%s311 + $0x14] sm:$0x3]
        %v318 = vld [vmem:[%s311 + $0x18] sm:$0xf]
        %v319 = vld [vmem:[%s311 + $0x1c] sm:$0xf]
        %v320 = vld [vmem:[%s311 + $0x20] sm:$0x3]
        %v321 = vld [vmem:[%s311 + $0x24] sm:$0xf]
        %v322 = vld [vmem:[%s311 + $0x28] sm:$0xf]
        %v323 = vld [vmem:[%s311 + $0x2c] sm:$0x3]
        %v324 = vld [vmem:[%s311 + $0x30] sm:$0xf]
        %v325 = vld [vmem:[%s311 + $0x34] sm:$0xf]
        %v326 = vld [vmem:[%s311 + $0x38] sm:$0x3]
        %v327 = vld [vmem:[%s311 + $0x3c] sm:$0xf]
        %v328 = vld [vmem:[%s311 + $0x40] sm:$0xf]
        %v329 = vld [vmem:[%s311 + $0x44] sm:$0x3]
        %v330 = vld [vmem:[%s311 + $0x48] sm:$0xf]
        %v331 = vld [vmem:[%s311 + $0x4c] sm:$0xf]
        %v332 = vld [vmem:[%s311 + $0x50] sm:$0x3]
        %v333 = vld [vmem:[%s311 + $0x54] sm:$0xf]
        %v334 = vld [vmem:[%s311 + $0x58] sm:$0xf]
        %v335 = vld [vmem:[%s311 + $0x5c] sm:$0x3]
        %v336 = vld [vmem:[%s311 + $0x60] sm:$0xf]
        %v337 = vld [vmem:[%s311 + $0x64] sm:$0xf]
        %v338 = vld [vmem:[%s311 + $0x68] sm:$0x3]
        %v339 = vld [vmem:[%s311 + $0x6c] sm:$0xf]
        %v340 = vld [vmem:[%s311 + $0x70] sm:$0xf]
        %v341 = vld [vmem:[%s311 + $0x74] sm:$0x3]
        %v342 = vld [vmem:[%s311 + $0x78] sm:$0xf]
        %v343 = vld [vmem:[%s311 + $0x7c] sm:$0xf]
        %v344 = vld [vmem:[%s311 + $0x80] sm:$0x3]
        %v345 = vld [vmem:[%s311 + $0x84] sm:$0xf]
        %v346 = vld [vmem:[%s311 + $0x88] sm:$0xf]
        %v347 = vld [vmem:[%s311 + $0x8c] sm:$0x3]
        %v379 = vunpack.c.l.s4 1966171168
        %v380 = vunpack.c.0.s8 %v379
        %v381 = vlaneseq
        %v382 = vshrl.u32 %v381, 7
        %v383 = vsub.s32 %v380, %v382
        %v384 = vrot.slane %v312, %v383
        %v385 = vcombine.high %v384, %v384
        %v387 = vunpack.c.l.s4 1966171168
        %v388 = vunpack.c.0.s8 %v387
        %v389 = vlaneseq
        %v390 = vshrl.u32 %v389, 7
        %v391 = vsub.s32 %v388, %v390
        %v392 = vrot.slane %v384, %v391
        %v394 = vunpack.c.l.s4 1966171168
        %v395 = vunpack.c.0.s8 %v394
        %v396 = vlaneseq
        %v397 = vshrl.u32 %v396, 7
        %v398 = vsub.s32 %v395, %v397
        %v399 = vrot.slane %v385, %v398
        %v400 = vcombine.high %v392, %v392
        %v401 = vcombine.high %v399, %v399
        %v403 = vunpack.c.l.s4 1966171168
        %v404 = vunpack.c.0.s8 %v403
        %v405 = vlaneseq
        %v406 = vshrl.u32 %v405, 7
        %v407 = vsub.s32 %v404, %v406
        %v408 = vrot.slane %v313, %v407
        %v409 = vcombine.high %v408, %v408
        %v411 = vunpack.c.l.s4 1966171168
        %v412 = vunpack.c.0.s8 %v411
        %v413 = vlaneseq
        %v414 = vshrl.u32 %v413, 7
        %v415 = vsub.s32 %v412, %v414
        %v416 = vrot.slane %v408, %v415
        %v418 = vunpack.c.l.s4 1966171168
        %v419 = vunpack.c.0.s8 %v418
        %v420 = vlaneseq
        %v421 = vshrl.u32 %v420, 7
        %v422 = vsub.s32 %v419, %v421
        %v423 = vrot.slane %v409, %v422
        %v424 = vcombine.high %v416, %v416
        %v425 = vcombine.high %v423, %v423
        %v427 = vunpack.c.l.s4 1966171168
        %v428 = vunpack.c.0.s8 %v427
        %v429 = vlaneseq
        %v430 = vshrl.u32 %v429, 7
        %v431 = vsub.s32 %v428, %v430
        %v432 = vrot.slane %v314, %v431
        %v434 = vunpack.c.l.s4 1966171168
        %v435 = vunpack.c.0.s8 %v434
        %v436 = vlaneseq
        %v437 = vshrl.u32 %v436, 7
        %v438 = vsub.s32 %v435, %v437
        %v439 = vrot.slane %v432, %v438
        %v441 = vunpack.c.l.s4 1966171168
        %v442 = vunpack.c.0.s8 %v441
        %v443 = vlaneseq
        %v444 = vshrl.u32 %v443, 7
        %v445 = vsub.s32 %v442, %v444
        %v446 = vrot.slane %v315, %v445
        %v447 = vcombine.high %v446, %v446
        %v449 = vunpack.c.l.s4 1966171168
        %v450 = vunpack.c.0.s8 %v449
        %v451 = vlaneseq
        %v452 = vshrl.u32 %v451, 7
        %v453 = vsub.s32 %v450, %v452
        %v454 = vrot.slane %v446, %v453
        %v456 = vunpack.c.l.s4 1966171168
        %v457 = vunpack.c.0.s8 %v456
        %v458 = vlaneseq
        %v459 = vshrl.u32 %v458, 7
        %v460 = vsub.s32 %v457, %v459
        %v461 = vrot.slane %v447, %v460
        %v462 = vcombine.high %v454, %v454
        %v463 = vcombine.high %v461, %v461
        %v465 = vunpack.c.l.s4 1966171168
        %v466 = vunpack.c.0.s8 %v465
        %v467 = vlaneseq
        %v468 = vshrl.u32 %v467, 7
        %v469 = vsub.s32 %v466, %v468
        %v470 = vrot.slane %v316, %v469
        %v471 = vcombine.high %v470, %v470
        %v473 = vunpack.c.l.s4 1966171168
        %v474 = vunpack.c.0.s8 %v473
        %v475 = vlaneseq
        %v476 = vshrl.u32 %v475, 7
        %v477 = vsub.s32 %v474, %v476
        %v478 = vrot.slane %v470, %v477
        %v480 = vunpack.c.l.s4 1966171168
        %v481 = vunpack.c.0.s8 %v480
        %v482 = vlaneseq
        %v483 = vshrl.u32 %v482, 7
        %v484 = vsub.s32 %v481, %v483
        %v485 = vrot.slane %v471, %v484
        %v486 = vcombine.high %v478, %v478
        %v487 = vcombine.high %v485, %v485
        %v489 = vunpack.c.l.s4 1966171168
        %v490 = vunpack.c.0.s8 %v489
        %v491 = vlaneseq
        %v492 = vshrl.u32 %v491, 7
        %v493 = vsub.s32 %v490, %v492
        %v494 = vrot.slane %v317, %v493
        %v496 = vunpack.c.l.s4 1966171168
        %v497 = vunpack.c.0.s8 %v496
        %v498 = vlaneseq
        %v499 = vshrl.u32 %v498, 7
        %v500 = vsub.s32 %v497, %v499
        %v501 = vrot.slane %v494, %v500
        %v503 = vunpack.c.l.s4 1966171168
        %v504 = vunpack.c.0.s8 %v503
        %v505 = vlaneseq
        %v506 = vshrl.u32 %v505, 7
        %v507 = vsub.s32 %v504, %v506
        %v508 = vrot.slane %v318, %v507
        %v509 = vcombine.high %v508, %v508
        %v511 = vunpack.c.l.s4 1966171168
        %v512 = vunpack.c.0.s8 %v511
        %v513 = vlaneseq
        %v514 = vshrl.u32 %v513, 7
        %v515 = vsub.s32 %v512, %v514
        %v516 = vrot.slane %v508, %v515
        %v518 = vunpack.c.l.s4 1966171168
        %v519 = vunpack.c.0.s8 %v518
        %v520 = vlaneseq
        %v521 = vshrl.u32 %v520, 7
        %v522 = vsub.s32 %v519, %v521
        %v523 = vrot.slane %v509, %v522
        %v524 = vcombine.high %v516, %v516
        %v525 = vcombine.high %v523, %v523
        %v527 = vunpack.c.l.s4 1966171168
        %v528 = vunpack.c.0.s8 %v527
        %v529 = vlaneseq
        %v530 = vshrl.u32 %v529, 7
        %v531 = vsub.s32 %v528, %v530
        %v532 = vrot.slane %v319, %v531
        %v533 = vcombine.high %v532, %v532
        %v535 = vunpack.c.l.s4 1966171168
        %v536 = vunpack.c.0.s8 %v535
        %v537 = vlaneseq
        %v538 = vshrl.u32 %v537, 7
        %v539 = vsub.s32 %v536, %v538
        %v540 = vrot.slane %v532, %v539
        %v542 = vunpack.c.l.s4 1966171168
        %v543 = vunpack.c.0.s8 %v542
        %v544 = vlaneseq
        %v545 = vshrl.u32 %v544, 7
        %v546 = vsub.s32 %v543, %v545
        %v547 = vrot.slane %v533, %v546
        %v548 = vcombine.high %v540, %v540
        %v549 = vcombine.high %v547, %v547
        %v551 = vunpack.c.l.s4 1966171168
        %v552 = vunpack.c.0.s8 %v551
        %v553 = vlaneseq
        %v554 = vshrl.u32 %v553, 7
        %v555 = vsub.s32 %v552, %v554
        %v556 = vrot.slane %v320, %v555
        %v558 = vunpack.c.l.s4 1966171168
        %v559 = vunpack.c.0.s8 %v558
        %v560 = vlaneseq
        %v561 = vshrl.u32 %v560, 7
        %v562 = vsub.s32 %v559, %v561
        %v563 = vrot.slane %v556, %v562
        %v565 = vunpack.c.l.s4 1966171168
        %v566 = vunpack.c.0.s8 %v565
        %v567 = vlaneseq
        %v568 = vshrl.u32 %v567, 7
        %v569 = vsub.s32 %v566, %v568
        %v570 = vrot.slane %v321, %v569
        %v571 = vcombine.high %v570, %v570
        %v573 = vunpack.c.l.s4 1966171168
        %v574 = vunpack.c.0.s8 %v573
        %v575 = vlaneseq
        %v576 = vshrl.u32 %v575, 7
        %v577 = vsub.s32 %v574, %v576
        %v578 = vrot.slane %v570, %v577
        %v580 = vunpack.c.l.s4 1966171168
        %v581 = vunpack.c.0.s8 %v580
        %v582 = vlaneseq
        %v583 = vshrl.u32 %v582, 7
        %v584 = vsub.s32 %v581, %v583
        %v585 = vrot.slane %v571, %v584
        %v586 = vcombine.high %v578, %v578
        %v587 = vcombine.high %v585, %v585
        %v589 = vunpack.c.l.s4 1966171168
        %v590 = vunpack.c.0.s8 %v589
        %v591 = vlaneseq
        %v592 = vshrl.u32 %v591, 7
        %v593 = vsub.s32 %v590, %v592
        %v594 = vrot.slane %v322, %v593
        %v595 = vcombine.high %v594, %v594
        %v597 = vunpack.c.l.s4 1966171168
        %v598 = vunpack.c.0.s8 %v597
        %v599 = vlaneseq
        %v600 = vshrl.u32 %v599, 7
        %v601 = vsub.s32 %v598, %v600
        %v602 = vrot.slane %v594, %v601
        %v604 = vunpack.c.l.s4 1966171168
        %v605 = vunpack.c.0.s8 %v604
        %v606 = vlaneseq
        %v607 = vshrl.u32 %v606, 7
        %v608 = vsub.s32 %v605, %v607
        %v609 = vrot.slane %v595, %v608
        %v610 = vcombine.high %v602, %v602
        %v611 = vcombine.high %v609, %v609
        %v613 = vunpack.c.l.s4 1966171168
        %v614 = vunpack.c.0.s8 %v613
        %v615 = vlaneseq
        %v616 = vshrl.u32 %v615, 7
        %v617 = vsub.s32 %v614, %v616
        %v618 = vrot.slane %v323, %v617
        %v620 = vunpack.c.l.s4 1966171168
        %v621 = vunpack.c.0.s8 %v620
        %v622 = vlaneseq
        %v623 = vshrl.u32 %v622, 7
        %v624 = vsub.s32 %v621, %v623
        %v625 = vrot.slane %v618, %v624
        %v627 = vunpack.c.l.s4 1966171168
        %v628 = vunpack.c.0.s8 %v627
        %v629 = vlaneseq
        %v630 = vshrl.u32 %v629, 7
        %v631 = vsub.s32 %v628, %v630
        %v632 = vrot.slane %v324, %v631
        %v633 = vcombine.high %v632, %v632
        %v635 = vunpack.c.l.s4 1966171168
        %v636 = vunpack.c.0.s8 %v635
        %v637 = vlaneseq
        %v638 = vshrl.u32 %v637, 7
        %v639 = vsub.s32 %v636, %v638
        %v640 = vrot.slane %v632, %v639
        %v642 = vunpack.c.l.s4 1966171168
        %v643 = vunpack.c.0.s8 %v642
        %v644 = vlaneseq
        %v645 = vshrl.u32 %v644, 7
        %v646 = vsub.s32 %v643, %v645
        %v647 = vrot.slane %v633, %v646
        %v648 = vcombine.high %v640, %v640
        %v649 = vcombine.high %v647, %v647
        %v651 = vunpack.c.l.s4 1966171168
        %v652 = vunpack.c.0.s8 %v651
        %v653 = vlaneseq
        %v654 = vshrl.u32 %v653, 7
        %v655 = vsub.s32 %v652, %v654
        %v656 = vrot.slane %v325, %v655
        %v657 = vcombine.high %v656, %v656
        %v659 = vunpack.c.l.s4 1966171168
        %v660 = vunpack.c.0.s8 %v659
        %v661 = vlaneseq
        %v662 = vshrl.u32 %v661, 7
        %v663 = vsub.s32 %v660, %v662
        %v664 = vrot.slane %v656, %v663
        %v666 = vunpack.c.l.s4 1966171168
        %v667 = vunpack.c.0.s8 %v666
        %v668 = vlaneseq
        %v669 = vshrl.u32 %v668, 7
        %v670 = vsub.s32 %v667, %v669
        %v671 = vrot.slane %v657, %v670
        %v672 = vcombine.high %v664, %v664
        %v673 = vcombine.high %v671, %v671
        %v675 = vunpack.c.l.s4 1966171168
        %v676 = vunpack.c.0.s8 %v675
        %v677 = vlaneseq
        %v678 = vshrl.u32 %v677, 7
        %v679 = vsub.s32 %v676, %v678
        %v680 = vrot.slane %v326, %v679
        %v682 = vunpack.c.l.s4 1966171168
        %v683 = vunpack.c.0.s8 %v682
        %v684 = vlaneseq
        %v685 = vshrl.u32 %v684, 7
        %v686 = vsub.s32 %v683, %v685
        %v687 = vrot.slane %v680, %v686
        %v689 = vunpack.c.l.s4 1966171168
        %v690 = vunpack.c.0.s8 %v689
        %v691 = vlaneseq
        %v692 = vshrl.u32 %v691, 7
        %v693 = vsub.s32 %v690, %v692
        %v694 = vrot.slane %v327, %v693
        %v695 = vcombine.high %v694, %v694
        %v697 = vunpack.c.l.s4 1966171168
        %v698 = vunpack.c.0.s8 %v697
        %v699 = vlaneseq
        %v700 = vshrl.u32 %v699, 7
        %v701 = vsub.s32 %v698, %v700
        %v702 = vrot.slane %v694, %v701
        %v704 = vunpack.c.l.s4 1966171168
        %v705 = vunpack.c.0.s8 %v704
        %v706 = vlaneseq
        %v707 = vshrl.u32 %v706, 7
        %v708 = vsub.s32 %v705, %v707
        %v709 = vrot.slane %v695, %v708
        %v710 = vcombine.high %v702, %v702
        %v711 = vcombine.high %v709, %v709
        %v713 = vunpack.c.l.s4 1966171168
        %v714 = vunpack.c.0.s8 %v713
        %v715 = vlaneseq
        %v716 = vshrl.u32 %v715, 7
        %v717 = vsub.s32 %v714, %v716
        %v718 = vrot.slane %v328, %v717
        %v719 = vcombine.high %v718, %v718
        %v721 = vunpack.c.l.s4 1966171168
        %v722 = vunpack.c.0.s8 %v721
        %v723 = vlaneseq
        %v724 = vshrl.u32 %v723, 7
        %v725 = vsub.s32 %v722, %v724
        %v726 = vrot.slane %v718, %v725
        %v728 = vunpack.c.l.s4 1966171168
        %v729 = vunpack.c.0.s8 %v728
        %v730 = vlaneseq
        %v731 = vshrl.u32 %v730, 7
        %v732 = vsub.s32 %v729, %v731
        %v733 = vrot.slane %v719, %v732
        %v734 = vcombine.high %v726, %v726
        %v735 = vcombine.high %v733, %v733
        %v737 = vunpack.c.l.s4 1966171168
        %v738 = vunpack.c.0.s8 %v737
        %v739 = vlaneseq
        %v740 = vshrl.u32 %v739, 7
        %v741 = vsub.s32 %v738, %v740
        %v742 = vrot.slane %v329, %v741
        %v744 = vunpack.c.l.s4 1966171168
        %v745 = vunpack.c.0.s8 %v744
        %v746 = vlaneseq
        %v747 = vshrl.u32 %v746, 7
        %v748 = vsub.s32 %v745, %v747
        %v749 = vrot.slane %v742, %v748
        %v751 = vunpack.c.l.s4 1966171168
        %v752 = vunpack.c.0.s8 %v751
        %v753 = vlaneseq
        %v754 = vshrl.u32 %v753, 7
        %v755 = vsub.s32 %v752, %v754
        %v756 = vrot.slane %v330, %v755
        %v757 = vcombine.high %v756, %v756
        %v759 = vunpack.c.l.s4 1966171168
        %v760 = vunpack.c.0.s8 %v759
        %v761 = vlaneseq
        %v762 = vshrl.u32 %v761, 7
        %v763 = vsub.s32 %v760, %v762
        %v764 = vrot.slane %v756, %v763
        %v766 = vunpack.c.l.s4 1966171168
        %v767 = vunpack.c.0.s8 %v766
        %v768 = vlaneseq
        %v769 = vshrl.u32 %v768, 7
        %v770 = vsub.s32 %v767, %v769
        %v771 = vrot.slane %v757, %v770
        %v772 = vcombine.high %v764, %v764
        %v773 = vcombine.high %v771, %v771
        %v775 = vunpack.c.l.s4 1966171168
        %v776 = vunpack.c.0.s8 %v775
        %v777 = vlaneseq
        %v778 = vshrl.u32 %v777, 7
        %v779 = vsub.s32 %v776, %v778
        %v780 = vrot.slane %v331, %v779
        %v781 = vcombine.high %v780, %v780
        %v783 = vunpack.c.l.s4 1966171168
        %v784 = vunpack.c.0.s8 %v783
        %v785 = vlaneseq
        %v786 = vshrl.u32 %v785, 7
        %v787 = vsub.s32 %v784, %v786
        %v788 = vrot.slane %v780, %v787
        %v790 = vunpack.c.l.s4 1966171168
        %v791 = vunpack.c.0.s8 %v790
        %v792 = vlaneseq
        %v793 = vshrl.u32 %v792, 7
        %v794 = vsub.s32 %v791, %v793
        %v795 = vrot.slane %v781, %v794
        %v796 = vcombine.high %v788, %v788
        %v797 = vcombine.high %v795, %v795
        %v799 = vunpack.c.l.s4 1966171168
        %v800 = vunpack.c.0.s8 %v799
        %v801 = vlaneseq
        %v802 = vshrl.u32 %v801, 7
        %v803 = vsub.s32 %v800, %v802
        %v804 = vrot.slane %v332, %v803
        %v806 = vunpack.c.l.s4 1966171168
        %v807 = vunpack.c.0.s8 %v806
        %v808 = vlaneseq
        %v809 = vshrl.u32 %v808, 7
        %v810 = vsub.s32 %v807, %v809
        %v811 = vrot.slane %v804, %v810
        %v813 = vunpack.c.l.s4 1966171168
        %v814 = vunpack.c.0.s8 %v813
        %v815 = vlaneseq
        %v816 = vshrl.u32 %v815, 7
        %v817 = vsub.s32 %v814, %v816
        %v818 = vrot.slane %v333, %v817
        %v819 = vcombine.high %v818, %v818
        %v821 = vunpack.c.l.s4 1966171168
        %v822 = vunpack.c.0.s8 %v821
        %v823 = vlaneseq
        %v824 = vshrl.u32 %v823, 7
        %v825 = vsub.s32 %v822, %v824
        %v826 = vrot.slane %v818, %v825
        %v828 = vunpack.c.l.s4 1966171168
        %v829 = vunpack.c.0.s8 %v828
        %v830 = vlaneseq
        %v831 = vshrl.u32 %v830, 7
        %v832 = vsub.s32 %v829, %v831
        %v833 = vrot.slane %v819, %v832
        %v834 = vcombine.high %v826, %v826
        %v835 = vcombine.high %v833, %v833
        %v837 = vunpack.c.l.s4 1966171168
        %v838 = vunpack.c.0.s8 %v837
        %v839 = vlaneseq
        %v840 = vshrl.u32 %v839, 7
        %v841 = vsub.s32 %v838, %v840
        %v842 = vrot.slane %v334, %v841
        %v843 = vcombine.high %v842, %v842
        %v845 = vunpack.c.l.s4 1966171168
        %v846 = vunpack.c.0.s8 %v845
        %v847 = vlaneseq
        %v848 = vshrl.u32 %v847, 7
        %v849 = vsub.s32 %v846, %v848
        %v850 = vrot.slane %v842, %v849
        %v852 = vunpack.c.l.s4 1966171168
        %v853 = vunpack.c.0.s8 %v852
        %v854 = vlaneseq
        %v855 = vshrl.u32 %v854, 7
        %v856 = vsub.s32 %v853, %v855
        %v857 = vrot.slane %v843, %v856
        %v858 = vcombine.high %v850, %v850
        %v859 = vcombine.high %v857, %v857
        %v861 = vunpack.c.l.s4 1966171168
        %v862 = vunpack.c.0.s8 %v861
        %v863 = vlaneseq
        %v864 = vshrl.u32 %v863, 7
        %v865 = vsub.s32 %v862, %v864
        %v866 = vrot.slane %v335, %v865
        %v868 = vunpack.c.l.s4 1966171168
        %v869 = vunpack.c.0.s8 %v868
        %v870 = vlaneseq
        %v871 = vshrl.u32 %v870, 7
        %v872 = vsub.s32 %v869, %v871
        %v873 = vrot.slane %v866, %v872
        %v875 = vunpack.c.l.s4 1966171168
        %v876 = vunpack.c.0.s8 %v875
        %v877 = vlaneseq
        %v878 = vshrl.u32 %v877, 7
        %v879 = vsub.s32 %v876, %v878
        %v880 = vrot.slane %v336, %v879
        %v881 = vcombine.high %v880, %v880
        %v883 = vunpack.c.l.s4 1966171168
        %v884 = vunpack.c.0.s8 %v883
        %v885 = vlaneseq
        %v886 = vshrl.u32 %v885, 7
        %v887 = vsub.s32 %v884, %v886
        %v888 = vrot.slane %v880, %v887
        %v890 = vunpack.c.l.s4 1966171168
        %v891 = vunpack.c.0.s8 %v890
        %v892 = vlaneseq
        %v893 = vshrl.u32 %v892, 7
        %v894 = vsub.s32 %v891, %v893
        %v895 = vrot.slane %v881, %v894
        %v896 = vcombine.high %v888, %v888
        %v897 = vcombine.high %v895, %v895
        %v899 = vunpack.c.l.s4 1966171168
        %v900 = vunpack.c.0.s8 %v899
        %v901 = vlaneseq
        %v902 = vshrl.u32 %v901, 7
        %v903 = vsub.s32 %v900, %v902
        %v904 = vrot.slane %v337, %v903
        %v905 = vcombine.high %v904, %v904
        %v907 = vunpack.c.l.s4 1966171168
        %v908 = vunpack.c.0.s8 %v907
        %v909 = vlaneseq
        %v910 = vshrl.u32 %v909, 7
        %v911 = vsub.s32 %v908, %v910
        %v912 = vrot.slane %v904, %v911
        %v914 = vunpack.c.l.s4 1966171168
        %v915 = vunpack.c.0.s8 %v914
        %v916 = vlaneseq
        %v917 = vshrl.u32 %v916, 7
        %v918 = vsub.s32 %v915, %v917
        %v919 = vrot.slane %v905, %v918
        %v920 = vcombine.high %v912, %v912
        %v921 = vcombine.high %v919, %v919
        %v923 = vunpack.c.l.s4 1966171168
        %v924 = vunpack.c.0.s8 %v923
        %v925 = vlaneseq
        %v926 = vshrl.u32 %v925, 7
        %v927 = vsub.s32 %v924, %v926
        %v928 = vrot.slane %v338, %v927
        %v930 = vunpack.c.l.s4 1966171168
        %v931 = vunpack.c.0.s8 %v930
        %v932 = vlaneseq
        %v933 = vshrl.u32 %v932, 7
        %v934 = vsub.s32 %v931, %v933
        %v935 = vrot.slane %v928, %v934
        %v937 = vunpack.c.l.s4 1966171168
        %v938 = vunpack.c.0.s8 %v937
        %v939 = vlaneseq
        %v940 = vshrl.u32 %v939, 7
        %v941 = vsub.s32 %v938, %v940
        %v942 = vrot.slane %v339, %v941
        %v943 = vcombine.high %v942, %v942
        %v945 = vunpack.c.l.s4 1966171168
        %v946 = vunpack.c.0.s8 %v945
        %v947 = vlaneseq
        %v948 = vshrl.u32 %v947, 7
        %v949 = vsub.s32 %v946, %v948
        %v950 = vrot.slane %v942, %v949
        %v952 = vunpack.c.l.s4 1966171168
        %v953 = vunpack.c.0.s8 %v952
        %v954 = vlaneseq
        %v955 = vshrl.u32 %v954, 7
        %v956 = vsub.s32 %v953, %v955
        %v957 = vrot.slane %v943, %v956
        %v958 = vcombine.high %v950, %v950
        %v959 = vcombine.high %v957, %v957
        %v961 = vunpack.c.l.s4 1966171168
        %v962 = vunpack.c.0.s8 %v961
        %v963 = vlaneseq
        %v964 = vshrl.u32 %v963, 7
        %v965 = vsub.s32 %v962, %v964
        %v966 = vrot.slane %v340, %v965
        %v967 = vcombine.high %v966, %v966
        %v969 = vunpack.c.l.s4 1966171168
        %v970 = vunpack.c.0.s8 %v969
        %v971 = vlaneseq
        %v972 = vshrl.u32 %v971, 7
        %v973 = vsub.s32 %v970, %v972
        %v974 = vrot.slane %v966, %v973
        %v976 = vunpack.c.l.s4 1966171168
        %v977 = vunpack.c.0.s8 %v976
        %v978 = vlaneseq
        %v979 = vshrl.u32 %v978, 7
        %v980 = vsub.s32 %v977, %v979
        %v981 = vrot.slane %v967, %v980
        %v982 = vcombine.high %v974, %v974
        %v983 = vcombine.high %v981, %v981
        %v985 = vunpack.c.l.s4 1966171168
        %v986 = vunpack.c.0.s8 %v985
        %v987 = vlaneseq
        %v988 = vshrl.u32 %v987, 7
        %v989 = vsub.s32 %v986, %v988
        %v990 = vrot.slane %v341, %v989
        %v992 = vunpack.c.l.s4 1966171168
        %v993 = vunpack.c.0.s8 %v992
        %v994 = vlaneseq
        %v995 = vshrl.u32 %v994, 7
        %v996 = vsub.s32 %v993, %v995
        %v997 = vrot.slane %v990, %v996
        %v998 = vld [vmem:[%s1] sm:$0x3]
        %v999 = vcombine.high %v432, %v432
        %v1001 = vunpack.c.l.s4 1966171168
        %v1002 = vunpack.c.0.s8 %v1001
        %v1003 = vlaneseq
        %v1004 = vshrl.u32 %v1003, 7
        %v1005 = vsub.s32 %v1002, %v1004
        %v1006 = vrot.slane %v999, %v1005
        %v1007 = vcombine.high %v494, %v494
        %v1009 = vunpack.c.l.s4 1966171168
        %v1010 = vunpack.c.0.s8 %v1009
        %v1011 = vlaneseq
        %v1012 = vshrl.u32 %v1011, 7
        %v1013 = vsub.s32 %v1010, %v1012
        %v1014 = vrot.slane %v1007, %v1013
        %v1015 = vcombine.high %v556, %v556
        %v1017 = vunpack.c.l.s4 1966171168
        %v1018 = vunpack.c.0.s8 %v1017
        %v1019 = vlaneseq
        %v1020 = vshrl.u32 %v1019, 7
        %v1021 = vsub.s32 %v1018, %v1020
        %v1022 = vrot.slane %v1015, %v1021
        %v1023 = vcombine.high %v618, %v618
        %v1025 = vunpack.c.l.s4 1966171168
        %v1026 = vunpack.c.0.s8 %v1025
        %v1027 = vlaneseq
        %v1028 = vshrl.u32 %v1027, 7
        %v1029 = vsub.s32 %v1026, %v1028
        %v1030 = vrot.slane %v1023, %v1029
        %v1031 = vcombine.high %v680, %v680
        %v1033 = vunpack.c.l.s4 1966171168
        %v1034 = vunpack.c.0.s8 %v1033
        %v1035 = vlaneseq
        %v1036 = vshrl.u32 %v1035, 7
        %v1037 = vsub.s32 %v1034, %v1036
        %v1038 = vrot.slane %v1031, %v1037
        %v1039 = vcombine.high %v742, %v742
        %v1041 = vunpack.c.l.s4 1966171168
        %v1042 = vunpack.c.0.s8 %v1041
        %v1043 = vlaneseq
        %v1044 = vshrl.u32 %v1043, 7
        %v1045 = vsub.s32 %v1042, %v1044
        %v1046 = vrot.slane %v1039, %v1045
        %v1047 = vcombine.high %v804, %v804
        %v1049 = vunpack.c.l.s4 1966171168
        %v1050 = vunpack.c.0.s8 %v1049
        %v1051 = vlaneseq
        %v1052 = vshrl.u32 %v1051, 7
        %v1053 = vsub.s32 %v1050, %v1052
        %v1054 = vrot.slane %v1047, %v1053
        %v1055 = vcombine.high %v866, %v866
        %v1057 = vunpack.c.l.s4 1966171168
        %v1058 = vunpack.c.0.s8 %v1057
        %v1059 = vlaneseq
        %v1060 = vshrl.u32 %v1059, 7
        %v1061 = vsub.s32 %v1058, %v1060
        %v1062 = vrot.slane %v1055, %v1061
        %v1063 = vcombine.high %v928, %v928
        %v1065 = vunpack.c.l.s4 1966171168
        %v1066 = vunpack.c.0.s8 %v1065
        %v1067 = vlaneseq
        %v1068 = vshrl.u32 %v1067, 7
        %v1069 = vsub.s32 %v1066, %v1068
        %v1070 = vrot.slane %v1063, %v1069
        %v1071 = vcombine.high %v990, %v990
        %v1073 = vunpack.c.l.s4 1966171168
        %v1074 = vunpack.c.0.s8 %v1073
        %v1075 = vlaneseq
        %v1076 = vshrl.u32 %v1075, 7
        %v1077 = vsub.s32 %v1074, %v1076
        %v1078 = vrot.slane %v1071, %v1077
        %vm1079 = vsmask.f32 256
        %vm1080 = vsmask.f32 1284
        %vm1081 = vmor %vm1079, %vm1080
        %vm1082 = vsmask.f32 2312
        %vm1083 = vmor %vm1081, %vm1082
        %vm1084 = vsmask.f32 3340
        %vm1085 = vmor %vm1083, %vm1084
        %vm1086 = vsmask.f32 4368
        %vm1087 = vmor %vm1085, %vm1086
        %vm1088 = vsmask.f32 5396
        %vm1089 = vmor %vm1087, %vm1088
        %vm1090 = vsmask.f32 6424
        %vm1091 = vmor %vm1089, %vm1090
        %vm1092 = vsmask.f32 7452
        %vm1093 = vmor %vm1091, %vm1092
        %v1095 = vshrl.u32 %v392, 16
        %v1097 = vrot.slane %v1095, 7
        %v1098 = vrot.slane %v1097, 1
        %v1100 = vshll.u32 %v399, 16
        %v1102 = vsel %vm1093, %v1098, %v1100
        %v1103 = vshrl.u32 %v399, 16
        %v1105 = vrot.slane %v1103, 7
        %v1106 = vrot.slane %v1105, 1
        %v1108 = vshll.u32 %v400, 16
        %v1110 = vsel %vm1093, %v1106, %v1108
        %v1111 = vshrl.u32 %v400, 16
        %v1113 = vrot.slane %v1111, 7
        %v1114 = vrot.slane %v1113, 1
        %v1116 = vshll.u32 %v401, 16
        %v1118 = vsel %vm1093, %v1114, %v1116
        %v1119 = vshrl.u32 %v401, 16
        %v1121 = vrot.slane %v1119, 7
        %v1122 = vrot.slane %v1121, 1
        %v1124 = vshll.u32 %v416, 16
        %v1126 = vsel %vm1093, %v1122, %v1124
        %v1127 = vshrl.u32 %v416, 16
        %v1129 = vrot.slane %v1127, 7
        %v1130 = vrot.slane %v1129, 1
        %v1132 = vshll.u32 %v423, 16
        %v1134 = vsel %vm1093, %v1130, %v1132
        %v1135 = vshrl.u32 %v423, 16
        %v1137 = vrot.slane %v1135, 7
        %v1138 = vrot.slane %v1137, 1
        %v1140 = vshll.u32 %v424, 16
        %v1142 = vsel %vm1093, %v1138, %v1140
        %v1143 = vshrl.u32 %v424, 16
        %v1145 = vrot.slane %v1143, 7
        %v1146 = vrot.slane %v1145, 1
        %v1148 = vshll.u32 %v425, 16
        %v1150 = vsel %vm1093, %v1146, %v1148
        %v1151 = vshrl.u32 %v425, 16
        %v1153 = vrot.slane %v1151, 7
        %v1154 = vrot.slane %v1153, 1
        %v1156 = vshll.u32 %v439, 16
        %v1158 = vsel %vm1093, %v1154, %v1156
        %v1159 = vshrl.u32 %v439, 16
        %v1161 = vrot.slane %v1159, 7
        %v1162 = vrot.slane %v1161, 1
        %v1164 = vshll.u32 %v1006, 16
        %v1166 = vsel %vm1093, %v1162, %v1164
        %v1168 = vshrl.u32 %v454, 16
        %v1170 = vrot.slane %v1168, 7
        %v1171 = vrot.slane %v1170, 1
        %v1173 = vshll.u32 %v461, 16
        %v1175 = vsel %vm1093, %v1171, %v1173
        %v1176 = vshrl.u32 %v461, 16
        %v1178 = vrot.slane %v1176, 7
        %v1179 = vrot.slane %v1178, 1
        %v1181 = vshll.u32 %v462, 16
        %v1183 = vsel %vm1093, %v1179, %v1181
        %v1184 = vshrl.u32 %v462, 16
        %v1186 = vrot.slane %v1184, 7
        %v1187 = vrot.slane %v1186, 1
        %v1189 = vshll.u32 %v463, 16
        %v1191 = vsel %vm1093, %v1187, %v1189
        %v1192 = vshrl.u32 %v463, 16
        %v1194 = vrot.slane %v1192, 7
        %v1195 = vrot.slane %v1194, 1
        %v1197 = vshll.u32 %v478, 16
        %v1199 = vsel %vm1093, %v1195, %v1197
        %v1200 = vshrl.u32 %v478, 16
        %v1202 = vrot.slane %v1200, 7
        %v1203 = vrot.slane %v1202, 1
        %v1205 = vshll.u32 %v485, 16
        %v1207 = vsel %vm1093, %v1203, %v1205
        %v1208 = vshrl.u32 %v485, 16
        %v1210 = vrot.slane %v1208, 7
        %v1211 = vrot.slane %v1210, 1
        %v1213 = vshll.u32 %v486, 16
        %v1215 = vsel %vm1093, %v1211, %v1213
        %v1216 = vshrl.u32 %v486, 16
        %v1218 = vrot.slane %v1216, 7
        %v1219 = vrot.slane %v1218, 1
        %v1221 = vshll.u32 %v487, 16
        %v1223 = vsel %vm1093, %v1219, %v1221
        %v1224 = vshrl.u32 %v487, 16
        %v1226 = vrot.slane %v1224, 7
        %v1227 = vrot.slane %v1226, 1
        %v1229 = vshll.u32 %v501, 16
        %v1231 = vsel %vm1093, %v1227, %v1229
        %v1232 = vshrl.u32 %v501, 16
        %v1234 = vrot.slane %v1232, 7
        %v1235 = vrot.slane %v1234, 1
        %v1237 = vshll.u32 %v1014, 16
        %v1239 = vsel %vm1093, %v1235, %v1237
        %v1241 = vshrl.u32 %v516, 16
        %v1243 = vrot.slane %v1241, 7
        %v1244 = vrot.slane %v1243, 1
        %v1246 = vshll.u32 %v523, 16
        %v1248 = vsel %vm1093, %v1244, %v1246
        %v1249 = vshrl.u32 %v523, 16
        %v1251 = vrot.slane %v1249, 7
        %v1252 = vrot.slane %v1251, 1
        %v1254 = vshll.u32 %v524, 16
        %v1256 = vsel %vm1093, %v1252, %v1254
        %v1257 = vshrl.u32 %v524, 16
        %v1259 = vrot.slane %v1257, 7
        %v1260 = vrot.slane %v1259, 1
        %v1262 = vshll.u32 %v525, 16
        %v1264 = vsel %vm1093, %v1260, %v1262
        %v1265 = vshrl.u32 %v525, 16
        %v1267 = vrot.slane %v1265, 7
        %v1268 = vrot.slane %v1267, 1
        %v1270 = vshll.u32 %v540, 16
        %v1272 = vsel %vm1093, %v1268, %v1270
        %v1273 = vshrl.u32 %v540, 16
        %v1275 = vrot.slane %v1273, 7
        %v1276 = vrot.slane %v1275, 1
        %v1278 = vshll.u32 %v547, 16
        %v1280 = vsel %vm1093, %v1276, %v1278
        %v1281 = vshrl.u32 %v547, 16
        %v1283 = vrot.slane %v1281, 7
        %v1284 = vrot.slane %v1283, 1
        %v1286 = vshll.u32 %v548, 16
        %v1288 = vsel %vm1093, %v1284, %v1286
        %v1289 = vshrl.u32 %v548, 16
        %v1291 = vrot.slane %v1289, 7
        %v1292 = vrot.slane %v1291, 1
        %v1294 = vshll.u32 %v549, 16
        %v1296 = vsel %vm1093, %v1292, %v1294
        %v1297 = vshrl.u32 %v549, 16
        %v1299 = vrot.slane %v1297, 7
        %v1300 = vrot.slane %v1299, 1
        %v1302 = vshll.u32 %v563, 16
        %v1304 = vsel %vm1093, %v1300, %v1302
        %v1305 = vshrl.u32 %v563, 16
        %v1307 = vrot.slane %v1305, 7
        %v1308 = vrot.slane %v1307, 1
        %v1310 = vshll.u32 %v1022, 16
        %v1312 = vsel %vm1093, %v1308, %v1310
        %v1314 = vshrl.u32 %v578, 16
        %v1316 = vrot.slane %v1314, 7
        %v1317 = vrot.slane %v1316, 1
        %v1319 = vshll.u32 %v585, 16
        %v1321 = vsel %vm1093, %v1317, %v1319
        %v1322 = vshrl.u32 %v585, 16
        %v1324 = vrot.slane %v1322, 7
        %v1325 = vrot.slane %v1324, 1
        %v1327 = vshll.u32 %v586, 16
        %v1329 = vsel %vm1093, %v1325, %v1327
        %v1330 = vshrl.u32 %v586, 16
        %v1332 = vrot.slane %v1330, 7
        %v1333 = vrot.slane %v1332, 1
        %v1335 = vshll.u32 %v587, 16
        %v1337 = vsel %vm1093, %v1333, %v1335
        %v1338 = vshrl.u32 %v587, 16
        %v1340 = vrot.slane %v1338, 7
        %v1341 = vrot.slane %v1340, 1
        %v1343 = vshll.u32 %v602, 16
        %v1345 = vsel %vm1093, %v1341, %v1343
        %v1346 = vshrl.u32 %v602, 16
        %v1348 = vrot.slane %v1346, 7
        %v1349 = vrot.slane %v1348, 1
        %v1351 = vshll.u32 %v609, 16
        %v1353 = vsel %vm1093, %v1349, %v1351
        %v1354 = vshrl.u32 %v609, 16
        %v1356 = vrot.slane %v1354, 7
        %v1357 = vrot.slane %v1356, 1
        %v1359 = vshll.u32 %v610, 16
        %v1361 = vsel %vm1093, %v1357, %v1359
        %v1362 = vshrl.u32 %v610, 16
        %v1364 = vrot.slane %v1362, 7
        %v1365 = vrot.slane %v1364, 1
        %v1367 = vshll.u32 %v611, 16
        %v1369 = vsel %vm1093, %v1365, %v1367
        %v1370 = vshrl.u32 %v611, 16
        %v1372 = vrot.slane %v1370, 7
        %v1373 = vrot.slane %v1372, 1
        %v1375 = vshll.u32 %v625, 16
        %v1377 = vsel %vm1093, %v1373, %v1375
        %v1378 = vshrl.u32 %v625, 16
        %v1380 = vrot.slane %v1378, 7
        %v1381 = vrot.slane %v1380, 1
        %v1383 = vshll.u32 %v1030, 16
        %v1385 = vsel %vm1093, %v1381, %v1383
        %v1387 = vshrl.u32 %v640, 16
        %v1389 = vrot.slane %v1387, 7
        %v1390 = vrot.slane %v1389, 1
        %v1392 = vshll.u32 %v647, 16
        %v1394 = vsel %vm1093, %v1390, %v1392
        %v1395 = vshrl.u32 %v647, 16
        %v1397 = vrot.slane %v1395, 7
        %v1398 = vrot.slane %v1397, 1
        %v1400 = vshll.u32 %v648, 16
        %v1402 = vsel %vm1093, %v1398, %v1400
        %v1403 = vshrl.u32 %v648, 16
        %v1405 = vrot.slane %v1403, 7
        %v1406 = vrot.slane %v1405, 1
        %v1408 = vshll.u32 %v649, 16
        %v1410 = vsel %vm1093, %v1406, %v1408
        %v1411 = vshrl.u32 %v649, 16
        %v1413 = vrot.slane %v1411, 7
        %v1414 = vrot.slane %v1413, 1
        %v1416 = vshll.u32 %v664, 16
        %v1418 = vsel %vm1093, %v1414, %v1416
        %v1419 = vshrl.u32 %v664, 16
        %v1421 = vrot.slane %v1419, 7
        %v1422 = vrot.slane %v1421, 1
        %v1424 = vshll.u32 %v671, 16
        %v1426 = vsel %vm1093, %v1422, %v1424
        %v1427 = vshrl.u32 %v671, 16
        %v1429 = vrot.slane %v1427, 7
        %v1430 = vrot.slane %v1429, 1
        %v1432 = vshll.u32 %v672, 16
        %v1434 = vsel %vm1093, %v1430, %v1432
        %v1435 = vshrl.u32 %v672, 16
        %v1437 = vrot.slane %v1435, 7
        %v1438 = vrot.slane %v1437, 1
        %v1440 = vshll.u32 %v673, 16
        %v1442 = vsel %vm1093, %v1438, %v1440
        %v1443 = vshrl.u32 %v673, 16
        %v1445 = vrot.slane %v1443, 7
        %v1446 = vrot.slane %v1445, 1
        %v1448 = vshll.u32 %v687, 16
        %v1450 = vsel %vm1093, %v1446, %v1448
        %v1451 = vshrl.u32 %v687, 16
        %v1453 = vrot.slane %v1451, 7
        %v1454 = vrot.slane %v1453, 1
        %v1456 = vshll.u32 %v1038, 16
        %v1458 = vsel %vm1093, %v1454, %v1456
        %v1460 = vshrl.u32 %v702, 16
        %v1462 = vrot.slane %v1460, 7
        %v1463 = vrot.slane %v1462, 1
        %v1465 = vshll.u32 %v709, 16
        %v1467 = vsel %vm1093, %v1463, %v1465
        %v1468 = vshrl.u32 %v709, 16
        %v1470 = vrot.slane %v1468, 7
        %v1471 = vrot.slane %v1470, 1
        %v1473 = vshll.u32 %v710, 16
        %v1475 = vsel %vm1093, %v1471, %v1473
        %v1476 = vshrl.u32 %v710, 16
        %v1478 = vrot.slane %v1476, 7
        %v1479 = vrot.slane %v1478, 1
        %v1481 = vshll.u32 %v711, 16
        %v1483 = vsel %vm1093, %v1479, %v1481
        %v1484 = vshrl.u32 %v711, 16
        %v1486 = vrot.slane %v1484, 7
        %v1487 = vrot.slane %v1486, 1
        %v1489 = vshll.u32 %v726, 16
        %v1491 = vsel %vm1093, %v1487, %v1489
        %v1492 = vshrl.u32 %v726, 16
        %v1494 = vrot.slane %v1492, 7
        %v1495 = vrot.slane %v1494, 1
        %v1497 = vshll.u32 %v733, 16
        %v1499 = vsel %vm1093, %v1495, %v1497
        %v1500 = vshrl.u32 %v733, 16
        %v1502 = vrot.slane %v1500, 7
        %v1503 = vrot.slane %v1502, 1
        %v1505 = vshll.u32 %v734, 16
        %v1507 = vsel %vm1093, %v1503, %v1505
        %v1508 = vshrl.u32 %v734, 16
        %v1510 = vrot.slane %v1508, 7
        %v1511 = vrot.slane %v1510, 1
        %v1513 = vshll.u32 %v735, 16
        %v1515 = vsel %vm1093, %v1511, %v1513
        %v1516 = vshrl.u32 %v735, 16
        %v1518 = vrot.slane %v1516, 7
        %v1519 = vrot.slane %v1518, 1
        %v1521 = vshll.u32 %v749, 16
        %v1523 = vsel %vm1093, %v1519, %v1521
        %v1524 = vshrl.u32 %v749, 16
        %v1526 = vrot.slane %v1524, 7
        %v1527 = vrot.slane %v1526, 1
        %v1529 = vshll.u32 %v1046, 16
        %v1531 = vsel %vm1093, %v1527, %v1529
        %v1533 = vshrl.u32 %v764, 16
        %v1535 = vrot.slane %v1533, 7
        %v1536 = vrot.slane %v1535, 1
        %v1538 = vshll.u32 %v771, 16
        %v1540 = vsel %vm1093, %v1536, %v1538
        %v1541 = vshrl.u32 %v771, 16
        %v1543 = vrot.slane %v1541, 7
        %v1544 = vrot.slane %v1543, 1
        %v1546 = vshll.u32 %v772, 16
        %v1548 = vsel %vm1093, %v1544, %v1546
        %v1549 = vshrl.u32 %v772, 16
        %v1551 = vrot.slane %v1549, 7
        %v1552 = vrot.slane %v1551, 1
        %v1554 = vshll.u32 %v773, 16
        %v1556 = vsel %vm1093, %v1552, %v1554
        %v1557 = vshrl.u32 %v773, 16
        %v1559 = vrot.slane %v1557, 7
        %v1560 = vrot.slane %v1559, 1
        %v1562 = vshll.u32 %v788, 16
        %v1564 = vsel %vm1093, %v1560, %v1562
        %v1565 = vshrl.u32 %v788, 16
        %v1567 = vrot.slane %v1565, 7
        %v1568 = vrot.slane %v1567, 1
        %v1570 = vshll.u32 %v795, 16
        %v1572 = vsel %vm1093, %v1568, %v1570
        %v1573 = vshrl.u32 %v795, 16
        %v1575 = vrot.slane %v1573, 7
        %v1576 = vrot.slane %v1575, 1
        %v1578 = vshll.u32 %v796, 16
        %v1580 = vsel %vm1093, %v1576, %v1578
        %v1581 = vshrl.u32 %v796, 16
        %v1583 = vrot.slane %v1581, 7
        %v1584 = vrot.slane %v1583, 1
        %v1586 = vshll.u32 %v797, 16
        %v1588 = vsel %vm1093, %v1584, %v1586
        %v1589 = vshrl.u32 %v797, 16
        %v1591 = vrot.slane %v1589, 7
        %v1592 = vrot.slane %v1591, 1
        %v1594 = vshll.u32 %v811, 16
        %v1596 = vsel %vm1093, %v1592, %v1594
        %v1597 = vshrl.u32 %v811, 16
        %v1599 = vrot.slane %v1597, 7
        %v1600 = vrot.slane %v1599, 1
        %v1602 = vshll.u32 %v1054, 16
        %v1604 = vsel %vm1093, %v1600, %v1602
        %v1606 = vshrl.u32 %v826, 16
        %v1608 = vrot.slane %v1606, 7
        %v1609 = vrot.slane %v1608, 1
        %v1611 = vshll.u32 %v833, 16
        %v1613 = vsel %vm1093, %v1609, %v1611
        %v1614 = vshrl.u32 %v833, 16
        %v1616 = vrot.slane %v1614, 7
        %v1617 = vrot.slane %v1616, 1
        %v1619 = vshll.u32 %v834, 16
        %v1621 = vsel %vm1093, %v1617, %v1619
        %v1622 = vshrl.u32 %v834, 16
        %v1624 = vrot.slane %v1622, 7
        %v1625 = vrot.slane %v1624, 1
        %v1627 = vshll.u32 %v835, 16
        %v1629 = vsel %vm1093, %v1625, %v1627
        %v1630 = vshrl.u32 %v835, 16
        %v1632 = vrot.slane %v1630, 7
        %v1633 = vrot.slane %v1632, 1
        %v1635 = vshll.u32 %v850, 16
        %v1637 = vsel %vm1093, %v1633, %v1635
        %v1638 = vshrl.u32 %v850, 16
        %v1640 = vrot.slane %v1638, 7
        %v1641 = vrot.slane %v1640, 1
        %v1643 = vshll.u32 %v857, 16
        %v1645 = vsel %vm1093, %v1641, %v1643
        %v1646 = vshrl.u32 %v857, 16
        %v1648 = vrot.slane %v1646, 7
        %v1649 = vrot.slane %v1648, 1
        %v1651 = vshll.u32 %v858, 16
        %v1653 = vsel %vm1093, %v1649, %v1651
        %v1654 = vshrl.u32 %v858, 16
        %v1656 = vrot.slane %v1654, 7
        %v1657 = vrot.slane %v1656, 1
        %v1659 = vshll.u32 %v859, 16
        %v1661 = vsel %vm1093, %v1657, %v1659
        %v1662 = vshrl.u32 %v859, 16
        %v1664 = vrot.slane %v1662, 7
        %v1665 = vrot.slane %v1664, 1
        %v1667 = vshll.u32 %v873, 16
        %v1669 = vsel %vm1093, %v1665, %v1667
        %v1670 = vshrl.u32 %v873, 16
        %v1672 = vrot.slane %v1670, 7
        %v1673 = vrot.slane %v1672, 1
        %v1675 = vshll.u32 %v1062, 16
        %v1677 = vsel %vm1093, %v1673, %v1675
        %v1679 = vshrl.u32 %v888, 16
        %v1681 = vrot.slane %v1679, 7
        %v1682 = vrot.slane %v1681, 1
        %v1684 = vshll.u32 %v895, 16
        %v1686 = vsel %vm1093, %v1682, %v1684
        %v1687 = vshrl.u32 %v895, 16
        %v1689 = vrot.slane %v1687, 7
        %v1690 = vrot.slane %v1689, 1
        %v1692 = vshll.u32 %v896, 16
        %v1694 = vsel %vm1093, %v1690, %v1692
        %v1695 = vshrl.u32 %v896, 16
        %v1697 = vrot.slane %v1695, 7
        %v1698 = vrot.slane %v1697, 1
        %v1700 = vshll.u32 %v897, 16
        %v1702 = vsel %vm1093, %v1698, %v1700
        %v1703 = vshrl.u32 %v897, 16
        %v1705 = vrot.slane %v1703, 7
        %v1706 = vrot.slane %v1705, 1
        %v1708 = vshll.u32 %v912, 16
        %v1710 = vsel %vm1093, %v1706, %v1708
        %v1711 = vshrl.u32 %v912, 16
        %v1713 = vrot.slane %v1711, 7
        %v1714 = vrot.slane %v1713, 1
        %v1716 = vshll.u32 %v919, 16
        %v1718 = vsel %vm1093, %v1714, %v1716
        %v1719 = vshrl.u32 %v919, 16
        %v1721 = vrot.slane %v1719, 7
        %v1722 = vrot.slane %v1721, 1
        %v1724 = vshll.u32 %v920, 16
        %v1726 = vsel %vm1093, %v1722, %v1724
        %v1727 = vshrl.u32 %v920, 16
        %v1729 = vrot.slane %v1727, 7
        %v1730 = vrot.slane %v1729, 1
        %v1732 = vshll.u32 %v921, 16
        %v1734 = vsel %vm1093, %v1730, %v1732
        %v1735 = vshrl.u32 %v921, 16
        %v1737 = vrot.slane %v1735, 7
        %v1738 = vrot.slane %v1737, 1
        %v1740 = vshll.u32 %v935, 16
        %v1742 = vsel %vm1093, %v1738, %v1740
        %v1743 = vshrl.u32 %v935, 16
        %v1745 = vrot.slane %v1743, 7
        %v1746 = vrot.slane %v1745, 1
        %v1748 = vshll.u32 %v1070, 16
        %v1750 = vsel %vm1093, %v1746, %v1748
        %v1752 = vshrl.u32 %v950, 16
        %v1754 = vrot.slane %v1752, 7
        %v1755 = vrot.slane %v1754, 1
        %v1757 = vshll.u32 %v957, 16
        %v1759 = vsel %vm1093, %v1755, %v1757
        %v1760 = vshrl.u32 %v957, 16
        %v1762 = vrot.slane %v1760, 7
        %v1763 = vrot.slane %v1762, 1
        %v1765 = vshll.u32 %v958, 16
        %v1767 = vsel %vm1093, %v1763, %v1765
        %v1768 = vshrl.u32 %v958, 16
        %v1770 = vrot.slane %v1768, 7
        %v1771 = vrot.slane %v1770, 1
        %v1773 = vshll.u32 %v959, 16
        %v1775 = vsel %vm1093, %v1771, %v1773
        %v1776 = vshrl.u32 %v959, 16
        %v1778 = vrot.slane %v1776, 7
        %v1779 = vrot.slane %v1778, 1
        %v1781 = vshll.u32 %v974, 16
        %v1783 = vsel %vm1093, %v1779, %v1781
        %v1784 = vshrl.u32 %v974, 16
        %v1786 = vrot.slane %v1784, 7
        %v1787 = vrot.slane %v1786, 1
        %v1789 = vshll.u32 %v981, 16
        %v1791 = vsel %vm1093, %v1787, %v1789
        %v1792 = vshrl.u32 %v981, 16
        %v1794 = vrot.slane %v1792, 7
        %v1795 = vrot.slane %v1794, 1
        %v1797 = vshll.u32 %v982, 16
        %v1799 = vsel %vm1093, %v1795, %v1797
        %v1800 = vshrl.u32 %v982, 16
        %v1802 = vrot.slane %v1800, 7
        %v1803 = vrot.slane %v1802, 1
        %v1805 = vshll.u32 %v983, 16
        %v1807 = vsel %vm1093, %v1803, %v1805
        %v1808 = vshrl.u32 %v983, 16
        %v1810 = vrot.slane %v1808, 7
        %v1811 = vrot.slane %v1810, 1
        %v1813 = vshll.u32 %v997, 16
        %v1815 = vsel %vm1093, %v1811, %v1813
        %v1816 = vshrl.u32 %v997, 16
        %v1818 = vrot.slane %v1816, 7
        %v1819 = vrot.slane %v1818, 1
        %v1821 = vshll.u32 %v1078, 16
        %v1823 = vsel %vm1093, %v1819, %v1821
        %s1824 = scalar_lea.vmem %s1, 2
        %v1825 = vld [vmem:[%s1824] sm:$0x3]
        %v1826 = vcombine.low %v1102, %v1110
        %v1827 = vcombine.low %v1118, %v1126
        %v1828 = vcombine.low %v1134, %v1142
        %v1829 = vcombine.low %v1150, %v1158
        %v1831 = vunpack.c.l.s4 1966171168
        %v1832 = vunpack.c.0.s8 %v1831
        %v1833 = vlaneseq
        %v1834 = vshrl.u32 %v1833, 7
        %v1835 = vsub.s32 %v1832, %v1834
        %v1836 = vrot.slane %v1826, %v1835
        %v1838 = vunpack.c.l.s4 1966171168
        %v1839 = vunpack.c.0.s8 %v1838
        %v1840 = vlaneseq
        %v1841 = vshrl.u32 %v1840, 7
        %v1842 = vsub.s32 %v1839, %v1841
        %v1843 = vrot.slane %v1827, %v1842
        %v1845 = vunpack.c.l.s4 1966171168
        %v1846 = vunpack.c.0.s8 %v1845
        %v1847 = vlaneseq
        %v1848 = vshrl.u32 %v1847, 7
        %v1849 = vsub.s32 %v1846, %v1848
        %v1850 = vrot.slane %v1828, %v1849
        %v1852 = vunpack.c.l.s4 1966171168
        %v1853 = vunpack.c.0.s8 %v1852
        %v1854 = vlaneseq
        %v1855 = vshrl.u32 %v1854, 7
        %v1856 = vsub.s32 %v1853, %v1855
        %v1857 = vrot.slane %v1829, %v1856
        %v1858 = vcombine.low %v1836, %v1843
        %v1859 = vcombine.low %v1850, %v1857
        %v1861 = vunpack.c.l.s4 1966171168
        %v1862 = vunpack.c.0.s8 %v1861
        %v1863 = vlaneseq
        %v1864 = vshrl.u32 %v1863, 7
        %v1865 = vsub.s32 %v1862, %v1864
        %v1866 = vrot.slane %v1858, %v1865
        %v1868 = vunpack.c.l.s4 1966171168
        %v1869 = vunpack.c.0.s8 %v1868
        %v1870 = vlaneseq
        %v1871 = vshrl.u32 %v1870, 7
        %v1872 = vsub.s32 %v1869, %v1871
        %v1873 = vrot.slane %v1859, %v1872
        %v1874 = vcombine.low %v1866, %v1873
        %v1875 = vcombine.low %v1166, %v1175
        %v1876 = vcombine.low %v1183, %v1191
        %v1877 = vcombine.low %v1199, %v1207
        %v1878 = vcombine.low %v1215, %v1223
        %v1880 = vunpack.c.l.s4 1966171168
        %v1881 = vunpack.c.0.s8 %v1880
        %v1882 = vlaneseq
        %v1883 = vshrl.u32 %v1882, 7
        %v1884 = vsub.s32 %v1881, %v1883
        %v1885 = vrot.slane %v1875, %v1884
        %v1887 = vunpack.c.l.s4 1966171168
        %v1888 = vunpack.c.0.s8 %v1887
        %v1889 = vlaneseq
        %v1890 = vshrl.u32 %v1889, 7
        %v1891 = vsub.s32 %v1888, %v1890
        %v1892 = vrot.slane %v1876, %v1891
        %v1894 = vunpack.c.l.s4 1966171168
        %v1895 = vunpack.c.0.s8 %v1894
        %v1896 = vlaneseq
        %v1897 = vshrl.u32 %v1896, 7
        %v1898 = vsub.s32 %v1895, %v1897
        %v1899 = vrot.slane %v1877, %v1898
        %v1901 = vunpack.c.l.s4 1966171168
        %v1902 = vunpack.c.0.s8 %v1901
        %v1903 = vlaneseq
        %v1904 = vshrl.u32 %v1903, 7
        %v1905 = vsub.s32 %v1902, %v1904
        %v1906 = vrot.slane %v1878, %v1905
        %v1907 = vcombine.low %v1885, %v1892
        %v1908 = vcombine.low %v1899, %v1906
        %v1910 = vunpack.c.l.s4 1966171168
        %v1911 = vunpack.c.0.s8 %v1910
        %v1912 = vlaneseq
        %v1913 = vshrl.u32 %v1912, 7
        %v1914 = vsub.s32 %v1911, %v1913
        %v1915 = vrot.slane %v1907, %v1914
        %v1917 = vunpack.c.l.s4 1966171168
        %v1918 = vunpack.c.0.s8 %v1917
        %v1919 = vlaneseq
        %v1920 = vshrl.u32 %v1919, 7
        %v1921 = vsub.s32 %v1918, %v1920
        %v1922 = vrot.slane %v1908, %v1921
        %v1923 = vcombine.low %v1915, %v1922
        %v1924 = vcombine.low %v1231, %v1239
        %v1925 = vcombine.low %v1248, %v1256
        %v1926 = vcombine.low %v1264, %v1272
        %v1927 = vcombine.low %v1280, %v1288
        %v1929 = vunpack.c.l.s4 1966171168
        %v1930 = vunpack.c.0.s8 %v1929
        %v1931 = vlaneseq
        %v1932 = vshrl.u32 %v1931, 7
        %v1933 = vsub.s32 %v1930, %v1932
        %v1934 = vrot.slane %v1924, %v1933
        %v1936 = vunpack.c.l.s4 1966171168
        %v1937 = vunpack.c.0.s8 %v1936
        %v1938 = vlaneseq
        %v1939 = vshrl.u32 %v1938, 7
        %v1940 = vsub.s32 %v1937, %v1939
        %v1941 = vrot.slane %v1925, %v1940
        %v1943 = vunpack.c.l.s4 1966171168
        %v1944 = vunpack.c.0.s8 %v1943
        %v1945 = vlaneseq
        %v1946 = vshrl.u32 %v1945, 7
        %v1947 = vsub.s32 %v1944, %v1946
        %v1948 = vrot.slane %v1926, %v1947
        %v1950 = vunpack.c.l.s4 1966171168
        %v1951 = vunpack.c.0.s8 %v1950
        %v1952 = vlaneseq
        %v1953 = vshrl.u32 %v1952, 7
        %v1954 = vsub.s32 %v1951, %v1953
        %v1955 = vrot.slane %v1927, %v1954
        %v1956 = vcombine.low %v1934, %v1941
        %v1957 = vcombine.low %v1948, %v1955
        %v1959 = vunpack.c.l.s4 1966171168
        %v1960 = vunpack.c.0.s8 %v1959
        %v1961 = vlaneseq
        %v1962 = vshrl.u32 %v1961, 7
        %v1963 = vsub.s32 %v1960, %v1962
        %v1964 = vrot.slane %v1956, %v1963
        %v1966 = vunpack.c.l.s4 1966171168
        %v1967 = vunpack.c.0.s8 %v1966
        %v1968 = vlaneseq
        %v1969 = vshrl.u32 %v1968, 7
        %v1970 = vsub.s32 %v1967, %v1969
        %v1971 = vrot.slane %v1957, %v1970
        %v1972 = vcombine.low %v1964, %v1971
        %v1973 = vcombine.low %v1296, %v1304
        %v1974 = vcombine.low %v1312, %v1321
        %v1975 = vcombine.low %v1329, %v1337
        %v1976 = vcombine.low %v1345, %v1353
        %v1978 = vunpack.c.l.s4 1966171168
        %v1979 = vunpack.c.0.s8 %v1978
        %v1980 = vlaneseq
        %v1981 = vshrl.u32 %v1980, 7
        %v1982 = vsub.s32 %v1979, %v1981
        %v1983 = vrot.slane %v1973, %v1982
        %v1985 = vunpack.c.l.s4 1966171168
        %v1986 = vunpack.c.0.s8 %v1985
        %v1987 = vlaneseq
        %v1988 = vshrl.u32 %v1987, 7
        %v1989 = vsub.s32 %v1986, %v1988
        %v1990 = vrot.slane %v1974, %v1989
        %v1992 = vunpack.c.l.s4 1966171168
        %v1993 = vunpack.c.0.s8 %v1992
        %v1994 = vlaneseq
        %v1995 = vshrl.u32 %v1994, 7
        %v1996 = vsub.s32 %v1993, %v1995
        %v1997 = vrot.slane %v1975, %v1996
        %v1999 = vunpack.c.l.s4 1966171168
        %v2000 = vunpack.c.0.s8 %v1999
        %v2001 = vlaneseq
        %v2002 = vshrl.u32 %v2001, 7
        %v2003 = vsub.s32 %v2000, %v2002
        %v2004 = vrot.slane %v1976, %v2003
        %v2005 = vcombine.low %v1983, %v1990
        %v2006 = vcombine.low %v1997, %v2004
        %v2008 = vunpack.c.l.s4 1966171168
        %v2009 = vunpack.c.0.s8 %v2008
        %v2010 = vlaneseq
        %v2011 = vshrl.u32 %v2010, 7
        %v2012 = vsub.s32 %v2009, %v2011
        %v2013 = vrot.slane %v2005, %v2012
        %v2015 = vunpack.c.l.s4 1966171168
        %v2016 = vunpack.c.0.s8 %v2015
        %v2017 = vlaneseq
        %v2018 = vshrl.u32 %v2017, 7
        %v2019 = vsub.s32 %v2016, %v2018
        %v2020 = vrot.slane %v2006, %v2019
        %v2021 = vcombine.low %v2013, %v2020
        %v2022 = vcombine.low %v1361, %v1369
        %v2023 = vcombine.low %v1377, %v1385
        %v2024 = vcombine.low %v1394, %v1402
        %v2025 = vcombine.low %v1410, %v1418
        %v2027 = vunpack.c.l.s4 1966171168
        %v2028 = vunpack.c.0.s8 %v2027
        %v2029 = vlaneseq
        %v2030 = vshrl.u32 %v2029, 7
        %v2031 = vsub.s32 %v2028, %v2030
        %v2032 = vrot.slane %v2022, %v2031
        %v2034 = vunpack.c.l.s4 1966171168
        %v2035 = vunpack.c.0.s8 %v2034
        %v2036 = vlaneseq
        %v2037 = vshrl.u32 %v2036, 7
        %v2038 = vsub.s32 %v2035, %v2037
        %v2039 = vrot.slane %v2023, %v2038
        %v2041 = vunpack.c.l.s4 1966171168
        %v2042 = vunpack.c.0.s8 %v2041
        %v2043 = vlaneseq
        %v2044 = vshrl.u32 %v2043, 7
        %v2045 = vsub.s32 %v2042, %v2044
        %v2046 = vrot.slane %v2024, %v2045
        %v2048 = vunpack.c.l.s4 1966171168
        %v2049 = vunpack.c.0.s8 %v2048
        %v2050 = vlaneseq
        %v2051 = vshrl.u32 %v2050, 7
        %v2052 = vsub.s32 %v2049, %v2051
        %v2053 = vrot.slane %v2025, %v2052
        %v2054 = vcombine.low %v2032, %v2039
        %v2055 = vcombine.low %v2046, %v2053
        %v2057 = vunpack.c.l.s4 1966171168
        %v2058 = vunpack.c.0.s8 %v2057
        %v2059 = vlaneseq
        %v2060 = vshrl.u32 %v2059, 7
        %v2061 = vsub.s32 %v2058, %v2060
        %v2062 = vrot.slane %v2054, %v2061
        %v2064 = vunpack.c.l.s4 1966171168
        %v2065 = vunpack.c.0.s8 %v2064
        %v2066 = vlaneseq
        %v2067 = vshrl.u32 %v2066, 7
        %v2068 = vsub.s32 %v2065, %v2067
        %v2069 = vrot.slane %v2055, %v2068
        %v2070 = vcombine.low %v2062, %v2069
        %v2071 = vcombine.low %v1426, %v1434
        %v2072 = vcombine.low %v1442, %v1450
        %v2073 = vcombine.low %v1458, %v1467
        %v2074 = vcombine.low %v1475, %v1483
        %v2076 = vunpack.c.l.s4 1966171168
        %v2077 = vunpack.c.0.s8 %v2076
        %v2078 = vlaneseq
        %v2079 = vshrl.u32 %v2078, 7
        %v2080 = vsub.s32 %v2077, %v2079
        %v2081 = vrot.slane %v2071, %v2080
        %v2083 = vunpack.c.l.s4 1966171168
        %v2084 = vunpack.c.0.s8 %v2083
        %v2085 = vlaneseq
        %v2086 = vshrl.u32 %v2085, 7
        %v2087 = vsub.s32 %v2084, %v2086
        %v2088 = vrot.slane %v2072, %v2087
        %v2090 = vunpack.c.l.s4 1966171168
        %v2091 = vunpack.c.0.s8 %v2090
        %v2092 = vlaneseq
        %v2093 = vshrl.u32 %v2092, 7
        %v2094 = vsub.s32 %v2091, %v2093
        %v2095 = vrot.slane %v2073, %v2094
        %v2097 = vunpack.c.l.s4 1966171168
        %v2098 = vunpack.c.0.s8 %v2097
        %v2099 = vlaneseq
        %v2100 = vshrl.u32 %v2099, 7
        %v2101 = vsub.s32 %v2098, %v2100
        %v2102 = vrot.slane %v2074, %v2101
        %v2103 = vcombine.low %v2081, %v2088
        %v2104 = vcombine.low %v2095, %v2102
        %v2106 = vunpack.c.l.s4 1966171168
        %v2107 = vunpack.c.0.s8 %v2106
        %v2108 = vlaneseq
        %v2109 = vshrl.u32 %v2108, 7
        %v2110 = vsub.s32 %v2107, %v2109
        %v2111 = vrot.slane %v2103, %v2110
        %v2113 = vunpack.c.l.s4 1966171168
        %v2114 = vunpack.c.0.s8 %v2113
        %v2115 = vlaneseq
        %v2116 = vshrl.u32 %v2115, 7
        %v2117 = vsub.s32 %v2114, %v2116
        %v2118 = vrot.slane %v2104, %v2117
        %v2119 = vcombine.low %v2111, %v2118
        %v2120 = vcombine.low %v1491, %v1499
        %v2121 = vcombine.low %v1507, %v1515
        %v2122 = vcombine.low %v1523, %v1531
        %v2123 = vcombine.low %v1540, %v1548
        %v2125 = vunpack.c.l.s4 1966171168
        %v2126 = vunpack.c.0.s8 %v2125
        %v2127 = vlaneseq
        %v2128 = vshrl.u32 %v2127, 7
        %v2129 = vsub.s32 %v2126, %v2128
        %v2130 = vrot.slane %v2120, %v2129
        %v2132 = vunpack.c.l.s4 1966171168
        %v2133 = vunpack.c.0.s8 %v2132
        %v2134 = vlaneseq
        %v2135 = vshrl.u32 %v2134, 7
        %v2136 = vsub.s32 %v2133, %v2135
        %v2137 = vrot.slane %v2121, %v2136
        %v2139 = vunpack.c.l.s4 1966171168
        %v2140 = vunpack.c.0.s8 %v2139
        %v2141 = vlaneseq
        %v2142 = vshrl.u32 %v2141, 7
        %v2143 = vsub.s32 %v2140, %v2142
        %v2144 = vrot.slane %v2122, %v2143
        %v2146 = vunpack.c.l.s4 1966171168
        %v2147 = vunpack.c.0.s8 %v2146
        %v2148 = vlaneseq
        %v2149 = vshrl.u32 %v2148, 7
        %v2150 = vsub.s32 %v2147, %v2149
        %v2151 = vrot.slane %v2123, %v2150
        %v2152 = vcombine.low %v2130, %v2137
        %v2153 = vcombine.low %v2144, %v2151
        %v2155 = vunpack.c.l.s4 1966171168
        %v2156 = vunpack.c.0.s8 %v2155
        %v2157 = vlaneseq
        %v2158 = vshrl.u32 %v2157, 7
        %v2159 = vsub.s32 %v2156, %v2158
        %v2160 = vrot.slane %v2152, %v2159
        %v2162 = vunpack.c.l.s4 1966171168
        %v2163 = vunpack.c.0.s8 %v2162
        %v2164 = vlaneseq
        %v2165 = vshrl.u32 %v2164, 7
        %v2166 = vsub.s32 %v2163, %v2165
        %v2167 = vrot.slane %v2153, %v2166
        %v2168 = vcombine.low %v2160, %v2167
        %v2169 = vcombine.low %v1556, %v1564
        %v2170 = vcombine.low %v1572, %v1580
        %v2171 = vcombine.low %v1588, %v1596
        %v2172 = vcombine.low %v1604, %v1613
        %v2174 = vunpack.c.l.s4 1966171168
        %v2175 = vunpack.c.0.s8 %v2174
        %v2176 = vlaneseq
        %v2177 = vshrl.u32 %v2176, 7
        %v2178 = vsub.s32 %v2175, %v2177
        %v2179 = vrot.slane %v2169, %v2178
        %v2181 = vunpack.c.l.s4 1966171168
        %v2182 = vunpack.c.0.s8 %v2181
        %v2183 = vlaneseq
        %v2184 = vshrl.u32 %v2183, 7
        %v2185 = vsub.s32 %v2182, %v2184
        %v2186 = vrot.slane %v2170, %v2185
        %v2188 = vunpack.c.l.s4 1966171168
        %v2189 = vunpack.c.0.s8 %v2188
        %v2190 = vlaneseq
        %v2191 = vshrl.u32 %v2190, 7
        %v2192 = vsub.s32 %v2189, %v2191
        %v2193 = vrot.slane %v2171, %v2192
        %v2195 = vunpack.c.l.s4 1966171168
        %v2196 = vunpack.c.0.s8 %v2195
        %v2197 = vlaneseq
        %v2198 = vshrl.u32 %v2197, 7
        %v2199 = vsub.s32 %v2196, %v2198
        %v2200 = vrot.slane %v2172, %v2199
        %v2201 = vcombine.low %v2179, %v2186
        %v2202 = vcombine.low %v2193, %v2200
        %v2204 = vunpack.c.l.s4 1966171168
        %v2205 = vunpack.c.0.s8 %v2204
        %v2206 = vlaneseq
        %v2207 = vshrl.u32 %v2206, 7
        %v2208 = vsub.s32 %v2205, %v2207
        %v2209 = vrot.slane %v2201, %v2208
        %v2211 = vunpack.c.l.s4 1966171168
        %v2212 = vunpack.c.0.s8 %v2211
        %v2213 = vlaneseq
        %v2214 = vshrl.u32 %v2213, 7
        %v2215 = vsub.s32 %v2212, %v2214
        %v2216 = vrot.slane %v2202, %v2215
        %v2217 = vcombine.low %v2209, %v2216
        %v2218 = vcombine.low %v1621, %v1629
        %v2219 = vcombine.low %v1637, %v1645
        %v2220 = vcombine.low %v1653, %v1661
        %v2221 = vcombine.low %v1669, %v1677
        %v2223 = vunpack.c.l.s4 1966171168
        %v2224 = vunpack.c.0.s8 %v2223
        %v2225 = vlaneseq
        %v2226 = vshrl.u32 %v2225, 7
        %v2227 = vsub.s32 %v2224, %v2226
        %v2228 = vrot.slane %v2218, %v2227
        %v2230 = vunpack.c.l.s4 1966171168
        %v2231 = vunpack.c.0.s8 %v2230
        %v2232 = vlaneseq
        %v2233 = vshrl.u32 %v2232, 7
        %v2234 = vsub.s32 %v2231, %v2233
        %v2235 = vrot.slane %v2219, %v2234
        %v2237 = vunpack.c.l.s4 1966171168
        %v2238 = vunpack.c.0.s8 %v2237
        %v2239 = vlaneseq
        %v2240 = vshrl.u32 %v2239, 7
        %v2241 = vsub.s32 %v2238, %v2240
        %v2242 = vrot.slane %v2220, %v2241
        %v2244 = vunpack.c.l.s4 1966171168
        %v2245 = vunpack.c.0.s8 %v2244
        %v2246 = vlaneseq
        %v2247 = vshrl.u32 %v2246, 7
        %v2248 = vsub.s32 %v2245, %v2247
        %v2249 = vrot.slane %v2221, %v2248
        %v2250 = vcombine.low %v2228, %v2235
        %v2251 = vcombine.low %v2242, %v2249
        %v2253 = vunpack.c.l.s4 1966171168
        %v2254 = vunpack.c.0.s8 %v2253
        %v2255 = vlaneseq
        %v2256 = vshrl.u32 %v2255, 7
        %v2257 = vsub.s32 %v2254, %v2256
        %v2258 = vrot.slane %v2250, %v2257
        %v2260 = vunpack.c.l.s4 1966171168
        %v2261 = vunpack.c.0.s8 %v2260
        %v2262 = vlaneseq
        %v2263 = vshrl.u32 %v2262, 7
        %v2264 = vsub.s32 %v2261, %v2263
        %v2265 = vrot.slane %v2251, %v2264
        %v2266 = vcombine.low %v2258, %v2265
        %v2267 = vcombine.low %v1686, %v1694
        %v2268 = vcombine.low %v1702, %v1710
        %v2269 = vcombine.low %v1718, %v1726
        %v2270 = vcombine.low %v1734, %v1742
        %v2272 = vunpack.c.l.s4 1966171168
        %v2273 = vunpack.c.0.s8 %v2272
        %v2274 = vlaneseq
        %v2275 = vshrl.u32 %v2274, 7
        %v2276 = vsub.s32 %v2273, %v2275
        %v2277 = vrot.slane %v2267, %v2276
        %v2279 = vunpack.c.l.s4 1966171168
        %v2280 = vunpack.c.0.s8 %v2279
        %v2281 = vlaneseq
        %v2282 = vshrl.u32 %v2281, 7
        %v2283 = vsub.s32 %v2280, %v2282
        %v2284 = vrot.slane %v2268, %v2283
        %v2286 = vunpack.c.l.s4 1966171168
        %v2287 = vunpack.c.0.s8 %v2286
        %v2288 = vlaneseq
        %v2289 = vshrl.u32 %v2288, 7
        %v2290 = vsub.s32 %v2287, %v2289
        %v2291 = vrot.slane %v2269, %v2290
        %v2293 = vunpack.c.l.s4 1966171168
        %v2294 = vunpack.c.0.s8 %v2293
        %v2295 = vlaneseq
        %v2296 = vshrl.u32 %v2295, 7
        %v2297 = vsub.s32 %v2294, %v2296
        %v2298 = vrot.slane %v2270, %v2297
        %v2299 = vcombine.low %v2277, %v2284
        %v2300 = vcombine.low %v2291, %v2298
        %v2302 = vunpack.c.l.s4 1966171168
        %v2303 = vunpack.c.0.s8 %v2302
        %v2304 = vlaneseq
        %v2305 = vshrl.u32 %v2304, 7
        %v2306 = vsub.s32 %v2303, %v2305
        %v2307 = vrot.slane %v2299, %v2306
        %v2309 = vunpack.c.l.s4 1966171168
        %v2310 = vunpack.c.0.s8 %v2309
        %v2311 = vlaneseq
        %v2312 = vshrl.u32 %v2311, 7
        %v2313 = vsub.s32 %v2310, %v2312
        %v2314 = vrot.slane %v2300, %v2313
        %v2315 = vcombine.low %v2307, %v2314
        %v2316 = vcombine.low %v1750, %v1759
        %v2317 = vcombine.low %v1767, %v1775
        %v2318 = vcombine.low %v1783, %v1791
        %v2319 = vcombine.low %v1799, %v1807
        %v2321 = vunpack.c.l.s4 1966171168
        %v2322 = vunpack.c.0.s8 %v2321
        %v2323 = vlaneseq
        %v2324 = vshrl.u32 %v2323, 7
        %v2325 = vsub.s32 %v2322, %v2324
        %v2326 = vrot.slane %v2316, %v2325
        %v2328 = vunpack.c.l.s4 1966171168
        %v2329 = vunpack.c.0.s8 %v2328
        %v2330 = vlaneseq
        %v2331 = vshrl.u32 %v2330, 7
        %v2332 = vsub.s32 %v2329, %v2331
        %v2333 = vrot.slane %v2317, %v2332
        %v2335 = vunpack.c.l.s4 1966171168
        %v2336 = vunpack.c.0.s8 %v2335
        %v2337 = vlaneseq
        %v2338 = vshrl.u32 %v2337, 7
        %v2339 = vsub.s32 %v2336, %v2338
        %v2340 = vrot.slane %v2318, %v2339
        %v2342 = vunpack.c.l.s4 1966171168
        %v2343 = vunpack.c.0.s8 %v2342
        %v2344 = vlaneseq
        %v2345 = vshrl.u32 %v2344, 7
        %v2346 = vsub.s32 %v2343, %v2345
        %v2347 = vrot.slane %v2319, %v2346
        %v2348 = vcombine.low %v2326, %v2333
        %v2349 = vcombine.low %v2340, %v2347
        %v2351 = vunpack.c.l.s4 1966171168
        %v2352 = vunpack.c.0.s8 %v2351
        %v2353 = vlaneseq
        %v2354 = vshrl.u32 %v2353, 7
        %v2355 = vsub.s32 %v2352, %v2354
        %v2356 = vrot.slane %v2348, %v2355
        %v2358 = vunpack.c.l.s4 1966171168
        %v2359 = vunpack.c.0.s8 %v2358
        %v2360 = vlaneseq
        %v2361 = vshrl.u32 %v2360, 7
        %v2362 = vsub.s32 %v2359, %v2361
        %v2363 = vrot.slane %v2349, %v2362
        %v2364 = vcombine.low %v2356, %v2363
        %v2365 = vcombine.low %v1815, %v1823
        %v2367 = vunpack.c.l.s4 1966171168
        %v2368 = vunpack.c.0.s8 %v2367
        %v2369 = vlaneseq
        %v2370 = vshrl.u32 %v2369, 7
        %v2371 = vsub.s32 %v2368, %v2370
        %v2372 = vrot.slane %v2365, %v2371
        %v2374 = vunpack.c.l.s4 1966171168
        %v2375 = vunpack.c.0.s8 %v2374
        %v2376 = vlaneseq
        %v2377 = vshrl.u32 %v2376, 7
        %v2378 = vsub.s32 %v2375, %v2377
        %v2379 = vrot.slane %v2372, %v2378
        %vm2380 = vcmask 31744
        %v2382 = vsel %vm2380, %v1874, 0
        %v2385 = vsel %vm2380, %v1923, 0
        %v2388 = vsel %vm2380, %v1972, 0
        %v2391 = vsel %vm2380, %v2021, 0
        %v2394 = vsel %vm2380, %v2070, 0
        %v2397 = vsel %vm2380, %v2119, 0
        %v2400 = vsel %vm2380, %v2168, 0
        %v2403 = vsel %vm2380, %v2217, 0
        %v2406 = vsel %vm2380, %v2266, 0
        %v2409 = vsel %vm2380, %v2315, 0
        %v2412 = vsel %vm2380, %v2364, 0
        %v2415 = vsel %vm2380, %v2379, 0
        %vm2417 = vcmask 1041408
        %v2419 = vsel %vm2417, %v1825, 0
        %2421 = vmatprep.subr.bf16.mxu0 0
        %2422 = vmatpush1.bf16.msra.mxu0 0
        %2423 = vmatprep.subr.bf16.mxu0 0
        %2424 = vmatpush1.bf16.msra.mxu0 0
        %2425 = vmatprep.subr.bf16.mxu0 0
        %2426 = vmatpush1.bf16.msra.mxu0 0
        %2427 = vmatprep.subr.bf16.mxu0 0
        %2428 = vmatpush1.bf16.msra.mxu0 0
        %2429 = vmatprep.subr.bf16.mxu0 0
        %2430 = vmatpush1.bf16.msra.mxu0 0
        %2431 = vmatprep.subr.bf16.mxu0 0
        %2432 = vmatpush1.bf16.msra.mxu0 0
        %2433 = vmatprep.subr.bf16.mxu0 0
        %2434 = vmatpush1.bf16.msra.mxu0 0
        %2435 = vmatprep.subr.bf16.mxu0 0
        %2436 = vmatpush1.bf16.msra.mxu0 %v2419
        %2437 = vmatprep.subr.bf16.mxu0 0
        %2438 = vmatpush2.bf16.msra.mxu0 0
        %2439 = vmatprep.subr.bf16.mxu0 0
        %2440 = vmatpush2.bf16.msra.mxu0 0
        %2441 = vmatprep.subr.bf16.mxu0 0
        %2442 = vmatpush2.bf16.msra.mxu0 0
        %2443 = vmatprep.subr.bf16.mxu0 0
        %2444 = vmatpush2.bf16.msra.mxu0 0
        %2445 = vmatprep.subr.bf16.mxu0 0
        %2446 = vmatpush2.bf16.msra.mxu0 0
        %2447 = vmatprep.subr.bf16.mxu0 0
        %2448 = vmatpush2.bf16.msra.mxu0 0
        %2449 = vmatprep.subr.bf16.mxu0 0
        %2450 = vmatpush2.bf16.msra.mxu0 0
        %2451 = vmatprep.subr.bf16.mxu0 0
        %2452 = vmatpush2.bf16.msra.mxu0 0
        %2453 = vmatprep.mubr.bf16.mxu0 0
        %2454 = vmatmul.mubr.bf16.gmra.mxu0 %v2382
        %v2455 = vpop.f32.mrf.mxu0
        %v2456 = vadd.f32 0.0, %v2455
        %v2457 = vpop.f32.mrf.mxu0
        %v2458 = vpop.f32.mrf.mxu0
        %v2459 = vadd.f32 0.0, %v2458
        %v2460 = vpop.f32.mrf.mxu0
        %2461 = vmatprep.mubr.bf16.mxu0 0
        %2462 = vmatmul.mubr.bf16.gmra.mxu0 %v2385
        %v2463 = vpop.f32.mrf.mxu0
        %v2464 = vadd.f32 0.0, %v2463
        %v2465 = vpop.f32.mrf.mxu0
        %v2466 = vpop.f32.mrf.mxu0
        %v2467 = vadd.f32 0.0, %v2466
        %v2468 = vpop.f32.mrf.mxu0
        %2469 = vmatprep.mubr.bf16.mxu0 0
        %2470 = vmatmul.mubr.bf16.gmra.mxu0 %v2388
        %v2471 = vpop.f32.mrf.mxu0
        %v2472 = vadd.f32 0.0, %v2471
        %v2473 = vpop.f32.mrf.mxu0
        %v2474 = vpop.f32.mrf.mxu0
        %v2475 = vadd.f32 0.0, %v2474
        %v2476 = vpop.f32.mrf.mxu0
        %2477 = vmatprep.mubr.bf16.mxu0 0
        %2478 = vmatmul.mubr.bf16.gmra.mxu0 %v2391
        %v2479 = vpop.f32.mrf.mxu0
        %v2480 = vadd.f32 0.0, %v2479
        %v2481 = vpop.f32.mrf.mxu0
        %v2482 = vpop.f32.mrf.mxu0
        %v2483 = vadd.f32 0.0, %v2482
        %v2484 = vpop.f32.mrf.mxu0
        %2485 = vmatprep.mubr.bf16.mxu0 0
        %2486 = vmatmul.mubr.bf16.gmra.mxu0 %v2394
        %v2487 = vpop.f32.mrf.mxu0
        %v2488 = vadd.f32 0.0, %v2487
        %v2489 = vpop.f32.mrf.mxu0
        %v2490 = vpop.f32.mrf.mxu0
        %v2491 = vadd.f32 0.0, %v2490
        %v2492 = vpop.f32.mrf.mxu0
        %2493 = vmatprep.mubr.bf16.mxu0 0
        %2494 = vmatmul.mubr.bf16.gmra.mxu0 %v2397
        %v2495 = vpop.f32.mrf.mxu0
        %v2496 = vadd.f32 0.0, %v2495
        %v2497 = vpop.f32.mrf.mxu0
        %v2498 = vpop.f32.mrf.mxu0
        %v2499 = vadd.f32 0.0, %v2498
        %v2500 = vpop.f32.mrf.mxu0
        %2501 = vmatprep.mubr.bf16.mxu0 0
        %2502 = vmatmul.mubr.bf16.gmra.mxu0 %v2400
        %v2503 = vpop.f32.mrf.mxu0
        %v2504 = vadd.f32 0.0, %v2503
        %v2505 = vpop.f32.mrf.mxu0
        %v2506 = vpop.f32.mrf.mxu0
        %v2507 = vadd.f32 0.0, %v2506
        %v2508 = vpop.f32.mrf.mxu0
        %2509 = vmatprep.mubr.bf16.mxu0 0
        %2510 = vmatmul.mubr.bf16.gmra.mxu0 %v2403
        %v2511 = vpop.f32.mrf.mxu0
        %v2512 = vadd.f32 0.0, %v2511
        %v2513 = vpop.f32.mrf.mxu0
        %v2514 = vpop.f32.mrf.mxu0
        %v2515 = vadd.f32 0.0, %v2514
        %v2516 = vpop.f32.mrf.mxu0
        %2517 = vmatprep.mubr.bf16.mxu0 0
        %2518 = vmatmul.mubr.bf16.gmra.mxu0 %v2406
        %v2519 = vpop.f32.mrf.mxu0
        %v2520 = vadd.f32 0.0, %v2519
        %v2521 = vpop.f32.mrf.mxu0
        %v2522 = vpop.f32.mrf.mxu0
        %v2523 = vadd.f32 0.0, %v2522
        %v2524 = vpop.f32.mrf.mxu0
        %2525 = vmatprep.mubr.bf16.mxu0 0
        %2526 = vmatmul.mubr.bf16.gmra.mxu0 %v2409
        %v2527 = vpop.f32.mrf.mxu0
        %v2528 = vadd.f32 0.0, %v2527
        %v2529 = vpop.f32.mrf.mxu0
        %v2530 = vpop.f32.mrf.mxu0
        %v2531 = vadd.f32 0.0, %v2530
        %v2532 = vpop.f32.mrf.mxu0
        %2533 = vmatprep.mubr.bf16.mxu0 0
        %2534 = vmatmul.mubr.bf16.gmra.mxu0 %v2412
        %v2535 = vpop.f32.mrf.mxu0
        %v2536 = vadd.f32 0.0, %v2535
        %v2537 = vpop.f32.mrf.mxu0
        %v2538 = vpop.f32.mrf.mxu0
        %v2539 = vadd.f32 0.0, %v2538
        %v2540 = vpop.f32.mrf.mxu0
        %2541 = vmatprep.mubr.bf16.mxu0 0
        %2542 = vmatmul.mubr.bf16.gmra.mxu0 %v2415
        %v2543 = vpop.f32.mrf.mxu0
        %v2544 = vadd.f32 0.0, %v2543
        %v2545 = vpop.f32.mrf.mxu0
        %v2546 = vpop.f32.mrf.mxu0
        %v2547 = vpop.f32.mrf.mxu0
        %2548 = vdwg.mxu0
        %v2549 = vcombine.low %v392, %v399
        %v2550 = vcombine.low %v400, %v401
        %v2551 = vcombine.low %v416, %v423
        %v2552 = vcombine.low %v424, %v425
        %v2554 = vunpack.c.l.s4 1966171168
        %v2555 = vunpack.c.0.s8 %v2554
        %v2556 = vlaneseq
        %v2557 = vshrl.u32 %v2556, 7
        %v2558 = vsub.s32 %v2555, %v2557
        %v2559 = vrot.slane %v2549, %v2558
        %v2561 = vunpack.c.l.s4 1966171168
        %v2562 = vunpack.c.0.s8 %v2561
        %v2563 = vlaneseq
        %v2564 = vshrl.u32 %v2563, 7
        %v2565 = vsub.s32 %v2562, %v2564
        %v2566 = vrot.slane %v2550, %v2565
        %v2568 = vunpack.c.l.s4 1966171168
        %v2569 = vunpack.c.0.s8 %v2568
        %v2570 = vlaneseq
        %v2571 = vshrl.u32 %v2570, 7
        %v2572 = vsub.s32 %v2569, %v2571
        %v2573 = vrot.slane %v2551, %v2572
        %v2575 = vunpack.c.l.s4 1966171168
        %v2576 = vunpack.c.0.s8 %v2575
        %v2577 = vlaneseq
        %v2578 = vshrl.u32 %v2577, 7
        %v2579 = vsub.s32 %v2576, %v2578
        %v2580 = vrot.slane %v2552, %v2579
        %v2581 = vcombine.low %v2559, %v2566
        %v2582 = vcombine.low %v2573, %v2580
        %v2584 = vunpack.c.l.s4 1966171168
        %v2585 = vunpack.c.0.s8 %v2584
        %v2586 = vlaneseq
        %v2587 = vshrl.u32 %v2586, 7
        %v2588 = vsub.s32 %v2585, %v2587
        %v2589 = vrot.slane %v2581, %v2588
        %v2591 = vunpack.c.l.s4 1966171168
        %v2592 = vunpack.c.0.s8 %v2591
        %v2593 = vlaneseq
        %v2594 = vshrl.u32 %v2593, 7
        %v2595 = vsub.s32 %v2592, %v2594
        %v2596 = vrot.slane %v2582, %v2595
        %v2597 = vcombine.low %v2589, %v2596
        %v2598 = vcombine.low %v439, %v454
        %v2599 = vcombine.low %v461, %v462
        %v2600 = vcombine.low %v463, %v478
        %v2601 = vcombine.low %v485, %v486
        %v2603 = vunpack.c.l.s4 1966171168
        %v2604 = vunpack.c.0.s8 %v2603
        %v2605 = vlaneseq
        %v2606 = vshrl.u32 %v2605, 7
        %v2607 = vsub.s32 %v2604, %v2606
        %v2608 = vrot.slane %v2598, %v2607
        %v2610 = vunpack.c.l.s4 1966171168
        %v2611 = vunpack.c.0.s8 %v2610
        %v2612 = vlaneseq
        %v2613 = vshrl.u32 %v2612, 7
        %v2614 = vsub.s32 %v2611, %v2613
        %v2615 = vrot.slane %v2599, %v2614
        %v2617 = vunpack.c.l.s4 1966171168
        %v2618 = vunpack.c.0.s8 %v2617
        %v2619 = vlaneseq
        %v2620 = vshrl.u32 %v2619, 7
        %v2621 = vsub.s32 %v2618, %v2620
        %v2622 = vrot.slane %v2600, %v2621
        %v2624 = vunpack.c.l.s4 1966171168
        %v2625 = vunpack.c.0.s8 %v2624
        %v2626 = vlaneseq
        %v2627 = vshrl.u32 %v2626, 7
        %v2628 = vsub.s32 %v2625, %v2627
        %v2629 = vrot.slane %v2601, %v2628
        %v2630 = vcombine.low %v2608, %v2615
        %v2631 = vcombine.low %v2622, %v2629
        %v2633 = vunpack.c.l.s4 1966171168
        %v2634 = vunpack.c.0.s8 %v2633
        %v2635 = vlaneseq
        %v2636 = vshrl.u32 %v2635, 7
        %v2637 = vsub.s32 %v2634, %v2636
        %v2638 = vrot.slane %v2630, %v2637
        %v2640 = vunpack.c.l.s4 1966171168
        %v2641 = vunpack.c.0.s8 %v2640
        %v2642 = vlaneseq
        %v2643 = vshrl.u32 %v2642, 7
        %v2644 = vsub.s32 %v2641, %v2643
        %v2645 = vrot.slane %v2631, %v2644
        %v2646 = vcombine.low %v2638, %v2645
        %v2647 = vcombine.low %v487, %v501
        %v2648 = vcombine.low %v516, %v523
        %v2649 = vcombine.low %v524, %v525
        %v2650 = vcombine.low %v540, %v547
        %v2652 = vunpack.c.l.s4 1966171168
        %v2653 = vunpack.c.0.s8 %v2652
        %v2654 = vlaneseq
        %v2655 = vshrl.u32 %v2654, 7
        %v2656 = vsub.s32 %v2653, %v2655
        %v2657 = vrot.slane %v2647, %v2656
        %v2659 = vunpack.c.l.s4 1966171168
        %v2660 = vunpack.c.0.s8 %v2659
        %v2661 = vlaneseq
        %v2662 = vshrl.u32 %v2661, 7
        %v2663 = vsub.s32 %v2660, %v2662
        %v2664 = vrot.slane %v2648, %v2663
        %v2666 = vunpack.c.l.s4 1966171168
        %v2667 = vunpack.c.0.s8 %v2666
        %v2668 = vlaneseq
        %v2669 = vshrl.u32 %v2668, 7
        %v2670 = vsub.s32 %v2667, %v2669
        %v2671 = vrot.slane %v2649, %v2670
        %v2673 = vunpack.c.l.s4 1966171168
        %v2674 = vunpack.c.0.s8 %v2673
        %v2675 = vlaneseq
        %v2676 = vshrl.u32 %v2675, 7
        %v2677 = vsub.s32 %v2674, %v2676
        %v2678 = vrot.slane %v2650, %v2677
        %v2679 = vcombine.low %v2657, %v2664
        %v2680 = vcombine.low %v2671, %v2678
        %v2682 = vunpack.c.l.s4 1966171168
        %v2683 = vunpack.c.0.s8 %v2682
        %v2684 = vlaneseq
        %v2685 = vshrl.u32 %v2684, 7
        %v2686 = vsub.s32 %v2683, %v2685
        %v2687 = vrot.slane %v2679, %v2686
        %v2689 = vunpack.c.l.s4 1966171168
        %v2690 = vunpack.c.0.s8 %v2689
        %v2691 = vlaneseq
        %v2692 = vshrl.u32 %v2691, 7
        %v2693 = vsub.s32 %v2690, %v2692
        %v2694 = vrot.slane %v2680, %v2693
        %v2695 = vcombine.low %v2687, %v2694
        %v2696 = vcombine.low %v548, %v549
        %v2697 = vcombine.low %v563, %v578
        %v2698 = vcombine.low %v585, %v586
        %v2699 = vcombine.low %v587, %v602
        %v2701 = vunpack.c.l.s4 1966171168
        %v2702 = vunpack.c.0.s8 %v2701
        %v2703 = vlaneseq
        %v2704 = vshrl.u32 %v2703, 7
        %v2705 = vsub.s32 %v2702, %v2704
        %v2706 = vrot.slane %v2696, %v2705
        %v2708 = vunpack.c.l.s4 1966171168
        %v2709 = vunpack.c.0.s8 %v2708
        %v2710 = vlaneseq
        %v2711 = vshrl.u32 %v2710, 7
        %v2712 = vsub.s32 %v2709, %v2711
        %v2713 = vrot.slane %v2697, %v2712
        %v2715 = vunpack.c.l.s4 1966171168
        %v2716 = vunpack.c.0.s8 %v2715
        %v2717 = vlaneseq
        %v2718 = vshrl.u32 %v2717, 7
        %v2719 = vsub.s32 %v2716, %v2718
        %v2720 = vrot.slane %v2698, %v2719
        %v2722 = vunpack.c.l.s4 1966171168
        %v2723 = vunpack.c.0.s8 %v2722
        %v2724 = vlaneseq
        %v2725 = vshrl.u32 %v2724, 7
        %v2726 = vsub.s32 %v2723, %v2725
        %v2727 = vrot.slane %v2699, %v2726
        %v2728 = vcombine.low %v2706, %v2713
        %v2729 = vcombine.low %v2720, %v2727
        %v2731 = vunpack.c.l.s4 1966171168
        %v2732 = vunpack.c.0.s8 %v2731
        %v2733 = vlaneseq
        %v2734 = vshrl.u32 %v2733, 7
        %v2735 = vsub.s32 %v2732, %v2734
        %v2736 = vrot.slane %v2728, %v2735
        %v2738 = vunpack.c.l.s4 1966171168
        %v2739 = vunpack.c.0.s8 %v2738
        %v2740 = vlaneseq
        %v2741 = vshrl.u32 %v2740, 7
        %v2742 = vsub.s32 %v2739, %v2741
        %v2743 = vrot.slane %v2729, %v2742
        %v2744 = vcombine.low %v2736, %v2743
        %v2745 = vcombine.low %v609, %v610
        %v2746 = vcombine.low %v611, %v625
        %v2747 = vcombine.low %v640, %v647
        %v2748 = vcombine.low %v648, %v649
        %v2750 = vunpack.c.l.s4 1966171168
        %v2751 = vunpack.c.0.s8 %v2750
        %v2752 = vlaneseq
        %v2753 = vshrl.u32 %v2752, 7
        %v2754 = vsub.s32 %v2751, %v2753
        %v2755 = vrot.slane %v2745, %v2754
        %v2757 = vunpack.c.l.s4 1966171168
        %v2758 = vunpack.c.0.s8 %v2757
        %v2759 = vlaneseq
        %v2760 = vshrl.u32 %v2759, 7
        %v2761 = vsub.s32 %v2758, %v2760
        %v2762 = vrot.slane %v2746, %v2761
        %v2764 = vunpack.c.l.s4 1966171168
        %v2765 = vunpack.c.0.s8 %v2764
        %v2766 = vlaneseq
        %v2767 = vshrl.u32 %v2766, 7
        %v2768 = vsub.s32 %v2765, %v2767
        %v2769 = vrot.slane %v2747, %v2768
        %v2771 = vunpack.c.l.s4 1966171168
        %v2772 = vunpack.c.0.s8 %v2771
        %v2773 = vlaneseq
        %v2774 = vshrl.u32 %v2773, 7
        %v2775 = vsub.s32 %v2772, %v2774
        %v2776 = vrot.slane %v2748, %v2775
        %v2777 = vcombine.low %v2755, %v2762
        %v2778 = vcombine.low %v2769, %v2776
        %v2780 = vunpack.c.l.s4 1966171168
        %v2781 = vunpack.c.0.s8 %v2780
        %v2782 = vlaneseq
        %v2783 = vshrl.u32 %v2782, 7
        %v2784 = vsub.s32 %v2781, %v2783
        %v2785 = vrot.slane %v2777, %v2784
        %v2787 = vunpack.c.l.s4 1966171168
        %v2788 = vunpack.c.0.s8 %v2787
        %v2789 = vlaneseq
        %v2790 = vshrl.u32 %v2789, 7
        %v2791 = vsub.s32 %v2788, %v2790
        %v2792 = vrot.slane %v2778, %v2791
        %v2793 = vcombine.low %v2785, %v2792
        %v2794 = vcombine.low %v664, %v671
        %v2795 = vcombine.low %v672, %v673
        %v2796 = vcombine.low %v687, %v702
        %v2797 = vcombine.low %v709, %v710
        %v2799 = vunpack.c.l.s4 1966171168
        %v2800 = vunpack.c.0.s8 %v2799
        %v2801 = vlaneseq
        %v2802 = vshrl.u32 %v2801, 7
        %v2803 = vsub.s32 %v2800, %v2802
        %v2804 = vrot.slane %v2794, %v2803
        %v2806 = vunpack.c.l.s4 1966171168
        %v2807 = vunpack.c.0.s8 %v2806
        %v2808 = vlaneseq
        %v2809 = vshrl.u32 %v2808, 7
        %v2810 = vsub.s32 %v2807, %v2809
        %v2811 = vrot.slane %v2795, %v2810
        %v2813 = vunpack.c.l.s4 1966171168
        %v2814 = vunpack.c.0.s8 %v2813
        %v2815 = vlaneseq
        %v2816 = vshrl.u32 %v2815, 7
        %v2817 = vsub.s32 %v2814, %v2816
        %v2818 = vrot.slane %v2796, %v2817
        %v2820 = vunpack.c.l.s4 1966171168
        %v2821 = vunpack.c.0.s8 %v2820
        %v2822 = vlaneseq
        %v2823 = vshrl.u32 %v2822, 7
        %v2824 = vsub.s32 %v2821, %v2823
        %v2825 = vrot.slane %v2797, %v2824
        %v2826 = vcombine.low %v2804, %v2811
        %v2827 = vcombine.low %v2818, %v2825
        %v2829 = vunpack.c.l.s4 1966171168
        %v2830 = vunpack.c.0.s8 %v2829
        %v2831 = vlaneseq
        %v2832 = vshrl.u32 %v2831, 7
        %v2833 = vsub.s32 %v2830, %v2832
        %v2834 = vrot.slane %v2826, %v2833
        %v2836 = vunpack.c.l.s4 1966171168
        %v2837 = vunpack.c.0.s8 %v2836
        %v2838 = vlaneseq
        %v2839 = vshrl.u32 %v2838, 7
        %v2840 = vsub.s32 %v2837, %v2839
        %v2841 = vrot.slane %v2827, %v2840
        %v2842 = vcombine.low %v2834, %v2841
        %v2843 = vcombine.low %v711, %v726
        %v2844 = vcombine.low %v733, %v734
        %v2845 = vcombine.low %v735, %v749
        %v2846 = vcombine.low %v764, %v771
        %v2848 = vunpack.c.l.s4 1966171168
        %v2849 = vunpack.c.0.s8 %v2848
        %v2850 = vlaneseq
        %v2851 = vshrl.u32 %v2850, 7
        %v2852 = vsub.s32 %v2849, %v2851
        %v2853 = vrot.slane %v2843, %v2852
        %v2855 = vunpack.c.l.s4 1966171168
        %v2856 = vunpack.c.0.s8 %v2855
        %v2857 = vlaneseq
        %v2858 = vshrl.u32 %v2857, 7
        %v2859 = vsub.s32 %v2856, %v2858
        %v2860 = vrot.slane %v2844, %v2859
        %v2862 = vunpack.c.l.s4 1966171168
        %v2863 = vunpack.c.0.s8 %v2862
        %v2864 = vlaneseq
        %v2865 = vshrl.u32 %v2864, 7
        %v2866 = vsub.s32 %v2863, %v2865
        %v2867 = vrot.slane %v2845, %v2866
        %v2869 = vunpack.c.l.s4 1966171168
        %v2870 = vunpack.c.0.s8 %v2869
        %v2871 = vlaneseq
        %v2872 = vshrl.u32 %v2871, 7
        %v2873 = vsub.s32 %v2870, %v2872
        %v2874 = vrot.slane %v2846, %v2873
        %v2875 = vcombine.low %v2853, %v2860
        %v2876 = vcombine.low %v2867, %v2874
        %v2878 = vunpack.c.l.s4 1966171168
        %v2879 = vunpack.c.0.s8 %v2878
        %v2880 = vlaneseq
        %v2881 = vshrl.u32 %v2880, 7
        %v2882 = vsub.s32 %v2879, %v2881
        %v2883 = vrot.slane %v2875, %v2882
        %v2885 = vunpack.c.l.s4 1966171168
        %v2886 = vunpack.c.0.s8 %v2885
        %v2887 = vlaneseq
        %v2888 = vshrl.u32 %v2887, 7
        %v2889 = vsub.s32 %v2886, %v2888
        %v2890 = vrot.slane %v2876, %v2889
        %v2891 = vcombine.low %v2883, %v2890
        %v2892 = vcombine.low %v772, %v773
        %v2893 = vcombine.low %v788, %v795
        %v2894 = vcombine.low %v796, %v797
        %v2895 = vcombine.low %v811, %v826
        %v2897 = vunpack.c.l.s4 1966171168
        %v2898 = vunpack.c.0.s8 %v2897
        %v2899 = vlaneseq
        %v2900 = vshrl.u32 %v2899, 7
        %v2901 = vsub.s32 %v2898, %v2900
        %v2902 = vrot.slane %v2892, %v2901
        %v2904 = vunpack.c.l.s4 1966171168
        %v2905 = vunpack.c.0.s8 %v2904
        %v2906 = vlaneseq
        %v2907 = vshrl.u32 %v2906, 7
        %v2908 = vsub.s32 %v2905, %v2907
        %v2909 = vrot.slane %v2893, %v2908
        %v2911 = vunpack.c.l.s4 1966171168
        %v2912 = vunpack.c.0.s8 %v2911
        %v2913 = vlaneseq
        %v2914 = vshrl.u32 %v2913, 7
        %v2915 = vsub.s32 %v2912, %v2914
        %v2916 = vrot.slane %v2894, %v2915
        %v2918 = vunpack.c.l.s4 1966171168
        %v2919 = vunpack.c.0.s8 %v2918
        %v2920 = vlaneseq
        %v2921 = vshrl.u32 %v2920, 7
        %v2922 = vsub.s32 %v2919, %v2921
        %v2923 = vrot.slane %v2895, %v2922
        %v2924 = vcombine.low %v2902, %v2909
        %v2925 = vcombine.low %v2916, %v2923
        %v2927 = vunpack.c.l.s4 1966171168
        %v2928 = vunpack.c.0.s8 %v2927
        %v2929 = vlaneseq
        %v2930 = vshrl.u32 %v2929, 7
        %v2931 = vsub.s32 %v2928, %v2930
        %v2932 = vrot.slane %v2924, %v2931
        %v2934 = vunpack.c.l.s4 1966171168
        %v2935 = vunpack.c.0.s8 %v2934
        %v2936 = vlaneseq
        %v2937 = vshrl.u32 %v2936, 7
        %v2938 = vsub.s32 %v2935, %v2937
        %v2939 = vrot.slane %v2925, %v2938
        %v2940 = vcombine.low %v2932, %v2939
        %v2941 = vcombine.low %v833, %v834
        %v2942 = vcombine.low %v835, %v850
        %v2943 = vcombine.low %v857, %v858
        %v2944 = vcombine.low %v859, %v873
        %v2946 = vunpack.c.l.s4 1966171168
        %v2947 = vunpack.c.0.s8 %v2946
        %v2948 = vlaneseq
        %v2949 = vshrl.u32 %v2948, 7
        %v2950 = vsub.s32 %v2947, %v2949
        %v2951 = vrot.slane %v2941, %v2950
        %v2953 = vunpack.c.l.s4 1966171168
        %v2954 = vunpack.c.0.s8 %v2953
        %v2955 = vlaneseq
        %v2956 = vshrl.u32 %v2955, 7
        %v2957 = vsub.s32 %v2954, %v2956
        %v2958 = vrot.slane %v2942, %v2957
        %v2960 = vunpack.c.l.s4 1966171168
        %v2961 = vunpack.c.0.s8 %v2960
        %v2962 = vlaneseq
        %v2963 = vshrl.u32 %v2962, 7
        %v2964 = vsub.s32 %v2961, %v2963
        %v2965 = vrot.slane %v2943, %v2964
        %v2967 = vunpack.c.l.s4 1966171168
        %v2968 = vunpack.c.0.s8 %v2967
        %v2969 = vlaneseq
        %v2970 = vshrl.u32 %v2969, 7
        %v2971 = vsub.s32 %v2968, %v2970
        %v2972 = vrot.slane %v2944, %v2971
        %v2973 = vcombine.low %v2951, %v2958
        %v2974 = vcombine.low %v2965, %v2972
        %v2976 = vunpack.c.l.s4 1966171168
        %v2977 = vunpack.c.0.s8 %v2976
        %v2978 = vlaneseq
        %v2979 = vshrl.u32 %v2978, 7
        %v2980 = vsub.s32 %v2977, %v2979
        %v2981 = vrot.slane %v2973, %v2980
        %v2983 = vunpack.c.l.s4 1966171168
        %v2984 = vunpack.c.0.s8 %v2983
        %v2985 = vlaneseq
        %v2986 = vshrl.u32 %v2985, 7
        %v2987 = vsub.s32 %v2984, %v2986
        %v2988 = vrot.slane %v2974, %v2987
        %v2989 = vcombine.low %v2981, %v2988
        %v2990 = vcombine.low %v888, %v895
        %v2991 = vcombine.low %v896, %v897
        %v2992 = vcombine.low %v912, %v919
        %v2993 = vcombine.low %v920, %v921
        %v2995 = vunpack.c.l.s4 1966171168
        %v2996 = vunpack.c.0.s8 %v2995
        %v2997 = vlaneseq
        %v2998 = vshrl.u32 %v2997, 7
        %v2999 = vsub.s32 %v2996, %v2998
        %v3000 = vrot.slane %v2990, %v2999
        %v3002 = vunpack.c.l.s4 1966171168
        %v3003 = vunpack.c.0.s8 %v3002
        %v3004 = vlaneseq
        %v3005 = vshrl.u32 %v3004, 7
        %v3006 = vsub.s32 %v3003, %v3005
        %v3007 = vrot.slane %v2991, %v3006
        %v3009 = vunpack.c.l.s4 1966171168
        %v3010 = vunpack.c.0.s8 %v3009
        %v3011 = vlaneseq
        %v3012 = vshrl.u32 %v3011, 7
        %v3013 = vsub.s32 %v3010, %v3012
        %v3014 = vrot.slane %v2992, %v3013
        %v3016 = vunpack.c.l.s4 1966171168
        %v3017 = vunpack.c.0.s8 %v3016
        %v3018 = vlaneseq
        %v3019 = vshrl.u32 %v3018, 7
        %v3020 = vsub.s32 %v3017, %v3019
        %v3021 = vrot.slane %v2993, %v3020
        %v3022 = vcombine.low %v3000, %v3007
        %v3023 = vcombine.low %v3014, %v3021
        %v3025 = vunpack.c.l.s4 1966171168
        %v3026 = vunpack.c.0.s8 %v3025
        %v3027 = vlaneseq
        %v3028 = vshrl.u32 %v3027, 7
        %v3029 = vsub.s32 %v3026, %v3028
        %v3030 = vrot.slane %v3022, %v3029
        %v3032 = vunpack.c.l.s4 1966171168
        %v3033 = vunpack.c.0.s8 %v3032
        %v3034 = vlaneseq
        %v3035 = vshrl.u32 %v3034, 7
        %v3036 = vsub.s32 %v3033, %v3035
        %v3037 = vrot.slane %v3023, %v3036
        %v3038 = vcombine.low %v3030, %v3037
        %v3039 = vcombine.low %v935, %v950
        %v3040 = vcombine.low %v957, %v958
        %v3041 = vcombine.low %v959, %v974
        %v3042 = vcombine.low %v981, %v982
        %v3044 = vunpack.c.l.s4 1966171168
        %v3045 = vunpack.c.0.s8 %v3044
        %v3046 = vlaneseq
        %v3047 = vshrl.u32 %v3046, 7
        %v3048 = vsub.s32 %v3045, %v3047
        %v3049 = vrot.slane %v3039, %v3048
        %v3051 = vunpack.c.l.s4 1966171168
        %v3052 = vunpack.c.0.s8 %v3051
        %v3053 = vlaneseq
        %v3054 = vshrl.u32 %v3053, 7
        %v3055 = vsub.s32 %v3052, %v3054
        %v3056 = vrot.slane %v3040, %v3055
        %v3058 = vunpack.c.l.s4 1966171168
        %v3059 = vunpack.c.0.s8 %v3058
        %v3060 = vlaneseq
        %v3061 = vshrl.u32 %v3060, 7
        %v3062 = vsub.s32 %v3059, %v3061
        %v3063 = vrot.slane %v3041, %v3062
        %v3065 = vunpack.c.l.s4 1966171168
        %v3066 = vunpack.c.0.s8 %v3065
        %v3067 = vlaneseq
        %v3068 = vshrl.u32 %v3067, 7
        %v3069 = vsub.s32 %v3066, %v3068
        %v3070 = vrot.slane %v3042, %v3069
        %v3071 = vcombine.low %v3049, %v3056
        %v3072 = vcombine.low %v3063, %v3070
        %v3074 = vunpack.c.l.s4 1966171168
        %v3075 = vunpack.c.0.s8 %v3074
        %v3076 = vlaneseq
        %v3077 = vshrl.u32 %v3076, 7
        %v3078 = vsub.s32 %v3075, %v3077
        %v3079 = vrot.slane %v3071, %v3078
        %v3081 = vunpack.c.l.s4 1966171168
        %v3082 = vunpack.c.0.s8 %v3081
        %v3083 = vlaneseq
        %v3084 = vshrl.u32 %v3083, 7
        %v3085 = vsub.s32 %v3082, %v3084
        %v3086 = vrot.slane %v3072, %v3085
        %v3087 = vcombine.low %v3079, %v3086
        %v3088 = vcombine.low %v983, %v997
        %v3090 = vunpack.c.l.s4 1966171168
        %v3091 = vunpack.c.0.s8 %v3090
        %v3092 = vlaneseq
        %v3093 = vshrl.u32 %v3092, 7
        %v3094 = vsub.s32 %v3091, %v3093
        %v3095 = vrot.slane %v3088, %v3094
        %v3097 = vunpack.c.l.s4 1966171168
        %v3098 = vunpack.c.0.s8 %v3097
        %v3099 = vlaneseq
        %v3100 = vshrl.u32 %v3099, 7
        %v3101 = vsub.s32 %v3098, %v3100
        %v3102 = vrot.slane %v3095, %v3101
        %v3104 = vsel %vm2380, %v2597, 0
        %v3107 = vsel %vm2380, %v2646, 0
        %v3110 = vsel %vm2380, %v2695, 0
        %v3113 = vsel %vm2380, %v2744, 0
        %v3116 = vsel %vm2380, %v2793, 0
        %v3119 = vsel %vm2380, %v2842, 0
        %v3122 = vsel %vm2380, %v2891, 0
        %v3125 = vsel %vm2380, %v2940, 0
        %v3128 = vsel %vm2380, %v2989, 0
        %v3131 = vsel %vm2380, %v3038, 0
        %v3134 = vsel %vm2380, %v3087, 0
        %v3137 = vsel %vm2380, %v3102, 0
        %v3140 = vsel %vm2417, %v998, 0
        %3142 = vmatprep.subr.bf16.mxu0 0
        %3143 = vmatpush1.bf16.msra.mxu0 0
        %3144 = vmatprep.subr.bf16.mxu0 0
        %3145 = vmatpush1.bf16.msra.mxu0 0
        %3146 = vmatprep.subr.bf16.mxu0 0
        %3147 = vmatpush1.bf16.msra.mxu0 0
        %3148 = vmatprep.subr.bf16.mxu0 0
        %3149 = vmatpush1.bf16.msra.mxu0 0
        %3150 = vmatprep.subr.bf16.mxu0 0
        %3151 = vmatpush1.bf16.msra.mxu0 0
        %3152 = vmatprep.subr.bf16.mxu0 0
        %3153 = vmatpush1.bf16.msra.mxu0 0
        %3154 = vmatprep.subr.bf16.mxu0 0
        %3155 = vmatpush1.bf16.msra.mxu0 0
        %3156 = vmatprep.subr.bf16.mxu0 0
        %3157 = vmatpush1.bf16.msra.mxu0 %v3140
        %3158 = vmatprep.subr.bf16.mxu0 0
        %3159 = vmatpush2.bf16.msra.mxu0 0
        %3160 = vmatprep.subr.bf16.mxu0 0
        %3161 = vmatpush2.bf16.msra.mxu0 0
        %3162 = vmatprep.subr.bf16.mxu0 0
        %3163 = vmatpush2.bf16.msra.mxu0 0
        %3164 = vmatprep.subr.bf16.mxu0 0
        %3165 = vmatpush2.bf16.msra.mxu0 0
        %3166 = vmatprep.subr.bf16.mxu0 0
        %3167 = vmatpush2.bf16.msra.mxu0 0
        %3168 = vmatprep.subr.bf16.mxu0 0
        %3169 = vmatpush2.bf16.msra.mxu0 0
        %3170 = vmatprep.subr.bf16.mxu0 0
        %3171 = vmatpush2.bf16.msra.mxu0 0
        %3172 = vmatprep.subr.bf16.mxu0 0
        %3173 = vmatpush2.bf16.msra.mxu0 0
        %3174 = vmatprep.mubr.bf16.mxu0 0
        %3175 = vmatmul.mubr.bf16.gmra.mxu0 %v3104
        %v3176 = vpop.f32.mrf.mxu0
        %v3177 = vadd.f32 %v2456, %v3176
        %v3178 = vpop.f32.mrf.mxu0
        %v3179 = vpop.f32.mrf.mxu0
        %v3180 = vadd.f32 %v2459, %v3179
        %v3181 = vpop.f32.mrf.mxu0
        %3182 = vmatprep.mubr.bf16.mxu0 0
        %3183 = vmatmul.mubr.bf16.gmra.mxu0 %v3107
        %v3184 = vpop.f32.mrf.mxu0
        %v3185 = vadd.f32 %v2464, %v3184
        %v3186 = vpop.f32.mrf.mxu0
        %v3187 = vpop.f32.mrf.mxu0
        %v3188 = vadd.f32 %v2467, %v3187
        %v3189 = vpop.f32.mrf.mxu0
        %3190 = vmatprep.mubr.bf16.mxu0 0
        %3191 = vmatmul.mubr.bf16.gmra.mxu0 %v3110
        %v3192 = vpop.f32.mrf.mxu0
        %v3193 = vadd.f32 %v2472, %v3192
        %v3194 = vpop.f32.mrf.mxu0
        %v3195 = vpop.f32.mrf.mxu0
        %v3196 = vadd.f32 %v2475, %v3195
        %v3197 = vpop.f32.mrf.mxu0
        %3198 = vmatprep.mubr.bf16.mxu0 0
        %3199 = vmatmul.mubr.bf16.gmra.mxu0 %v3113
        %v3200 = vpop.f32.mrf.mxu0
        %v3201 = vadd.f32 %v2480, %v3200
        %v3202 = vpop.f32.mrf.mxu0
        %v3203 = vpop.f32.mrf.mxu0
        %v3204 = vadd.f32 %v2483, %v3203
        %v3205 = vpop.f32.mrf.mxu0
        %3206 = vmatprep.mubr.bf16.mxu0 0
        %3207 = vmatmul.mubr.bf16.gmra.mxu0 %v3116
        %v3208 = vpop.f32.mrf.mxu0
        %v3209 = vadd.f32 %v2488, %v3208
        %v3210 = vpop.f32.mrf.mxu0
        %v3211 = vpop.f32.mrf.mxu0
        %v3212 = vadd.f32 %v2491, %v3211
        %v3213 = vpop.f32.mrf.mxu0
        %3214 = vmatprep.mubr.bf16.mxu0 0
        %3215 = vmatmul.mubr.bf16.gmra.mxu0 %v3119
        %v3216 = vpop.f32.mrf.mxu0
        %v3217 = vadd.f32 %v2496, %v3216
        %v3218 = vpop.f32.mrf.mxu0
        %v3219 = vpop.f32.mrf.mxu0
        %v3220 = vadd.f32 %v2499, %v3219
        %v3221 = vpop.f32.mrf.mxu0
        %3222 = vmatprep.mubr.bf16.mxu0 0
        %3223 = vmatmul.mubr.bf16.gmra.mxu0 %v3122
        %v3224 = vpop.f32.mrf.mxu0
        %v3225 = vadd.f32 %v2504, %v3224
        %v3226 = vpop.f32.mrf.mxu0
        %v3227 = vpop.f32.mrf.mxu0
        %v3228 = vadd.f32 %v2507, %v3227
        %v3229 = vpop.f32.mrf.mxu0
        %3230 = vmatprep.mubr.bf16.mxu0 0
        %3231 = vmatmul.mubr.bf16.gmra.mxu0 %v3125
        %v3232 = vpop.f32.mrf.mxu0
        %v3233 = vadd.f32 %v2512, %v3232
        %v3234 = vpop.f32.mrf.mxu0
        %v3235 = vpop.f32.mrf.mxu0
        %v3236 = vadd.f32 %v2515, %v3235
        %v3237 = vpop.f32.mrf.mxu0
        %3238 = vmatprep.mubr.bf16.mxu0 0
        %3239 = vmatmul.mubr.bf16.gmra.mxu0 %v3128
        %v3240 = vpop.f32.mrf.mxu0
        %v3241 = vadd.f32 %v2520, %v3240
        %v3242 = vpop.f32.mrf.mxu0
        %v3243 = vpop.f32.mrf.mxu0
        %v3244 = vadd.f32 %v2523, %v3243
        %v3245 = vpop.f32.mrf.mxu0
        %3246 = vmatprep.mubr.bf16.mxu0 0
        %3247 = vmatmul.mubr.bf16.gmra.mxu0 %v3131
        %v3248 = vpop.f32.mrf.mxu0
        %v3249 = vadd.f32 %v2528, %v3248
        %v3250 = vpop.f32.mrf.mxu0
        %v3251 = vpop.f32.mrf.mxu0
        %v3252 = vadd.f32 %v2531, %v3251
        %v3253 = vpop.f32.mrf.mxu0
        %3254 = vmatprep.mubr.bf16.mxu0 0
        %3255 = vmatmul.mubr.bf16.gmra.mxu0 %v3134
        %v3256 = vpop.f32.mrf.mxu0
        %v3257 = vadd.f32 %v2536, %v3256
        %v3258 = vpop.f32.mrf.mxu0
        %v3259 = vpop.f32.mrf.mxu0
        %v3260 = vadd.f32 %v2539, %v3259
        %v3261 = vpop.f32.mrf.mxu0
        %3262 = vmatprep.mubr.bf16.mxu0 0
        %3263 = vmatmul.mubr.bf16.gmra.mxu0 %v3137
        %v3264 = vpop.f32.mrf.mxu0
        %v3265 = vadd.f32 %v2544, %v3264
        %v3266 = vpop.f32.mrf.mxu0
        %v3267 = vpop.f32.mrf.mxu0
        %v3268 = vpop.f32.mrf.mxu0
        %3269 = vdwg.mxu0
        %s3270 = scalar_lea.vmem %s1, 4
        %v3271 = vld [vmem:[%s3270] sm:$0x3]
        %v3272 = vcombine.low %v399, %v400
        %v3273 = vcombine.low %v401, %v416
        %v3274 = vcombine.low %v423, %v424
        %v3275 = vcombine.low %v425, %v439
        %v3277 = vunpack.c.l.s4 1966171168
        %v3278 = vunpack.c.0.s8 %v3277
        %v3279 = vlaneseq
        %v3280 = vshrl.u32 %v3279, 7
        %v3281 = vsub.s32 %v3278, %v3280
        %v3282 = vrot.slane %v3272, %v3281
        %v3284 = vunpack.c.l.s4 1966171168
        %v3285 = vunpack.c.0.s8 %v3284
        %v3286 = vlaneseq
        %v3287 = vshrl.u32 %v3286, 7
        %v3288 = vsub.s32 %v3285, %v3287
        %v3289 = vrot.slane %v3273, %v3288
        %v3291 = vunpack.c.l.s4 1966171168
        %v3292 = vunpack.c.0.s8 %v3291
        %v3293 = vlaneseq
        %v3294 = vshrl.u32 %v3293, 7
        %v3295 = vsub.s32 %v3292, %v3294
        %v3296 = vrot.slane %v3274, %v3295
        %v3298 = vunpack.c.l.s4 1966171168
        %v3299 = vunpack.c.0.s8 %v3298
        %v3300 = vlaneseq
        %v3301 = vshrl.u32 %v3300, 7
        %v3302 = vsub.s32 %v3299, %v3301
        %v3303 = vrot.slane %v3275, %v3302
        %v3304 = vcombine.low %v3282, %v3289
        %v3305 = vcombine.low %v3296, %v3303
        %v3307 = vunpack.c.l.s4 1966171168
        %v3308 = vunpack.c.0.s8 %v3307
        %v3309 = vlaneseq
        %v3310 = vshrl.u32 %v3309, 7
        %v3311 = vsub.s32 %v3308, %v3310
        %v3312 = vrot.slane %v3304, %v3311
        %v3314 = vunpack.c.l.s4 1966171168
        %v3315 = vunpack.c.0.s8 %v3314
        %v3316 = vlaneseq
        %v3317 = vshrl.u32 %v3316, 7
        %v3318 = vsub.s32 %v3315, %v3317
        %v3319 = vrot.slane %v3305, %v3318
        %v3320 = vcombine.low %v3312, %v3319
        %v3321 = vcombine.low %v1006, %v461
        %v3322 = vcombine.low %v462, %v463
        %v3323 = vcombine.low %v478, %v485
        %v3324 = vcombine.low %v486, %v487
        %v3326 = vunpack.c.l.s4 1966171168
        %v3327 = vunpack.c.0.s8 %v3326
        %v3328 = vlaneseq
        %v3329 = vshrl.u32 %v3328, 7
        %v3330 = vsub.s32 %v3327, %v3329
        %v3331 = vrot.slane %v3321, %v3330
        %v3333 = vunpack.c.l.s4 1966171168
        %v3334 = vunpack.c.0.s8 %v3333
        %v3335 = vlaneseq
        %v3336 = vshrl.u32 %v3335, 7
        %v3337 = vsub.s32 %v3334, %v3336
        %v3338 = vrot.slane %v3322, %v3337
        %v3340 = vunpack.c.l.s4 1966171168
        %v3341 = vunpack.c.0.s8 %v3340
        %v3342 = vlaneseq
        %v3343 = vshrl.u32 %v3342, 7
        %v3344 = vsub.s32 %v3341, %v3343
        %v3345 = vrot.slane %v3323, %v3344
        %v3347 = vunpack.c.l.s4 1966171168
        %v3348 = vunpack.c.0.s8 %v3347
        %v3349 = vlaneseq
        %v3350 = vshrl.u32 %v3349, 7
        %v3351 = vsub.s32 %v3348, %v3350
        %v3352 = vrot.slane %v3324, %v3351
        %v3353 = vcombine.low %v3331, %v3338
        %v3354 = vcombine.low %v3345, %v3352
        %v3356 = vunpack.c.l.s4 1966171168
        %v3357 = vunpack.c.0.s8 %v3356
        %v3358 = vlaneseq
        %v3359 = vshrl.u32 %v3358, 7
        %v3360 = vsub.s32 %v3357, %v3359
        %v3361 = vrot.slane %v3353, %v3360
        %v3363 = vunpack.c.l.s4 1966171168
        %v3364 = vunpack.c.0.s8 %v3363
        %v3365 = vlaneseq
        %v3366 = vshrl.u32 %v3365, 7
        %v3367 = vsub.s32 %v3364, %v3366
        %v3368 = vrot.slane %v3354, %v3367
        %v3369 = vcombine.low %v3361, %v3368
        %v3370 = vcombine.low %v501, %v1014
        %v3371 = vcombine.low %v523, %v524
        %v3372 = vcombine.low %v525, %v540
        %v3373 = vcombine.low %v547, %v548
        %v3375 = vunpack.c.l.s4 1966171168
        %v3376 = vunpack.c.0.s8 %v3375
        %v3377 = vlaneseq
        %v3378 = vshrl.u32 %v3377, 7
        %v3379 = vsub.s32 %v3376, %v3378
        %v3380 = vrot.slane %v3370, %v3379
        %v3382 = vunpack.c.l.s4 1966171168
        %v3383 = vunpack.c.0.s8 %v3382
        %v3384 = vlaneseq
        %v3385 = vshrl.u32 %v3384, 7
        %v3386 = vsub.s32 %v3383, %v3385
        %v3387 = vrot.slane %v3371, %v3386
        %v3389 = vunpack.c.l.s4 1966171168
        %v3390 = vunpack.c.0.s8 %v3389
        %v3391 = vlaneseq
        %v3392 = vshrl.u32 %v3391, 7
        %v3393 = vsub.s32 %v3390, %v3392
        %v3394 = vrot.slane %v3372, %v3393
        %v3396 = vunpack.c.l.s4 1966171168
        %v3397 = vunpack.c.0.s8 %v3396
        %v3398 = vlaneseq
        %v3399 = vshrl.u32 %v3398, 7
        %v3400 = vsub.s32 %v3397, %v3399
        %v3401 = vrot.slane %v3373, %v3400
        %v3402 = vcombine.low %v3380, %v3387
        %v3403 = vcombine.low %v3394, %v3401
        %v3405 = vunpack.c.l.s4 1966171168
        %v3406 = vunpack.c.0.s8 %v3405
        %v3407 = vlaneseq
        %v3408 = vshrl.u32 %v3407, 7
        %v3409 = vsub.s32 %v3406, %v3408
        %v3410 = vrot.slane %v3402, %v3409
        %v3412 = vunpack.c.l.s4 1966171168
        %v3413 = vunpack.c.0.s8 %v3412
        %v3414 = vlaneseq
        %v3415 = vshrl.u32 %v3414, 7
        %v3416 = vsub.s32 %v3413, %v3415
        %v3417 = vrot.slane %v3403, %v3416
        %v3418 = vcombine.low %v3410, %v3417
        %v3419 = vcombine.low %v549, %v563
        %v3420 = vcombine.low %v1022, %v585
        %v3421 = vcombine.low %v586, %v587
        %v3422 = vcombine.low %v602, %v609
        %v3424 = vunpack.c.l.s4 1966171168
        %v3425 = vunpack.c.0.s8 %v3424
        %v3426 = vlaneseq
        %v3427 = vshrl.u32 %v3426, 7
        %v3428 = vsub.s32 %v3425, %v3427
        %v3429 = vrot.slane %v3419, %v3428
        %v3431 = vunpack.c.l.s4 1966171168
        %v3432 = vunpack.c.0.s8 %v3431
        %v3433 = vlaneseq
        %v3434 = vshrl.u32 %v3433, 7
        %v3435 = vsub.s32 %v3432, %v3434
        %v3436 = vrot.slane %v3420, %v3435
        %v3438 = vunpack.c.l.s4 1966171168
        %v3439 = vunpack.c.0.s8 %v3438
        %v3440 = vlaneseq
        %v3441 = vshrl.u32 %v3440, 7
        %v3442 = vsub.s32 %v3439, %v3441
        %v3443 = vrot.slane %v3421, %v3442
        %v3445 = vunpack.c.l.s4 1966171168
        %v3446 = vunpack.c.0.s8 %v3445
        %v3447 = vlaneseq
        %v3448 = vshrl.u32 %v3447, 7
        %v3449 = vsub.s32 %v3446, %v3448
        %v3450 = vrot.slane %v3422, %v3449
        %v3451 = vcombine.low %v3429, %v3436
        %v3452 = vcombine.low %v3443, %v3450
        %v3454 = vunpack.c.l.s4 1966171168
        %v3455 = vunpack.c.0.s8 %v3454
        %v3456 = vlaneseq
        %v3457 = vshrl.u32 %v3456, 7
        %v3458 = vsub.s32 %v3455, %v3457
        %v3459 = vrot.slane %v3451, %v3458
        %v3461 = vunpack.c.l.s4 1966171168
        %v3462 = vunpack.c.0.s8 %v3461
        %v3463 = vlaneseq
        %v3464 = vshrl.u32 %v3463, 7
        %v3465 = vsub.s32 %v3462, %v3464
        %v3466 = vrot.slane %v3452, %v3465
        %v3467 = vcombine.low %v3459, %v3466
        %v3468 = vcombine.low %v610, %v611
        %v3469 = vcombine.low %v625, %v1030
        %v3470 = vcombine.low %v647, %v648
        %v3471 = vcombine.low %v649, %v664
        %v3473 = vunpack.c.l.s4 1966171168
        %v3474 = vunpack.c.0.s8 %v3473
        %v3475 = vlaneseq
        %v3476 = vshrl.u32 %v3475, 7
        %v3477 = vsub.s32 %v3474, %v3476
        %v3478 = vrot.slane %v3468, %v3477
        %v3480 = vunpack.c.l.s4 1966171168
        %v3481 = vunpack.c.0.s8 %v3480
        %v3482 = vlaneseq
        %v3483 = vshrl.u32 %v3482, 7
        %v3484 = vsub.s32 %v3481, %v3483
        %v3485 = vrot.slane %v3469, %v3484
        %v3487 = vunpack.c.l.s4 1966171168
        %v3488 = vunpack.c.0.s8 %v3487
        %v3489 = vlaneseq
        %v3490 = vshrl.u32 %v3489, 7
        %v3491 = vsub.s32 %v3488, %v3490
        %v3492 = vrot.slane %v3470, %v3491
        %v3494 = vunpack.c.l.s4 1966171168
        %v3495 = vunpack.c.0.s8 %v3494
        %v3496 = vlaneseq
        %v3497 = vshrl.u32 %v3496, 7
        %v3498 = vsub.s32 %v3495, %v3497
        %v3499 = vrot.slane %v3471, %v3498
        %v3500 = vcombine.low %v3478, %v3485
        %v3501 = vcombine.low %v3492, %v3499
        %v3503 = vunpack.c.l.s4 1966171168
        %v3504 = vunpack.c.0.s8 %v3503
        %v3505 = vlaneseq
        %v3506 = vshrl.u32 %v3505, 7
        %v3507 = vsub.s32 %v3504, %v3506
        %v3508 = vrot.slane %v3500, %v3507
        %v3510 = vunpack.c.l.s4 1966171168
        %v3511 = vunpack.c.0.s8 %v3510
        %v3512 = vlaneseq
        %v3513 = vshrl.u32 %v3512, 7
        %v3514 = vsub.s32 %v3511, %v3513
        %v3515 = vrot.slane %v3501, %v3514
        %v3516 = vcombine.low %v3508, %v3515
        %v3517 = vcombine.low %v671, %v672
        %v3518 = vcombine.low %v673, %v687
        %v3519 = vcombine.low %v1038, %v709
        %v3520 = vcombine.low %v710, %v711
        %v3522 = vunpack.c.l.s4 1966171168
        %v3523 = vunpack.c.0.s8 %v3522
        %v3524 = vlaneseq
        %v3525 = vshrl.u32 %v3524, 7
        %v3526 = vsub.s32 %v3523, %v3525
        %v3527 = vrot.slane %v3517, %v3526
        %v3529 = vunpack.c.l.s4 1966171168
        %v3530 = vunpack.c.0.s8 %v3529
        %v3531 = vlaneseq
        %v3532 = vshrl.u32 %v3531, 7
        %v3533 = vsub.s32 %v3530, %v3532
        %v3534 = vrot.slane %v3518, %v3533
        %v3536 = vunpack.c.l.s4 1966171168
        %v3537 = vunpack.c.0.s8 %v3536
        %v3538 = vlaneseq
        %v3539 = vshrl.u32 %v3538, 7
        %v3540 = vsub.s32 %v3537, %v3539
        %v3541 = vrot.slane %v3519, %v3540
        %v3543 = vunpack.c.l.s4 1966171168
        %v3544 = vunpack.c.0.s8 %v3543
        %v3545 = vlaneseq
        %v3546 = vshrl.u32 %v3545, 7
        %v3547 = vsub.s32 %v3544, %v3546
        %v3548 = vrot.slane %v3520, %v3547
        %v3549 = vcombine.low %v3527, %v3534
        %v3550 = vcombine.low %v3541, %v3548
        %v3552 = vunpack.c.l.s4 1966171168
        %v3553 = vunpack.c.0.s8 %v3552
        %v3554 = vlaneseq
        %v3555 = vshrl.u32 %v3554, 7
        %v3556 = vsub.s32 %v3553, %v3555
        %v3557 = vrot.slane %v3549, %v3556
        %v3559 = vunpack.c.l.s4 1966171168
        %v3560 = vunpack.c.0.s8 %v3559
        %v3561 = vlaneseq
        %v3562 = vshrl.u32 %v3561, 7
        %v3563 = vsub.s32 %v3560, %v3562
        %v3564 = vrot.slane %v3550, %v3563
        %v3565 = vcombine.low %v3557, %v3564
        %v3566 = vcombine.low %v726, %v733
        %v3567 = vcombine.low %v734, %v735
        %v3568 = vcombine.low %v749, %v1046
        %v3569 = vcombine.low %v771, %v772
        %v3571 = vunpack.c.l.s4 1966171168
        %v3572 = vunpack.c.0.s8 %v3571
        %v3573 = vlaneseq
        %v3574 = vshrl.u32 %v3573, 7
        %v3575 = vsub.s32 %v3572, %v3574
        %v3576 = vrot.slane %v3566, %v3575
        %v3578 = vunpack.c.l.s4 1966171168
        %v3579 = vunpack.c.0.s8 %v3578
        %v3580 = vlaneseq
        %v3581 = vshrl.u32 %v3580, 7
        %v3582 = vsub.s32 %v3579, %v3581
        %v3583 = vrot.slane %v3567, %v3582
        %v3585 = vunpack.c.l.s4 1966171168
        %v3586 = vunpack.c.0.s8 %v3585
        %v3587 = vlaneseq
        %v3588 = vshrl.u32 %v3587, 7
        %v3589 = vsub.s32 %v3586, %v3588
        %v3590 = vrot.slane %v3568, %v3589
        %v3592 = vunpack.c.l.s4 1966171168
        %v3593 = vunpack.c.0.s8 %v3592
        %v3594 = vlaneseq
        %v3595 = vshrl.u32 %v3594, 7
        %v3596 = vsub.s32 %v3593, %v3595
        %v3597 = vrot.slane %v3569, %v3596
        %v3598 = vcombine.low %v3576, %v3583
        %v3599 = vcombine.low %v3590, %v3597
        %v3601 = vunpack.c.l.s4 1966171168
        %v3602 = vunpack.c.0.s8 %v3601
        %v3603 = vlaneseq
        %v3604 = vshrl.u32 %v3603, 7
        %v3605 = vsub.s32 %v3602, %v3604
        %v3606 = vrot.slane %v3598, %v3605
        %v3608 = vunpack.c.l.s4 1966171168
        %v3609 = vunpack.c.0.s8 %v3608
        %v3610 = vlaneseq
        %v3611 = vshrl.u32 %v3610, 7
        %v3612 = vsub.s32 %v3609, %v3611
        %v3613 = vrot.slane %v3599, %v3612
        %v3614 = vcombine.low %v3606, %v3613
        %v3615 = vcombine.low %v773, %v788
        %v3616 = vcombine.low %v795, %v796
        %v3617 = vcombine.low %v797, %v811
        %v3618 = vcombine.low %v1054, %v833
        %v3620 = vunpack.c.l.s4 1966171168
        %v3621 = vunpack.c.0.s8 %v3620
        %v3622 = vlaneseq
        %v3623 = vshrl.u32 %v3622, 7
        %v3624 = vsub.s32 %v3621, %v3623
        %v3625 = vrot.slane %v3615, %v3624
        %v3627 = vunpack.c.l.s4 1966171168
        %v3628 = vunpack.c.0.s8 %v3627
        %v3629 = vlaneseq
        %v3630 = vshrl.u32 %v3629, 7
        %v3631 = vsub.s32 %v3628, %v3630
        %v3632 = vrot.slane %v3616, %v3631
        %v3634 = vunpack.c.l.s4 1966171168
        %v3635 = vunpack.c.0.s8 %v3634
        %v3636 = vlaneseq
        %v3637 = vshrl.u32 %v3636, 7
        %v3638 = vsub.s32 %v3635, %v3637
        %v3639 = vrot.slane %v3617, %v3638
        %v3641 = vunpack.c.l.s4 1966171168
        %v3642 = vunpack.c.0.s8 %v3641
        %v3643 = vlaneseq
        %v3644 = vshrl.u32 %v3643, 7
        %v3645 = vsub.s32 %v3642, %v3644
        %v3646 = vrot.slane %v3618, %v3645
        %v3647 = vcombine.low %v3625, %v3632
        %v3648 = vcombine.low %v3639, %v3646
        %v3650 = vunpack.c.l.s4 1966171168
        %v3651 = vunpack.c.0.s8 %v3650
        %v3652 = vlaneseq
        %v3653 = vshrl.u32 %v3652, 7
        %v3654 = vsub.s32 %v3651, %v3653
        %v3655 = vrot.slane %v3647, %v3654
        %v3657 = vunpack.c.l.s4 1966171168
        %v3658 = vunpack.c.0.s8 %v3657
        %v3659 = vlaneseq
        %v3660 = vshrl.u32 %v3659, 7
        %v3661 = vsub.s32 %v3658, %v3660
        %v3662 = vrot.slane %v3648, %v3661
        %v3663 = vcombine.low %v3655, %v3662
        %v3664 = vcombine.low %v834, %v835
        %v3665 = vcombine.low %v850, %v857
        %v3666 = vcombine.low %v858, %v859
        %v3667 = vcombine.low %v873, %v1062
        %v3669 = vunpack.c.l.s4 1966171168
        %v3670 = vunpack.c.0.s8 %v3669
        %v3671 = vlaneseq
        %v3672 = vshrl.u32 %v3671, 7
        %v3673 = vsub.s32 %v3670, %v3672
        %v3674 = vrot.slane %v3664, %v3673
        %v3676 = vunpack.c.l.s4 1966171168
        %v3677 = vunpack.c.0.s8 %v3676
        %v3678 = vlaneseq
        %v3679 = vshrl.u32 %v3678, 7
        %v3680 = vsub.s32 %v3677, %v3679
        %v3681 = vrot.slane %v3665, %v3680
        %v3683 = vunpack.c.l.s4 1966171168
        %v3684 = vunpack.c.0.s8 %v3683
        %v3685 = vlaneseq
        %v3686 = vshrl.u32 %v3685, 7
        %v3687 = vsub.s32 %v3684, %v3686
        %v3688 = vrot.slane %v3666, %v3687
        %v3690 = vunpack.c.l.s4 1966171168
        %v3691 = vunpack.c.0.s8 %v3690
        %v3692 = vlaneseq
        %v3693 = vshrl.u32 %v3692, 7
        %v3694 = vsub.s32 %v3691, %v3693
        %v3695 = vrot.slane %v3667, %v3694
        %v3696 = vcombine.low %v3674, %v3681
        %v3697 = vcombine.low %v3688, %v3695
        %v3699 = vunpack.c.l.s4 1966171168
        %v3700 = vunpack.c.0.s8 %v3699
        %v3701 = vlaneseq
        %v3702 = vshrl.u32 %v3701, 7
        %v3703 = vsub.s32 %v3700, %v3702
        %v3704 = vrot.slane %v3696, %v3703
        %v3706 = vunpack.c.l.s4 1966171168
        %v3707 = vunpack.c.0.s8 %v3706
        %v3708 = vlaneseq
        %v3709 = vshrl.u32 %v3708, 7
        %v3710 = vsub.s32 %v3707, %v3709
        %v3711 = vrot.slane %v3697, %v3710
        %v3712 = vcombine.low %v3704, %v3711
        %v3713 = vcombine.low %v895, %v896
        %v3714 = vcombine.low %v897, %v912
        %v3715 = vcombine.low %v919, %v920
        %v3716 = vcombine.low %v921, %v935
        %v3718 = vunpack.c.l.s4 1966171168
        %v3719 = vunpack.c.0.s8 %v3718
        %v3720 = vlaneseq
        %v3721 = vshrl.u32 %v3720, 7
        %v3722 = vsub.s32 %v3719, %v3721
        %v3723 = vrot.slane %v3713, %v3722
        %v3725 = vunpack.c.l.s4 1966171168
        %v3726 = vunpack.c.0.s8 %v3725
        %v3727 = vlaneseq
        %v3728 = vshrl.u32 %v3727, 7
        %v3729 = vsub.s32 %v3726, %v3728
        %v3730 = vrot.slane %v3714, %v3729
        %v3732 = vunpack.c.l.s4 1966171168
        %v3733 = vunpack.c.0.s8 %v3732
        %v3734 = vlaneseq
        %v3735 = vshrl.u32 %v3734, 7
        %v3736 = vsub.s32 %v3733, %v3735
        %v3737 = vrot.slane %v3715, %v3736
        %v3739 = vunpack.c.l.s4 1966171168
        %v3740 = vunpack.c.0.s8 %v3739
        %v3741 = vlaneseq
        %v3742 = vshrl.u32 %v3741, 7
        %v3743 = vsub.s32 %v3740, %v3742
        %v3744 = vrot.slane %v3716, %v3743
        %v3745 = vcombine.low %v3723, %v3730
        %v3746 = vcombine.low %v3737, %v3744
        %v3748 = vunpack.c.l.s4 1966171168
        %v3749 = vunpack.c.0.s8 %v3748
        %v3750 = vlaneseq
        %v3751 = vshrl.u32 %v3750, 7
        %v3752 = vsub.s32 %v3749, %v3751
        %v3753 = vrot.slane %v3745, %v3752
        %v3755 = vunpack.c.l.s4 1966171168
        %v3756 = vunpack.c.0.s8 %v3755
        %v3757 = vlaneseq
        %v3758 = vshrl.u32 %v3757, 7
        %v3759 = vsub.s32 %v3756, %v3758
        %v3760 = vrot.slane %v3746, %v3759
        %v3761 = vcombine.low %v3753, %v3760
        %v3762 = vcombine.low %v1070, %v957
        %v3763 = vcombine.low %v958, %v959
        %v3764 = vcombine.low %v974, %v981
        %v3765 = vcombine.low %v982, %v983
        %v3767 = vunpack.c.l.s4 1966171168
        %v3768 = vunpack.c.0.s8 %v3767
        %v3769 = vlaneseq
        %v3770 = vshrl.u32 %v3769, 7
        %v3771 = vsub.s32 %v3768, %v3770
        %v3772 = vrot.slane %v3762, %v3771
        %v3774 = vunpack.c.l.s4 1966171168
        %v3775 = vunpack.c.0.s8 %v3774
        %v3776 = vlaneseq
        %v3777 = vshrl.u32 %v3776, 7
        %v3778 = vsub.s32 %v3775, %v3777
        %v3779 = vrot.slane %v3763, %v3778
        %v3781 = vunpack.c.l.s4 1966171168
        %v3782 = vunpack.c.0.s8 %v3781
        %v3783 = vlaneseq
        %v3784 = vshrl.u32 %v3783, 7
        %v3785 = vsub.s32 %v3782, %v3784
        %v3786 = vrot.slane %v3764, %v3785
        %v3788 = vunpack.c.l.s4 1966171168
        %v3789 = vunpack.c.0.s8 %v3788
        %v3790 = vlaneseq
        %v3791 = vshrl.u32 %v3790, 7
        %v3792 = vsub.s32 %v3789, %v3791
        %v3793 = vrot.slane %v3765, %v3792
        %v3794 = vcombine.low %v3772, %v3779
        %v3795 = vcombine.low %v3786, %v3793
        %v3797 = vunpack.c.l.s4 1966171168
        %v3798 = vunpack.c.0.s8 %v3797
        %v3799 = vlaneseq
        %v3800 = vshrl.u32 %v3799, 7
        %v3801 = vsub.s32 %v3798, %v3800
        %v3802 = vrot.slane %v3794, %v3801
        %v3804 = vunpack.c.l.s4 1966171168
        %v3805 = vunpack.c.0.s8 %v3804
        %v3806 = vlaneseq
        %v3807 = vshrl.u32 %v3806, 7
        %v3808 = vsub.s32 %v3805, %v3807
        %v3809 = vrot.slane %v3795, %v3808
        %v3810 = vcombine.low %v3802, %v3809
        %v3811 = vcombine.low %v997, %v1078
        %v3813 = vunpack.c.l.s4 1966171168
        %v3814 = vunpack.c.0.s8 %v3813
        %v3815 = vlaneseq
        %v3816 = vshrl.u32 %v3815, 7
        %v3817 = vsub.s32 %v3814, %v3816
        %v3818 = vrot.slane %v3811, %v3817
        %v3820 = vunpack.c.l.s4 1966171168
        %v3821 = vunpack.c.0.s8 %v3820
        %v3822 = vlaneseq
        %v3823 = vshrl.u32 %v3822, 7
        %v3824 = vsub.s32 %v3821, %v3823
        %v3825 = vrot.slane %v3818, %v3824
        %v3827 = vsel %vm2380, %v3320, 0
        %v3830 = vsel %vm2380, %v3369, 0
        %v3833 = vsel %vm2380, %v3418, 0
        %v3836 = vsel %vm2380, %v3467, 0
        %v3839 = vsel %vm2380, %v3516, 0
        %v3842 = vsel %vm2380, %v3565, 0
        %v3845 = vsel %vm2380, %v3614, 0
        %v3848 = vsel %vm2380, %v3663, 0
        %v3851 = vsel %vm2380, %v3712, 0
        %v3854 = vsel %vm2380, %v3761, 0
        %v3857 = vsel %vm2380, %v3810, 0
        %v3860 = vsel %vm2380, %v3825, 0
        %v3863 = vsel %vm2417, %v3271, 0
        %3865 = vmatprep.subr.bf16.mxu0 0
        %3866 = vmatpush1.bf16.msra.mxu0 0
        %3867 = vmatprep.subr.bf16.mxu0 0
        %3868 = vmatpush1.bf16.msra.mxu0 0
        %3869 = vmatprep.subr.bf16.mxu0 0
        %3870 = vmatpush1.bf16.msra.mxu0 0
        %3871 = vmatprep.subr.bf16.mxu0 0
        %3872 = vmatpush1.bf16.msra.mxu0 0
        %3873 = vmatprep.subr.bf16.mxu0 0
        %3874 = vmatpush1.bf16.msra.mxu0 0
        %3875 = vmatprep.subr.bf16.mxu0 0
        %3876 = vmatpush1.bf16.msra.mxu0 0
        %3877 = vmatprep.subr.bf16.mxu0 0
        %3878 = vmatpush1.bf16.msra.mxu0 0
        %3879 = vmatprep.subr.bf16.mxu0 0
        %3880 = vmatpush1.bf16.msra.mxu0 %v3863
        %3881 = vmatprep.subr.bf16.mxu0 0
        %3882 = vmatpush2.bf16.msra.mxu0 0
        %3883 = vmatprep.subr.bf16.mxu0 0
        %3884 = vmatpush2.bf16.msra.mxu0 0
        %3885 = vmatprep.subr.bf16.mxu0 0
        %3886 = vmatpush2.bf16.msra.mxu0 0
        %3887 = vmatprep.subr.bf16.mxu0 0
        %3888 = vmatpush2.bf16.msra.mxu0 0
        %3889 = vmatprep.subr.bf16.mxu0 0
        %3890 = vmatpush2.bf16.msra.mxu0 0
        %3891 = vmatprep.subr.bf16.mxu0 0
        %3892 = vmatpush2.bf16.msra.mxu0 0
        %3893 = vmatprep.subr.bf16.mxu0 0
        %3894 = vmatpush2.bf16.msra.mxu0 0
        %3895 = vmatprep.subr.bf16.mxu0 0
        %3896 = vmatpush2.bf16.msra.mxu0 0
        %3897 = vmatprep.mubr.bf16.mxu0 0
        %3898 = vmatmul.mubr.bf16.gmra.mxu0 %v3827
        %v3899 = vpop.f32.mrf.mxu0
        %v3900 = vadd.f32 0.0, %v3899
        %v3901 = vpop.f32.mrf.mxu0
        %v3902 = vpop.f32.mrf.mxu0
        %v3903 = vadd.f32 0.0, %v3902
        %v3904 = vpop.f32.mrf.mxu0
        %3905 = vmatprep.mubr.bf16.mxu0 0
        %3906 = vmatmul.mubr.bf16.gmra.mxu0 %v3830
        %v3907 = vpop.f32.mrf.mxu0
        %v3908 = vadd.f32 0.0, %v3907
        %v3909 = vpop.f32.mrf.mxu0
        %v3910 = vpop.f32.mrf.mxu0
        %v3911 = vadd.f32 0.0, %v3910
        %v3912 = vpop.f32.mrf.mxu0
        %3913 = vmatprep.mubr.bf16.mxu0 0
        %3914 = vmatmul.mubr.bf16.gmra.mxu0 %v3833
        %v3915 = vpop.f32.mrf.mxu0
        %v3916 = vadd.f32 0.0, %v3915
        %v3917 = vpop.f32.mrf.mxu0
        %v3918 = vpop.f32.mrf.mxu0
        %v3919 = vadd.f32 0.0, %v3918
        %v3920 = vpop.f32.mrf.mxu0
        %3921 = vmatprep.mubr.bf16.mxu0 0
        %3922 = vmatmul.mubr.bf16.gmra.mxu0 %v3836
        %v3923 = vpop.f32.mrf.mxu0
        %v3924 = vadd.f32 0.0, %v3923
        %v3925 = vpop.f32.mrf.mxu0
        %v3926 = vpop.f32.mrf.mxu0
        %v3927 = vadd.f32 0.0, %v3926
        %v3928 = vpop.f32.mrf.mxu0
        %3929 = vmatprep.mubr.bf16.mxu0 0
        %3930 = vmatmul.mubr.bf16.gmra.mxu0 %v3839
        %v3931 = vpop.f32.mrf.mxu0
        %v3932 = vadd.f32 0.0, %v3931
        %v3933 = vpop.f32.mrf.mxu0
        %v3934 = vpop.f32.mrf.mxu0
        %v3935 = vadd.f32 0.0, %v3934
        %v3936 = vpop.f32.mrf.mxu0
        %3937 = vmatprep.mubr.bf16.mxu0 0
        %3938 = vmatmul.mubr.bf16.gmra.mxu0 %v3842
        %v3939 = vpop.f32.mrf.mxu0
        %v3940 = vadd.f32 0.0, %v3939
        %v3941 = vpop.f32.mrf.mxu0
        %v3942 = vpop.f32.mrf.mxu0
        %v3943 = vadd.f32 0.0, %v3942
        %v3944 = vpop.f32.mrf.mxu0
        %3945 = vmatprep.mubr.bf16.mxu0 0
        %3946 = vmatmul.mubr.bf16.gmra.mxu0 %v3845
        %v3947 = vpop.f32.mrf.mxu0
        %v3948 = vadd.f32 0.0, %v3947
        %v3949 = vpop.f32.mrf.mxu0
        %v3950 = vpop.f32.mrf.mxu0
        %v3951 = vadd.f32 0.0, %v3950
        %v3952 = vpop.f32.mrf.mxu0
        %3953 = vmatprep.mubr.bf16.mxu0 0
        %3954 = vmatmul.mubr.bf16.gmra.mxu0 %v3848
        %v3955 = vpop.f32.mrf.mxu0
        %v3956 = vadd.f32 0.0, %v3955
        %v3957 = vpop.f32.mrf.mxu0
        %v3958 = vpop.f32.mrf.mxu0
        %v3959 = vadd.f32 0.0, %v3958
        %v3960 = vpop.f32.mrf.mxu0
        %3961 = vmatprep.mubr.bf16.mxu0 0
        %3962 = vmatmul.mubr.bf16.gmra.mxu0 %v3851
        %v3963 = vpop.f32.mrf.mxu0
        %v3964 = vadd.f32 0.0, %v3963
        %v3965 = vpop.f32.mrf.mxu0
        %v3966 = vpop.f32.mrf.mxu0
        %v3967 = vadd.f32 0.0, %v3966
        %v3968 = vpop.f32.mrf.mxu0
        %3969 = vmatprep.mubr.bf16.mxu0 0
        %3970 = vmatmul.mubr.bf16.gmra.mxu0 %v3854
        %v3971 = vpop.f32.mrf.mxu0
        %v3972 = vadd.f32 0.0, %v3971
        %v3973 = vpop.f32.mrf.mxu0
        %v3974 = vpop.f32.mrf.mxu0
        %v3975 = vadd.f32 0.0, %v3974
        %v3976 = vpop.f32.mrf.mxu0
        %3977 = vmatprep.mubr.bf16.mxu0 0
        %3978 = vmatmul.mubr.bf16.gmra.mxu0 %v3857
        %v3979 = vpop.f32.mrf.mxu0
        %v3980 = vadd.f32 0.0, %v3979
        %v3981 = vpop.f32.mrf.mxu0
        %v3982 = vpop.f32.mrf.mxu0
        %v3983 = vadd.f32 0.0, %v3982
        %v3984 = vpop.f32.mrf.mxu0
        %3985 = vmatprep.mubr.bf16.mxu0 0
        %3986 = vmatmul.mubr.bf16.gmra.mxu0 %v3860
        %v3987 = vpop.f32.mrf.mxu0
        %v3988 = vadd.f32 0.0, %v3987
        %v3989 = vpop.f32.mrf.mxu0
        %v3990 = vpop.f32.mrf.mxu0
        %v3991 = vpop.f32.mrf.mxu0
        %3992 = vdwg.mxu0
        %v3993 = vadd.f32 %v3177, %v3900
        %v3994 = vadd.f32 %v3180, %v3903
        %v3995 = vadd.f32 %v3185, %v3908
        %v3996 = vadd.f32 %v3188, %v3911
        %v3997 = vadd.f32 %v3193, %v3916
        %v3998 = vadd.f32 %v3196, %v3919
        %v3999 = vadd.f32 %v3201, %v3924
        %v4000 = vadd.f32 %v3204, %v3927
        %v4001 = vadd.f32 %v3209, %v3932
        %v4002 = vadd.f32 %v3212, %v3935
        %v4003 = vadd.f32 %v3217, %v3940
        %v4004 = vadd.f32 %v3220, %v3943
        %v4005 = vadd.f32 %v3225, %v3948
        %v4006 = vadd.f32 %v3228, %v3951
        %v4007 = vadd.f32 %v3233, %v3956
        %v4008 = vadd.f32 %v3236, %v3959
        %v4009 = vadd.f32 %v3241, %v3964
        %v4010 = vadd.f32 %v3244, %v3967
        %v4011 = vadd.f32 %v3249, %v3972
        %v4012 = vadd.f32 %v3252, %v3975
        %v4013 = vadd.f32 %v3257, %v3980
        %v4014 = vadd.f32 %v3260, %v3983
        %v4015 = vadd.f32 %v3265, %v3988
        %v4020 = vunpack.c.l.s4 1966171168
        %v4021 = vunpack.c.0.s8 %v4020
        %v4022 = vlaneseq
        %v4023 = vshrl.u32 %v4022, 7
        %v4024 = vsub.s32 %v4021, %v4023
        %v4025 = vrot.slane %v342, %v4024
        %v4026 = vcombine.high %v4025, %v4025
        %v4028 = vunpack.c.l.s4 1966171168
        %v4029 = vunpack.c.0.s8 %v4028
        %v4030 = vlaneseq
        %v4031 = vshrl.u32 %v4030, 7
        %v4032 = vsub.s32 %v4029, %v4031
        %v4033 = vrot.slane %v4025, %v4032
        %v4035 = vunpack.c.l.s4 1966171168
        %v4036 = vunpack.c.0.s8 %v4035
        %v4037 = vlaneseq
        %v4038 = vshrl.u32 %v4037, 7
        %v4039 = vsub.s32 %v4036, %v4038
        %v4040 = vrot.slane %v4026, %v4039
        %v4041 = vcombine.high %v4033, %v4033
        %v4042 = vcombine.high %v4040, %v4040
        %v4044 = vunpack.c.l.s4 1966171168
        %v4045 = vunpack.c.0.s8 %v4044
        %v4046 = vlaneseq
        %v4047 = vshrl.u32 %v4046, 7
        %v4048 = vsub.s32 %v4045, %v4047
        %v4049 = vrot.slane %v343, %v4048
        %v4050 = vcombine.high %v4049, %v4049
        %v4052 = vunpack.c.l.s4 1966171168
        %v4053 = vunpack.c.0.s8 %v4052
        %v4054 = vlaneseq
        %v4055 = vshrl.u32 %v4054, 7
        %v4056 = vsub.s32 %v4053, %v4055
        %v4057 = vrot.slane %v4049, %v4056
        %v4059 = vunpack.c.l.s4 1966171168
        %v4060 = vunpack.c.0.s8 %v4059
        %v4061 = vlaneseq
        %v4062 = vshrl.u32 %v4061, 7
        %v4063 = vsub.s32 %v4060, %v4062
        %v4064 = vrot.slane %v4050, %v4063
        %v4065 = vcombine.high %v4057, %v4057
        %v4066 = vcombine.high %v4064, %v4064
        %v4068 = vunpack.c.l.s4 1966171168
        %v4069 = vunpack.c.0.s8 %v4068
        %v4070 = vlaneseq
        %v4071 = vshrl.u32 %v4070, 7
        %v4072 = vsub.s32 %v4069, %v4071
        %v4073 = vrot.slane %v344, %v4072
        %v4075 = vunpack.c.l.s4 1966171168
        %v4076 = vunpack.c.0.s8 %v4075
        %v4077 = vlaneseq
        %v4078 = vshrl.u32 %v4077, 7
        %v4079 = vsub.s32 %v4076, %v4078
        %v4080 = vrot.slane %v4073, %v4079
        %s4081 = scalar_lea.vmem %s1, 6
        %v4082 = vld [vmem:[%s4081] sm:$0x3]
        %v4083 = vcombine.low %v454, %v461
        %v4085 = vunpack.c.l.s4 1966171168
        %v4086 = vunpack.c.0.s8 %v4085
        %v4087 = vlaneseq
        %v4088 = vshrl.u32 %v4087, 7
        %v4089 = vsub.s32 %v4086, %v4088
        %v4090 = vrot.slane %v4083, %v4089
        %v4091 = vcombine.low %v4090, %v3338
        %v4093 = vunpack.c.l.s4 1966171168
        %v4094 = vunpack.c.0.s8 %v4093
        %v4095 = vlaneseq
        %v4096 = vshrl.u32 %v4095, 7
        %v4097 = vsub.s32 %v4094, %v4096
        %v4098 = vrot.slane %v4091, %v4097
        %v4099 = vcombine.low %v4098, %v3368
        %v4100 = vcombine.low %v501, %v516
        %v4102 = vunpack.c.l.s4 1966171168
        %v4103 = vunpack.c.0.s8 %v4102
        %v4104 = vlaneseq
        %v4105 = vshrl.u32 %v4104, 7
        %v4106 = vsub.s32 %v4103, %v4105
        %v4107 = vrot.slane %v4100, %v4106
        %v4108 = vcombine.low %v4107, %v3387
        %v4110 = vunpack.c.l.s4 1966171168
        %v4111 = vunpack.c.0.s8 %v4110
        %v4112 = vlaneseq
        %v4113 = vshrl.u32 %v4112, 7
        %v4114 = vsub.s32 %v4111, %v4113
        %v4115 = vrot.slane %v4108, %v4114
        %v4116 = vcombine.low %v4115, %v3417
        %v4117 = vcombine.low %v578, %v585
        %v4119 = vunpack.c.l.s4 1966171168
        %v4120 = vunpack.c.0.s8 %v4119
        %v4121 = vlaneseq
        %v4122 = vshrl.u32 %v4121, 7
        %v4123 = vsub.s32 %v4120, %v4122
        %v4124 = vrot.slane %v4117, %v4123
        %v4125 = vcombine.low %v3429, %v4124
        %v4127 = vunpack.c.l.s4 1966171168
        %v4128 = vunpack.c.0.s8 %v4127
        %v4129 = vlaneseq
        %v4130 = vshrl.u32 %v4129, 7
        %v4131 = vsub.s32 %v4128, %v4130
        %v4132 = vrot.slane %v4125, %v4131
        %v4133 = vcombine.low %v4132, %v3466
        %v4134 = vcombine.low %v625, %v640
        %v4136 = vunpack.c.l.s4 1966171168
        %v4137 = vunpack.c.0.s8 %v4136
        %v4138 = vlaneseq
        %v4139 = vshrl.u32 %v4138, 7
        %v4140 = vsub.s32 %v4137, %v4139
        %v4141 = vrot.slane %v4134, %v4140
        %v4142 = vcombine.low %v3478, %v4141
        %v4144 = vunpack.c.l.s4 1966171168
        %v4145 = vunpack.c.0.s8 %v4144
        %v4146 = vlaneseq
        %v4147 = vshrl.u32 %v4146, 7
        %v4148 = vsub.s32 %v4145, %v4147
        %v4149 = vrot.slane %v4142, %v4148
        %v4150 = vcombine.low %v4149, %v3515
        %v4151 = vcombine.low %v702, %v709
        %v4153 = vunpack.c.l.s4 1966171168
        %v4154 = vunpack.c.0.s8 %v4153
        %v4155 = vlaneseq
        %v4156 = vshrl.u32 %v4155, 7
        %v4157 = vsub.s32 %v4154, %v4156
        %v4158 = vrot.slane %v4151, %v4157
        %v4159 = vcombine.low %v4158, %v3548
        %v4161 = vunpack.c.l.s4 1966171168
        %v4162 = vunpack.c.0.s8 %v4161
        %v4163 = vlaneseq
        %v4164 = vshrl.u32 %v4163, 7
        %v4165 = vsub.s32 %v4162, %v4164
        %v4166 = vrot.slane %v4159, %v4165
        %v4167 = vcombine.low %v3557, %v4166
        %v4168 = vcombine.low %v749, %v764
        %v4170 = vunpack.c.l.s4 1966171168
        %v4171 = vunpack.c.0.s8 %v4170
        %v4172 = vlaneseq
        %v4173 = vshrl.u32 %v4172, 7
        %v4174 = vsub.s32 %v4171, %v4173
        %v4175 = vrot.slane %v4168, %v4174
        %v4176 = vcombine.low %v4175, %v3597
        %v4178 = vunpack.c.l.s4 1966171168
        %v4179 = vunpack.c.0.s8 %v4178
        %v4180 = vlaneseq
        %v4181 = vshrl.u32 %v4180, 7
        %v4182 = vsub.s32 %v4179, %v4181
        %v4183 = vrot.slane %v4176, %v4182
        %v4184 = vcombine.low %v3606, %v4183
        %v4185 = vcombine.low %v826, %v833
        %v4187 = vunpack.c.l.s4 1966171168
        %v4188 = vunpack.c.0.s8 %v4187
        %v4189 = vlaneseq
        %v4190 = vshrl.u32 %v4189, 7
        %v4191 = vsub.s32 %v4188, %v4190
        %v4192 = vrot.slane %v4185, %v4191
        %v4193 = vcombine.low %v3639, %v4192
        %v4195 = vunpack.c.l.s4 1966171168
        %v4196 = vunpack.c.0.s8 %v4195
        %v4197 = vlaneseq
        %v4198 = vshrl.u32 %v4197, 7
        %v4199 = vsub.s32 %v4196, %v4198
        %v4200 = vrot.slane %v4193, %v4199
        %v4201 = vcombine.low %v3655, %v4200
        %v4202 = vcombine.low %v873, %v888
        %v4204 = vunpack.c.l.s4 1966171168
        %v4205 = vunpack.c.0.s8 %v4204
        %v4206 = vlaneseq
        %v4207 = vshrl.u32 %v4206, 7
        %v4208 = vsub.s32 %v4205, %v4207
        %v4209 = vrot.slane %v4202, %v4208
        %v4210 = vcombine.low %v3688, %v4209
        %v4212 = vunpack.c.l.s4 1966171168
        %v4213 = vunpack.c.0.s8 %v4212
        %v4214 = vlaneseq
        %v4215 = vshrl.u32 %v4214, 7
        %v4216 = vsub.s32 %v4213, %v4215
        %v4217 = vrot.slane %v4210, %v4216
        %v4218 = vcombine.low %v3704, %v4217
        %v4219 = vcombine.low %v950, %v957
        %v4221 = vunpack.c.l.s4 1966171168
        %v4222 = vunpack.c.0.s8 %v4221
        %v4223 = vlaneseq
        %v4224 = vshrl.u32 %v4223, 7
        %v4225 = vsub.s32 %v4222, %v4224
        %v4226 = vrot.slane %v4219, %v4225
        %v4227 = vcombine.low %v4226, %v3779
        %v4229 = vunpack.c.l.s4 1966171168
        %v4230 = vunpack.c.0.s8 %v4229
        %v4231 = vlaneseq
        %v4232 = vshrl.u32 %v4231, 7
        %v4233 = vsub.s32 %v4230, %v4232
        %v4234 = vrot.slane %v4227, %v4233
        %v4235 = vcombine.low %v4234, %v3809
        %v4236 = vcombine.low %v997, %v4033
        %v4237 = vcombine.low %v4040, %v4041
        %v4238 = vcombine.low %v4042, %v4057
        %v4239 = vcombine.low %v4064, %v4065
        %v4241 = vunpack.c.l.s4 1966171168
        %v4242 = vunpack.c.0.s8 %v4241
        %v4243 = vlaneseq
        %v4244 = vshrl.u32 %v4243, 7
        %v4245 = vsub.s32 %v4242, %v4244
        %v4246 = vrot.slane %v4236, %v4245
        %v4248 = vunpack.c.l.s4 1966171168
        %v4249 = vunpack.c.0.s8 %v4248
        %v4250 = vlaneseq
        %v4251 = vshrl.u32 %v4250, 7
        %v4252 = vsub.s32 %v4249, %v4251
        %v4253 = vrot.slane %v4237, %v4252
        %v4255 = vunpack.c.l.s4 1966171168
        %v4256 = vunpack.c.0.s8 %v4255
        %v4257 = vlaneseq
        %v4258 = vshrl.u32 %v4257, 7
        %v4259 = vsub.s32 %v4256, %v4258
        %v4260 = vrot.slane %v4238, %v4259
        %v4262 = vunpack.c.l.s4 1966171168
        %v4263 = vunpack.c.0.s8 %v4262
        %v4264 = vlaneseq
        %v4265 = vshrl.u32 %v4264, 7
        %v4266 = vsub.s32 %v4263, %v4265
        %v4267 = vrot.slane %v4239, %v4266
        %v4268 = vcombine.low %v4246, %v4253
        %v4269 = vcombine.low %v4260, %v4267
        %v4271 = vunpack.c.l.s4 1966171168
        %v4272 = vunpack.c.0.s8 %v4271
        %v4273 = vlaneseq
        %v4274 = vshrl.u32 %v4273, 7
        %v4275 = vsub.s32 %v4272, %v4274
        %v4276 = vrot.slane %v4268, %v4275
        %v4278 = vunpack.c.l.s4 1966171168
        %v4279 = vunpack.c.0.s8 %v4278
        %v4280 = vlaneseq
        %v4281 = vshrl.u32 %v4280, 7
        %v4282 = vsub.s32 %v4279, %v4281
        %v4283 = vrot.slane %v4269, %v4282
        %v4284 = vcombine.low %v4276, %v4283
        %v4285 = vcombine.low %v4066, %v4080
        %v4287 = vunpack.c.l.s4 1966171168
        %v4288 = vunpack.c.0.s8 %v4287
        %v4289 = vlaneseq
        %v4290 = vshrl.u32 %v4289, 7
        %v4291 = vsub.s32 %v4288, %v4290
        %v4292 = vrot.slane %v4285, %v4291
        %v4294 = vunpack.c.l.s4 1966171168
        %v4295 = vunpack.c.0.s8 %v4294
        %v4296 = vlaneseq
        %v4297 = vshrl.u32 %v4296, 7
        %v4298 = vsub.s32 %v4295, %v4297
        %v4299 = vrot.slane %v4292, %v4298
        %v4301 = vsel %vm2380, %v4099, 0
        %v4304 = vsel %vm2380, %v4116, 0
        %v4307 = vsel %vm2380, %v4133, 0
        %v4310 = vsel %vm2380, %v4150, 0
        %v4313 = vsel %vm2380, %v4167, 0
        %v4316 = vsel %vm2380, %v4184, 0
        %v4319 = vsel %vm2380, %v4201, 0
        %v4322 = vsel %vm2380, %v4218, 0
        %v4325 = vsel %vm2380, %v4235, 0
        %v4328 = vsel %vm2380, %v4284, 0
        %v4331 = vsel %vm2380, %v4299, 0
        %v4334 = vsel %vm2417, %v4082, 0
        %4336 = vmatprep.subr.bf16.mxu0 0
        %4337 = vmatpush1.bf16.msra.mxu0 0
        %4338 = vmatprep.subr.bf16.mxu0 0
        %4339 = vmatpush1.bf16.msra.mxu0 0
        %4340 = vmatprep.subr.bf16.mxu0 0
        %4341 = vmatpush1.bf16.msra.mxu0 0
        %4342 = vmatprep.subr.bf16.mxu0 0
        %4343 = vmatpush1.bf16.msra.mxu0 0
        %4344 = vmatprep.subr.bf16.mxu0 0
        %4345 = vmatpush1.bf16.msra.mxu0 0
        %4346 = vmatprep.subr.bf16.mxu0 0
        %4347 = vmatpush1.bf16.msra.mxu0 0
        %4348 = vmatprep.subr.bf16.mxu0 0
        %4349 = vmatpush1.bf16.msra.mxu0 0
        %4350 = vmatprep.subr.bf16.mxu0 0
        %4351 = vmatpush1.bf16.msra.mxu0 %v4334
        %4352 = vmatprep.subr.bf16.mxu0 0
        %4353 = vmatpush2.bf16.msra.mxu0 0
        %4354 = vmatprep.subr.bf16.mxu0 0
        %4355 = vmatpush2.bf16.msra.mxu0 0
        %4356 = vmatprep.subr.bf16.mxu0 0
        %4357 = vmatpush2.bf16.msra.mxu0 0
        %4358 = vmatprep.subr.bf16.mxu0 0
        %4359 = vmatpush2.bf16.msra.mxu0 0
        %4360 = vmatprep.subr.bf16.mxu0 0
        %4361 = vmatpush2.bf16.msra.mxu0 0
        %4362 = vmatprep.subr.bf16.mxu0 0
        %4363 = vmatpush2.bf16.msra.mxu0 0
        %4364 = vmatprep.subr.bf16.mxu0 0
        %4365 = vmatpush2.bf16.msra.mxu0 0
        %4366 = vmatprep.subr.bf16.mxu0 0
        %4367 = vmatpush2.bf16.msra.mxu0 0
        %4368 = vmatprep.mubr.bf16.mxu0 0
        %4369 = vmatmul.mubr.bf16.gmra.mxu0 %v4301
        %v4370 = vpop.f32.mrf.mxu0
        %v4371 = vadd.f32 0.0, %v4370
        %v4372 = vpop.f32.mrf.mxu0
        %v4373 = vpop.f32.mrf.mxu0
        %v4374 = vadd.f32 0.0, %v4373
        %v4375 = vpop.f32.mrf.mxu0
        %4376 = vmatprep.mubr.bf16.mxu0 0
        %4377 = vmatmul.mubr.bf16.gmra.mxu0 %v4304
        %v4378 = vpop.f32.mrf.mxu0
        %v4379 = vadd.f32 0.0, %v4378
        %v4380 = vpop.f32.mrf.mxu0
        %v4381 = vpop.f32.mrf.mxu0
        %v4382 = vadd.f32 0.0, %v4381
        %v4383 = vpop.f32.mrf.mxu0
        %4384 = vmatprep.mubr.bf16.mxu0 0
        %4385 = vmatmul.mubr.bf16.gmra.mxu0 %v4307
        %v4386 = vpop.f32.mrf.mxu0
        %v4387 = vadd.f32 0.0, %v4386
        %v4388 = vpop.f32.mrf.mxu0
        %v4389 = vpop.f32.mrf.mxu0
        %v4390 = vadd.f32 0.0, %v4389
        %v4391 = vpop.f32.mrf.mxu0
        %4392 = vmatprep.mubr.bf16.mxu0 0
        %4393 = vmatmul.mubr.bf16.gmra.mxu0 %v4310
        %v4394 = vpop.f32.mrf.mxu0
        %v4395 = vadd.f32 0.0, %v4394
        %v4396 = vpop.f32.mrf.mxu0
        %v4397 = vpop.f32.mrf.mxu0
        %v4398 = vadd.f32 0.0, %v4397
        %v4399 = vpop.f32.mrf.mxu0
        %4400 = vmatprep.mubr.bf16.mxu0 0
        %4401 = vmatmul.mubr.bf16.gmra.mxu0 %v4313
        %v4402 = vpop.f32.mrf.mxu0
        %v4403 = vadd.f32 0.0, %v4402
        %v4404 = vpop.f32.mrf.mxu0
        %v4405 = vpop.f32.mrf.mxu0
        %v4406 = vadd.f32 0.0, %v4405
        %v4407 = vpop.f32.mrf.mxu0
        %4408 = vmatprep.mubr.bf16.mxu0 0
        %4409 = vmatmul.mubr.bf16.gmra.mxu0 %v4316
        %v4410 = vpop.f32.mrf.mxu0
        %v4411 = vadd.f32 0.0, %v4410
        %v4412 = vpop.f32.mrf.mxu0
        %v4413 = vpop.f32.mrf.mxu0
        %v4414 = vadd.f32 0.0, %v4413
        %v4415 = vpop.f32.mrf.mxu0
        %4416 = vmatprep.mubr.bf16.mxu0 0
        %4417 = vmatmul.mubr.bf16.gmra.mxu0 %v4319
        %v4418 = vpop.f32.mrf.mxu0
        %v4419 = vadd.f32 0.0, %v4418
        %v4420 = vpop.f32.mrf.mxu0
        %v4421 = vpop.f32.mrf.mxu0
        %v4422 = vadd.f32 0.0, %v4421
        %v4423 = vpop.f32.mrf.mxu0
        %4424 = vmatprep.mubr.bf16.mxu0 0
        %4425 = vmatmul.mubr.bf16.gmra.mxu0 %v4322
        %v4426 = vpop.f32.mrf.mxu0
        %v4427 = vadd.f32 0.0, %v4426
        %v4428 = vpop.f32.mrf.mxu0
        %v4429 = vpop.f32.mrf.mxu0
        %v4430 = vadd.f32 0.0, %v4429
        %v4431 = vpop.f32.mrf.mxu0
        %4432 = vmatprep.mubr.bf16.mxu0 0
        %4433 = vmatmul.mubr.bf16.gmra.mxu0 %v3854
        %v4434 = vpop.f32.mrf.mxu0
        %v4435 = vadd.f32 0.0, %v4434
        %v4436 = vpop.f32.mrf.mxu0
        %v4437 = vpop.f32.mrf.mxu0
        %v4438 = vadd.f32 0.0, %v4437
        %v4439 = vpop.f32.mrf.mxu0
        %4440 = vmatprep.mubr.bf16.mxu0 0
        %4441 = vmatmul.mubr.bf16.gmra.mxu0 %v4325
        %v4442 = vpop.f32.mrf.mxu0
        %v4443 = vadd.f32 0.0, %v4442
        %v4444 = vpop.f32.mrf.mxu0
        %v4445 = vpop.f32.mrf.mxu0
        %v4446 = vadd.f32 0.0, %v4445
        %v4447 = vpop.f32.mrf.mxu0
        %4448 = vmatprep.mubr.bf16.mxu0 0
        %4449 = vmatmul.mubr.bf16.gmra.mxu0 %v4328
        %v4450 = vpop.f32.mrf.mxu0
        %v4451 = vadd.f32 0.0, %v4450
        %v4452 = vpop.f32.mrf.mxu0
        %v4453 = vpop.f32.mrf.mxu0
        %v4454 = vadd.f32 0.0, %v4453
        %v4455 = vpop.f32.mrf.mxu0
        %4456 = vmatprep.mubr.bf16.mxu0 0
        %4457 = vmatmul.mubr.bf16.gmra.mxu0 %v4331
        %v4458 = vpop.f32.mrf.mxu0
        %v4459 = vadd.f32 0.0, %v4458
        %v4460 = vpop.f32.mrf.mxu0
        %v4461 = vpop.f32.mrf.mxu0
        %v4462 = vpop.f32.mrf.mxu0
        %4463 = vdwg.mxu0
        %v4464 = vadd.f32 %v3993, %v4371
        %v4465 = vadd.f32 %v3994, %v4374
        %v4466 = vadd.f32 %v3995, %v4379
        %v4467 = vadd.f32 %v3996, %v4382
        %v4468 = vadd.f32 %v3997, %v4387
        %v4469 = vadd.f32 %v3998, %v4390
        %v4470 = vadd.f32 %v3999, %v4395
        %v4471 = vadd.f32 %v4000, %v4398
        %v4472 = vadd.f32 %v4001, %v4403
        %v4473 = vadd.f32 %v4002, %v4406
        %v4474 = vadd.f32 %v4003, %v4411
        %v4475 = vadd.f32 %v4004, %v4414
        %v4476 = vadd.f32 %v4005, %v4419
        %v4477 = vadd.f32 %v4006, %v4422
        %v4478 = vadd.f32 %v4007, %v4427
        %v4479 = vadd.f32 %v4008, %v4430
        %v4480 = vadd.f32 %v4009, %v4435
        %v4481 = vadd.f32 %v4010, %v4438
        %v4482 = vadd.f32 %v4011, %v4443
        %v4483 = vadd.f32 %v4012, %v4446
        %v4484 = vadd.f32 %v4013, %v4451
        %v4485 = vadd.f32 %v4014, %v4454
        %v4486 = vadd.f32 %v4015, %v4459
        %v4487 = vcombine.high %v4073, %v4073
        %v4489 = vunpack.c.l.s4 1966171168
        %v4490 = vunpack.c.0.s8 %v4489
        %v4491 = vlaneseq
        %v4492 = vshrl.u32 %v4491, 7
        %v4493 = vsub.s32 %v4490, %v4492
        %v4494 = vrot.slane %v4487, %v4493
        %v4496 = vshrl.u32 %v4033, 16
        %v4498 = vrot.slane %v4496, 7
        %v4499 = vrot.slane %v4498, 1
        %v4501 = vshll.u32 %v4040, 16
        %v4503 = vsel %vm1093, %v4499, %v4501
        %v4504 = vshrl.u32 %v4040, 16
        %v4506 = vrot.slane %v4504, 7
        %v4507 = vrot.slane %v4506, 1
        %v4509 = vshll.u32 %v4041, 16
        %v4511 = vsel %vm1093, %v4507, %v4509
        %v4512 = vshrl.u32 %v4041, 16
        %v4514 = vrot.slane %v4512, 7
        %v4515 = vrot.slane %v4514, 1
        %v4517 = vshll.u32 %v4042, 16
        %v4519 = vsel %vm1093, %v4515, %v4517
        %v4520 = vshrl.u32 %v4042, 16
        %v4522 = vrot.slane %v4520, 7
        %v4523 = vrot.slane %v4522, 1
        %v4525 = vshll.u32 %v4057, 16
        %v4527 = vsel %vm1093, %v4523, %v4525
        %v4528 = vshrl.u32 %v4057, 16
        %v4530 = vrot.slane %v4528, 7
        %v4531 = vrot.slane %v4530, 1
        %v4533 = vshll.u32 %v4064, 16
        %v4535 = vsel %vm1093, %v4531, %v4533
        %v4536 = vshrl.u32 %v4064, 16
        %v4538 = vrot.slane %v4536, 7
        %v4539 = vrot.slane %v4538, 1
        %v4541 = vshll.u32 %v4065, 16
        %v4543 = vsel %vm1093, %v4539, %v4541
        %v4544 = vshrl.u32 %v4065, 16
        %v4546 = vrot.slane %v4544, 7
        %v4547 = vrot.slane %v4546, 1
        %v4549 = vshll.u32 %v4066, 16
        %v4551 = vsel %vm1093, %v4547, %v4549
        %v4552 = vshrl.u32 %v4066, 16
        %v4554 = vrot.slane %v4552, 7
        %v4555 = vrot.slane %v4554, 1
        %v4557 = vshll.u32 %v4080, 16
        %v4559 = vsel %vm1093, %v4555, %v4557
        %v4560 = vshrl.u32 %v4080, 16
        %v4562 = vrot.slane %v4560, 7
        %v4563 = vrot.slane %v4562, 1
        %v4565 = vshll.u32 %v4494, 16
        %v4567 = vsel %vm1093, %v4563, %v4565
        %s4568 = scalar_lea.vmem %s1, 8
        %v4569 = vld [vmem:[%s4568] sm:$0x3]
        %v4570 = vcombine.low %v1175, %v1183
        %v4571 = vcombine.low %v1191, %v1199
        %v4572 = vcombine.low %v1207, %v1215
        %v4573 = vcombine.low %v1223, %v1231
        %v4575 = vunpack.c.l.s4 1966171168
        %v4576 = vunpack.c.0.s8 %v4575
        %v4577 = vlaneseq
        %v4578 = vshrl.u32 %v4577, 7
        %v4579 = vsub.s32 %v4576, %v4578
        %v4580 = vrot.slane %v4570, %v4579
        %v4582 = vunpack.c.l.s4 1966171168
        %v4583 = vunpack.c.0.s8 %v4582
        %v4584 = vlaneseq
        %v4585 = vshrl.u32 %v4584, 7
        %v4586 = vsub.s32 %v4583, %v4585
        %v4587 = vrot.slane %v4571, %v4586
        %v4589 = vunpack.c.l.s4 1966171168
        %v4590 = vunpack.c.0.s8 %v4589
        %v4591 = vlaneseq
        %v4592 = vshrl.u32 %v4591, 7
        %v4593 = vsub.s32 %v4590, %v4592
        %v4594 = vrot.slane %v4572, %v4593
        %v4596 = vunpack.c.l.s4 1966171168
        %v4597 = vunpack.c.0.s8 %v4596
        %v4598 = vlaneseq
        %v4599 = vshrl.u32 %v4598, 7
        %v4600 = vsub.s32 %v4597, %v4599
        %v4601 = vrot.slane %v4573, %v4600
        %v4602 = vcombine.low %v4580, %v4587
        %v4603 = vcombine.low %v4594, %v4601
        %v4605 = vunpack.c.l.s4 1966171168
        %v4606 = vunpack.c.0.s8 %v4605
        %v4607 = vlaneseq
        %v4608 = vshrl.u32 %v4607, 7
        %v4609 = vsub.s32 %v4606, %v4608
        %v4610 = vrot.slane %v4602, %v4609
        %v4612 = vunpack.c.l.s4 1966171168
        %v4613 = vunpack.c.0.s8 %v4612
        %v4614 = vlaneseq
        %v4615 = vshrl.u32 %v4614, 7
        %v4616 = vsub.s32 %v4613, %v4615
        %v4617 = vrot.slane %v4603, %v4616
        %v4618 = vcombine.low %v4610, %v4617
        %v4619 = vcombine.low %v1239, %v1248
        %v4620 = vcombine.low %v1256, %v1264
        %v4621 = vcombine.low %v1272, %v1280
        %v4622 = vcombine.low %v1288, %v1296
        %v4624 = vunpack.c.l.s4 1966171168
        %v4625 = vunpack.c.0.s8 %v4624
        %v4626 = vlaneseq
        %v4627 = vshrl.u32 %v4626, 7
        %v4628 = vsub.s32 %v4625, %v4627
        %v4629 = vrot.slane %v4619, %v4628
        %v4631 = vunpack.c.l.s4 1966171168
        %v4632 = vunpack.c.0.s8 %v4631
        %v4633 = vlaneseq
        %v4634 = vshrl.u32 %v4633, 7
        %v4635 = vsub.s32 %v4632, %v4634
        %v4636 = vrot.slane %v4620, %v4635
        %v4638 = vunpack.c.l.s4 1966171168
        %v4639 = vunpack.c.0.s8 %v4638
        %v4640 = vlaneseq
        %v4641 = vshrl.u32 %v4640, 7
        %v4642 = vsub.s32 %v4639, %v4641
        %v4643 = vrot.slane %v4621, %v4642
        %v4645 = vunpack.c.l.s4 1966171168
        %v4646 = vunpack.c.0.s8 %v4645
        %v4647 = vlaneseq
        %v4648 = vshrl.u32 %v4647, 7
        %v4649 = vsub.s32 %v4646, %v4648
        %v4650 = vrot.slane %v4622, %v4649
        %v4651 = vcombine.low %v4629, %v4636
        %v4652 = vcombine.low %v4643, %v4650
        %v4654 = vunpack.c.l.s4 1966171168
        %v4655 = vunpack.c.0.s8 %v4654
        %v4656 = vlaneseq
        %v4657 = vshrl.u32 %v4656, 7
        %v4658 = vsub.s32 %v4655, %v4657
        %v4659 = vrot.slane %v4651, %v4658
        %v4661 = vunpack.c.l.s4 1966171168
        %v4662 = vunpack.c.0.s8 %v4661
        %v4663 = vlaneseq
        %v4664 = vshrl.u32 %v4663, 7
        %v4665 = vsub.s32 %v4662, %v4664
        %v4666 = vrot.slane %v4652, %v4665
        %v4667 = vcombine.low %v4659, %v4666
        %v4668 = vcombine.low %v1304, %v1312
        %v4669 = vcombine.low %v1321, %v1329
        %v4670 = vcombine.low %v1337, %v1345
        %v4671 = vcombine.low %v1353, %v1361
        %v4673 = vunpack.c.l.s4 1966171168
        %v4674 = vunpack.c.0.s8 %v4673
        %v4675 = vlaneseq
        %v4676 = vshrl.u32 %v4675, 7
        %v4677 = vsub.s32 %v4674, %v4676
        %v4678 = vrot.slane %v4668, %v4677
        %v4680 = vunpack.c.l.s4 1966171168
        %v4681 = vunpack.c.0.s8 %v4680
        %v4682 = vlaneseq
        %v4683 = vshrl.u32 %v4682, 7
        %v4684 = vsub.s32 %v4681, %v4683
        %v4685 = vrot.slane %v4669, %v4684
        %v4687 = vunpack.c.l.s4 1966171168
        %v4688 = vunpack.c.0.s8 %v4687
        %v4689 = vlaneseq
        %v4690 = vshrl.u32 %v4689, 7
        %v4691 = vsub.s32 %v4688, %v4690
        %v4692 = vrot.slane %v4670, %v4691
        %v4694 = vunpack.c.l.s4 1966171168
        %v4695 = vunpack.c.0.s8 %v4694
        %v4696 = vlaneseq
        %v4697 = vshrl.u32 %v4696, 7
        %v4698 = vsub.s32 %v4695, %v4697
        %v4699 = vrot.slane %v4671, %v4698
        %v4700 = vcombine.low %v4678, %v4685
        %v4701 = vcombine.low %v4692, %v4699
        %v4703 = vunpack.c.l.s4 1966171168
        %v4704 = vunpack.c.0.s8 %v4703
        %v4705 = vlaneseq
        %v4706 = vshrl.u32 %v4705, 7
        %v4707 = vsub.s32 %v4704, %v4706
        %v4708 = vrot.slane %v4700, %v4707
        %v4710 = vunpack.c.l.s4 1966171168
        %v4711 = vunpack.c.0.s8 %v4710
        %v4712 = vlaneseq
        %v4713 = vshrl.u32 %v4712, 7
        %v4714 = vsub.s32 %v4711, %v4713
        %v4715 = vrot.slane %v4701, %v4714
        %v4716 = vcombine.low %v4708, %v4715
        %v4717 = vcombine.low %v1369, %v1377
        %v4718 = vcombine.low %v1385, %v1394
        %v4719 = vcombine.low %v1402, %v1410
        %v4720 = vcombine.low %v1418, %v1426
        %v4722 = vunpack.c.l.s4 1966171168
        %v4723 = vunpack.c.0.s8 %v4722
        %v4724 = vlaneseq
        %v4725 = vshrl.u32 %v4724, 7
        %v4726 = vsub.s32 %v4723, %v4725
        %v4727 = vrot.slane %v4717, %v4726
        %v4729 = vunpack.c.l.s4 1966171168
        %v4730 = vunpack.c.0.s8 %v4729
        %v4731 = vlaneseq
        %v4732 = vshrl.u32 %v4731, 7
        %v4733 = vsub.s32 %v4730, %v4732
        %v4734 = vrot.slane %v4718, %v4733
        %v4736 = vunpack.c.l.s4 1966171168
        %v4737 = vunpack.c.0.s8 %v4736
        %v4738 = vlaneseq
        %v4739 = vshrl.u32 %v4738, 7
        %v4740 = vsub.s32 %v4737, %v4739
        %v4741 = vrot.slane %v4719, %v4740
        %v4743 = vunpack.c.l.s4 1966171168
        %v4744 = vunpack.c.0.s8 %v4743
        %v4745 = vlaneseq
        %v4746 = vshrl.u32 %v4745, 7
        %v4747 = vsub.s32 %v4744, %v4746
        %v4748 = vrot.slane %v4720, %v4747
        %v4749 = vcombine.low %v4727, %v4734
        %v4750 = vcombine.low %v4741, %v4748
        %v4752 = vunpack.c.l.s4 1966171168
        %v4753 = vunpack.c.0.s8 %v4752
        %v4754 = vlaneseq
        %v4755 = vshrl.u32 %v4754, 7
        %v4756 = vsub.s32 %v4753, %v4755
        %v4757 = vrot.slane %v4749, %v4756
        %v4759 = vunpack.c.l.s4 1966171168
        %v4760 = vunpack.c.0.s8 %v4759
        %v4761 = vlaneseq
        %v4762 = vshrl.u32 %v4761, 7
        %v4763 = vsub.s32 %v4760, %v4762
        %v4764 = vrot.slane %v4750, %v4763
        %v4765 = vcombine.low %v4757, %v4764
        %v4766 = vcombine.low %v1434, %v1442
        %v4767 = vcombine.low %v1450, %v1458
        %v4768 = vcombine.low %v1467, %v1475
        %v4769 = vcombine.low %v1483, %v1491
        %v4771 = vunpack.c.l.s4 1966171168
        %v4772 = vunpack.c.0.s8 %v4771
        %v4773 = vlaneseq
        %v4774 = vshrl.u32 %v4773, 7
        %v4775 = vsub.s32 %v4772, %v4774
        %v4776 = vrot.slane %v4766, %v4775
        %v4778 = vunpack.c.l.s4 1966171168
        %v4779 = vunpack.c.0.s8 %v4778
        %v4780 = vlaneseq
        %v4781 = vshrl.u32 %v4780, 7
        %v4782 = vsub.s32 %v4779, %v4781
        %v4783 = vrot.slane %v4767, %v4782
        %v4785 = vunpack.c.l.s4 1966171168
        %v4786 = vunpack.c.0.s8 %v4785
        %v4787 = vlaneseq
        %v4788 = vshrl.u32 %v4787, 7
        %v4789 = vsub.s32 %v4786, %v4788
        %v4790 = vrot.slane %v4768, %v4789
        %v4792 = vunpack.c.l.s4 1966171168
        %v4793 = vunpack.c.0.s8 %v4792
        %v4794 = vlaneseq
        %v4795 = vshrl.u32 %v4794, 7
        %v4796 = vsub.s32 %v4793, %v4795
        %v4797 = vrot.slane %v4769, %v4796
        %v4798 = vcombine.low %v4776, %v4783
        %v4799 = vcombine.low %v4790, %v4797
        %v4801 = vunpack.c.l.s4 1966171168
        %v4802 = vunpack.c.0.s8 %v4801
        %v4803 = vlaneseq
        %v4804 = vshrl.u32 %v4803, 7
        %v4805 = vsub.s32 %v4802, %v4804
        %v4806 = vrot.slane %v4798, %v4805
        %v4808 = vunpack.c.l.s4 1966171168
        %v4809 = vunpack.c.0.s8 %v4808
        %v4810 = vlaneseq
        %v4811 = vshrl.u32 %v4810, 7
        %v4812 = vsub.s32 %v4809, %v4811
        %v4813 = vrot.slane %v4799, %v4812
        %v4814 = vcombine.low %v4806, %v4813
        %v4815 = vcombine.low %v1499, %v1507
        %v4816 = vcombine.low %v1515, %v1523
        %v4817 = vcombine.low %v1531, %v1540
        %v4818 = vcombine.low %v1548, %v1556
        %v4820 = vunpack.c.l.s4 1966171168
        %v4821 = vunpack.c.0.s8 %v4820
        %v4822 = vlaneseq
        %v4823 = vshrl.u32 %v4822, 7
        %v4824 = vsub.s32 %v4821, %v4823
        %v4825 = vrot.slane %v4815, %v4824
        %v4827 = vunpack.c.l.s4 1966171168
        %v4828 = vunpack.c.0.s8 %v4827
        %v4829 = vlaneseq
        %v4830 = vshrl.u32 %v4829, 7
        %v4831 = vsub.s32 %v4828, %v4830
        %v4832 = vrot.slane %v4816, %v4831
        %v4834 = vunpack.c.l.s4 1966171168
        %v4835 = vunpack.c.0.s8 %v4834
        %v4836 = vlaneseq
        %v4837 = vshrl.u32 %v4836, 7
        %v4838 = vsub.s32 %v4835, %v4837
        %v4839 = vrot.slane %v4817, %v4838
        %v4841 = vunpack.c.l.s4 1966171168
        %v4842 = vunpack.c.0.s8 %v4841
        %v4843 = vlaneseq
        %v4844 = vshrl.u32 %v4843, 7
        %v4845 = vsub.s32 %v4842, %v4844
        %v4846 = vrot.slane %v4818, %v4845
        %v4847 = vcombine.low %v4825, %v4832
        %v4848 = vcombine.low %v4839, %v4846
        %v4850 = vunpack.c.l.s4 1966171168
        %v4851 = vunpack.c.0.s8 %v4850
        %v4852 = vlaneseq
        %v4853 = vshrl.u32 %v4852, 7
        %v4854 = vsub.s32 %v4851, %v4853
        %v4855 = vrot.slane %v4847, %v4854
        %v4857 = vunpack.c.l.s4 1966171168
        %v4858 = vunpack.c.0.s8 %v4857
        %v4859 = vlaneseq
        %v4860 = vshrl.u32 %v4859, 7
        %v4861 = vsub.s32 %v4858, %v4860
        %v4862 = vrot.slane %v4848, %v4861
        %v4863 = vcombine.low %v4855, %v4862
        %v4864 = vcombine.low %v1564, %v1572
        %v4865 = vcombine.low %v1580, %v1588
        %v4866 = vcombine.low %v1596, %v1604
        %v4867 = vcombine.low %v1613, %v1621
        %v4869 = vunpack.c.l.s4 1966171168
        %v4870 = vunpack.c.0.s8 %v4869
        %v4871 = vlaneseq
        %v4872 = vshrl.u32 %v4871, 7
        %v4873 = vsub.s32 %v4870, %v4872
        %v4874 = vrot.slane %v4864, %v4873
        %v4876 = vunpack.c.l.s4 1966171168
        %v4877 = vunpack.c.0.s8 %v4876
        %v4878 = vlaneseq
        %v4879 = vshrl.u32 %v4878, 7
        %v4880 = vsub.s32 %v4877, %v4879
        %v4881 = vrot.slane %v4865, %v4880
        %v4883 = vunpack.c.l.s4 1966171168
        %v4884 = vunpack.c.0.s8 %v4883
        %v4885 = vlaneseq
        %v4886 = vshrl.u32 %v4885, 7
        %v4887 = vsub.s32 %v4884, %v4886
        %v4888 = vrot.slane %v4866, %v4887
        %v4890 = vunpack.c.l.s4 1966171168
        %v4891 = vunpack.c.0.s8 %v4890
        %v4892 = vlaneseq
        %v4893 = vshrl.u32 %v4892, 7
        %v4894 = vsub.s32 %v4891, %v4893
        %v4895 = vrot.slane %v4867, %v4894
        %v4896 = vcombine.low %v4874, %v4881
        %v4897 = vcombine.low %v4888, %v4895
        %v4899 = vunpack.c.l.s4 1966171168
        %v4900 = vunpack.c.0.s8 %v4899
        %v4901 = vlaneseq
        %v4902 = vshrl.u32 %v4901, 7
        %v4903 = vsub.s32 %v4900, %v4902
        %v4904 = vrot.slane %v4896, %v4903
        %v4906 = vunpack.c.l.s4 1966171168
        %v4907 = vunpack.c.0.s8 %v4906
        %v4908 = vlaneseq
        %v4909 = vshrl.u32 %v4908, 7
        %v4910 = vsub.s32 %v4907, %v4909
        %v4911 = vrot.slane %v4897, %v4910
        %v4912 = vcombine.low %v4904, %v4911
        %v4913 = vcombine.low %v1629, %v1637
        %v4914 = vcombine.low %v1645, %v1653
        %v4915 = vcombine.low %v1661, %v1669
        %v4916 = vcombine.low %v1677, %v1686
        %v4918 = vunpack.c.l.s4 1966171168
        %v4919 = vunpack.c.0.s8 %v4918
        %v4920 = vlaneseq
        %v4921 = vshrl.u32 %v4920, 7
        %v4922 = vsub.s32 %v4919, %v4921
        %v4923 = vrot.slane %v4913, %v4922
        %v4925 = vunpack.c.l.s4 1966171168
        %v4926 = vunpack.c.0.s8 %v4925
        %v4927 = vlaneseq
        %v4928 = vshrl.u32 %v4927, 7
        %v4929 = vsub.s32 %v4926, %v4928
        %v4930 = vrot.slane %v4914, %v4929
        %v4932 = vunpack.c.l.s4 1966171168
        %v4933 = vunpack.c.0.s8 %v4932
        %v4934 = vlaneseq
        %v4935 = vshrl.u32 %v4934, 7
        %v4936 = vsub.s32 %v4933, %v4935
        %v4937 = vrot.slane %v4915, %v4936
        %v4939 = vunpack.c.l.s4 1966171168
        %v4940 = vunpack.c.0.s8 %v4939
        %v4941 = vlaneseq
        %v4942 = vshrl.u32 %v4941, 7
        %v4943 = vsub.s32 %v4940, %v4942
        %v4944 = vrot.slane %v4916, %v4943
        %v4945 = vcombine.low %v4923, %v4930
        %v4946 = vcombine.low %v4937, %v4944
        %v4948 = vunpack.c.l.s4 1966171168
        %v4949 = vunpack.c.0.s8 %v4948
        %v4950 = vlaneseq
        %v4951 = vshrl.u32 %v4950, 7
        %v4952 = vsub.s32 %v4949, %v4951
        %v4953 = vrot.slane %v4945, %v4952
        %v4955 = vunpack.c.l.s4 1966171168
        %v4956 = vunpack.c.0.s8 %v4955
        %v4957 = vlaneseq
        %v4958 = vshrl.u32 %v4957, 7
        %v4959 = vsub.s32 %v4956, %v4958
        %v4960 = vrot.slane %v4946, %v4959
        %v4961 = vcombine.low %v4953, %v4960
        %v4962 = vcombine.low %v1694, %v1702
        %v4963 = vcombine.low %v1710, %v1718
        %v4964 = vcombine.low %v1726, %v1734
        %v4965 = vcombine.low %v1742, %v1750
        %v4967 = vunpack.c.l.s4 1966171168
        %v4968 = vunpack.c.0.s8 %v4967
        %v4969 = vlaneseq
        %v4970 = vshrl.u32 %v4969, 7
        %v4971 = vsub.s32 %v4968, %v4970
        %v4972 = vrot.slane %v4962, %v4971
        %v4974 = vunpack.c.l.s4 1966171168
        %v4975 = vunpack.c.0.s8 %v4974
        %v4976 = vlaneseq
        %v4977 = vshrl.u32 %v4976, 7
        %v4978 = vsub.s32 %v4975, %v4977
        %v4979 = vrot.slane %v4963, %v4978
        %v4981 = vunpack.c.l.s4 1966171168
        %v4982 = vunpack.c.0.s8 %v4981
        %v4983 = vlaneseq
        %v4984 = vshrl.u32 %v4983, 7
        %v4985 = vsub.s32 %v4982, %v4984
        %v4986 = vrot.slane %v4964, %v4985
        %v4988 = vunpack.c.l.s4 1966171168
        %v4989 = vunpack.c.0.s8 %v4988
        %v4990 = vlaneseq
        %v4991 = vshrl.u32 %v4990, 7
        %v4992 = vsub.s32 %v4989, %v4991
        %v4993 = vrot.slane %v4965, %v4992
        %v4994 = vcombine.low %v4972, %v4979
        %v4995 = vcombine.low %v4986, %v4993
        %v4997 = vunpack.c.l.s4 1966171168
        %v4998 = vunpack.c.0.s8 %v4997
        %v4999 = vlaneseq
        %v5000 = vshrl.u32 %v4999, 7
        %v5001 = vsub.s32 %v4998, %v5000
        %v5002 = vrot.slane %v4994, %v5001
        %v5004 = vunpack.c.l.s4 1966171168
        %v5005 = vunpack.c.0.s8 %v5004
        %v5006 = vlaneseq
        %v5007 = vshrl.u32 %v5006, 7
        %v5008 = vsub.s32 %v5005, %v5007
        %v5009 = vrot.slane %v4995, %v5008
        %v5010 = vcombine.low %v5002, %v5009
        %v5011 = vcombine.low %v1759, %v1767
        %v5012 = vcombine.low %v1775, %v1783
        %v5013 = vcombine.low %v1791, %v1799
        %v5014 = vcombine.low %v1807, %v1815
        %v5016 = vunpack.c.l.s4 1966171168
        %v5017 = vunpack.c.0.s8 %v5016
        %v5018 = vlaneseq
        %v5019 = vshrl.u32 %v5018, 7
        %v5020 = vsub.s32 %v5017, %v5019
        %v5021 = vrot.slane %v5011, %v5020
        %v5023 = vunpack.c.l.s4 1966171168
        %v5024 = vunpack.c.0.s8 %v5023
        %v5025 = vlaneseq
        %v5026 = vshrl.u32 %v5025, 7
        %v5027 = vsub.s32 %v5024, %v5026
        %v5028 = vrot.slane %v5012, %v5027
        %v5030 = vunpack.c.l.s4 1966171168
        %v5031 = vunpack.c.0.s8 %v5030
        %v5032 = vlaneseq
        %v5033 = vshrl.u32 %v5032, 7
        %v5034 = vsub.s32 %v5031, %v5033
        %v5035 = vrot.slane %v5013, %v5034
        %v5037 = vunpack.c.l.s4 1966171168
        %v5038 = vunpack.c.0.s8 %v5037
        %v5039 = vlaneseq
        %v5040 = vshrl.u32 %v5039, 7
        %v5041 = vsub.s32 %v5038, %v5040
        %v5042 = vrot.slane %v5014, %v5041
        %v5043 = vcombine.low %v5021, %v5028
        %v5044 = vcombine.low %v5035, %v5042
        %v5046 = vunpack.c.l.s4 1966171168
        %v5047 = vunpack.c.0.s8 %v5046
        %v5048 = vlaneseq
        %v5049 = vshrl.u32 %v5048, 7
        %v5050 = vsub.s32 %v5047, %v5049
        %v5051 = vrot.slane %v5043, %v5050
        %v5053 = vunpack.c.l.s4 1966171168
        %v5054 = vunpack.c.0.s8 %v5053
        %v5055 = vlaneseq
        %v5056 = vshrl.u32 %v5055, 7
        %v5057 = vsub.s32 %v5054, %v5056
        %v5058 = vrot.slane %v5044, %v5057
        %v5059 = vcombine.low %v5051, %v5058
        %v5060 = vcombine.low %v1823, %v4503
        %v5061 = vcombine.low %v4511, %v4519
        %v5062 = vcombine.low %v4527, %v4535
        %v5063 = vcombine.low %v4543, %v4551
        %v5065 = vunpack.c.l.s4 1966171168
        %v5066 = vunpack.c.0.s8 %v5065
        %v5067 = vlaneseq
        %v5068 = vshrl.u32 %v5067, 7
        %v5069 = vsub.s32 %v5066, %v5068
        %v5070 = vrot.slane %v5060, %v5069
        %v5072 = vunpack.c.l.s4 1966171168
        %v5073 = vunpack.c.0.s8 %v5072
        %v5074 = vlaneseq
        %v5075 = vshrl.u32 %v5074, 7
        %v5076 = vsub.s32 %v5073, %v5075
        %v5077 = vrot.slane %v5061, %v5076
        %v5079 = vunpack.c.l.s4 1966171168
        %v5080 = vunpack.c.0.s8 %v5079
        %v5081 = vlaneseq
        %v5082 = vshrl.u32 %v5081, 7
        %v5083 = vsub.s32 %v5080, %v5082
        %v5084 = vrot.slane %v5062, %v5083
        %v5086 = vunpack.c.l.s4 1966171168
        %v5087 = vunpack.c.0.s8 %v5086
        %v5088 = vlaneseq
        %v5089 = vshrl.u32 %v5088, 7
        %v5090 = vsub.s32 %v5087, %v5089
        %v5091 = vrot.slane %v5063, %v5090
        %v5092 = vcombine.low %v5070, %v5077
        %v5093 = vcombine.low %v5084, %v5091
        %v5095 = vunpack.c.l.s4 1966171168
        %v5096 = vunpack.c.0.s8 %v5095
        %v5097 = vlaneseq
        %v5098 = vshrl.u32 %v5097, 7
        %v5099 = vsub.s32 %v5096, %v5098
        %v5100 = vrot.slane %v5092, %v5099
        %v5102 = vunpack.c.l.s4 1966171168
        %v5103 = vunpack.c.0.s8 %v5102
        %v5104 = vlaneseq
        %v5105 = vshrl.u32 %v5104, 7
        %v5106 = vsub.s32 %v5103, %v5105
        %v5107 = vrot.slane %v5093, %v5106
        %v5108 = vcombine.low %v5100, %v5107
        %v5109 = vcombine.low %v4559, %v4567
        %v5111 = vunpack.c.l.s4 1966171168
        %v5112 = vunpack.c.0.s8 %v5111
        %v5113 = vlaneseq
        %v5114 = vshrl.u32 %v5113, 7
        %v5115 = vsub.s32 %v5112, %v5114
        %v5116 = vrot.slane %v5109, %v5115
        %v5118 = vunpack.c.l.s4 1966171168
        %v5119 = vunpack.c.0.s8 %v5118
        %v5120 = vlaneseq
        %v5121 = vshrl.u32 %v5120, 7
        %v5122 = vsub.s32 %v5119, %v5121
        %v5123 = vrot.slane %v5116, %v5122
        %v5125 = vsel %vm2380, %v4618, 0
        %v5128 = vsel %vm2380, %v4667, 0
        %v5131 = vsel %vm2380, %v4716, 0
        %v5134 = vsel %vm2380, %v4765, 0
        %v5137 = vsel %vm2380, %v4814, 0
        %v5140 = vsel %vm2380, %v4863, 0
        %v5143 = vsel %vm2380, %v4912, 0
        %v5146 = vsel %vm2380, %v4961, 0
        %v5149 = vsel %vm2380, %v5010, 0
        %v5152 = vsel %vm2380, %v5059, 0
        %v5155 = vsel %vm2380, %v5108, 0
        %v5158 = vsel %vm2380, %v5123, 0
        %v5161 = vsel %vm2417, %v4569, 0
        %5163 = vmatprep.subr.bf16.mxu0 0
        %5164 = vmatpush1.bf16.msra.mxu0 0
        %5165 = vmatprep.subr.bf16.mxu0 0
        %5166 = vmatpush1.bf16.msra.mxu0 0
        %5167 = vmatprep.subr.bf16.mxu0 0
        %5168 = vmatpush1.bf16.msra.mxu0 0
        %5169 = vmatprep.subr.bf16.mxu0 0
        %5170 = vmatpush1.bf16.msra.mxu0 0
        %5171 = vmatprep.subr.bf16.mxu0 0
        %5172 = vmatpush1.bf16.msra.mxu0 0
        %5173 = vmatprep.subr.bf16.mxu0 0
        %5174 = vmatpush1.bf16.msra.mxu0 0
        %5175 = vmatprep.subr.bf16.mxu0 0
        %5176 = vmatpush1.bf16.msra.mxu0 0
        %5177 = vmatprep.subr.bf16.mxu0 0
        %5178 = vmatpush1.bf16.msra.mxu0 %v5161
        %5179 = vmatprep.subr.bf16.mxu0 0
        %5180 = vmatpush2.bf16.msra.mxu0 0
        %5181 = vmatprep.subr.bf16.mxu0 0
        %5182 = vmatpush2.bf16.msra.mxu0 0
        %5183 = vmatprep.subr.bf16.mxu0 0
        %5184 = vmatpush2.bf16.msra.mxu0 0
        %5185 = vmatprep.subr.bf16.mxu0 0
        %5186 = vmatpush2.bf16.msra.mxu0 0
        %5187 = vmatprep.subr.bf16.mxu0 0
        %5188 = vmatpush2.bf16.msra.mxu0 0
        %5189 = vmatprep.subr.bf16.mxu0 0
        %5190 = vmatpush2.bf16.msra.mxu0 0
        %5191 = vmatprep.subr.bf16.mxu0 0
        %5192 = vmatpush2.bf16.msra.mxu0 0
        %5193 = vmatprep.subr.bf16.mxu0 0
        %5194 = vmatpush2.bf16.msra.mxu0 0
        %5195 = vmatprep.mubr.bf16.mxu0 0
        %5196 = vmatmul.mubr.bf16.gmra.mxu0 %v5125
        %v5197 = vpop.f32.mrf.mxu0
        %v5198 = vadd.f32 0.0, %v5197
        %v5199 = vpop.f32.mrf.mxu0
        %v5200 = vpop.f32.mrf.mxu0
        %v5201 = vadd.f32 0.0, %v5200
        %v5202 = vpop.f32.mrf.mxu0
        %5203 = vmatprep.mubr.bf16.mxu0 0
        %5204 = vmatmul.mubr.bf16.gmra.mxu0 %v5128
        %v5205 = vpop.f32.mrf.mxu0
        %v5206 = vadd.f32 0.0, %v5205
        %v5207 = vpop.f32.mrf.mxu0
        %v5208 = vpop.f32.mrf.mxu0
        %v5209 = vadd.f32 0.0, %v5208
        %v5210 = vpop.f32.mrf.mxu0
        %5211 = vmatprep.mubr.bf16.mxu0 0
        %5212 = vmatmul.mubr.bf16.gmra.mxu0 %v5131
        %v5213 = vpop.f32.mrf.mxu0
        %v5214 = vadd.f32 0.0, %v5213
        %v5215 = vpop.f32.mrf.mxu0
        %v5216 = vpop.f32.mrf.mxu0
        %v5217 = vadd.f32 0.0, %v5216
        %v5218 = vpop.f32.mrf.mxu0
        %5219 = vmatprep.mubr.bf16.mxu0 0
        %5220 = vmatmul.mubr.bf16.gmra.mxu0 %v5134
        %v5221 = vpop.f32.mrf.mxu0
        %v5222 = vadd.f32 0.0, %v5221
        %v5223 = vpop.f32.mrf.mxu0
        %v5224 = vpop.f32.mrf.mxu0
        %v5225 = vadd.f32 0.0, %v5224
        %v5226 = vpop.f32.mrf.mxu0
        %5227 = vmatprep.mubr.bf16.mxu0 0
        %5228 = vmatmul.mubr.bf16.gmra.mxu0 %v5137
        %v5229 = vpop.f32.mrf.mxu0
        %v5230 = vadd.f32 0.0, %v5229
        %v5231 = vpop.f32.mrf.mxu0
        %v5232 = vpop.f32.mrf.mxu0
        %v5233 = vadd.f32 0.0, %v5232
        %v5234 = vpop.f32.mrf.mxu0
        %5235 = vmatprep.mubr.bf16.mxu0 0
        %5236 = vmatmul.mubr.bf16.gmra.mxu0 %v5140
        %v5237 = vpop.f32.mrf.mxu0
        %v5238 = vadd.f32 0.0, %v5237
        %v5239 = vpop.f32.mrf.mxu0
        %v5240 = vpop.f32.mrf.mxu0
        %v5241 = vadd.f32 0.0, %v5240
        %v5242 = vpop.f32.mrf.mxu0
        %5243 = vmatprep.mubr.bf16.mxu0 0
        %5244 = vmatmul.mubr.bf16.gmra.mxu0 %v5143
        %v5245 = vpop.f32.mrf.mxu0
        %v5246 = vadd.f32 0.0, %v5245
        %v5247 = vpop.f32.mrf.mxu0
        %v5248 = vpop.f32.mrf.mxu0
        %v5249 = vadd.f32 0.0, %v5248
        %v5250 = vpop.f32.mrf.mxu0
        %5251 = vmatprep.mubr.bf16.mxu0 0
        %5252 = vmatmul.mubr.bf16.gmra.mxu0 %v5146
        %v5253 = vpop.f32.mrf.mxu0
        %v5254 = vadd.f32 0.0, %v5253
        %v5255 = vpop.f32.mrf.mxu0
        %v5256 = vpop.f32.mrf.mxu0
        %v5257 = vadd.f32 0.0, %v5256
        %v5258 = vpop.f32.mrf.mxu0
        %5259 = vmatprep.mubr.bf16.mxu0 0
        %5260 = vmatmul.mubr.bf16.gmra.mxu0 %v5149
        %v5261 = vpop.f32.mrf.mxu0
        %v5262 = vadd.f32 0.0, %v5261
        %v5263 = vpop.f32.mrf.mxu0
        %v5264 = vpop.f32.mrf.mxu0
        %v5265 = vadd.f32 0.0, %v5264
        %v5266 = vpop.f32.mrf.mxu0
        %5267 = vmatprep.mubr.bf16.mxu0 0
        %5268 = vmatmul.mubr.bf16.gmra.mxu0 %v5152
        %v5269 = vpop.f32.mrf.mxu0
        %v5270 = vadd.f32 0.0, %v5269
        %v5271 = vpop.f32.mrf.mxu0
        %v5272 = vpop.f32.mrf.mxu0
        %v5273 = vadd.f32 0.0, %v5272
        %v5274 = vpop.f32.mrf.mxu0
        %5275 = vmatprep.mubr.bf16.mxu0 0
        %5276 = vmatmul.mubr.bf16.gmra.mxu0 %v5155
        %v5277 = vpop.f32.mrf.mxu0
        %v5278 = vadd.f32 0.0, %v5277
        %v5279 = vpop.f32.mrf.mxu0
        %v5280 = vpop.f32.mrf.mxu0
        %v5281 = vadd.f32 0.0, %v5280
        %v5282 = vpop.f32.mrf.mxu0
        %5283 = vmatprep.mubr.bf16.mxu0 0
        %5284 = vmatmul.mubr.bf16.gmra.mxu0 %v5158
        %v5285 = vpop.f32.mrf.mxu0
        %v5286 = vadd.f32 0.0, %v5285
        %v5287 = vpop.f32.mrf.mxu0
        %v5288 = vpop.f32.mrf.mxu0
        %v5289 = vpop.f32.mrf.mxu0
        %5290 = vdwg.mxu0
        %v5291 = vadd.f32 %v4464, %v5198
        %v5292 = vadd.f32 %v4465, %v5201
        %v5293 = vadd.f32 %v4466, %v5206
        %v5294 = vadd.f32 %v4467, %v5209
        %v5295 = vadd.f32 %v4468, %v5214
        %v5296 = vadd.f32 %v4469, %v5217
        %v5297 = vadd.f32 %v4470, %v5222
        %v5298 = vadd.f32 %v4471, %v5225
        %v5299 = vadd.f32 %v4472, %v5230
        %v5300 = vadd.f32 %v4473, %v5233
        %v5301 = vadd.f32 %v4474, %v5238
        %v5302 = vadd.f32 %v4475, %v5241
        %v5303 = vadd.f32 %v4476, %v5246
        %v5304 = vadd.f32 %v4477, %v5249
        %v5305 = vadd.f32 %v4478, %v5254
        %v5306 = vadd.f32 %v4479, %v5257
        %v5307 = vadd.f32 %v4480, %v5262
        %v5308 = vadd.f32 %v4481, %v5265
        %v5309 = vadd.f32 %v4482, %v5270
        %v5310 = vadd.f32 %v4483, %v5273
        %v5311 = vadd.f32 %v4484, %v5278
        %v5312 = vadd.f32 %v4485, %v5281
        %v5313 = vadd.f32 %v4486, %v5286
        %s5314 = scalar_lea.vmem %s1, 10
        %v5315 = vld [vmem:[%s5314] sm:$0x3]
        %v5316 = vcombine.low %v2615, %v2622
        %v5317 = vcombine.low %v2629, %v2657
        %v5319 = vunpack.c.l.s4 1966171168
        %v5320 = vunpack.c.0.s8 %v5319
        %v5321 = vlaneseq
        %v5322 = vshrl.u32 %v5321, 7
        %v5323 = vsub.s32 %v5320, %v5322
        %v5324 = vrot.slane %v5316, %v5323
        %v5326 = vunpack.c.l.s4 1966171168
        %v5327 = vunpack.c.0.s8 %v5326
        %v5328 = vlaneseq
        %v5329 = vshrl.u32 %v5328, 7
        %v5330 = vsub.s32 %v5327, %v5329
        %v5331 = vrot.slane %v5317, %v5330
        %v5332 = vcombine.low %v5324, %v5331
        %v5333 = vcombine.low %v1014, %v523
        %v5335 = vunpack.c.l.s4 1966171168
        %v5336 = vunpack.c.0.s8 %v5335
        %v5337 = vlaneseq
        %v5338 = vshrl.u32 %v5337, 7
        %v5339 = vsub.s32 %v5336, %v5338
        %v5340 = vrot.slane %v5333, %v5339
        %v5341 = vcombine.low %v5340, %v2671
        %v5342 = vcombine.low %v2678, %v2706
        %v5344 = vunpack.c.l.s4 1966171168
        %v5345 = vunpack.c.0.s8 %v5344
        %v5346 = vlaneseq
        %v5347 = vshrl.u32 %v5346, 7
        %v5348 = vsub.s32 %v5345, %v5347
        %v5349 = vrot.slane %v5341, %v5348
        %v5351 = vunpack.c.l.s4 1966171168
        %v5352 = vunpack.c.0.s8 %v5351
        %v5353 = vlaneseq
        %v5354 = vshrl.u32 %v5353, 7
        %v5355 = vsub.s32 %v5352, %v5354
        %v5356 = vrot.slane %v5342, %v5355
        %v5357 = vcombine.low %v5349, %v5356
        %v5358 = vcombine.low %v563, %v1022
        %v5360 = vunpack.c.l.s4 1966171168
        %v5361 = vunpack.c.0.s8 %v5360
        %v5362 = vlaneseq
        %v5363 = vshrl.u32 %v5362, 7
        %v5364 = vsub.s32 %v5361, %v5363
        %v5365 = vrot.slane %v5358, %v5364
        %v5366 = vcombine.low %v5365, %v2720
        %v5367 = vcombine.low %v2727, %v2755
        %v5369 = vunpack.c.l.s4 1966171168
        %v5370 = vunpack.c.0.s8 %v5369
        %v5371 = vlaneseq
        %v5372 = vshrl.u32 %v5371, 7
        %v5373 = vsub.s32 %v5370, %v5372
        %v5374 = vrot.slane %v5366, %v5373
        %v5376 = vunpack.c.l.s4 1966171168
        %v5377 = vunpack.c.0.s8 %v5376
        %v5378 = vlaneseq
        %v5379 = vshrl.u32 %v5378, 7
        %v5380 = vsub.s32 %v5377, %v5379
        %v5381 = vrot.slane %v5367, %v5380
        %v5382 = vcombine.low %v5374, %v5381
        %v5383 = vcombine.low %v1030, %v647
        %v5385 = vunpack.c.l.s4 1966171168
        %v5386 = vunpack.c.0.s8 %v5385
        %v5387 = vlaneseq
        %v5388 = vshrl.u32 %v5387, 7
        %v5389 = vsub.s32 %v5386, %v5388
        %v5390 = vrot.slane %v5383, %v5389
        %v5391 = vcombine.low %v2762, %v5390
        %v5392 = vcombine.low %v2776, %v2804
        %v5394 = vunpack.c.l.s4 1966171168
        %v5395 = vunpack.c.0.s8 %v5394
        %v5396 = vlaneseq
        %v5397 = vshrl.u32 %v5396, 7
        %v5398 = vsub.s32 %v5395, %v5397
        %v5399 = vrot.slane %v5391, %v5398
        %v5401 = vunpack.c.l.s4 1966171168
        %v5402 = vunpack.c.0.s8 %v5401
        %v5403 = vlaneseq
        %v5404 = vshrl.u32 %v5403, 7
        %v5405 = vsub.s32 %v5402, %v5404
        %v5406 = vrot.slane %v5392, %v5405
        %v5407 = vcombine.low %v5399, %v5406
        %v5408 = vcombine.low %v687, %v1038
        %v5410 = vunpack.c.l.s4 1966171168
        %v5411 = vunpack.c.0.s8 %v5410
        %v5412 = vlaneseq
        %v5413 = vshrl.u32 %v5412, 7
        %v5414 = vsub.s32 %v5411, %v5413
        %v5415 = vrot.slane %v5408, %v5414
        %v5416 = vcombine.low %v2811, %v5415
        %v5417 = vcombine.low %v2825, %v2853
        %v5419 = vunpack.c.l.s4 1966171168
        %v5420 = vunpack.c.0.s8 %v5419
        %v5421 = vlaneseq
        %v5422 = vshrl.u32 %v5421, 7
        %v5423 = vsub.s32 %v5420, %v5422
        %v5424 = vrot.slane %v5416, %v5423
        %v5426 = vunpack.c.l.s4 1966171168
        %v5427 = vunpack.c.0.s8 %v5426
        %v5428 = vlaneseq
        %v5429 = vshrl.u32 %v5428, 7
        %v5430 = vsub.s32 %v5427, %v5429
        %v5431 = vrot.slane %v5417, %v5430
        %v5432 = vcombine.low %v5424, %v5431
        %v5433 = vcombine.low %v1046, %v771
        %v5435 = vunpack.c.l.s4 1966171168
        %v5436 = vunpack.c.0.s8 %v5435
        %v5437 = vlaneseq
        %v5438 = vshrl.u32 %v5437, 7
        %v5439 = vsub.s32 %v5436, %v5438
        %v5440 = vrot.slane %v5433, %v5439
        %v5441 = vcombine.low %v2860, %v2867
        %v5442 = vcombine.low %v5440, %v2902
        %v5444 = vunpack.c.l.s4 1966171168
        %v5445 = vunpack.c.0.s8 %v5444
        %v5446 = vlaneseq
        %v5447 = vshrl.u32 %v5446, 7
        %v5448 = vsub.s32 %v5445, %v5447
        %v5449 = vrot.slane %v5441, %v5448
        %v5451 = vunpack.c.l.s4 1966171168
        %v5452 = vunpack.c.0.s8 %v5451
        %v5453 = vlaneseq
        %v5454 = vshrl.u32 %v5453, 7
        %v5455 = vsub.s32 %v5452, %v5454
        %v5456 = vrot.slane %v5442, %v5455
        %v5457 = vcombine.low %v5449, %v5456
        %v5458 = vcombine.low %v811, %v1054
        %v5460 = vunpack.c.l.s4 1966171168
        %v5461 = vunpack.c.0.s8 %v5460
        %v5462 = vlaneseq
        %v5463 = vshrl.u32 %v5462, 7
        %v5464 = vsub.s32 %v5461, %v5463
        %v5465 = vrot.slane %v5458, %v5464
        %v5466 = vcombine.low %v2909, %v2916
        %v5467 = vcombine.low %v5465, %v2951
        %v5469 = vunpack.c.l.s4 1966171168
        %v5470 = vunpack.c.0.s8 %v5469
        %v5471 = vlaneseq
        %v5472 = vshrl.u32 %v5471, 7
        %v5473 = vsub.s32 %v5470, %v5472
        %v5474 = vrot.slane %v5466, %v5473
        %v5476 = vunpack.c.l.s4 1966171168
        %v5477 = vunpack.c.0.s8 %v5476
        %v5478 = vlaneseq
        %v5479 = vshrl.u32 %v5478, 7
        %v5480 = vsub.s32 %v5477, %v5479
        %v5481 = vrot.slane %v5467, %v5480
        %v5482 = vcombine.low %v5474, %v5481
        %v5483 = vcombine.low %v1062, %v895
        %v5485 = vunpack.c.l.s4 1966171168
        %v5486 = vunpack.c.0.s8 %v5485
        %v5487 = vlaneseq
        %v5488 = vshrl.u32 %v5487, 7
        %v5489 = vsub.s32 %v5486, %v5488
        %v5490 = vrot.slane %v5483, %v5489
        %v5491 = vcombine.low %v2958, %v2965
        %v5492 = vcombine.low %v2972, %v5490
        %v5494 = vunpack.c.l.s4 1966171168
        %v5495 = vunpack.c.0.s8 %v5494
        %v5496 = vlaneseq
        %v5497 = vshrl.u32 %v5496, 7
        %v5498 = vsub.s32 %v5495, %v5497
        %v5499 = vrot.slane %v5491, %v5498
        %v5501 = vunpack.c.l.s4 1966171168
        %v5502 = vunpack.c.0.s8 %v5501
        %v5503 = vlaneseq
        %v5504 = vshrl.u32 %v5503, 7
        %v5505 = vsub.s32 %v5502, %v5504
        %v5506 = vrot.slane %v5492, %v5505
        %v5507 = vcombine.low %v5499, %v5506
        %v5508 = vcombine.low %v935, %v1070
        %v5510 = vunpack.c.l.s4 1966171168
        %v5511 = vunpack.c.0.s8 %v5510
        %v5512 = vlaneseq
        %v5513 = vshrl.u32 %v5512, 7
        %v5514 = vsub.s32 %v5511, %v5513
        %v5515 = vrot.slane %v5508, %v5514
        %v5516 = vcombine.low %v3007, %v3014
        %v5517 = vcombine.low %v3021, %v5515
        %v5519 = vunpack.c.l.s4 1966171168
        %v5520 = vunpack.c.0.s8 %v5519
        %v5521 = vlaneseq
        %v5522 = vshrl.u32 %v5521, 7
        %v5523 = vsub.s32 %v5520, %v5522
        %v5524 = vrot.slane %v5516, %v5523
        %v5526 = vunpack.c.l.s4 1966171168
        %v5527 = vunpack.c.0.s8 %v5526
        %v5528 = vlaneseq
        %v5529 = vshrl.u32 %v5528, 7
        %v5530 = vsub.s32 %v5527, %v5529
        %v5531 = vrot.slane %v5517, %v5530
        %v5532 = vcombine.low %v5524, %v5531
        %v5533 = vcombine.low %v3056, %v3063
        %v5534 = vcombine.low %v3070, %v3095
        %v5536 = vunpack.c.l.s4 1966171168
        %v5537 = vunpack.c.0.s8 %v5536
        %v5538 = vlaneseq
        %v5539 = vshrl.u32 %v5538, 7
        %v5540 = vsub.s32 %v5537, %v5539
        %v5541 = vrot.slane %v5533, %v5540
        %v5543 = vunpack.c.l.s4 1966171168
        %v5544 = vunpack.c.0.s8 %v5543
        %v5545 = vlaneseq
        %v5546 = vshrl.u32 %v5545, 7
        %v5547 = vsub.s32 %v5544, %v5546
        %v5548 = vrot.slane %v5534, %v5547
        %v5549 = vcombine.low %v5541, %v5548
        %v5550 = vcombine.low %v1078, %v4040
        %v5551 = vcombine.low %v4041, %v4042
        %v5552 = vcombine.low %v4057, %v4064
        %v5553 = vcombine.low %v4065, %v4066
        %v5555 = vunpack.c.l.s4 1966171168
        %v5556 = vunpack.c.0.s8 %v5555
        %v5557 = vlaneseq
        %v5558 = vshrl.u32 %v5557, 7
        %v5559 = vsub.s32 %v5556, %v5558
        %v5560 = vrot.slane %v5550, %v5559
        %v5562 = vunpack.c.l.s4 1966171168
        %v5563 = vunpack.c.0.s8 %v5562
        %v5564 = vlaneseq
        %v5565 = vshrl.u32 %v5564, 7
        %v5566 = vsub.s32 %v5563, %v5565
        %v5567 = vrot.slane %v5551, %v5566
        %v5569 = vunpack.c.l.s4 1966171168
        %v5570 = vunpack.c.0.s8 %v5569
        %v5571 = vlaneseq
        %v5572 = vshrl.u32 %v5571, 7
        %v5573 = vsub.s32 %v5570, %v5572
        %v5574 = vrot.slane %v5552, %v5573
        %v5576 = vunpack.c.l.s4 1966171168
        %v5577 = vunpack.c.0.s8 %v5576
        %v5578 = vlaneseq
        %v5579 = vshrl.u32 %v5578, 7
        %v5580 = vsub.s32 %v5577, %v5579
        %v5581 = vrot.slane %v5553, %v5580
        %v5582 = vcombine.low %v5560, %v5567
        %v5583 = vcombine.low %v5574, %v5581
        %v5585 = vunpack.c.l.s4 1966171168
        %v5586 = vunpack.c.0.s8 %v5585
        %v5587 = vlaneseq
        %v5588 = vshrl.u32 %v5587, 7
        %v5589 = vsub.s32 %v5586, %v5588
        %v5590 = vrot.slane %v5582, %v5589
        %v5592 = vunpack.c.l.s4 1966171168
        %v5593 = vunpack.c.0.s8 %v5592
        %v5594 = vlaneseq
        %v5595 = vshrl.u32 %v5594, 7
        %v5596 = vsub.s32 %v5593, %v5595
        %v5597 = vrot.slane %v5583, %v5596
        %v5598 = vcombine.low %v5590, %v5597
        %v5599 = vcombine.low %v4080, %v4494
        %v5601 = vunpack.c.l.s4 1966171168
        %v5602 = vunpack.c.0.s8 %v5601
        %v5603 = vlaneseq
        %v5604 = vshrl.u32 %v5603, 7
        %v5605 = vsub.s32 %v5602, %v5604
        %v5606 = vrot.slane %v5599, %v5605
        %v5608 = vunpack.c.l.s4 1966171168
        %v5609 = vunpack.c.0.s8 %v5608
        %v5610 = vlaneseq
        %v5611 = vshrl.u32 %v5610, 7
        %v5612 = vsub.s32 %v5609, %v5611
        %v5613 = vrot.slane %v5606, %v5612
        %v5615 = vsel %vm2380, %v5332, 0
        %v5618 = vsel %vm2380, %v5357, 0
        %v5621 = vsel %vm2380, %v5382, 0
        %v5624 = vsel %vm2380, %v5407, 0
        %v5627 = vsel %vm2380, %v5432, 0
        %v5630 = vsel %vm2380, %v5457, 0
        %v5633 = vsel %vm2380, %v5482, 0
        %v5636 = vsel %vm2380, %v5507, 0
        %v5639 = vsel %vm2380, %v5532, 0
        %v5642 = vsel %vm2380, %v5549, 0
        %v5645 = vsel %vm2380, %v5598, 0
        %v5648 = vsel %vm2380, %v5613, 0
        %v5651 = vsel %vm2417, %v5315, 0
        %5653 = vmatprep.subr.bf16.mxu0 0
        %5654 = vmatpush1.bf16.msra.mxu0 0
        %5655 = vmatprep.subr.bf16.mxu0 0
        %5656 = vmatpush1.bf16.msra.mxu0 0
        %5657 = vmatprep.subr.bf16.mxu0 0
        %5658 = vmatpush1.bf16.msra.mxu0 0
        %5659 = vmatprep.subr.bf16.mxu0 0
        %5660 = vmatpush1.bf16.msra.mxu0 0
        %5661 = vmatprep.subr.bf16.mxu0 0
        %5662 = vmatpush1.bf16.msra.mxu0 0
        %5663 = vmatprep.subr.bf16.mxu0 0
        %5664 = vmatpush1.bf16.msra.mxu0 0
        %5665 = vmatprep.subr.bf16.mxu0 0
        %5666 = vmatpush1.bf16.msra.mxu0 0
        %5667 = vmatprep.subr.bf16.mxu0 0
        %5668 = vmatpush1.bf16.msra.mxu0 %v5651
        %5669 = vmatprep.subr.bf16.mxu0 0
        %5670 = vmatpush2.bf16.msra.mxu0 0
        %5671 = vmatprep.subr.bf16.mxu0 0
        %5672 = vmatpush2.bf16.msra.mxu0 0
        %5673 = vmatprep.subr.bf16.mxu0 0
        %5674 = vmatpush2.bf16.msra.mxu0 0
        %5675 = vmatprep.subr.bf16.mxu0 0
        %5676 = vmatpush2.bf16.msra.mxu0 0
        %5677 = vmatprep.subr.bf16.mxu0 0
        %5678 = vmatpush2.bf16.msra.mxu0 0
        %5679 = vmatprep.subr.bf16.mxu0 0
        %5680 = vmatpush2.bf16.msra.mxu0 0
        %5681 = vmatprep.subr.bf16.mxu0 0
        %5682 = vmatpush2.bf16.msra.mxu0 0
        %5683 = vmatprep.subr.bf16.mxu0 0
        %5684 = vmatpush2.bf16.msra.mxu0 0
        %5685 = vmatprep.mubr.bf16.mxu0 0
        %5686 = vmatmul.mubr.bf16.gmra.mxu0 %v5615
        %v5687 = vpop.f32.mrf.mxu0
        %v5688 = vadd.f32 0.0, %v5687
        %v5689 = vpop.f32.mrf.mxu0
        %v5690 = vpop.f32.mrf.mxu0
        %v5691 = vadd.f32 0.0, %v5690
        %v5692 = vpop.f32.mrf.mxu0
        %5693 = vmatprep.mubr.bf16.mxu0 0
        %5694 = vmatmul.mubr.bf16.gmra.mxu0 %v5618
        %v5695 = vpop.f32.mrf.mxu0
        %v5696 = vadd.f32 0.0, %v5695
        %v5697 = vpop.f32.mrf.mxu0
        %v5698 = vpop.f32.mrf.mxu0
        %v5699 = vadd.f32 0.0, %v5698
        %v5700 = vpop.f32.mrf.mxu0
        %5701 = vmatprep.mubr.bf16.mxu0 0
        %5702 = vmatmul.mubr.bf16.gmra.mxu0 %v5621
        %v5703 = vpop.f32.mrf.mxu0
        %v5704 = vadd.f32 0.0, %v5703
        %v5705 = vpop.f32.mrf.mxu0
        %v5706 = vpop.f32.mrf.mxu0
        %v5707 = vadd.f32 0.0, %v5706
        %v5708 = vpop.f32.mrf.mxu0
        %5709 = vmatprep.mubr.bf16.mxu0 0
        %5710 = vmatmul.mubr.bf16.gmra.mxu0 %v5624
        %v5711 = vpop.f32.mrf.mxu0
        %v5712 = vadd.f32 0.0, %v5711
        %v5713 = vpop.f32.mrf.mxu0
        %v5714 = vpop.f32.mrf.mxu0
        %v5715 = vadd.f32 0.0, %v5714
        %v5716 = vpop.f32.mrf.mxu0
        %5717 = vmatprep.mubr.bf16.mxu0 0
        %5718 = vmatmul.mubr.bf16.gmra.mxu0 %v5627
        %v5719 = vpop.f32.mrf.mxu0
        %v5720 = vadd.f32 0.0, %v5719
        %v5721 = vpop.f32.mrf.mxu0
        %v5722 = vpop.f32.mrf.mxu0
        %v5723 = vadd.f32 0.0, %v5722
        %v5724 = vpop.f32.mrf.mxu0
        %5725 = vmatprep.mubr.bf16.mxu0 0
        %5726 = vmatmul.mubr.bf16.gmra.mxu0 %v5630
        %v5727 = vpop.f32.mrf.mxu0
        %v5728 = vadd.f32 0.0, %v5727
        %v5729 = vpop.f32.mrf.mxu0
        %v5730 = vpop.f32.mrf.mxu0
        %v5731 = vadd.f32 0.0, %v5730
        %v5732 = vpop.f32.mrf.mxu0
        %5733 = vmatprep.mubr.bf16.mxu0 0
        %5734 = vmatmul.mubr.bf16.gmra.mxu0 %v5633
        %v5735 = vpop.f32.mrf.mxu0
        %v5736 = vadd.f32 0.0, %v5735
        %v5737 = vpop.f32.mrf.mxu0
        %v5738 = vpop.f32.mrf.mxu0
        %v5739 = vadd.f32 0.0, %v5738
        %v5740 = vpop.f32.mrf.mxu0
        %5741 = vmatprep.mubr.bf16.mxu0 0
        %5742 = vmatmul.mubr.bf16.gmra.mxu0 %v5636
        %v5743 = vpop.f32.mrf.mxu0
        %v5744 = vadd.f32 0.0, %v5743
        %v5745 = vpop.f32.mrf.mxu0
        %v5746 = vpop.f32.mrf.mxu0
        %v5747 = vadd.f32 0.0, %v5746
        %v5748 = vpop.f32.mrf.mxu0
        %5749 = vmatprep.mubr.bf16.mxu0 0
        %5750 = vmatmul.mubr.bf16.gmra.mxu0 %v5639
        %v5751 = vpop.f32.mrf.mxu0
        %v5752 = vadd.f32 0.0, %v5751
        %v5753 = vpop.f32.mrf.mxu0
        %v5754 = vpop.f32.mrf.mxu0
        %v5755 = vadd.f32 0.0, %v5754
        %v5756 = vpop.f32.mrf.mxu0
        %5757 = vmatprep.mubr.bf16.mxu0 0
        %5758 = vmatmul.mubr.bf16.gmra.mxu0 %v5642
        %v5759 = vpop.f32.mrf.mxu0
        %v5760 = vadd.f32 0.0, %v5759
        %v5761 = vpop.f32.mrf.mxu0
        %v5762 = vpop.f32.mrf.mxu0
        %v5763 = vadd.f32 0.0, %v5762
        %v5764 = vpop.f32.mrf.mxu0
        %5765 = vmatprep.mubr.bf16.mxu0 0
        %5766 = vmatmul.mubr.bf16.gmra.mxu0 %v5645
        %v5767 = vpop.f32.mrf.mxu0
        %v5768 = vadd.f32 0.0, %v5767
        %v5769 = vpop.f32.mrf.mxu0
        %v5770 = vpop.f32.mrf.mxu0
        %v5771 = vadd.f32 0.0, %v5770
        %v5772 = vpop.f32.mrf.mxu0
        %5773 = vmatprep.mubr.bf16.mxu0 0
        %5774 = vmatmul.mubr.bf16.gmra.mxu0 %v5648
        %v5775 = vpop.f32.mrf.mxu0
        %v5776 = vadd.f32 0.0, %v5775
        %v5777 = vpop.f32.mrf.mxu0
        %v5778 = vpop.f32.mrf.mxu0
        %v5779 = vpop.f32.mrf.mxu0
        %5780 = vdwg.mxu0
        %v5781 = vadd.f32 %v5291, %v5688
        %v5782 = vadd.f32 %v5292, %v5691
        %v5783 = vadd.f32 %v5293, %v5696
        %v5784 = vadd.f32 %v5294, %v5699
        %v5785 = vadd.f32 %v5295, %v5704
        %v5786 = vadd.f32 %v5296, %v5707
        %v5787 = vadd.f32 %v5297, %v5712
        %v5788 = vadd.f32 %v5298, %v5715
        %v5789 = vadd.f32 %v5299, %v5720
        %v5790 = vadd.f32 %v5300, %v5723
        %v5791 = vadd.f32 %v5301, %v5728
        %v5792 = vadd.f32 %v5302, %v5731
        %v5793 = vadd.f32 %v5303, %v5736
        %v5794 = vadd.f32 %v5304, %v5739
        %v5795 = vadd.f32 %v5305, %v5744
        %v5796 = vadd.f32 %v5306, %v5747
        %v5797 = vadd.f32 %v5307, %v5752
        %v5798 = vadd.f32 %v5308, %v5755
        %v5799 = vadd.f32 %v5309, %v5760
        %v5800 = vadd.f32 %v5310, %v5763
        %v5801 = vadd.f32 %v5311, %v5768
        %v5802 = vadd.f32 %v5312, %v5771
        %v5803 = vadd.f32 %v5313, %v5776
        %v5808 = vunpack.c.l.s4 1966171168
        %v5809 = vunpack.c.0.s8 %v5808
        %v5810 = vlaneseq
        %v5811 = vshrl.u32 %v5810, 7
        %v5812 = vsub.s32 %v5809, %v5811
        %v5813 = vrot.slane %v345, %v5812
        %v5814 = vcombine.high %v5813, %v5813
        %v5816 = vunpack.c.l.s4 1966171168
        %v5817 = vunpack.c.0.s8 %v5816
        %v5818 = vlaneseq
        %v5819 = vshrl.u32 %v5818, 7
        %v5820 = vsub.s32 %v5817, %v5819
        %v5821 = vrot.slane %v5813, %v5820
        %v5823 = vunpack.c.l.s4 1966171168
        %v5824 = vunpack.c.0.s8 %v5823
        %v5825 = vlaneseq
        %v5826 = vshrl.u32 %v5825, 7
        %v5827 = vsub.s32 %v5824, %v5826
        %v5828 = vrot.slane %v5814, %v5827
        %v5829 = vcombine.high %v5821, %v5821
        %v5830 = vcombine.high %v5828, %v5828
        %v5832 = vunpack.c.l.s4 1966171168
        %v5833 = vunpack.c.0.s8 %v5832
        %v5834 = vlaneseq
        %v5835 = vshrl.u32 %v5834, 7
        %v5836 = vsub.s32 %v5833, %v5835
        %v5837 = vrot.slane %v346, %v5836
        %v5838 = vcombine.high %v5837, %v5837
        %v5840 = vunpack.c.l.s4 1966171168
        %v5841 = vunpack.c.0.s8 %v5840
        %v5842 = vlaneseq
        %v5843 = vshrl.u32 %v5842, 7
        %v5844 = vsub.s32 %v5841, %v5843
        %v5845 = vrot.slane %v5837, %v5844
        %v5847 = vunpack.c.l.s4 1966171168
        %v5848 = vunpack.c.0.s8 %v5847
        %v5849 = vlaneseq
        %v5850 = vshrl.u32 %v5849, 7
        %v5851 = vsub.s32 %v5848, %v5850
        %v5852 = vrot.slane %v5838, %v5851
        %v5853 = vcombine.high %v5845, %v5845
        %v5854 = vcombine.high %v5852, %v5852
        %v5856 = vunpack.c.l.s4 1966171168
        %v5857 = vunpack.c.0.s8 %v5856
        %v5858 = vlaneseq
        %v5859 = vshrl.u32 %v5858, 7
        %v5860 = vsub.s32 %v5857, %v5859
        %v5861 = vrot.slane %v347, %v5860
        %v5863 = vunpack.c.l.s4 1966171168
        %v5864 = vunpack.c.0.s8 %v5863
        %v5865 = vlaneseq
        %v5866 = vshrl.u32 %v5865, 7
        %v5867 = vsub.s32 %v5864, %v5866
        %v5868 = vrot.slane %v5861, %v5867
        %s5869 = scalar_lea.vmem %s1, 12
        %v5870 = vld [vmem:[%s5869] sm:$0x3]
        %v5871 = vcombine.low %v2664, %v2671
        %v5873 = vunpack.c.l.s4 1966171168
        %v5874 = vunpack.c.0.s8 %v5873
        %v5875 = vlaneseq
        %v5876 = vshrl.u32 %v5875, 7
        %v5877 = vsub.s32 %v5874, %v5876
        %v5878 = vrot.slane %v5871, %v5877
        %v5879 = vcombine.low %v5878, %v5356
        %v5880 = vcombine.low %v2713, %v2720
        %v5882 = vunpack.c.l.s4 1966171168
        %v5883 = vunpack.c.0.s8 %v5882
        %v5884 = vlaneseq
        %v5885 = vshrl.u32 %v5884, 7
        %v5886 = vsub.s32 %v5883, %v5885
        %v5887 = vrot.slane %v5880, %v5886
        %v5888 = vcombine.low %v5887, %v5381
        %v5889 = vcombine.low %v2762, %v2769
        %v5891 = vunpack.c.l.s4 1966171168
        %v5892 = vunpack.c.0.s8 %v5891
        %v5893 = vlaneseq
        %v5894 = vshrl.u32 %v5893, 7
        %v5895 = vsub.s32 %v5892, %v5894
        %v5896 = vrot.slane %v5889, %v5895
        %v5897 = vcombine.low %v5896, %v5406
        %v5898 = vcombine.low %v2811, %v2818
        %v5900 = vunpack.c.l.s4 1966171168
        %v5901 = vunpack.c.0.s8 %v5900
        %v5902 = vlaneseq
        %v5903 = vshrl.u32 %v5902, 7
        %v5904 = vsub.s32 %v5901, %v5903
        %v5905 = vrot.slane %v5898, %v5904
        %v5906 = vcombine.low %v5905, %v5431
        %v5907 = vcombine.low %v2874, %v2902
        %v5909 = vunpack.c.l.s4 1966171168
        %v5910 = vunpack.c.0.s8 %v5909
        %v5911 = vlaneseq
        %v5912 = vshrl.u32 %v5911, 7
        %v5913 = vsub.s32 %v5910, %v5912
        %v5914 = vrot.slane %v5907, %v5913
        %v5915 = vcombine.low %v5449, %v5914
        %v5916 = vcombine.low %v2923, %v2951
        %v5918 = vunpack.c.l.s4 1966171168
        %v5919 = vunpack.c.0.s8 %v5918
        %v5920 = vlaneseq
        %v5921 = vshrl.u32 %v5920, 7
        %v5922 = vsub.s32 %v5919, %v5921
        %v5923 = vrot.slane %v5916, %v5922
        %v5924 = vcombine.low %v5474, %v5923
        %v5925 = vcombine.low %v2972, %v3000
        %v5927 = vunpack.c.l.s4 1966171168
        %v5928 = vunpack.c.0.s8 %v5927
        %v5929 = vlaneseq
        %v5930 = vshrl.u32 %v5929, 7
        %v5931 = vsub.s32 %v5928, %v5930
        %v5932 = vrot.slane %v5925, %v5931
        %v5933 = vcombine.low %v5499, %v5932
        %v5934 = vcombine.low %v3021, %v3049
        %v5936 = vunpack.c.l.s4 1966171168
        %v5937 = vunpack.c.0.s8 %v5936
        %v5938 = vlaneseq
        %v5939 = vshrl.u32 %v5938, 7
        %v5940 = vsub.s32 %v5937, %v5939
        %v5941 = vrot.slane %v5934, %v5940
        %v5942 = vcombine.low %v5524, %v5941
        %v5943 = vcombine.low %v4033, %v4040
        %v5945 = vunpack.c.l.s4 1966171168
        %v5946 = vunpack.c.0.s8 %v5945
        %v5947 = vlaneseq
        %v5948 = vshrl.u32 %v5947, 7
        %v5949 = vsub.s32 %v5946, %v5948
        %v5950 = vrot.slane %v5943, %v5949
        %v5951 = vcombine.low %v5950, %v5567
        %v5953 = vunpack.c.l.s4 1966171168
        %v5954 = vunpack.c.0.s8 %v5953
        %v5955 = vlaneseq
        %v5956 = vshrl.u32 %v5955, 7
        %v5957 = vsub.s32 %v5954, %v5956
        %v5958 = vrot.slane %v5951, %v5957
        %v5959 = vcombine.low %v5958, %v5597
        %v5960 = vcombine.low %v4080, %v5821
        %v5961 = vcombine.low %v5828, %v5829
        %v5962 = vcombine.low %v5830, %v5845
        %v5963 = vcombine.low %v5852, %v5853
        %v5965 = vunpack.c.l.s4 1966171168
        %v5966 = vunpack.c.0.s8 %v5965
        %v5967 = vlaneseq
        %v5968 = vshrl.u32 %v5967, 7
        %v5969 = vsub.s32 %v5966, %v5968
        %v5970 = vrot.slane %v5960, %v5969
        %v5972 = vunpack.c.l.s4 1966171168
        %v5973 = vunpack.c.0.s8 %v5972
        %v5974 = vlaneseq
        %v5975 = vshrl.u32 %v5974, 7
        %v5976 = vsub.s32 %v5973, %v5975
        %v5977 = vrot.slane %v5961, %v5976
        %v5979 = vunpack.c.l.s4 1966171168
        %v5980 = vunpack.c.0.s8 %v5979
        %v5981 = vlaneseq
        %v5982 = vshrl.u32 %v5981, 7
        %v5983 = vsub.s32 %v5980, %v5982
        %v5984 = vrot.slane %v5962, %v5983
        %v5986 = vunpack.c.l.s4 1966171168
        %v5987 = vunpack.c.0.s8 %v5986
        %v5988 = vlaneseq
        %v5989 = vshrl.u32 %v5988, 7
        %v5990 = vsub.s32 %v5987, %v5989
        %v5991 = vrot.slane %v5963, %v5990
        %v5992 = vcombine.low %v5970, %v5977
        %v5993 = vcombine.low %v5984, %v5991
        %v5995 = vunpack.c.l.s4 1966171168
        %v5996 = vunpack.c.0.s8 %v5995
        %v5997 = vlaneseq
        %v5998 = vshrl.u32 %v5997, 7
        %v5999 = vsub.s32 %v5996, %v5998
        %v6000 = vrot.slane %v5992, %v5999
        %v6002 = vunpack.c.l.s4 1966171168
        %v6003 = vunpack.c.0.s8 %v6002
        %v6004 = vlaneseq
        %v6005 = vshrl.u32 %v6004, 7
        %v6006 = vsub.s32 %v6003, %v6005
        %v6007 = vrot.slane %v5993, %v6006
        %v6008 = vcombine.low %v6000, %v6007
        %v6009 = vcombine.low %v5854, %v5868
        %v6011 = vunpack.c.l.s4 1966171168
        %v6012 = vunpack.c.0.s8 %v6011
        %v6013 = vlaneseq
        %v6014 = vshrl.u32 %v6013, 7
        %v6015 = vsub.s32 %v6012, %v6014
        %v6016 = vrot.slane %v6009, %v6015
        %v6018 = vunpack.c.l.s4 1966171168
        %v6019 = vunpack.c.0.s8 %v6018
        %v6020 = vlaneseq
        %v6021 = vshrl.u32 %v6020, 7
        %v6022 = vsub.s32 %v6019, %v6021
        %v6023 = vrot.slane %v6016, %v6022
        %v6025 = vsel %vm2380, %v5879, 0
        %v6028 = vsel %vm2380, %v5888, 0
        %v6031 = vsel %vm2380, %v5897, 0
        %v6034 = vsel %vm2380, %v5906, 0
        %v6037 = vsel %vm2380, %v5915, 0
        %v6040 = vsel %vm2380, %v5924, 0
        %v6043 = vsel %vm2380, %v5933, 0
        %v6046 = vsel %vm2380, %v5942, 0
        %v6049 = vsel %vm2380, %v5959, 0
        %v6052 = vsel %vm2380, %v6008, 0
        %v6055 = vsel %vm2380, %v6023, 0
        %v6058 = vsel %vm2417, %v5870, 0
        %6060 = vmatprep.subr.bf16.mxu0 0
        %6061 = vmatpush1.bf16.msra.mxu0 0
        %6062 = vmatprep.subr.bf16.mxu0 0
        %6063 = vmatpush1.bf16.msra.mxu0 0
        %6064 = vmatprep.subr.bf16.mxu0 0
        %6065 = vmatpush1.bf16.msra.mxu0 0
        %6066 = vmatprep.subr.bf16.mxu0 0
        %6067 = vmatpush1.bf16.msra.mxu0 0
        %6068 = vmatprep.subr.bf16.mxu0 0
        %6069 = vmatpush1.bf16.msra.mxu0 0
        %6070 = vmatprep.subr.bf16.mxu0 0
        %6071 = vmatpush1.bf16.msra.mxu0 0
        %6072 = vmatprep.subr.bf16.mxu0 0
        %6073 = vmatpush1.bf16.msra.mxu0 0
        %6074 = vmatprep.subr.bf16.mxu0 0
        %6075 = vmatpush1.bf16.msra.mxu0 %v6058
        %6076 = vmatprep.subr.bf16.mxu0 0
        %6077 = vmatpush2.bf16.msra.mxu0 0
        %6078 = vmatprep.subr.bf16.mxu0 0
        %6079 = vmatpush2.bf16.msra.mxu0 0
        %6080 = vmatprep.subr.bf16.mxu0 0
        %6081 = vmatpush2.bf16.msra.mxu0 0
        %6082 = vmatprep.subr.bf16.mxu0 0
        %6083 = vmatpush2.bf16.msra.mxu0 0
        %6084 = vmatprep.subr.bf16.mxu0 0
        %6085 = vmatpush2.bf16.msra.mxu0 0
        %6086 = vmatprep.subr.bf16.mxu0 0
        %6087 = vmatpush2.bf16.msra.mxu0 0
        %6088 = vmatprep.subr.bf16.mxu0 0
        %6089 = vmatpush2.bf16.msra.mxu0 0
        %6090 = vmatprep.subr.bf16.mxu0 0
        %6091 = vmatpush2.bf16.msra.mxu0 0
        %6092 = vmatprep.mubr.bf16.mxu0 0
        %6093 = vmatmul.mubr.bf16.gmra.mxu0 %v6025
        %v6094 = vpop.f32.mrf.mxu0
        %v6095 = vadd.f32 0.0, %v6094
        %v6096 = vpop.f32.mrf.mxu0
        %v6097 = vpop.f32.mrf.mxu0
        %v6098 = vadd.f32 0.0, %v6097
        %v6099 = vpop.f32.mrf.mxu0
        %6100 = vmatprep.mubr.bf16.mxu0 0
        %6101 = vmatmul.mubr.bf16.gmra.mxu0 %v6028
        %v6102 = vpop.f32.mrf.mxu0
        %v6103 = vadd.f32 0.0, %v6102
        %v6104 = vpop.f32.mrf.mxu0
        %v6105 = vpop.f32.mrf.mxu0
        %v6106 = vadd.f32 0.0, %v6105
        %v6107 = vpop.f32.mrf.mxu0
        %6108 = vmatprep.mubr.bf16.mxu0 0
        %6109 = vmatmul.mubr.bf16.gmra.mxu0 %v6031
        %v6110 = vpop.f32.mrf.mxu0
        %v6111 = vadd.f32 0.0, %v6110
        %v6112 = vpop.f32.mrf.mxu0
        %v6113 = vpop.f32.mrf.mxu0
        %v6114 = vadd.f32 0.0, %v6113
        %v6115 = vpop.f32.mrf.mxu0
        %6116 = vmatprep.mubr.bf16.mxu0 0
        %6117 = vmatmul.mubr.bf16.gmra.mxu0 %v6034
        %v6118 = vpop.f32.mrf.mxu0
        %v6119 = vadd.f32 0.0, %v6118
        %v6120 = vpop.f32.mrf.mxu0
        %v6121 = vpop.f32.mrf.mxu0
        %v6122 = vadd.f32 0.0, %v6121
        %v6123 = vpop.f32.mrf.mxu0
        %6124 = vmatprep.mubr.bf16.mxu0 0
        %6125 = vmatmul.mubr.bf16.gmra.mxu0 %v6037
        %v6126 = vpop.f32.mrf.mxu0
        %v6127 = vadd.f32 0.0, %v6126
        %v6128 = vpop.f32.mrf.mxu0
        %v6129 = vpop.f32.mrf.mxu0
        %v6130 = vadd.f32 0.0, %v6129
        %v6131 = vpop.f32.mrf.mxu0
        %6132 = vmatprep.mubr.bf16.mxu0 0
        %6133 = vmatmul.mubr.bf16.gmra.mxu0 %v6040
        %v6134 = vpop.f32.mrf.mxu0
        %v6135 = vadd.f32 0.0, %v6134
        %v6136 = vpop.f32.mrf.mxu0
        %v6137 = vpop.f32.mrf.mxu0
        %v6138 = vadd.f32 0.0, %v6137
        %v6139 = vpop.f32.mrf.mxu0
        %6140 = vmatprep.mubr.bf16.mxu0 0
        %6141 = vmatmul.mubr.bf16.gmra.mxu0 %v6043
        %v6142 = vpop.f32.mrf.mxu0
        %v6143 = vadd.f32 0.0, %v6142
        %v6144 = vpop.f32.mrf.mxu0
        %v6145 = vpop.f32.mrf.mxu0
        %v6146 = vadd.f32 0.0, %v6145
        %v6147 = vpop.f32.mrf.mxu0
        %6148 = vmatprep.mubr.bf16.mxu0 0
        %6149 = vmatmul.mubr.bf16.gmra.mxu0 %v6046
        %v6150 = vpop.f32.mrf.mxu0
        %v6151 = vadd.f32 0.0, %v6150
        %v6152 = vpop.f32.mrf.mxu0
        %v6153 = vpop.f32.mrf.mxu0
        %v6154 = vadd.f32 0.0, %v6153
        %v6155 = vpop.f32.mrf.mxu0
        %6156 = vmatprep.mubr.bf16.mxu0 0
        %6157 = vmatmul.mubr.bf16.gmra.mxu0 %v5642
        %v6158 = vpop.f32.mrf.mxu0
        %v6159 = vadd.f32 0.0, %v6158
        %v6160 = vpop.f32.mrf.mxu0
        %v6161 = vpop.f32.mrf.mxu0
        %v6162 = vadd.f32 0.0, %v6161
        %v6163 = vpop.f32.mrf.mxu0
        %6164 = vmatprep.mubr.bf16.mxu0 0
        %6165 = vmatmul.mubr.bf16.gmra.mxu0 %v6049
        %v6166 = vpop.f32.mrf.mxu0
        %v6167 = vadd.f32 0.0, %v6166
        %v6168 = vpop.f32.mrf.mxu0
        %v6169 = vpop.f32.mrf.mxu0
        %v6170 = vadd.f32 0.0, %v6169
        %v6171 = vpop.f32.mrf.mxu0
        %6172 = vmatprep.mubr.bf16.mxu0 0
        %6173 = vmatmul.mubr.bf16.gmra.mxu0 %v6052
        %v6174 = vpop.f32.mrf.mxu0
        %v6175 = vadd.f32 0.0, %v6174
        %v6176 = vpop.f32.mrf.mxu0
        %v6177 = vpop.f32.mrf.mxu0
        %v6178 = vadd.f32 0.0, %v6177
        %v6179 = vpop.f32.mrf.mxu0
        %6180 = vmatprep.mubr.bf16.mxu0 0
        %6181 = vmatmul.mubr.bf16.gmra.mxu0 %v6055
        %v6182 = vpop.f32.mrf.mxu0
        %v6183 = vadd.f32 0.0, %v6182
        %v6184 = vpop.f32.mrf.mxu0
        %v6185 = vpop.f32.mrf.mxu0
        %v6186 = vpop.f32.mrf.mxu0
        %6187 = vdwg.mxu0
        %v6188 = vadd.f32 %v5781, %v6095
        %v6189 = vadd.f32 %v5782, %v6098
        %v6190 = vadd.f32 %v5783, %v6103
        %v6191 = vadd.f32 %v5784, %v6106
        %v6192 = vadd.f32 %v5785, %v6111
        %v6193 = vadd.f32 %v5786, %v6114
        %v6194 = vadd.f32 %v5787, %v6119
        %v6195 = vadd.f32 %v5788, %v6122
        %v6196 = vadd.f32 %v5789, %v6127
        %v6197 = vadd.f32 %v5790, %v6130
        %v6198 = vadd.f32 %v5791, %v6135
        %v6199 = vadd.f32 %v5792, %v6138
        %v6200 = vadd.f32 %v5793, %v6143
        %v6201 = vadd.f32 %v5794, %v6146
        %v6202 = vadd.f32 %v5795, %v6151
        %v6203 = vadd.f32 %v5796, %v6154
        %v6204 = vadd.f32 %v5797, %v6159
        %v6205 = vadd.f32 %v5798, %v6162
        %v6206 = vadd.f32 %v5799, %v6167
        %v6207 = vadd.f32 %v5800, %v6170
        %v6208 = vadd.f32 %v5801, %v6175
        %v6209 = vadd.f32 %v5802, %v6178
        %v6210 = vadd.f32 %v5803, %v6183
        %v6211 = vcombine.high %v5861, %v5861
        %v6213 = vunpack.c.l.s4 1966171168
        %v6214 = vunpack.c.0.s8 %v6213
        %v6215 = vlaneseq
        %v6216 = vshrl.u32 %v6215, 7
        %v6217 = vsub.s32 %v6214, %v6216
        %v6218 = vrot.slane %v6211, %v6217
        %v6220 = vshrl.u32 %v5821, 16
        %v6222 = vrot.slane %v6220, 7
        %v6223 = vrot.slane %v6222, 1
        %v6225 = vshll.u32 %v5828, 16
        %v6227 = vsel %vm1093, %v6223, %v6225
        %v6228 = vshrl.u32 %v5828, 16
        %v6230 = vrot.slane %v6228, 7
        %v6231 = vrot.slane %v6230, 1
        %v6233 = vshll.u32 %v5829, 16
        %v6235 = vsel %vm1093, %v6231, %v6233
        %v6236 = vshrl.u32 %v5829, 16
        %v6238 = vrot.slane %v6236, 7
        %v6239 = vrot.slane %v6238, 1
        %v6241 = vshll.u32 %v5830, 16
        %v6243 = vsel %vm1093, %v6239, %v6241
        %v6244 = vshrl.u32 %v5830, 16
        %v6246 = vrot.slane %v6244, 7
        %v6247 = vrot.slane %v6246, 1
        %v6249 = vshll.u32 %v5845, 16
        %v6251 = vsel %vm1093, %v6247, %v6249
        %v6252 = vshrl.u32 %v5845, 16
        %v6254 = vrot.slane %v6252, 7
        %v6255 = vrot.slane %v6254, 1
        %v6257 = vshll.u32 %v5852, 16
        %v6259 = vsel %vm1093, %v6255, %v6257
        %v6260 = vshrl.u32 %v5852, 16
        %v6262 = vrot.slane %v6260, 7
        %v6263 = vrot.slane %v6262, 1
        %v6265 = vshll.u32 %v5853, 16
        %v6267 = vsel %vm1093, %v6263, %v6265
        %v6268 = vshrl.u32 %v5853, 16
        %v6270 = vrot.slane %v6268, 7
        %v6271 = vrot.slane %v6270, 1
        %v6273 = vshll.u32 %v5854, 16
        %v6275 = vsel %vm1093, %v6271, %v6273
        %v6276 = vshrl.u32 %v5854, 16
        %v6278 = vrot.slane %v6276, 7
        %v6279 = vrot.slane %v6278, 1
        %v6281 = vshll.u32 %v5868, 16
        %v6283 = vsel %vm1093, %v6279, %v6281
        %v6284 = vshrl.u32 %v5868, 16
        %v6286 = vrot.slane %v6284, 7
        %v6287 = vrot.slane %v6286, 1
        %v6289 = vshll.u32 %v6218, 16
        %v6291 = vsel %vm1093, %v6287, %v6289
        %s6292 = scalar_lea.vmem %s1, 14
        %v6293 = vld [vmem:[%s6292] sm:$0x3]
        %v6294 = vcombine.low %v1941, %v1948
        %v6295 = vcombine.low %v1955, %v1983
        %v6297 = vunpack.c.l.s4 1966171168
        %v6298 = vunpack.c.0.s8 %v6297
        %v6299 = vlaneseq
        %v6300 = vshrl.u32 %v6299, 7
        %v6301 = vsub.s32 %v6298, %v6300
        %v6302 = vrot.slane %v6294, %v6301
        %v6304 = vunpack.c.l.s4 1966171168
        %v6305 = vunpack.c.0.s8 %v6304
        %v6306 = vlaneseq
        %v6307 = vshrl.u32 %v6306, 7
        %v6308 = vsub.s32 %v6305, %v6307
        %v6309 = vrot.slane %v6295, %v6308
        %v6310 = vcombine.low %v6302, %v6309
        %v6311 = vcombine.low %v1990, %v1997
        %v6312 = vcombine.low %v2004, %v2032
        %v6314 = vunpack.c.l.s4 1966171168
        %v6315 = vunpack.c.0.s8 %v6314
        %v6316 = vlaneseq
        %v6317 = vshrl.u32 %v6316, 7
        %v6318 = vsub.s32 %v6315, %v6317
        %v6319 = vrot.slane %v6311, %v6318
        %v6321 = vunpack.c.l.s4 1966171168
        %v6322 = vunpack.c.0.s8 %v6321
        %v6323 = vlaneseq
        %v6324 = vshrl.u32 %v6323, 7
        %v6325 = vsub.s32 %v6322, %v6324
        %v6326 = vrot.slane %v6312, %v6325
        %v6327 = vcombine.low %v6319, %v6326
        %v6328 = vcombine.low %v2039, %v2046
        %v6329 = vcombine.low %v2053, %v2081
        %v6331 = vunpack.c.l.s4 1966171168
        %v6332 = vunpack.c.0.s8 %v6331
        %v6333 = vlaneseq
        %v6334 = vshrl.u32 %v6333, 7
        %v6335 = vsub.s32 %v6332, %v6334
        %v6336 = vrot.slane %v6328, %v6335
        %v6338 = vunpack.c.l.s4 1966171168
        %v6339 = vunpack.c.0.s8 %v6338
        %v6340 = vlaneseq
        %v6341 = vshrl.u32 %v6340, 7
        %v6342 = vsub.s32 %v6339, %v6341
        %v6343 = vrot.slane %v6329, %v6342
        %v6344 = vcombine.low %v6336, %v6343
        %v6345 = vcombine.low %v2088, %v2095
        %v6346 = vcombine.low %v2102, %v2130
        %v6348 = vunpack.c.l.s4 1966171168
        %v6349 = vunpack.c.0.s8 %v6348
        %v6350 = vlaneseq
        %v6351 = vshrl.u32 %v6350, 7
        %v6352 = vsub.s32 %v6349, %v6351
        %v6353 = vrot.slane %v6345, %v6352
        %v6355 = vunpack.c.l.s4 1966171168
        %v6356 = vunpack.c.0.s8 %v6355
        %v6357 = vlaneseq
        %v6358 = vshrl.u32 %v6357, 7
        %v6359 = vsub.s32 %v6356, %v6358
        %v6360 = vrot.slane %v6346, %v6359
        %v6361 = vcombine.low %v6353, %v6360
        %v6362 = vcombine.low %v2137, %v2144
        %v6363 = vcombine.low %v2151, %v2179
        %v6365 = vunpack.c.l.s4 1966171168
        %v6366 = vunpack.c.0.s8 %v6365
        %v6367 = vlaneseq
        %v6368 = vshrl.u32 %v6367, 7
        %v6369 = vsub.s32 %v6366, %v6368
        %v6370 = vrot.slane %v6362, %v6369
        %v6372 = vunpack.c.l.s4 1966171168
        %v6373 = vunpack.c.0.s8 %v6372
        %v6374 = vlaneseq
        %v6375 = vshrl.u32 %v6374, 7
        %v6376 = vsub.s32 %v6373, %v6375
        %v6377 = vrot.slane %v6363, %v6376
        %v6378 = vcombine.low %v6370, %v6377
        %v6379 = vcombine.low %v2186, %v2193
        %v6380 = vcombine.low %v2200, %v2228
        %v6382 = vunpack.c.l.s4 1966171168
        %v6383 = vunpack.c.0.s8 %v6382
        %v6384 = vlaneseq
        %v6385 = vshrl.u32 %v6384, 7
        %v6386 = vsub.s32 %v6383, %v6385
        %v6387 = vrot.slane %v6379, %v6386
        %v6389 = vunpack.c.l.s4 1966171168
        %v6390 = vunpack.c.0.s8 %v6389
        %v6391 = vlaneseq
        %v6392 = vshrl.u32 %v6391, 7
        %v6393 = vsub.s32 %v6390, %v6392
        %v6394 = vrot.slane %v6380, %v6393
        %v6395 = vcombine.low %v6387, %v6394
        %v6396 = vcombine.low %v2235, %v2242
        %v6397 = vcombine.low %v2249, %v2277
        %v6399 = vunpack.c.l.s4 1966171168
        %v6400 = vunpack.c.0.s8 %v6399
        %v6401 = vlaneseq
        %v6402 = vshrl.u32 %v6401, 7
        %v6403 = vsub.s32 %v6400, %v6402
        %v6404 = vrot.slane %v6396, %v6403
        %v6406 = vunpack.c.l.s4 1966171168
        %v6407 = vunpack.c.0.s8 %v6406
        %v6408 = vlaneseq
        %v6409 = vshrl.u32 %v6408, 7
        %v6410 = vsub.s32 %v6407, %v6409
        %v6411 = vrot.slane %v6397, %v6410
        %v6412 = vcombine.low %v6404, %v6411
        %v6413 = vcombine.low %v2284, %v2291
        %v6414 = vcombine.low %v2298, %v2326
        %v6416 = vunpack.c.l.s4 1966171168
        %v6417 = vunpack.c.0.s8 %v6416
        %v6418 = vlaneseq
        %v6419 = vshrl.u32 %v6418, 7
        %v6420 = vsub.s32 %v6417, %v6419
        %v6421 = vrot.slane %v6413, %v6420
        %v6423 = vunpack.c.l.s4 1966171168
        %v6424 = vunpack.c.0.s8 %v6423
        %v6425 = vlaneseq
        %v6426 = vshrl.u32 %v6425, 7
        %v6427 = vsub.s32 %v6424, %v6426
        %v6428 = vrot.slane %v6414, %v6427
        %v6429 = vcombine.low %v6421, %v6428
        %v6430 = vcombine.low %v2333, %v2340
        %v6431 = vcombine.low %v2347, %v2372
        %v6433 = vunpack.c.l.s4 1966171168
        %v6434 = vunpack.c.0.s8 %v6433
        %v6435 = vlaneseq
        %v6436 = vshrl.u32 %v6435, 7
        %v6437 = vsub.s32 %v6434, %v6436
        %v6438 = vrot.slane %v6430, %v6437
        %v6440 = vunpack.c.l.s4 1966171168
        %v6441 = vunpack.c.0.s8 %v6440
        %v6442 = vlaneseq
        %v6443 = vshrl.u32 %v6442, 7
        %v6444 = vsub.s32 %v6441, %v6443
        %v6445 = vrot.slane %v6431, %v6444
        %v6446 = vcombine.low %v6438, %v6445
        %v6447 = vcombine.low %v4503, %v4511
        %v6448 = vcombine.low %v4519, %v4527
        %v6449 = vcombine.low %v4535, %v4543
        %v6450 = vcombine.low %v4551, %v4559
        %v6452 = vunpack.c.l.s4 1966171168
        %v6453 = vunpack.c.0.s8 %v6452
        %v6454 = vlaneseq
        %v6455 = vshrl.u32 %v6454, 7
        %v6456 = vsub.s32 %v6453, %v6455
        %v6457 = vrot.slane %v6447, %v6456
        %v6459 = vunpack.c.l.s4 1966171168
        %v6460 = vunpack.c.0.s8 %v6459
        %v6461 = vlaneseq
        %v6462 = vshrl.u32 %v6461, 7
        %v6463 = vsub.s32 %v6460, %v6462
        %v6464 = vrot.slane %v6448, %v6463
        %v6466 = vunpack.c.l.s4 1966171168
        %v6467 = vunpack.c.0.s8 %v6466
        %v6468 = vlaneseq
        %v6469 = vshrl.u32 %v6468, 7
        %v6470 = vsub.s32 %v6467, %v6469
        %v6471 = vrot.slane %v6449, %v6470
        %v6473 = vunpack.c.l.s4 1966171168
        %v6474 = vunpack.c.0.s8 %v6473
        %v6475 = vlaneseq
        %v6476 = vshrl.u32 %v6475, 7
        %v6477 = vsub.s32 %v6474, %v6476
        %v6478 = vrot.slane %v6450, %v6477
        %v6479 = vcombine.low %v6457, %v6464
        %v6480 = vcombine.low %v6471, %v6478
        %v6482 = vunpack.c.l.s4 1966171168
        %v6483 = vunpack.c.0.s8 %v6482
        %v6484 = vlaneseq
        %v6485 = vshrl.u32 %v6484, 7
        %v6486 = vsub.s32 %v6483, %v6485
        %v6487 = vrot.slane %v6479, %v6486
        %v6489 = vunpack.c.l.s4 1966171168
        %v6490 = vunpack.c.0.s8 %v6489
        %v6491 = vlaneseq
        %v6492 = vshrl.u32 %v6491, 7
        %v6493 = vsub.s32 %v6490, %v6492
        %v6494 = vrot.slane %v6480, %v6493
        %v6495 = vcombine.low %v6487, %v6494
        %v6496 = vcombine.low %v4567, %v6227
        %v6497 = vcombine.low %v6235, %v6243
        %v6498 = vcombine.low %v6251, %v6259
        %v6499 = vcombine.low %v6267, %v6275
        %v6501 = vunpack.c.l.s4 1966171168
        %v6502 = vunpack.c.0.s8 %v6501
        %v6503 = vlaneseq
        %v6504 = vshrl.u32 %v6503, 7
        %v6505 = vsub.s32 %v6502, %v6504
        %v6506 = vrot.slane %v6496, %v6505
        %v6508 = vunpack.c.l.s4 1966171168
        %v6509 = vunpack.c.0.s8 %v6508
        %v6510 = vlaneseq
        %v6511 = vshrl.u32 %v6510, 7
        %v6512 = vsub.s32 %v6509, %v6511
        %v6513 = vrot.slane %v6497, %v6512
        %v6515 = vunpack.c.l.s4 1966171168
        %v6516 = vunpack.c.0.s8 %v6515
        %v6517 = vlaneseq
        %v6518 = vshrl.u32 %v6517, 7
        %v6519 = vsub.s32 %v6516, %v6518
        %v6520 = vrot.slane %v6498, %v6519
        %v6522 = vunpack.c.l.s4 1966171168
        %v6523 = vunpack.c.0.s8 %v6522
        %v6524 = vlaneseq
        %v6525 = vshrl.u32 %v6524, 7
        %v6526 = vsub.s32 %v6523, %v6525
        %v6527 = vrot.slane %v6499, %v6526
        %v6528 = vcombine.low %v6506, %v6513
        %v6529 = vcombine.low %v6520, %v6527
        %v6531 = vunpack.c.l.s4 1966171168
        %v6532 = vunpack.c.0.s8 %v6531
        %v6533 = vlaneseq
        %v6534 = vshrl.u32 %v6533, 7
        %v6535 = vsub.s32 %v6532, %v6534
        %v6536 = vrot.slane %v6528, %v6535
        %v6538 = vunpack.c.l.s4 1966171168
        %v6539 = vunpack.c.0.s8 %v6538
        %v6540 = vlaneseq
        %v6541 = vshrl.u32 %v6540, 7
        %v6542 = vsub.s32 %v6539, %v6541
        %v6543 = vrot.slane %v6529, %v6542
        %v6544 = vcombine.low %v6536, %v6543
        %v6545 = vcombine.low %v6283, %v6291
        %v6547 = vunpack.c.l.s4 1966171168
        %v6548 = vunpack.c.0.s8 %v6547
        %v6549 = vlaneseq
        %v6550 = vshrl.u32 %v6549, 7
        %v6551 = vsub.s32 %v6548, %v6550
        %v6552 = vrot.slane %v6545, %v6551
        %v6554 = vunpack.c.l.s4 1966171168
        %v6555 = vunpack.c.0.s8 %v6554
        %v6556 = vlaneseq
        %v6557 = vshrl.u32 %v6556, 7
        %v6558 = vsub.s32 %v6555, %v6557
        %v6559 = vrot.slane %v6552, %v6558
        %v6561 = vsel %vm2380, %v6310, 0
        %v6564 = vsel %vm2380, %v6327, 0
        %v6567 = vsel %vm2380, %v6344, 0
        %v6570 = vsel %vm2380, %v6361, 0
        %v6573 = vsel %vm2380, %v6378, 0
        %v6576 = vsel %vm2380, %v6395, 0
        %v6579 = vsel %vm2380, %v6412, 0
        %v6582 = vsel %vm2380, %v6429, 0
        %v6585 = vsel %vm2380, %v6446, 0
        %v6588 = vsel %vm2380, %v6495, 0
        %v6591 = vsel %vm2380, %v6544, 0
        %v6594 = vsel %vm2380, %v6559, 0
        %v6597 = vsel %vm2417, %v6293, 0
        %6599 = vmatprep.subr.bf16.mxu0 0
        %6600 = vmatpush1.bf16.msra.mxu0 0
        %6601 = vmatprep.subr.bf16.mxu0 0
        %6602 = vmatpush1.bf16.msra.mxu0 0
        %6603 = vmatprep.subr.bf16.mxu0 0
        %6604 = vmatpush1.bf16.msra.mxu0 0
        %6605 = vmatprep.subr.bf16.mxu0 0
        %6606 = vmatpush1.bf16.msra.mxu0 0
        %6607 = vmatprep.subr.bf16.mxu0 0
        %6608 = vmatpush1.bf16.msra.mxu0 0
        %6609 = vmatprep.subr.bf16.mxu0 0
        %6610 = vmatpush1.bf16.msra.mxu0 0
        %6611 = vmatprep.subr.bf16.mxu0 0
        %6612 = vmatpush1.bf16.msra.mxu0 0
        %6613 = vmatprep.subr.bf16.mxu0 0
        %6614 = vmatpush1.bf16.msra.mxu0 %v6597
        %6615 = vmatprep.subr.bf16.mxu0 0
        %6616 = vmatpush2.bf16.msra.mxu0 0
        %6617 = vmatprep.subr.bf16.mxu0 0
        %6618 = vmatpush2.bf16.msra.mxu0 0
        %6619 = vmatprep.subr.bf16.mxu0 0
        %6620 = vmatpush2.bf16.msra.mxu0 0
        %6621 = vmatprep.subr.bf16.mxu0 0
        %6622 = vmatpush2.bf16.msra.mxu0 0
        %6623 = vmatprep.subr.bf16.mxu0 0
        %6624 = vmatpush2.bf16.msra.mxu0 0
        %6625 = vmatprep.subr.bf16.mxu0 0
        %6626 = vmatpush2.bf16.msra.mxu0 0
        %6627 = vmatprep.subr.bf16.mxu0 0
        %6628 = vmatpush2.bf16.msra.mxu0 0
        %6629 = vmatprep.subr.bf16.mxu0 0
        %6630 = vmatpush2.bf16.msra.mxu0 0
        %6631 = vmatprep.mubr.bf16.mxu0 0
        %6632 = vmatmul.mubr.bf16.gmra.mxu0 %v6561
        %v6633 = vpop.f32.mrf.mxu0
        %v6634 = vadd.f32 0.0, %v6633
        %v6635 = vpop.f32.mrf.mxu0
        %v6636 = vpop.f32.mrf.mxu0
        %v6637 = vadd.f32 0.0, %v6636
        %v6638 = vpop.f32.mrf.mxu0
        %6639 = vmatprep.mubr.bf16.mxu0 0
        %6640 = vmatmul.mubr.bf16.gmra.mxu0 %v6564
        %v6641 = vpop.f32.mrf.mxu0
        %v6642 = vadd.f32 0.0, %v6641
        %v6643 = vpop.f32.mrf.mxu0
        %v6644 = vpop.f32.mrf.mxu0
        %v6645 = vadd.f32 0.0, %v6644
        %v6646 = vpop.f32.mrf.mxu0
        %6647 = vmatprep.mubr.bf16.mxu0 0
        %6648 = vmatmul.mubr.bf16.gmra.mxu0 %v6567
        %v6649 = vpop.f32.mrf.mxu0
        %v6650 = vadd.f32 0.0, %v6649
        %v6651 = vpop.f32.mrf.mxu0
        %v6652 = vpop.f32.mrf.mxu0
        %v6653 = vadd.f32 0.0, %v6652
        %v6654 = vpop.f32.mrf.mxu0
        %6655 = vmatprep.mubr.bf16.mxu0 0
        %6656 = vmatmul.mubr.bf16.gmra.mxu0 %v6570
        %v6657 = vpop.f32.mrf.mxu0
        %v6658 = vadd.f32 0.0, %v6657
        %v6659 = vpop.f32.mrf.mxu0
        %v6660 = vpop.f32.mrf.mxu0
        %v6661 = vadd.f32 0.0, %v6660
        %v6662 = vpop.f32.mrf.mxu0
        %6663 = vmatprep.mubr.bf16.mxu0 0
        %6664 = vmatmul.mubr.bf16.gmra.mxu0 %v6573
        %v6665 = vpop.f32.mrf.mxu0
        %v6666 = vadd.f32 0.0, %v6665
        %v6667 = vpop.f32.mrf.mxu0
        %v6668 = vpop.f32.mrf.mxu0
        %v6669 = vadd.f32 0.0, %v6668
        %v6670 = vpop.f32.mrf.mxu0
        %6671 = vmatprep.mubr.bf16.mxu0 0
        %6672 = vmatmul.mubr.bf16.gmra.mxu0 %v6576
        %v6673 = vpop.f32.mrf.mxu0
        %v6674 = vadd.f32 0.0, %v6673
        %v6675 = vpop.f32.mrf.mxu0
        %v6676 = vpop.f32.mrf.mxu0
        %v6677 = vadd.f32 0.0, %v6676
        %v6678 = vpop.f32.mrf.mxu0
        %6679 = vmatprep.mubr.bf16.mxu0 0
        %6680 = vmatmul.mubr.bf16.gmra.mxu0 %v6579
        %v6681 = vpop.f32.mrf.mxu0
        %v6682 = vadd.f32 0.0, %v6681
        %v6683 = vpop.f32.mrf.mxu0
        %v6684 = vpop.f32.mrf.mxu0
        %v6685 = vadd.f32 0.0, %v6684
        %v6686 = vpop.f32.mrf.mxu0
        %6687 = vmatprep.mubr.bf16.mxu0 0
        %6688 = vmatmul.mubr.bf16.gmra.mxu0 %v6582
        %v6689 = vpop.f32.mrf.mxu0
        %v6690 = vadd.f32 0.0, %v6689
        %v6691 = vpop.f32.mrf.mxu0
        %v6692 = vpop.f32.mrf.mxu0
        %v6693 = vadd.f32 0.0, %v6692
        %v6694 = vpop.f32.mrf.mxu0
        %6695 = vmatprep.mubr.bf16.mxu0 0
        %6696 = vmatmul.mubr.bf16.gmra.mxu0 %v6585
        %v6697 = vpop.f32.mrf.mxu0
        %v6698 = vadd.f32 0.0, %v6697
        %v6699 = vpop.f32.mrf.mxu0
        %v6700 = vpop.f32.mrf.mxu0
        %v6701 = vadd.f32 0.0, %v6700
        %v6702 = vpop.f32.mrf.mxu0
        %6703 = vmatprep.mubr.bf16.mxu0 0
        %6704 = vmatmul.mubr.bf16.gmra.mxu0 %v6588
        %v6705 = vpop.f32.mrf.mxu0
        %v6706 = vadd.f32 0.0, %v6705
        %v6707 = vpop.f32.mrf.mxu0
        %v6708 = vpop.f32.mrf.mxu0
        %v6709 = vadd.f32 0.0, %v6708
        %v6710 = vpop.f32.mrf.mxu0
        %6711 = vmatprep.mubr.bf16.mxu0 0
        %6712 = vmatmul.mubr.bf16.gmra.mxu0 %v6591
        %v6713 = vpop.f32.mrf.mxu0
        %v6714 = vadd.f32 0.0, %v6713
        %v6715 = vpop.f32.mrf.mxu0
        %v6716 = vpop.f32.mrf.mxu0
        %v6717 = vadd.f32 0.0, %v6716
        %v6718 = vpop.f32.mrf.mxu0
        %6719 = vmatprep.mubr.bf16.mxu0 0
        %6720 = vmatmul.mubr.bf16.gmra.mxu0 %v6594
        %v6721 = vpop.f32.mrf.mxu0
        %v6722 = vadd.f32 0.0, %v6721
        %v6723 = vpop.f32.mrf.mxu0
        %v6724 = vpop.f32.mrf.mxu0
        %v6725 = vpop.f32.mrf.mxu0
        %6726 = vdwg.mxu0
        %v6727 = vadd.f32 %v6188, %v6634
        %v6728 = vadd.f32 %v6189, %v6637
        %v6729 = vadd.f32 %v6190, %v6642
        %v6730 = vadd.f32 %v6191, %v6645
        %v6731 = vadd.f32 %v6192, %v6650
        %v6732 = vadd.f32 %v6193, %v6653
        %v6733 = vadd.f32 %v6194, %v6658
        %v6734 = vadd.f32 %v6195, %v6661
        %v6735 = vadd.f32 %v6196, %v6666
        %v6736 = vadd.f32 %v6197, %v6669
        %v6737 = vadd.f32 %v6198, %v6674
        %v6738 = vadd.f32 %v6199, %v6677
        %v6739 = vadd.f32 %v6200, %v6682
        %v6740 = vadd.f32 %v6201, %v6685
        %v6741 = vadd.f32 %v6202, %v6690
        %v6742 = vadd.f32 %v6203, %v6693
        %v6743 = vadd.f32 %v6204, %v6698
        %v6744 = vadd.f32 %v6205, %v6701
        %v6745 = vadd.f32 %v6206, %v6706
        %v6746 = vadd.f32 %v6207, %v6709
        %v6747 = vadd.f32 %v6208, %v6714
        %v6748 = vadd.f32 %v6209, %v6717
        %v6749 = vadd.f32 %v6210, %v6722
        %s6750 = scalar_lea.vmem %s1, 16
        %v6751 = vld [vmem:[%s6750] sm:$0x3]
        %v6752 = vcombine.low %v3387, %v3394
        %v6753 = vcombine.low %v3401, %v3429
        %v6755 = vunpack.c.l.s4 1966171168
        %v6756 = vunpack.c.0.s8 %v6755
        %v6757 = vlaneseq
        %v6758 = vshrl.u32 %v6757, 7
        %v6759 = vsub.s32 %v6756, %v6758
        %v6760 = vrot.slane %v6752, %v6759
        %v6762 = vunpack.c.l.s4 1966171168
        %v6763 = vunpack.c.0.s8 %v6762
        %v6764 = vlaneseq
        %v6765 = vshrl.u32 %v6764, 7
        %v6766 = vsub.s32 %v6763, %v6765
        %v6767 = vrot.slane %v6753, %v6766
        %v6768 = vcombine.low %v6760, %v6767
        %v6769 = vcombine.low %v3436, %v3443
        %v6770 = vcombine.low %v3450, %v3478
        %v6772 = vunpack.c.l.s4 1966171168
        %v6773 = vunpack.c.0.s8 %v6772
        %v6774 = vlaneseq
        %v6775 = vshrl.u32 %v6774, 7
        %v6776 = vsub.s32 %v6773, %v6775
        %v6777 = vrot.slane %v6769, %v6776
        %v6779 = vunpack.c.l.s4 1966171168
        %v6780 = vunpack.c.0.s8 %v6779
        %v6781 = vlaneseq
        %v6782 = vshrl.u32 %v6781, 7
        %v6783 = vsub.s32 %v6780, %v6782
        %v6784 = vrot.slane %v6770, %v6783
        %v6785 = vcombine.low %v6777, %v6784
        %v6786 = vcombine.low %v3485, %v3492
        %v6787 = vcombine.low %v3499, %v3527
        %v6789 = vunpack.c.l.s4 1966171168
        %v6790 = vunpack.c.0.s8 %v6789
        %v6791 = vlaneseq
        %v6792 = vshrl.u32 %v6791, 7
        %v6793 = vsub.s32 %v6790, %v6792
        %v6794 = vrot.slane %v6786, %v6793
        %v6796 = vunpack.c.l.s4 1966171168
        %v6797 = vunpack.c.0.s8 %v6796
        %v6798 = vlaneseq
        %v6799 = vshrl.u32 %v6798, 7
        %v6800 = vsub.s32 %v6797, %v6799
        %v6801 = vrot.slane %v6787, %v6800
        %v6802 = vcombine.low %v6794, %v6801
        %v6803 = vcombine.low %v3534, %v3541
        %v6804 = vcombine.low %v3548, %v3576
        %v6806 = vunpack.c.l.s4 1966171168
        %v6807 = vunpack.c.0.s8 %v6806
        %v6808 = vlaneseq
        %v6809 = vshrl.u32 %v6808, 7
        %v6810 = vsub.s32 %v6807, %v6809
        %v6811 = vrot.slane %v6803, %v6810
        %v6813 = vunpack.c.l.s4 1966171168
        %v6814 = vunpack.c.0.s8 %v6813
        %v6815 = vlaneseq
        %v6816 = vshrl.u32 %v6815, 7
        %v6817 = vsub.s32 %v6814, %v6816
        %v6818 = vrot.slane %v6804, %v6817
        %v6819 = vcombine.low %v6811, %v6818
        %v6820 = vcombine.low %v3583, %v3590
        %v6821 = vcombine.low %v3597, %v3625
        %v6823 = vunpack.c.l.s4 1966171168
        %v6824 = vunpack.c.0.s8 %v6823
        %v6825 = vlaneseq
        %v6826 = vshrl.u32 %v6825, 7
        %v6827 = vsub.s32 %v6824, %v6826
        %v6828 = vrot.slane %v6820, %v6827
        %v6830 = vunpack.c.l.s4 1966171168
        %v6831 = vunpack.c.0.s8 %v6830
        %v6832 = vlaneseq
        %v6833 = vshrl.u32 %v6832, 7
        %v6834 = vsub.s32 %v6831, %v6833
        %v6835 = vrot.slane %v6821, %v6834
        %v6836 = vcombine.low %v6828, %v6835
        %v6837 = vcombine.low %v3632, %v3639
        %v6838 = vcombine.low %v3646, %v3674
        %v6840 = vunpack.c.l.s4 1966171168
        %v6841 = vunpack.c.0.s8 %v6840
        %v6842 = vlaneseq
        %v6843 = vshrl.u32 %v6842, 7
        %v6844 = vsub.s32 %v6841, %v6843
        %v6845 = vrot.slane %v6837, %v6844
        %v6847 = vunpack.c.l.s4 1966171168
        %v6848 = vunpack.c.0.s8 %v6847
        %v6849 = vlaneseq
        %v6850 = vshrl.u32 %v6849, 7
        %v6851 = vsub.s32 %v6848, %v6850
        %v6852 = vrot.slane %v6838, %v6851
        %v6853 = vcombine.low %v6845, %v6852
        %v6854 = vcombine.low %v3681, %v3688
        %v6855 = vcombine.low %v3695, %v3723
        %v6857 = vunpack.c.l.s4 1966171168
        %v6858 = vunpack.c.0.s8 %v6857
        %v6859 = vlaneseq
        %v6860 = vshrl.u32 %v6859, 7
        %v6861 = vsub.s32 %v6858, %v6860
        %v6862 = vrot.slane %v6854, %v6861
        %v6864 = vunpack.c.l.s4 1966171168
        %v6865 = vunpack.c.0.s8 %v6864
        %v6866 = vlaneseq
        %v6867 = vshrl.u32 %v6866, 7
        %v6868 = vsub.s32 %v6865, %v6867
        %v6869 = vrot.slane %v6855, %v6868
        %v6870 = vcombine.low %v6862, %v6869
        %v6871 = vcombine.low %v3730, %v3737
        %v6872 = vcombine.low %v3744, %v3772
        %v6874 = vunpack.c.l.s4 1966171168
        %v6875 = vunpack.c.0.s8 %v6874
        %v6876 = vlaneseq
        %v6877 = vshrl.u32 %v6876, 7
        %v6878 = vsub.s32 %v6875, %v6877
        %v6879 = vrot.slane %v6871, %v6878
        %v6881 = vunpack.c.l.s4 1966171168
        %v6882 = vunpack.c.0.s8 %v6881
        %v6883 = vlaneseq
        %v6884 = vshrl.u32 %v6883, 7
        %v6885 = vsub.s32 %v6882, %v6884
        %v6886 = vrot.slane %v6872, %v6885
        %v6887 = vcombine.low %v6879, %v6886
        %v6888 = vcombine.low %v3779, %v3786
        %v6889 = vcombine.low %v3793, %v3818
        %v6891 = vunpack.c.l.s4 1966171168
        %v6892 = vunpack.c.0.s8 %v6891
        %v6893 = vlaneseq
        %v6894 = vshrl.u32 %v6893, 7
        %v6895 = vsub.s32 %v6892, %v6894
        %v6896 = vrot.slane %v6888, %v6895
        %v6898 = vunpack.c.l.s4 1966171168
        %v6899 = vunpack.c.0.s8 %v6898
        %v6900 = vlaneseq
        %v6901 = vshrl.u32 %v6900, 7
        %v6902 = vsub.s32 %v6899, %v6901
        %v6903 = vrot.slane %v6889, %v6902
        %v6904 = vcombine.low %v6896, %v6903
        %v6905 = vcombine.low %v4253, %v4260
        %v6906 = vcombine.low %v4267, %v4292
        %v6908 = vunpack.c.l.s4 1966171168
        %v6909 = vunpack.c.0.s8 %v6908
        %v6910 = vlaneseq
        %v6911 = vshrl.u32 %v6910, 7
        %v6912 = vsub.s32 %v6909, %v6911
        %v6913 = vrot.slane %v6905, %v6912
        %v6915 = vunpack.c.l.s4 1966171168
        %v6916 = vunpack.c.0.s8 %v6915
        %v6917 = vlaneseq
        %v6918 = vshrl.u32 %v6917, 7
        %v6919 = vsub.s32 %v6916, %v6918
        %v6920 = vrot.slane %v6906, %v6919
        %v6921 = vcombine.low %v6913, %v6920
        %v6922 = vcombine.low %v4494, %v5828
        %v6923 = vcombine.low %v5829, %v5830
        %v6924 = vcombine.low %v5845, %v5852
        %v6925 = vcombine.low %v5853, %v5854
        %v6927 = vunpack.c.l.s4 1966171168
        %v6928 = vunpack.c.0.s8 %v6927
        %v6929 = vlaneseq
        %v6930 = vshrl.u32 %v6929, 7
        %v6931 = vsub.s32 %v6928, %v6930
        %v6932 = vrot.slane %v6922, %v6931
        %v6934 = vunpack.c.l.s4 1966171168
        %v6935 = vunpack.c.0.s8 %v6934
        %v6936 = vlaneseq
        %v6937 = vshrl.u32 %v6936, 7
        %v6938 = vsub.s32 %v6935, %v6937
        %v6939 = vrot.slane %v6923, %v6938
        %v6941 = vunpack.c.l.s4 1966171168
        %v6942 = vunpack.c.0.s8 %v6941
        %v6943 = vlaneseq
        %v6944 = vshrl.u32 %v6943, 7
        %v6945 = vsub.s32 %v6942, %v6944
        %v6946 = vrot.slane %v6924, %v6945
        %v6948 = vunpack.c.l.s4 1966171168
        %v6949 = vunpack.c.0.s8 %v6948
        %v6950 = vlaneseq
        %v6951 = vshrl.u32 %v6950, 7
        %v6952 = vsub.s32 %v6949, %v6951
        %v6953 = vrot.slane %v6925, %v6952
        %v6954 = vcombine.low %v6932, %v6939
        %v6955 = vcombine.low %v6946, %v6953
        %v6957 = vunpack.c.l.s4 1966171168
        %v6958 = vunpack.c.0.s8 %v6957
        %v6959 = vlaneseq
        %v6960 = vshrl.u32 %v6959, 7
        %v6961 = vsub.s32 %v6958, %v6960
        %v6962 = vrot.slane %v6954, %v6961
        %v6964 = vunpack.c.l.s4 1966171168
        %v6965 = vunpack.c.0.s8 %v6964
        %v6966 = vlaneseq
        %v6967 = vshrl.u32 %v6966, 7
        %v6968 = vsub.s32 %v6965, %v6967
        %v6969 = vrot.slane %v6955, %v6968
        %v6970 = vcombine.low %v6962, %v6969
        %v6971 = vcombine.low %v5868, %v6218
        %v6973 = vunpack.c.l.s4 1966171168
        %v6974 = vunpack.c.0.s8 %v6973
        %v6975 = vlaneseq
        %v6976 = vshrl.u32 %v6975, 7
        %v6977 = vsub.s32 %v6974, %v6976
        %v6978 = vrot.slane %v6971, %v6977
        %v6980 = vunpack.c.l.s4 1966171168
        %v6981 = vunpack.c.0.s8 %v6980
        %v6982 = vlaneseq
        %v6983 = vshrl.u32 %v6982, 7
        %v6984 = vsub.s32 %v6981, %v6983
        %v6985 = vrot.slane %v6978, %v6984
        %v6987 = vsel %vm2380, %v6768, 0
        %v6990 = vsel %vm2380, %v6785, 0
        %v6993 = vsel %vm2380, %v6802, 0
        %v6996 = vsel %vm2380, %v6819, 0
        %v6999 = vsel %vm2380, %v6836, 0
        %v7002 = vsel %vm2380, %v6853, 0
        %v7005 = vsel %vm2380, %v6870, 0
        %v7008 = vsel %vm2380, %v6887, 0
        %v7011 = vsel %vm2380, %v6904, 0
        %v7014 = vsel %vm2380, %v6921, 0
        %v7017 = vsel %vm2380, %v6970, 0
        %v7020 = vsel %vm2380, %v6985, 0
        %v7023 = vsel %vm2417, %v6751, 0
        %7025 = vmatprep.subr.bf16.mxu0 0
        %7026 = vmatpush1.bf16.msra.mxu0 0
        %7027 = vmatprep.subr.bf16.mxu0 0
        %7028 = vmatpush1.bf16.msra.mxu0 0
        %7029 = vmatprep.subr.bf16.mxu0 0
        %7030 = vmatpush1.bf16.msra.mxu0 0
        %7031 = vmatprep.subr.bf16.mxu0 0
        %7032 = vmatpush1.bf16.msra.mxu0 0
        %7033 = vmatprep.subr.bf16.mxu0 0
        %7034 = vmatpush1.bf16.msra.mxu0 0
        %7035 = vmatprep.subr.bf16.mxu0 0
        %7036 = vmatpush1.bf16.msra.mxu0 0
        %7037 = vmatprep.subr.bf16.mxu0 0
        %7038 = vmatpush1.bf16.msra.mxu0 0
        %7039 = vmatprep.subr.bf16.mxu0 0
        %7040 = vmatpush1.bf16.msra.mxu0 %v7023
        %7041 = vmatprep.subr.bf16.mxu0 0
        %7042 = vmatpush2.bf16.msra.mxu0 0
        %7043 = vmatprep.subr.bf16.mxu0 0
        %7044 = vmatpush2.bf16.msra.mxu0 0
        %7045 = vmatprep.subr.bf16.mxu0 0
        %7046 = vmatpush2.bf16.msra.mxu0 0
        %7047 = vmatprep.subr.bf16.mxu0 0
        %7048 = vmatpush2.bf16.msra.mxu0 0
        %7049 = vmatprep.subr.bf16.mxu0 0
        %7050 = vmatpush2.bf16.msra.mxu0 0
        %7051 = vmatprep.subr.bf16.mxu0 0
        %7052 = vmatpush2.bf16.msra.mxu0 0
        %7053 = vmatprep.subr.bf16.mxu0 0
        %7054 = vmatpush2.bf16.msra.mxu0 0
        %7055 = vmatprep.subr.bf16.mxu0 0
        %7056 = vmatpush2.bf16.msra.mxu0 0
        %7057 = vmatprep.mubr.bf16.mxu0 0
        %7058 = vmatmul.mubr.bf16.gmra.mxu0 %v6987
        %v7059 = vpop.f32.mrf.mxu0
        %v7060 = vadd.f32 0.0, %v7059
        %v7061 = vpop.f32.mrf.mxu0
        %v7062 = vpop.f32.mrf.mxu0
        %v7063 = vadd.f32 0.0, %v7062
        %v7064 = vpop.f32.mrf.mxu0
        %7065 = vmatprep.mubr.bf16.mxu0 0
        %7066 = vmatmul.mubr.bf16.gmra.mxu0 %v6990
        %v7067 = vpop.f32.mrf.mxu0
        %v7068 = vadd.f32 0.0, %v7067
        %v7069 = vpop.f32.mrf.mxu0
        %v7070 = vpop.f32.mrf.mxu0
        %v7071 = vadd.f32 0.0, %v7070
        %v7072 = vpop.f32.mrf.mxu0
        %7073 = vmatprep.mubr.bf16.mxu0 0
        %7074 = vmatmul.mubr.bf16.gmra.mxu0 %v6993
        %v7075 = vpop.f32.mrf.mxu0
        %v7076 = vadd.f32 0.0, %v7075
        %v7077 = vpop.f32.mrf.mxu0
        %v7078 = vpop.f32.mrf.mxu0
        %v7079 = vadd.f32 0.0, %v7078
        %v7080 = vpop.f32.mrf.mxu0
        %7081 = vmatprep.mubr.bf16.mxu0 0
        %7082 = vmatmul.mubr.bf16.gmra.mxu0 %v6996
        %v7083 = vpop.f32.mrf.mxu0
        %v7084 = vadd.f32 0.0, %v7083
        %v7085 = vpop.f32.mrf.mxu0
        %v7086 = vpop.f32.mrf.mxu0
        %v7087 = vadd.f32 0.0, %v7086
        %v7088 = vpop.f32.mrf.mxu0
        %7089 = vmatprep.mubr.bf16.mxu0 0
        %7090 = vmatmul.mubr.bf16.gmra.mxu0 %v6999
        %v7091 = vpop.f32.mrf.mxu0
        %v7092 = vadd.f32 0.0, %v7091
        %v7093 = vpop.f32.mrf.mxu0
        %v7094 = vpop.f32.mrf.mxu0
        %v7095 = vadd.f32 0.0, %v7094
        %v7096 = vpop.f32.mrf.mxu0
        %7097 = vmatprep.mubr.bf16.mxu0 0
        %7098 = vmatmul.mubr.bf16.gmra.mxu0 %v7002
        %v7099 = vpop.f32.mrf.mxu0
        %v7100 = vadd.f32 0.0, %v7099
        %v7101 = vpop.f32.mrf.mxu0
        %v7102 = vpop.f32.mrf.mxu0
        %v7103 = vadd.f32 0.0, %v7102
        %v7104 = vpop.f32.mrf.mxu0
        %7105 = vmatprep.mubr.bf16.mxu0 0
        %7106 = vmatmul.mubr.bf16.gmra.mxu0 %v7005
        %v7107 = vpop.f32.mrf.mxu0
        %v7108 = vadd.f32 0.0, %v7107
        %v7109 = vpop.f32.mrf.mxu0
        %v7110 = vpop.f32.mrf.mxu0
        %v7111 = vadd.f32 0.0, %v7110
        %v7112 = vpop.f32.mrf.mxu0
        %7113 = vmatprep.mubr.bf16.mxu0 0
        %7114 = vmatmul.mubr.bf16.gmra.mxu0 %v7008
        %v7115 = vpop.f32.mrf.mxu0
        %v7116 = vadd.f32 0.0, %v7115
        %v7117 = vpop.f32.mrf.mxu0
        %v7118 = vpop.f32.mrf.mxu0
        %v7119 = vadd.f32 0.0, %v7118
        %v7120 = vpop.f32.mrf.mxu0
        %7121 = vmatprep.mubr.bf16.mxu0 0
        %7122 = vmatmul.mubr.bf16.gmra.mxu0 %v7011
        %v7123 = vpop.f32.mrf.mxu0
        %v7124 = vadd.f32 0.0, %v7123
        %v7125 = vpop.f32.mrf.mxu0
        %v7126 = vpop.f32.mrf.mxu0
        %v7127 = vadd.f32 0.0, %v7126
        %v7128 = vpop.f32.mrf.mxu0
        %7129 = vmatprep.mubr.bf16.mxu0 0
        %7130 = vmatmul.mubr.bf16.gmra.mxu0 %v7014
        %v7131 = vpop.f32.mrf.mxu0
        %v7132 = vadd.f32 0.0, %v7131
        %v7133 = vpop.f32.mrf.mxu0
        %v7134 = vpop.f32.mrf.mxu0
        %v7135 = vadd.f32 0.0, %v7134
        %v7136 = vpop.f32.mrf.mxu0
        %7137 = vmatprep.mubr.bf16.mxu0 0
        %7138 = vmatmul.mubr.bf16.gmra.mxu0 %v7017
        %v7139 = vpop.f32.mrf.mxu0
        %v7140 = vadd.f32 0.0, %v7139
        %v7141 = vpop.f32.mrf.mxu0
        %v7142 = vpop.f32.mrf.mxu0
        %v7143 = vadd.f32 0.0, %v7142
        %v7144 = vpop.f32.mrf.mxu0
        %7145 = vmatprep.mubr.bf16.mxu0 0
        %7146 = vmatmul.mubr.bf16.gmra.mxu0 %v7020
        %v7147 = vpop.f32.mrf.mxu0
        %v7148 = vadd.f32 0.0, %v7147
        %v7149 = vpop.f32.mrf.mxu0
        %v7150 = vpop.f32.mrf.mxu0
        %v7151 = vpop.f32.mrf.mxu0
        %7152 = vdwg.mxu0
        %v7153 = vadd.f32 %v6727, %v7060
        %v7154 = vadd.f32 %v6728, %v7063
        %v7155 = vadd.f32 %v6729, %v7068
        %v7156 = vadd.f32 %v6730, %v7071
        %v7157 = vadd.f32 %v6731, %v7076
        %v7158 = vadd.f32 %v6732, %v7079
        %v7159 = vadd.f32 %v6733, %v7084
        %v7160 = vadd.f32 %v6734, %v7087
        %v7161 = vadd.f32 %v6735, %v7092
        %v7162 = vadd.f32 %v6736, %v7095
        %v7163 = vadd.f32 %v6737, %v7100
        %v7164 = vadd.f32 %v6738, %v7103
        %v7165 = vadd.f32 %v6739, %v7108
        %v7166 = vadd.f32 %v6740, %v7111
        %v7167 = vadd.f32 %v6741, %v7116
        %v7168 = vadd.f32 %v6742, %v7119
        %v7169 = vadd.f32 %v6743, %v7124
        %v7170 = vadd.f32 %v6744, %v7127
        %v7171 = vadd.f32 %v6745, %v7132
        %v7172 = vadd.f32 %v6746, %v7135
        %v7173 = vadd.f32 %v6747, %v7140
        %v7174 = vadd.f32 %v6748, %v7143
        %v7175 = vadd.f32 %v6749, %v7148
        %v7176 = vld [vmem:[%s2] sm:$0x1]
        %v7178 = vlaneseq
        %v7179 = vshrl.u32 %v7178, 7
        %v7180 = vsub.s32 0, %v7179
        %v7181 = vrot.slane %v7176, %v7180
        %v7183 = vadd.f32 %v7153, %v7181
        %v7184 = vadd.f32 %v7154, %v7181
        %v7185 = vadd.f32 %v7155, %v7181
        %v7186 = vadd.f32 %v7156, %v7181
        %v7187 = vadd.f32 %v7157, %v7181
        %v7188 = vadd.f32 %v7158, %v7181
        %v7189 = vadd.f32 %v7159, %v7181
        %v7190 = vadd.f32 %v7160, %v7181
        %v7191 = vadd.f32 %v7161, %v7181
        %v7192 = vadd.f32 %v7162, %v7181
        %v7193 = vadd.f32 %v7163, %v7181
        %v7194 = vadd.f32 %v7164, %v7181
        %v7195 = vadd.f32 %v7165, %v7181
        %v7196 = vadd.f32 %v7166, %v7181
        %v7197 = vadd.f32 %v7167, %v7181
        %v7198 = vadd.f32 %v7168, %v7181
        %v7199 = vadd.f32 %v7169, %v7181
        %v7200 = vadd.f32 %v7170, %v7181
        %v7201 = vadd.f32 %v7171, %v7181
        %v7202 = vadd.f32 %v7172, %v7181
        %v7203 = vadd.f32 %v7173, %v7181
        %v7204 = vadd.f32 %v7174, %v7181
        %v7205 = vadd.f32 %v7175, %v7181
        %v7206 = vmax.f32 %v7183, 0.0
        %v7207 = vmax.f32 %v7184, 0.0
        %v7208 = vmax.f32 %v7185, 0.0
        %v7209 = vmax.f32 %v7186, 0.0
        %v7210 = vmax.f32 %v7187, 0.0
        %v7211 = vmax.f32 %v7188, 0.0
        %v7212 = vmax.f32 %v7189, 0.0
        %v7213 = vmax.f32 %v7190, 0.0
        %v7214 = vmax.f32 %v7191, 0.0
        %v7215 = vmax.f32 %v7192, 0.0
        %v7216 = vmax.f32 %v7193, 0.0
        %v7217 = vmax.f32 %v7194, 0.0
        %v7218 = vmax.f32 %v7195, 0.0
        %v7219 = vmax.f32 %v7196, 0.0
        %v7220 = vmax.f32 %v7197, 0.0
        %v7221 = vmax.f32 %v7198, 0.0
        %v7222 = vmax.f32 %v7199, 0.0
        %v7223 = vmax.f32 %v7200, 0.0
        %v7224 = vmax.f32 %v7201, 0.0
        %v7225 = vmax.f32 %v7202, 0.0
        %v7226 = vmax.f32 %v7203, 0.0
        %v7227 = vmax.f32 %v7204, 0.0
        %v7228 = vmax.f32 %v7205, 0.0
        %v7252 = vcombine.high %v7206, %v7206
        %v7254 = vunpack.c.l.s4 1983009808
        %v7255 = vunpack.c.0.s8 %v7254
        %v7256 = vlaneseq
        %v7257 = vshrl.u32 %v7256, 7
        %v7258 = vsub.s32 %v7255, %v7257
        %v7259 = vrot.slane %v7206, %v7258
        %v7261 = vunpack.c.l.s4 1983009808
        %v7262 = vunpack.c.0.s8 %v7261
        %v7263 = vlaneseq
        %v7264 = vshrl.u32 %v7263, 7
        %v7265 = vsub.s32 %v7262, %v7264
        %v7266 = vrot.slane %v7252, %v7265
        %v7267 = vcombine.high %v7259, %v7259
        %v7268 = vcombine.high %v7266, %v7266
        %v7269 = vcombine.high %v7207, %v7207
        %v7271 = vunpack.c.l.s4 1983009808
        %v7272 = vunpack.c.0.s8 %v7271
        %v7273 = vlaneseq
        %v7274 = vshrl.u32 %v7273, 7
        %v7275 = vsub.s32 %v7272, %v7274
        %v7276 = vrot.slane %v7207, %v7275
        %v7278 = vunpack.c.l.s4 1983009808
        %v7279 = vunpack.c.0.s8 %v7278
        %v7280 = vlaneseq
        %v7281 = vshrl.u32 %v7280, 7
        %v7282 = vsub.s32 %v7279, %v7281
        %v7283 = vrot.slane %v7269, %v7282
        %v7284 = vcombine.high %v7276, %v7276
        %v7285 = vcombine.high %v7283, %v7283
        %v7286 = vcombine.high %v7208, %v7208
        %v7288 = vunpack.c.l.s4 1983009808
        %v7289 = vunpack.c.0.s8 %v7288
        %v7290 = vlaneseq
        %v7291 = vshrl.u32 %v7290, 7
        %v7292 = vsub.s32 %v7289, %v7291
        %v7293 = vrot.slane %v7208, %v7292
        %v7295 = vunpack.c.l.s4 1983009808
        %v7296 = vunpack.c.0.s8 %v7295
        %v7297 = vlaneseq
        %v7298 = vshrl.u32 %v7297, 7
        %v7299 = vsub.s32 %v7296, %v7298
        %v7300 = vrot.slane %v7286, %v7299
        %v7301 = vcombine.high %v7293, %v7293
        %v7302 = vcombine.high %v7300, %v7300
        %v7303 = vcombine.high %v7209, %v7209
        %v7305 = vunpack.c.l.s4 1983009808
        %v7306 = vunpack.c.0.s8 %v7305
        %v7307 = vlaneseq
        %v7308 = vshrl.u32 %v7307, 7
        %v7309 = vsub.s32 %v7306, %v7308
        %v7310 = vrot.slane %v7209, %v7309
        %v7312 = vunpack.c.l.s4 1983009808
        %v7313 = vunpack.c.0.s8 %v7312
        %v7314 = vlaneseq
        %v7315 = vshrl.u32 %v7314, 7
        %v7316 = vsub.s32 %v7313, %v7315
        %v7317 = vrot.slane %v7303, %v7316
        %v7318 = vcombine.high %v7310, %v7310
        %v7319 = vcombine.high %v7317, %v7317
        %v7320 = vcombine.high %v7210, %v7210
        %v7322 = vunpack.c.l.s4 1983009808
        %v7323 = vunpack.c.0.s8 %v7322
        %v7324 = vlaneseq
        %v7325 = vshrl.u32 %v7324, 7
        %v7326 = vsub.s32 %v7323, %v7325
        %v7327 = vrot.slane %v7210, %v7326
        %v7329 = vunpack.c.l.s4 1983009808
        %v7330 = vunpack.c.0.s8 %v7329
        %v7331 = vlaneseq
        %v7332 = vshrl.u32 %v7331, 7
        %v7333 = vsub.s32 %v7330, %v7332
        %v7334 = vrot.slane %v7320, %v7333
        %v7335 = vcombine.high %v7327, %v7327
        %v7336 = vcombine.high %v7334, %v7334
        %v7337 = vcombine.high %v7211, %v7211
        %v7339 = vunpack.c.l.s4 1983009808
        %v7340 = vunpack.c.0.s8 %v7339
        %v7341 = vlaneseq
        %v7342 = vshrl.u32 %v7341, 7
        %v7343 = vsub.s32 %v7340, %v7342
        %v7344 = vrot.slane %v7211, %v7343
        %v7346 = vunpack.c.l.s4 1983009808
        %v7347 = vunpack.c.0.s8 %v7346
        %v7348 = vlaneseq
        %v7349 = vshrl.u32 %v7348, 7
        %v7350 = vsub.s32 %v7347, %v7349
        %v7351 = vrot.slane %v7337, %v7350
        %v7352 = vcombine.high %v7344, %v7344
        %v7353 = vcombine.high %v7351, %v7351
        %v7354 = vcombine.high %v7212, %v7212
        %v7356 = vunpack.c.l.s4 1983009808
        %v7357 = vunpack.c.0.s8 %v7356
        %v7358 = vlaneseq
        %v7359 = vshrl.u32 %v7358, 7
        %v7360 = vsub.s32 %v7357, %v7359
        %v7361 = vrot.slane %v7212, %v7360
        %v7363 = vunpack.c.l.s4 1983009808
        %v7364 = vunpack.c.0.s8 %v7363
        %v7365 = vlaneseq
        %v7366 = vshrl.u32 %v7365, 7
        %v7367 = vsub.s32 %v7364, %v7366
        %v7368 = vrot.slane %v7354, %v7367
        %v7369 = vcombine.high %v7361, %v7361
        %v7370 = vcombine.high %v7368, %v7368
        %v7371 = vcombine.high %v7213, %v7213
        %v7373 = vunpack.c.l.s4 1983009808
        %v7374 = vunpack.c.0.s8 %v7373
        %v7375 = vlaneseq
        %v7376 = vshrl.u32 %v7375, 7
        %v7377 = vsub.s32 %v7374, %v7376
        %v7378 = vrot.slane %v7213, %v7377
        %v7380 = vunpack.c.l.s4 1983009808
        %v7381 = vunpack.c.0.s8 %v7380
        %v7382 = vlaneseq
        %v7383 = vshrl.u32 %v7382, 7
        %v7384 = vsub.s32 %v7381, %v7383
        %v7385 = vrot.slane %v7371, %v7384
        %v7386 = vcombine.high %v7378, %v7378
        %v7387 = vcombine.high %v7385, %v7385
        %v7388 = vcombine.high %v7214, %v7214
        %v7390 = vunpack.c.l.s4 1983009808
        %v7391 = vunpack.c.0.s8 %v7390
        %v7392 = vlaneseq
        %v7393 = vshrl.u32 %v7392, 7
        %v7394 = vsub.s32 %v7391, %v7393
        %v7395 = vrot.slane %v7214, %v7394
        %v7397 = vunpack.c.l.s4 1983009808
        %v7398 = vunpack.c.0.s8 %v7397
        %v7399 = vlaneseq
        %v7400 = vshrl.u32 %v7399, 7
        %v7401 = vsub.s32 %v7398, %v7400
        %v7402 = vrot.slane %v7388, %v7401
        %v7403 = vcombine.high %v7395, %v7395
        %v7404 = vcombine.high %v7402, %v7402
        %v7405 = vcombine.high %v7215, %v7215
        %v7407 = vunpack.c.l.s4 1983009808
        %v7408 = vunpack.c.0.s8 %v7407
        %v7409 = vlaneseq
        %v7410 = vshrl.u32 %v7409, 7
        %v7411 = vsub.s32 %v7408, %v7410
        %v7412 = vrot.slane %v7215, %v7411
        %v7414 = vunpack.c.l.s4 1983009808
        %v7415 = vunpack.c.0.s8 %v7414
        %v7416 = vlaneseq
        %v7417 = vshrl.u32 %v7416, 7
        %v7418 = vsub.s32 %v7415, %v7417
        %v7419 = vrot.slane %v7405, %v7418
        %v7420 = vcombine.high %v7412, %v7412
        %v7421 = vcombine.high %v7419, %v7419
        %v7422 = vcombine.high %v7216, %v7216
        %v7424 = vunpack.c.l.s4 1983009808
        %v7425 = vunpack.c.0.s8 %v7424
        %v7426 = vlaneseq
        %v7427 = vshrl.u32 %v7426, 7
        %v7428 = vsub.s32 %v7425, %v7427
        %v7429 = vrot.slane %v7216, %v7428
        %v7431 = vunpack.c.l.s4 1983009808
        %v7432 = vunpack.c.0.s8 %v7431
        %v7433 = vlaneseq
        %v7434 = vshrl.u32 %v7433, 7
        %v7435 = vsub.s32 %v7432, %v7434
        %v7436 = vrot.slane %v7422, %v7435
        %v7437 = vcombine.high %v7429, %v7429
        %v7438 = vcombine.high %v7436, %v7436
        %v7439 = vcombine.high %v7217, %v7217
        %v7441 = vunpack.c.l.s4 1983009808
        %v7442 = vunpack.c.0.s8 %v7441
        %v7443 = vlaneseq
        %v7444 = vshrl.u32 %v7443, 7
        %v7445 = vsub.s32 %v7442, %v7444
        %v7446 = vrot.slane %v7217, %v7445
        %v7448 = vunpack.c.l.s4 1983009808
        %v7449 = vunpack.c.0.s8 %v7448
        %v7450 = vlaneseq
        %v7451 = vshrl.u32 %v7450, 7
        %v7452 = vsub.s32 %v7449, %v7451
        %v7453 = vrot.slane %v7439, %v7452
        %v7454 = vcombine.high %v7446, %v7446
        %v7455 = vcombine.high %v7453, %v7453
        %v7456 = vcombine.high %v7218, %v7218
        %v7458 = vunpack.c.l.s4 1983009808
        %v7459 = vunpack.c.0.s8 %v7458
        %v7460 = vlaneseq
        %v7461 = vshrl.u32 %v7460, 7
        %v7462 = vsub.s32 %v7459, %v7461
        %v7463 = vrot.slane %v7218, %v7462
        %v7465 = vunpack.c.l.s4 1983009808
        %v7466 = vunpack.c.0.s8 %v7465
        %v7467 = vlaneseq
        %v7468 = vshrl.u32 %v7467, 7
        %v7469 = vsub.s32 %v7466, %v7468
        %v7470 = vrot.slane %v7456, %v7469
        %v7471 = vcombine.high %v7463, %v7463
        %v7472 = vcombine.high %v7470, %v7470
        %v7473 = vcombine.high %v7219, %v7219
        %v7475 = vunpack.c.l.s4 1983009808
        %v7476 = vunpack.c.0.s8 %v7475
        %v7477 = vlaneseq
        %v7478 = vshrl.u32 %v7477, 7
        %v7479 = vsub.s32 %v7476, %v7478
        %v7480 = vrot.slane %v7219, %v7479
        %v7482 = vunpack.c.l.s4 1983009808
        %v7483 = vunpack.c.0.s8 %v7482
        %v7484 = vlaneseq
        %v7485 = vshrl.u32 %v7484, 7
        %v7486 = vsub.s32 %v7483, %v7485
        %v7487 = vrot.slane %v7473, %v7486
        %v7488 = vcombine.high %v7480, %v7480
        %v7489 = vcombine.high %v7487, %v7487
        %v7490 = vcombine.high %v7220, %v7220
        %v7492 = vunpack.c.l.s4 1983009808
        %v7493 = vunpack.c.0.s8 %v7492
        %v7494 = vlaneseq
        %v7495 = vshrl.u32 %v7494, 7
        %v7496 = vsub.s32 %v7493, %v7495
        %v7497 = vrot.slane %v7220, %v7496
        %v7499 = vunpack.c.l.s4 1983009808
        %v7500 = vunpack.c.0.s8 %v7499
        %v7501 = vlaneseq
        %v7502 = vshrl.u32 %v7501, 7
        %v7503 = vsub.s32 %v7500, %v7502
        %v7504 = vrot.slane %v7490, %v7503
        %v7505 = vcombine.high %v7497, %v7497
        %v7506 = vcombine.high %v7504, %v7504
        %v7507 = vcombine.high %v7221, %v7221
        %v7509 = vunpack.c.l.s4 1983009808
        %v7510 = vunpack.c.0.s8 %v7509
        %v7511 = vlaneseq
        %v7512 = vshrl.u32 %v7511, 7
        %v7513 = vsub.s32 %v7510, %v7512
        %v7514 = vrot.slane %v7221, %v7513
        %v7516 = vunpack.c.l.s4 1983009808
        %v7517 = vunpack.c.0.s8 %v7516
        %v7518 = vlaneseq
        %v7519 = vshrl.u32 %v7518, 7
        %v7520 = vsub.s32 %v7517, %v7519
        %v7521 = vrot.slane %v7507, %v7520
        %v7522 = vcombine.high %v7514, %v7514
        %v7523 = vcombine.high %v7521, %v7521
        %v7524 = vcombine.high %v7222, %v7222
        %v7526 = vunpack.c.l.s4 1983009808
        %v7527 = vunpack.c.0.s8 %v7526
        %v7528 = vlaneseq
        %v7529 = vshrl.u32 %v7528, 7
        %v7530 = vsub.s32 %v7527, %v7529
        %v7531 = vrot.slane %v7222, %v7530
        %v7533 = vunpack.c.l.s4 1983009808
        %v7534 = vunpack.c.0.s8 %v7533
        %v7535 = vlaneseq
        %v7536 = vshrl.u32 %v7535, 7
        %v7537 = vsub.s32 %v7534, %v7536
        %v7538 = vrot.slane %v7524, %v7537
        %v7539 = vcombine.high %v7531, %v7531
        %v7540 = vcombine.high %v7538, %v7538
        %v7541 = vcombine.high %v7223, %v7223
        %v7543 = vunpack.c.l.s4 1983009808
        %v7544 = vunpack.c.0.s8 %v7543
        %v7545 = vlaneseq
        %v7546 = vshrl.u32 %v7545, 7
        %v7547 = vsub.s32 %v7544, %v7546
        %v7548 = vrot.slane %v7223, %v7547
        %v7550 = vunpack.c.l.s4 1983009808
        %v7551 = vunpack.c.0.s8 %v7550
        %v7552 = vlaneseq
        %v7553 = vshrl.u32 %v7552, 7
        %v7554 = vsub.s32 %v7551, %v7553
        %v7555 = vrot.slane %v7541, %v7554
        %v7556 = vcombine.high %v7548, %v7548
        %v7557 = vcombine.high %v7555, %v7555
        %v7558 = vcombine.high %v7224, %v7224
        %v7560 = vunpack.c.l.s4 1983009808
        %v7561 = vunpack.c.0.s8 %v7560
        %v7562 = vlaneseq
        %v7563 = vshrl.u32 %v7562, 7
        %v7564 = vsub.s32 %v7561, %v7563
        %v7565 = vrot.slane %v7224, %v7564
        %v7567 = vunpack.c.l.s4 1983009808
        %v7568 = vunpack.c.0.s8 %v7567
        %v7569 = vlaneseq
        %v7570 = vshrl.u32 %v7569, 7
        %v7571 = vsub.s32 %v7568, %v7570
        %v7572 = vrot.slane %v7558, %v7571
        %v7573 = vcombine.high %v7565, %v7565
        %v7574 = vcombine.high %v7572, %v7572
        %v7575 = vcombine.high %v7225, %v7225
        %v7577 = vunpack.c.l.s4 1983009808
        %v7578 = vunpack.c.0.s8 %v7577
        %v7579 = vlaneseq
        %v7580 = vshrl.u32 %v7579, 7
        %v7581 = vsub.s32 %v7578, %v7580
        %v7582 = vrot.slane %v7225, %v7581
        %v7584 = vunpack.c.l.s4 1983009808
        %v7585 = vunpack.c.0.s8 %v7584
        %v7586 = vlaneseq
        %v7587 = vshrl.u32 %v7586, 7
        %v7588 = vsub.s32 %v7585, %v7587
        %v7589 = vrot.slane %v7575, %v7588
        %v7590 = vcombine.high %v7582, %v7582
        %v7591 = vcombine.high %v7589, %v7589
        %v7592 = vcombine.high %v7226, %v7226
        %v7594 = vunpack.c.l.s4 1983009808
        %v7595 = vunpack.c.0.s8 %v7594
        %v7596 = vlaneseq
        %v7597 = vshrl.u32 %v7596, 7
        %v7598 = vsub.s32 %v7595, %v7597
        %v7599 = vrot.slane %v7226, %v7598
        %v7601 = vunpack.c.l.s4 1983009808
        %v7602 = vunpack.c.0.s8 %v7601
        %v7603 = vlaneseq
        %v7604 = vshrl.u32 %v7603, 7
        %v7605 = vsub.s32 %v7602, %v7604
        %v7606 = vrot.slane %v7592, %v7605
        %v7607 = vcombine.high %v7599, %v7599
        %v7608 = vcombine.high %v7606, %v7606
        %v7609 = vcombine.high %v7227, %v7227
        %v7611 = vunpack.c.l.s4 1983009808
        %v7612 = vunpack.c.0.s8 %v7611
        %v7613 = vlaneseq
        %v7614 = vshrl.u32 %v7613, 7
        %v7615 = vsub.s32 %v7612, %v7614
        %v7616 = vrot.slane %v7227, %v7615
        %v7618 = vunpack.c.l.s4 1983009808
        %v7619 = vunpack.c.0.s8 %v7618
        %v7620 = vlaneseq
        %v7621 = vshrl.u32 %v7620, 7
        %v7622 = vsub.s32 %v7619, %v7621
        %v7623 = vrot.slane %v7609, %v7622
        %v7624 = vcombine.high %v7616, %v7616
        %v7625 = vcombine.high %v7623, %v7623
        %v7627 = vunpack.c.l.s4 1983009808
        %v7628 = vunpack.c.0.s8 %v7627
        %v7629 = vlaneseq
        %v7630 = vshrl.u32 %v7629, 7
        %v7631 = vsub.s32 %v7628, %v7630
        %v7632 = vrot.slane %v7228, %v7631
        %v7633 = vcombine.high %v7632, %v7632
        %v7634 = vcombine.low %v7259, %v7267
        %v7635 = vcombine.low %v7266, %v7268
        %v7637 = vunpack.c.l.s4 1983009808
        %v7638 = vunpack.c.0.s8 %v7637
        %v7639 = vlaneseq
        %v7640 = vshrl.u32 %v7639, 7
        %v7641 = vsub.s32 %v7638, %v7640
        %v7642 = vrot.slane %v7634, %v7641
        %v7644 = vunpack.c.l.s4 1983009808
        %v7645 = vunpack.c.0.s8 %v7644
        %v7646 = vlaneseq
        %v7647 = vshrl.u32 %v7646, 7
        %v7648 = vsub.s32 %v7645, %v7647
        %v7649 = vrot.slane %v7635, %v7648
        %v7650 = vcombine.low %v7642, %v7649
        %v7651 = vcombine.low %v7276, %v7284
        %v7652 = vcombine.low %v7283, %v7285
        %v7654 = vunpack.c.l.s4 1983009808
        %v7655 = vunpack.c.0.s8 %v7654
        %v7656 = vlaneseq
        %v7657 = vshrl.u32 %v7656, 7
        %v7658 = vsub.s32 %v7655, %v7657
        %v7659 = vrot.slane %v7651, %v7658
        %v7661 = vunpack.c.l.s4 1983009808
        %v7662 = vunpack.c.0.s8 %v7661
        %v7663 = vlaneseq
        %v7664 = vshrl.u32 %v7663, 7
        %v7665 = vsub.s32 %v7662, %v7664
        %v7666 = vrot.slane %v7652, %v7665
        %v7667 = vcombine.low %v7659, %v7666
        %v7669 = vunpack.c.l.s4 1983009808
        %v7670 = vunpack.c.0.s8 %v7669
        %v7671 = vlaneseq
        %v7672 = vshrl.u32 %v7671, 7
        %v7673 = vsub.s32 %v7670, %v7672
        %v7674 = vrot.slane %v7293, %v7673
        %v7675 = vcombine.low %v7301, %v7300
        %v7676 = vcombine.low %v7302, %v7310
        %v7678 = vunpack.c.l.s4 1983009808
        %v7679 = vunpack.c.0.s8 %v7678
        %v7680 = vlaneseq
        %v7681 = vshrl.u32 %v7680, 7
        %v7682 = vsub.s32 %v7679, %v7681
        %v7683 = vrot.slane %v7675, %v7682
        %v7685 = vunpack.c.l.s4 1983009808
        %v7686 = vunpack.c.0.s8 %v7685
        %v7687 = vlaneseq
        %v7688 = vshrl.u32 %v7687, 7
        %v7689 = vsub.s32 %v7686, %v7688
        %v7690 = vrot.slane %v7676, %v7689
        %v7691 = vcombine.low %v7683, %v7690
        %v7692 = vcombine.low %v7318, %v7317
        %v7693 = vcombine.low %v7319, %v7327
        %v7695 = vunpack.c.l.s4 1983009808
        %v7696 = vunpack.c.0.s8 %v7695
        %v7697 = vlaneseq
        %v7698 = vshrl.u32 %v7697, 7
        %v7699 = vsub.s32 %v7696, %v7698
        %v7700 = vrot.slane %v7692, %v7699
        %v7702 = vunpack.c.l.s4 1983009808
        %v7703 = vunpack.c.0.s8 %v7702
        %v7704 = vlaneseq
        %v7705 = vshrl.u32 %v7704, 7
        %v7706 = vsub.s32 %v7703, %v7705
        %v7707 = vrot.slane %v7693, %v7706
        %v7708 = vcombine.low %v7700, %v7707
        %v7710 = vunpack.c.l.s4 1983009808
        %v7711 = vunpack.c.0.s8 %v7710
        %v7712 = vlaneseq
        %v7713 = vshrl.u32 %v7712, 7
        %v7714 = vsub.s32 %v7711, %v7713
        %v7715 = vrot.slane %v7335, %v7714
        %v7716 = vcombine.low %v7334, %v7336
        %v7717 = vcombine.low %v7344, %v7352
        %v7719 = vunpack.c.l.s4 1983009808
        %v7720 = vunpack.c.0.s8 %v7719
        %v7721 = vlaneseq
        %v7722 = vshrl.u32 %v7721, 7
        %v7723 = vsub.s32 %v7720, %v7722
        %v7724 = vrot.slane %v7716, %v7723
        %v7726 = vunpack.c.l.s4 1983009808
        %v7727 = vunpack.c.0.s8 %v7726
        %v7728 = vlaneseq
        %v7729 = vshrl.u32 %v7728, 7
        %v7730 = vsub.s32 %v7727, %v7729
        %v7731 = vrot.slane %v7717, %v7730
        %v7732 = vcombine.low %v7724, %v7731
        %v7733 = vcombine.low %v7351, %v7353
        %v7734 = vcombine.low %v7361, %v7369
        %v7736 = vunpack.c.l.s4 1983009808
        %v7737 = vunpack.c.0.s8 %v7736
        %v7738 = vlaneseq
        %v7739 = vshrl.u32 %v7738, 7
        %v7740 = vsub.s32 %v7737, %v7739
        %v7741 = vrot.slane %v7733, %v7740
        %v7743 = vunpack.c.l.s4 1983009808
        %v7744 = vunpack.c.0.s8 %v7743
        %v7745 = vlaneseq
        %v7746 = vshrl.u32 %v7745, 7
        %v7747 = vsub.s32 %v7744, %v7746
        %v7748 = vrot.slane %v7734, %v7747
        %v7749 = vcombine.low %v7741, %v7748
        %v7751 = vunpack.c.l.s4 1983009808
        %v7752 = vunpack.c.0.s8 %v7751
        %v7753 = vlaneseq
        %v7754 = vshrl.u32 %v7753, 7
        %v7755 = vsub.s32 %v7752, %v7754
        %v7756 = vrot.slane %v7368, %v7755
        %v7757 = vcombine.low %v7370, %v7378
        %v7758 = vcombine.low %v7386, %v7385
        %v7760 = vunpack.c.l.s4 1983009808
        %v7761 = vunpack.c.0.s8 %v7760
        %v7762 = vlaneseq
        %v7763 = vshrl.u32 %v7762, 7
        %v7764 = vsub.s32 %v7761, %v7763
        %v7765 = vrot.slane %v7757, %v7764
        %v7767 = vunpack.c.l.s4 1983009808
        %v7768 = vunpack.c.0.s8 %v7767
        %v7769 = vlaneseq
        %v7770 = vshrl.u32 %v7769, 7
        %v7771 = vsub.s32 %v7768, %v7770
        %v7772 = vrot.slane %v7758, %v7771
        %v7773 = vcombine.low %v7765, %v7772
        %v7774 = vcombine.low %v7387, %v7395
        %v7775 = vcombine.low %v7403, %v7402
        %v7777 = vunpack.c.l.s4 1983009808
        %v7778 = vunpack.c.0.s8 %v7777
        %v7779 = vlaneseq
        %v7780 = vshrl.u32 %v7779, 7
        %v7781 = vsub.s32 %v7778, %v7780
        %v7782 = vrot.slane %v7774, %v7781
        %v7784 = vunpack.c.l.s4 1983009808
        %v7785 = vunpack.c.0.s8 %v7784
        %v7786 = vlaneseq
        %v7787 = vshrl.u32 %v7786, 7
        %v7788 = vsub.s32 %v7785, %v7787
        %v7789 = vrot.slane %v7775, %v7788
        %v7790 = vcombine.low %v7782, %v7789
        %v7792 = vunpack.c.l.s4 1983009808
        %v7793 = vunpack.c.0.s8 %v7792
        %v7794 = vlaneseq
        %v7795 = vshrl.u32 %v7794, 7
        %v7796 = vsub.s32 %v7793, %v7795
        %v7797 = vrot.slane %v7404, %v7796
        %v7798 = vcombine.low %v7412, %v7420
        %v7799 = vcombine.low %v7419, %v7421
        %v7801 = vunpack.c.l.s4 1983009808
        %v7802 = vunpack.c.0.s8 %v7801
        %v7803 = vlaneseq
        %v7804 = vshrl.u32 %v7803, 7
        %v7805 = vsub.s32 %v7802, %v7804
        %v7806 = vrot.slane %v7798, %v7805
        %v7808 = vunpack.c.l.s4 1983009808
        %v7809 = vunpack.c.0.s8 %v7808
        %v7810 = vlaneseq
        %v7811 = vshrl.u32 %v7810, 7
        %v7812 = vsub.s32 %v7809, %v7811
        %v7813 = vrot.slane %v7799, %v7812
        %v7814 = vcombine.low %v7806, %v7813
        %v7815 = vcombine.low %v7429, %v7437
        %v7816 = vcombine.low %v7436, %v7438
        %v7818 = vunpack.c.l.s4 1983009808
        %v7819 = vunpack.c.0.s8 %v7818
        %v7820 = vlaneseq
        %v7821 = vshrl.u32 %v7820, 7
        %v7822 = vsub.s32 %v7819, %v7821
        %v7823 = vrot.slane %v7815, %v7822
        %v7825 = vunpack.c.l.s4 1983009808
        %v7826 = vunpack.c.0.s8 %v7825
        %v7827 = vlaneseq
        %v7828 = vshrl.u32 %v7827, 7
        %v7829 = vsub.s32 %v7826, %v7828
        %v7830 = vrot.slane %v7816, %v7829
        %v7831 = vcombine.low %v7823, %v7830
        %v7833 = vunpack.c.l.s4 1983009808
        %v7834 = vunpack.c.0.s8 %v7833
        %v7835 = vlaneseq
        %v7836 = vshrl.u32 %v7835, 7
        %v7837 = vsub.s32 %v7834, %v7836
        %v7838 = vrot.slane %v7446, %v7837
        %v7839 = vcombine.low %v7454, %v7453
        %v7840 = vcombine.low %v7455, %v7463
        %v7842 = vunpack.c.l.s4 1983009808
        %v7843 = vunpack.c.0.s8 %v7842
        %v7844 = vlaneseq
        %v7845 = vshrl.u32 %v7844, 7
        %v7846 = vsub.s32 %v7843, %v7845
        %v7847 = vrot.slane %v7839, %v7846
        %v7849 = vunpack.c.l.s4 1983009808
        %v7850 = vunpack.c.0.s8 %v7849
        %v7851 = vlaneseq
        %v7852 = vshrl.u32 %v7851, 7
        %v7853 = vsub.s32 %v7850, %v7852
        %v7854 = vrot.slane %v7840, %v7853
        %v7855 = vcombine.low %v7847, %v7854
        %v7856 = vcombine.low %v7471, %v7470
        %v7857 = vcombine.low %v7472, %v7480
        %v7859 = vunpack.c.l.s4 1983009808
        %v7860 = vunpack.c.0.s8 %v7859
        %v7861 = vlaneseq
        %v7862 = vshrl.u32 %v7861, 7
        %v7863 = vsub.s32 %v7860, %v7862
        %v7864 = vrot.slane %v7856, %v7863
        %v7866 = vunpack.c.l.s4 1983009808
        %v7867 = vunpack.c.0.s8 %v7866
        %v7868 = vlaneseq
        %v7869 = vshrl.u32 %v7868, 7
        %v7870 = vsub.s32 %v7867, %v7869
        %v7871 = vrot.slane %v7857, %v7870
        %v7872 = vcombine.low %v7864, %v7871
        %v7874 = vunpack.c.l.s4 1983009808
        %v7875 = vunpack.c.0.s8 %v7874
        %v7876 = vlaneseq
        %v7877 = vshrl.u32 %v7876, 7
        %v7878 = vsub.s32 %v7875, %v7877
        %v7879 = vrot.slane %v7488, %v7878
        %v7880 = vcombine.low %v7487, %v7489
        %v7881 = vcombine.low %v7497, %v7505
        %v7883 = vunpack.c.l.s4 1983009808
        %v7884 = vunpack.c.0.s8 %v7883
        %v7885 = vlaneseq
        %v7886 = vshrl.u32 %v7885, 7
        %v7887 = vsub.s32 %v7884, %v7886
        %v7888 = vrot.slane %v7880, %v7887
        %v7890 = vunpack.c.l.s4 1983009808
        %v7891 = vunpack.c.0.s8 %v7890
        %v7892 = vlaneseq
        %v7893 = vshrl.u32 %v7892, 7
        %v7894 = vsub.s32 %v7891, %v7893
        %v7895 = vrot.slane %v7881, %v7894
        %v7896 = vcombine.low %v7888, %v7895
        %v7897 = vcombine.low %v7504, %v7506
        %v7898 = vcombine.low %v7514, %v7522
        %v7900 = vunpack.c.l.s4 1983009808
        %v7901 = vunpack.c.0.s8 %v7900
        %v7902 = vlaneseq
        %v7903 = vshrl.u32 %v7902, 7
        %v7904 = vsub.s32 %v7901, %v7903
        %v7905 = vrot.slane %v7897, %v7904
        %v7907 = vunpack.c.l.s4 1983009808
        %v7908 = vunpack.c.0.s8 %v7907
        %v7909 = vlaneseq
        %v7910 = vshrl.u32 %v7909, 7
        %v7911 = vsub.s32 %v7908, %v7910
        %v7912 = vrot.slane %v7898, %v7911
        %v7913 = vcombine.low %v7905, %v7912
        %v7915 = vunpack.c.l.s4 1983009808
        %v7916 = vunpack.c.0.s8 %v7915
        %v7917 = vlaneseq
        %v7918 = vshrl.u32 %v7917, 7
        %v7919 = vsub.s32 %v7916, %v7918
        %v7920 = vrot.slane %v7521, %v7919
        %v7921 = vcombine.low %v7523, %v7531
        %v7922 = vcombine.low %v7539, %v7538
        %v7924 = vunpack.c.l.s4 1983009808
        %v7925 = vunpack.c.0.s8 %v7924
        %v7926 = vlaneseq
        %v7927 = vshrl.u32 %v7926, 7
        %v7928 = vsub.s32 %v7925, %v7927
        %v7929 = vrot.slane %v7921, %v7928
        %v7931 = vunpack.c.l.s4 1983009808
        %v7932 = vunpack.c.0.s8 %v7931
        %v7933 = vlaneseq
        %v7934 = vshrl.u32 %v7933, 7
        %v7935 = vsub.s32 %v7932, %v7934
        %v7936 = vrot.slane %v7922, %v7935
        %v7937 = vcombine.low %v7929, %v7936
        %v7938 = vcombine.low %v7540, %v7548
        %v7939 = vcombine.low %v7556, %v7555
        %v7941 = vunpack.c.l.s4 1983009808
        %v7942 = vunpack.c.0.s8 %v7941
        %v7943 = vlaneseq
        %v7944 = vshrl.u32 %v7943, 7
        %v7945 = vsub.s32 %v7942, %v7944
        %v7946 = vrot.slane %v7938, %v7945
        %v7948 = vunpack.c.l.s4 1983009808
        %v7949 = vunpack.c.0.s8 %v7948
        %v7950 = vlaneseq
        %v7951 = vshrl.u32 %v7950, 7
        %v7952 = vsub.s32 %v7949, %v7951
        %v7953 = vrot.slane %v7939, %v7952
        %v7954 = vcombine.low %v7946, %v7953
        %v7956 = vunpack.c.l.s4 1983009808
        %v7957 = vunpack.c.0.s8 %v7956
        %v7958 = vlaneseq
        %v7959 = vshrl.u32 %v7958, 7
        %v7960 = vsub.s32 %v7957, %v7959
        %v7961 = vrot.slane %v7557, %v7960
        %v7962 = vcombine.low %v7565, %v7573
        %v7963 = vcombine.low %v7572, %v7574
        %v7965 = vunpack.c.l.s4 1983009808
        %v7966 = vunpack.c.0.s8 %v7965
        %v7967 = vlaneseq
        %v7968 = vshrl.u32 %v7967, 7
        %v7969 = vsub.s32 %v7966, %v7968
        %v7970 = vrot.slane %v7962, %v7969
        %v7972 = vunpack.c.l.s4 1983009808
        %v7973 = vunpack.c.0.s8 %v7972
        %v7974 = vlaneseq
        %v7975 = vshrl.u32 %v7974, 7
        %v7976 = vsub.s32 %v7973, %v7975
        %v7977 = vrot.slane %v7963, %v7976
        %v7978 = vcombine.low %v7970, %v7977
        %v7979 = vcombine.low %v7582, %v7590
        %v7980 = vcombine.low %v7589, %v7591
        %v7982 = vunpack.c.l.s4 1983009808
        %v7983 = vunpack.c.0.s8 %v7982
        %v7984 = vlaneseq
        %v7985 = vshrl.u32 %v7984, 7
        %v7986 = vsub.s32 %v7983, %v7985
        %v7987 = vrot.slane %v7979, %v7986
        %v7989 = vunpack.c.l.s4 1983009808
        %v7990 = vunpack.c.0.s8 %v7989
        %v7991 = vlaneseq
        %v7992 = vshrl.u32 %v7991, 7
        %v7993 = vsub.s32 %v7990, %v7992
        %v7994 = vrot.slane %v7980, %v7993
        %v7995 = vcombine.low %v7987, %v7994
        %v7997 = vunpack.c.l.s4 1983009808
        %v7998 = vunpack.c.0.s8 %v7997
        %v7999 = vlaneseq
        %v8000 = vshrl.u32 %v7999, 7
        %v8001 = vsub.s32 %v7998, %v8000
        %v8002 = vrot.slane %v7599, %v8001
        %v8003 = vcombine.low %v7607, %v7606
        %v8004 = vcombine.low %v7608, %v7616
        %v8006 = vunpack.c.l.s4 1983009808
        %v8007 = vunpack.c.0.s8 %v8006
        %v8008 = vlaneseq
        %v8009 = vshrl.u32 %v8008, 7
        %v8010 = vsub.s32 %v8007, %v8009
        %v8011 = vrot.slane %v8003, %v8010
        %v8013 = vunpack.c.l.s4 1983009808
        %v8014 = vunpack.c.0.s8 %v8013
        %v8015 = vlaneseq
        %v8016 = vshrl.u32 %v8015, 7
        %v8017 = vsub.s32 %v8014, %v8016
        %v8018 = vrot.slane %v8004, %v8017
        %v8019 = vcombine.low %v8011, %v8018
        %v8020 = vcombine.low %v7624, %v7623
        %v8021 = vcombine.low %v7625, %v7632
        %v8023 = vunpack.c.l.s4 1983009808
        %v8024 = vunpack.c.0.s8 %v8023
        %v8025 = vlaneseq
        %v8026 = vshrl.u32 %v8025, 7
        %v8027 = vsub.s32 %v8024, %v8026
        %v8028 = vrot.slane %v8020, %v8027
        %v8030 = vunpack.c.l.s4 1983009808
        %v8031 = vunpack.c.0.s8 %v8030
        %v8032 = vlaneseq
        %v8033 = vshrl.u32 %v8032, 7
        %v8034 = vsub.s32 %v8031, %v8033
        %v8035 = vrot.slane %v8021, %v8034
        %v8036 = vcombine.low %v8028, %v8035
        %v8038 = vunpack.c.l.s4 1983009808
        %v8039 = vunpack.c.0.s8 %v8038
        %v8040 = vlaneseq
        %v8041 = vshrl.u32 %v8040, 7
        %v8042 = vsub.s32 %v8039, %v8041
        %v8043 = vrot.slane %v7633, %v8042
        %v8074 = vpack.c.bf16 %v7667, %v7650
        %v8075 = vpack.c.bf16 %v7674, %v7674
        %v8076 = vpack.c.bf16 %v7708, %v7691
        %v8077 = vpack.c.bf16 %v7715, %v7715
        %v8078 = vpack.c.bf16 %v7749, %v7732
        %v8079 = vpack.c.bf16 %v7756, %v7756
        %v8080 = vpack.c.bf16 %v7790, %v7773
        %v8081 = vpack.c.bf16 %v7797, %v7797
        %v8082 = vpack.c.bf16 %v7831, %v7814
        %v8083 = vpack.c.bf16 %v7838, %v7838
        %v8084 = vpack.c.bf16 %v7872, %v7855
        %v8085 = vpack.c.bf16 %v7879, %v7879
        %v8086 = vpack.c.bf16 %v7913, %v7896
        %v8087 = vpack.c.bf16 %v7920, %v7920
        %v8088 = vpack.c.bf16 %v7954, %v7937
        %v8089 = vpack.c.bf16 %v7961, %v7961
        %v8090 = vpack.c.bf16 %v7995, %v7978
        %v8091 = vpack.c.bf16 %v8002, %v8002
        %v8092 = vpack.c.bf16 %v8036, %v8019
        %v8093 = vpack.c.bf16 %v8043, %v8043
        %v8114 = vunpack.c.l.b16 %v8074
        %v8115 = vunpack.c.h.b16 %v8074
        %v8116 = vunpack.c.l.b16 %v8075
        %v8117 = vunpack.c.l.b16 %v8076
        %v8118 = vunpack.c.h.b16 %v8076
        %v8119 = vunpack.c.l.b16 %v8077
        %v8120 = vunpack.c.l.b16 %v8078
        %v8121 = vunpack.c.h.b16 %v8078
        %v8122 = vunpack.c.l.b16 %v8079
        %v8123 = vunpack.c.l.b16 %v8080
        %v8124 = vunpack.c.h.b16 %v8080
        %v8125 = vunpack.c.l.b16 %v8081
        %v8126 = vunpack.c.l.b16 %v8082
        %v8127 = vunpack.c.h.b16 %v8082
        %v8128 = vunpack.c.l.b16 %v8083
        %v8129 = vunpack.c.l.b16 %v8084
        %v8130 = vunpack.c.h.b16 %v8084
        %v8131 = vunpack.c.l.b16 %v8085
        %v8132 = vunpack.c.l.b16 %v8086
        %v8133 = vunpack.c.h.b16 %v8086
        %v8134 = vunpack.c.l.b16 %v8087
        %v8135 = vunpack.c.l.b16 %v8088
        %v8136 = vunpack.c.h.b16 %v8088
        %v8137 = vunpack.c.l.b16 %v8089
        %v8138 = vunpack.c.l.b16 %v8090
        %v8139 = vunpack.c.h.b16 %v8090
        %v8140 = vunpack.c.l.b16 %v8091
        %v8141 = vunpack.c.l.b16 %v8092
        %v8142 = vunpack.c.h.b16 %v8092
        %v8143 = vunpack.c.l.b16 %v8093
        %v8144 = vpack.c.b16 %v8114, %v8114
        %v8145 = vpack.c.b16 %v8115, %v8115
        %v8146 = vpack.c.b16 %v8116, %v8116
        %v8147 = vpack.c.b16 %v8117, %v8117
        %v8148 = vpack.c.b16 %v8118, %v8118
        %v8149 = vpack.c.b16 %v8119, %v8119
        %v8150 = vpack.c.b16 %v8120, %v8120
        %v8151 = vpack.c.b16 %v8121, %v8121
        %v8152 = vpack.c.b16 %v8122, %v8122
        %v8153 = vpack.c.b16 %v8123, %v8123
        %v8154 = vpack.c.b16 %v8124, %v8124
        %v8155 = vpack.c.b16 %v8125, %v8125
        %v8156 = vpack.c.b16 %v8126, %v8126
        %v8157 = vpack.c.b16 %v8127, %v8127
        %v8158 = vpack.c.b16 %v8128, %v8128
        %v8159 = vpack.c.b16 %v8129, %v8129
        %v8160 = vpack.c.b16 %v8130, %v8130
        %v8161 = vpack.c.b16 %v8131, %v8131
        %v8162 = vpack.c.b16 %v8132, %v8132
        %v8163 = vpack.c.b16 %v8133, %v8133
        %v8164 = vpack.c.b16 %v8134, %v8134
        %v8165 = vpack.c.b16 %v8135, %v8135
        %v8166 = vpack.c.b16 %v8136, %v8136
        %v8167 = vpack.c.b16 %v8137, %v8137
        %v8168 = vpack.c.b16 %v8138, %v8138
        %v8169 = vpack.c.b16 %v8139, %v8139
        %v8170 = vpack.c.b16 %v8140, %v8140
        %v8171 = vpack.c.b16 %v8141, %v8141
        %v8172 = vpack.c.b16 %v8142, %v8142
        %v8173 = vpack.c.b16 %v8143, %v8143
        %8204 = vst [vmem:[#allocation2] sm:$0xf] %v8144
        %8205 = vst [vmem:[#allocation2 + $0x4] sm:$0xf] %v8145
        %8206 = vst [vmem:[#allocation2 + $0x8] sm:$0x1] %v8146
        %8207 = vst [vmem:[#allocation2 + $0xc] sm:$0xf] %v8147
        %8208 = vst [vmem:[#allocation2 + $0x10] sm:$0xf] %v8148
        %8209 = vst [vmem:[#allocation2 + $0x14] sm:$0x1] %v8149
        %8210 = vst [vmem:[#allocation2 + $0x18] sm:$0xf] %v8150
        %8211 = vst [vmem:[#allocation2 + $0x1c] sm:$0xf] %v8151
        %8212 = vst [vmem:[#allocation2 + $0x20] sm:$0x1] %v8152
        %8213 = vst [vmem:[#allocation2 + $0x24] sm:$0xf] %v8153
        %8214 = vst [vmem:[#allocation2 + $0x28] sm:$0xf] %v8154
        %8215 = vst [vmem:[#allocation2 + $0x2c] sm:$0x1] %v8155
        %8216 = vst [vmem:[#allocation2 + $0x30] sm:$0xf] %v8156
        %8217 = vst [vmem:[#allocation2 + $0x34] sm:$0xf] %v8157
        %8218 = vst [vmem:[#allocation2 + $0x38] sm:$0x1] %v8158
        %8219 = vst [vmem:[#allocation2 + $0x3c] sm:$0xf] %v8159
        %8220 = vst [vmem:[#allocation2 + $0x40] sm:$0xf] %v8160
        %8221 = vst [vmem:[#allocation2 + $0x44] sm:$0x1] %v8161
        %8222 = vst [vmem:[#allocation2 + $0x48] sm:$0xf] %v8162
        %8223 = vst [vmem:[#allocation2 + $0x4c] sm:$0xf] %v8163
        %8224 = vst [vmem:[#allocation2 + $0x50] sm:$0x1] %v8164
        %8225 = vst [vmem:[#allocation2 + $0x54] sm:$0xf] %v8165
        %8226 = vst [vmem:[#allocation2 + $0x58] sm:$0xf] %v8166
        %8227 = vst [vmem:[#allocation2 + $0x5c] sm:$0x1] %v8167
        %8228 = vst [vmem:[#allocation2 + $0x60] sm:$0xf] %v8168
        %8229 = vst [vmem:[#allocation2 + $0x64] sm:$0xf] %v8169
        %8230 = vst [vmem:[#allocation2 + $0x68] sm:$0x1] %v8170
        %8231 = vst [vmem:[#allocation2 + $0x6c] sm:$0xf] %v8171
        %8232 = vst [vmem:[#allocation2 + $0x70] sm:$0xf] %v8172
        %8233 = vst [vmem:[#allocation2 + $0x74] sm:$0x1] %v8173
        %vm8234 = vcmask 1040384
        %vm8235 = vmand %vm8234, %vm1079
        %v8236 = vld [vmem:[#allocation2] sm:$0x1]
        %v8237 = vsel %vm8235, 0, %v8236
        %8238 = vst [vmem:[#allocation2] sm:$0x1] %v8237
        %v8239 = vld [vmem:[#allocation2 + $0xc] sm:$0x1]
        %v8240 = vsel %vm8235, 0, %v8239
        %8241 = vst [vmem:[#allocation2 + $0xc] sm:$0x1] %v8240
        %v8242 = vld [vmem:[#allocation2 + $0x18] sm:$0x1]
        %v8243 = vsel %vm8235, 0, %v8242
        %8244 = vst [vmem:[#allocation2 + $0x18] sm:$0x1] %v8243
        %v8245 = vld [vmem:[#allocation2 + $0x24] sm:$0x1]
        %v8246 = vsel %vm8235, 0, %v8245
        %8247 = vst [vmem:[#allocation2 + $0x24] sm:$0x1] %v8246
        %v8248 = vld [vmem:[#allocation2 + $0x30] sm:$0x1]
        %v8249 = vsel %vm8235, 0, %v8248
        %8250 = vst [vmem:[#allocation2 + $0x30] sm:$0x1] %v8249
        %v8251 = vld [vmem:[#allocation2 + $0x3c] sm:$0x1]
        %v8252 = vsel %vm8235, 0, %v8251
        %8253 = vst [vmem:[#allocation2 + $0x3c] sm:$0x1] %v8252
        %v8254 = vld [vmem:[#allocation2 + $0x48] sm:$0x1]
        %v8255 = vsel %vm8235, 0, %v8254
        %8256 = vst [vmem:[#allocation2 + $0x48] sm:$0x1] %v8255
        %v8257 = vld [vmem:[#allocation2 + $0x54] sm:$0x1]
        %v8258 = vsel %vm8235, 0, %v8257
        %8259 = vst [vmem:[#allocation2 + $0x54] sm:$0x1] %v8258
        %v8260 = vld [vmem:[#allocation2 + $0x60] sm:$0x1]
        %v8261 = vsel %vm8235, 0, %v8260
        %8262 = vst [vmem:[#allocation2 + $0x60] sm:$0x1] %v8261
        %v8263 = vld [vmem:[#allocation2 + $0x6c] sm:$0x1]
        %v8264 = vsel %vm8235, 0, %v8263
        %8265 = vst [vmem:[#allocation2 + $0x6c] sm:$0x1] %v8264
        %vm8266 = vsmask.f32 7938
        %vm8267 = vmand %vm8234, %vm8266
        %v8268 = vld [vmem:[#allocation2 + $0x8] sm:$0x1]
        %v8269 = vsel %vm8267, 0, %v8268
        %8270 = vst [vmem:[#allocation2 + $0x8] sm:$0x1] %v8269
        %v8271 = vld [vmem:[#allocation2 + $0x14] sm:$0x1]
        %v8272 = vsel %vm8267, 0, %v8271
        %8273 = vst [vmem:[#allocation2 + $0x14] sm:$0x1] %v8272
        %v8274 = vld [vmem:[#allocation2 + $0x20] sm:$0x1]
        %v8275 = vsel %vm8267, 0, %v8274
        %8276 = vst [vmem:[#allocation2 + $0x20] sm:$0x1] %v8275
        %v8277 = vld [vmem:[#allocation2 + $0x2c] sm:$0x1]
        %v8278 = vsel %vm8267, 0, %v8277
        %8279 = vst [vmem:[#allocation2 + $0x2c] sm:$0x1] %v8278
        %v8280 = vld [vmem:[#allocation2 + $0x38] sm:$0x1]
        %v8281 = vsel %vm8267, 0, %v8280
        %8282 = vst [vmem:[#allocation2 + $0x38] sm:$0x1] %v8281
        %v8283 = vld [vmem:[#allocation2 + $0x44] sm:$0x1]
        %v8284 = vsel %vm8267, 0, %v8283
        %8285 = vst [vmem:[#allocation2 + $0x44] sm:$0x1] %v8284
        %v8286 = vld [vmem:[#allocation2 + $0x50] sm:$0x1]
        %v8287 = vsel %vm8267, 0, %v8286
        %8288 = vst [vmem:[#allocation2 + $0x50] sm:$0x1] %v8287
        %v8289 = vld [vmem:[#allocation2 + $0x5c] sm:$0x1]
        %v8290 = vsel %vm8267, 0, %v8289
        %8291 = vst [vmem:[#allocation2 + $0x5c] sm:$0x1] %v8290
        %v8292 = vld [vmem:[#allocation2 + $0x68] sm:$0x1]
        %v8293 = vsel %vm8267, 0, %v8292
        %8294 = vst [vmem:[#allocation2 + $0x68] sm:$0x1] %v8293
        %v8295 = vld [vmem:[#allocation2 + $0x74] sm:$0x1]
        %v8296 = vsel %vm8267, 0, %v8295
        %8297 = vst [vmem:[#allocation2 + $0x74] sm:$0x1] %v8296
        %p8298 = scmp.eq.s32.totalorder %s27, 0
        // Predicated region
        $region53: #{tpu_custom_call.1} parent=47 // pred_check
          %p8299 = pneg %p8298
        $region54: #{tpu_custom_call.1} parent=47 // pred_check_branch
          %8301 = sbr.rel (%p8299) target = $region56
        $region55: #{tpu_custom_call.1} parent=47 // pred_region
          %8302 = vst [vmem:[#allocation2] sm:$0xf] 0
          %8303 = vst [vmem:[#allocation2 + $0x4] sm:$0xf] 0
          %8304 = vst [vmem:[#allocation2 + $0x8] sm:$0x1] 0
        $region56: #{tpu_custom_call.1} parent=47 // pred_fallthru
          _
        %p8305 = scmp.eq.s32.totalorder %s27, 1
        // Predicated region
        $region57: #{tpu_custom_call.1} parent=47 // pred_check
          %p8306 = pneg %p8305
        $region58: #{tpu_custom_call.1} parent=47 // pred_check_branch
          %8308 = sbr.rel (%p8306) target = $region60
        $region59: #{tpu_custom_call.1} parent=47 // pred_region
          %s8309 = scalar_lea.vmem [#allocation2], 108
          %8310 = vst [vmem:[%s8309] sm:$0xf] 0
          %8311 = vst [vmem:[%s8309 + $0x4] sm:$0xf] 0
          %8312 = vst [vmem:[%s8309 + $0x8] sm:$0x1] 0
        $region60: #{tpu_custom_call.1} parent=47 // pred_fallthru
          _
        %v8313 = vld [vmem:[#allocation2] sm:$0xf]
        %v8314 = vld [vmem:[#allocation2 + $0x4] sm:$0xf]
        %v8315 = vld [vmem:[#allocation2 + $0x8] sm:$0x1]
        %v8316 = vld [vmem:[#allocation2 + $0xc] sm:$0xf]
        %v8317 = vld [vmem:[#allocation2 + $0x10] sm:$0xf]
        %v8318 = vld [vmem:[#allocation2 + $0x14] sm:$0x1]
        %v8319 = vld [vmem:[#allocation2 + $0x18] sm:$0xf]
        %v8320 = vld [vmem:[#allocation2 + $0x1c] sm:$0xf]
        %v8321 = vld [vmem:[#allocation2 + $0x20] sm:$0x1]
        %v8322 = vld [vmem:[#allocation2 + $0x24] sm:$0xf]
        %v8323 = vld [vmem:[#allocation2 + $0x28] sm:$0xf]
        %v8324 = vld [vmem:[#allocation2 + $0x2c] sm:$0x1]
        %v8325 = vld [vmem:[#allocation2 + $0x30] sm:$0xf]
        %v8326 = vld [vmem:[#allocation2 + $0x34] sm:$0xf]
        %v8327 = vld [vmem:[#allocation2 + $0x38] sm:$0x1]
        %v8328 = vld [vmem:[#allocation2 + $0x3c] sm:$0xf]
        %v8329 = vld [vmem:[#allocation2 + $0x40] sm:$0xf]
        %v8330 = vld [vmem:[#allocation2 + $0x44] sm:$0x1]
        %v8331 = vld [vmem:[#allocation2 + $0x48] sm:$0xf]
        %v8332 = vld [vmem:[#allocation2 + $0x4c] sm:$0xf]
        %v8333 = vld [vmem:[#allocation2 + $0x50] sm:$0x1]
        %v8334 = vld [vmem:[#allocation2 + $0x54] sm:$0xf]
        %v8335 = vld [vmem:[#allocation2 + $0x58] sm:$0xf]
        %v8336 = vld [vmem:[#allocation2 + $0x5c] sm:$0x1]
        %v8337 = vld [vmem:[#allocation2 + $0x60] sm:$0xf]
        %v8338 = vld [vmem:[#allocation2 + $0x64] sm:$0xf]
        %v8339 = vld [vmem:[#allocation2 + $0x68] sm:$0x1]
        %v8340 = vld [vmem:[#allocation2 + $0x6c] sm:$0xf]
        %v8341 = vld [vmem:[#allocation2 + $0x70] sm:$0xf]
        %v8342 = vld [vmem:[#allocation2 + $0x74] sm:$0x1]
        %v8363 = vunpack.c.l.b16 %v8313
        %v8364 = vunpack.c.l.b16 %v8314
        %v8365 = vunpack.c.l.b16 %v8316
        %v8366 = vunpack.c.l.b16 %v8317
        %v8367 = vunpack.c.l.b16 %v8319
        %v8368 = vunpack.c.l.b16 %v8320
        %v8369 = vunpack.c.l.b16 %v8322
        %v8370 = vunpack.c.l.b16 %v8323
        %v8371 = vunpack.c.l.b16 %v8325
        %v8372 = vunpack.c.l.b16 %v8326
        %v8373 = vunpack.c.l.b16 %v8328
        %v8374 = vunpack.c.l.b16 %v8329
        %v8375 = vunpack.c.l.b16 %v8331
        %v8376 = vunpack.c.l.b16 %v8332
        %v8377 = vunpack.c.l.b16 %v8334
        %v8378 = vunpack.c.l.b16 %v8335
        %v8379 = vunpack.c.l.b16 %v8337
        %v8380 = vunpack.c.l.b16 %v8338
        %v8381 = vunpack.c.l.b16 %v8340
        %v8382 = vunpack.c.l.b16 %v8341
        %v8383 = vpack.c.b16 %v8364, %v8363
        %v8384 = vpack.c.b16 %v8366, %v8365
        %v8385 = vpack.c.b16 %v8368, %v8367
        %v8386 = vpack.c.b16 %v8370, %v8369
        %v8387 = vpack.c.b16 %v8372, %v8371
        %v8388 = vpack.c.b16 %v8374, %v8373
        %v8389 = vpack.c.b16 %v8376, %v8375
        %v8390 = vpack.c.b16 %v8378, %v8377
        %v8391 = vpack.c.b16 %v8380, %v8379
        %v8392 = vpack.c.b16 %v8382, %v8381
        %v8413 = vunpack.c.l.b16 %v8315
        %v8414 = vunpack.c.l.b16 %v8318
        %v8415 = vunpack.c.l.b16 %v8321
        %v8416 = vunpack.c.l.b16 %v8324
        %v8417 = vunpack.c.l.b16 %v8327
        %v8418 = vunpack.c.l.b16 %v8330
        %v8419 = vunpack.c.l.b16 %v8333
        %v8420 = vunpack.c.l.b16 %v8336
        %v8421 = vunpack.c.l.b16 %v8339
        %v8422 = vunpack.c.l.b16 %v8342
        %v8423 = vpack.c.b16 %v8413, %v8413
        %v8424 = vpack.c.b16 %v8414, %v8414
        %v8425 = vpack.c.b16 %v8415, %v8415
        %v8426 = vpack.c.b16 %v8416, %v8416
        %v8427 = vpack.c.b16 %v8417, %v8417
        %v8428 = vpack.c.b16 %v8418, %v8418
        %v8429 = vpack.c.b16 %v8419, %v8419
        %v8430 = vpack.c.b16 %v8420, %v8420
        %v8431 = vpack.c.b16 %v8421, %v8421
        %v8432 = vpack.c.b16 %v8422, %v8422
        %vm8433 = vsmask.f32 7424
        %v8435 = vshrl.u32 %v8383, 16
        %v8437 = vshll.u32 %v8383, 16
        %v8439 = vrot.slane %v8437, 1
        %v8440 = vor.u32 %v8435, %v8439
        %v8442 = vshll.u32 %v8423, 16
        %v8444 = vrot.slane %v8442, 1
        %v8445 = vsel %vm8433, %v8440, %v8444
        %v8447 = vshrl.u32 %v8384, 16
        %v8449 = vshll.u32 %v8384, 16
        %v8451 = vrot.slane %v8449, 1
        %v8452 = vor.u32 %v8447, %v8451
        %v8454 = vshll.u32 %v8424, 16
        %v8456 = vrot.slane %v8454, 1
        %v8457 = vsel %vm8433, %v8452, %v8456
        %v8459 = vshrl.u32 %v8385, 16
        %v8461 = vshll.u32 %v8385, 16
        %v8463 = vrot.slane %v8461, 1
        %v8464 = vor.u32 %v8459, %v8463
        %v8466 = vshll.u32 %v8425, 16
        %v8468 = vrot.slane %v8466, 1
        %v8469 = vsel %vm8433, %v8464, %v8468
        %v8471 = vshrl.u32 %v8386, 16
        %v8473 = vshll.u32 %v8386, 16
        %v8475 = vrot.slane %v8473, 1
        %v8476 = vor.u32 %v8471, %v8475
        %v8478 = vshll.u32 %v8426, 16
        %v8480 = vrot.slane %v8478, 1
        %v8481 = vsel %vm8433, %v8476, %v8480
        %v8483 = vshrl.u32 %v8387, 16
        %v8485 = vshll.u32 %v8387, 16
        %v8487 = vrot.slane %v8485, 1
        %v8488 = vor.u32 %v8483, %v8487
        %v8490 = vshll.u32 %v8427, 16
        %v8492 = vrot.slane %v8490, 1
        %v8493 = vsel %vm8433, %v8488, %v8492
        %v8495 = vshrl.u32 %v8388, 16
        %v8497 = vshll.u32 %v8388, 16
        %v8499 = vrot.slane %v8497, 1
        %v8500 = vor.u32 %v8495, %v8499
        %v8502 = vshll.u32 %v8428, 16
        %v8504 = vrot.slane %v8502, 1
        %v8505 = vsel %vm8433, %v8500, %v8504
        %v8507 = vshrl.u32 %v8389, 16
        %v8509 = vshll.u32 %v8389, 16
        %v8511 = vrot.slane %v8509, 1
        %v8512 = vor.u32 %v8507, %v8511
        %v8514 = vshll.u32 %v8429, 16
        %v8516 = vrot.slane %v8514, 1
        %v8517 = vsel %vm8433, %v8512, %v8516
        %v8519 = vshrl.u32 %v8390, 16
        %v8521 = vshll.u32 %v8390, 16
        %v8523 = vrot.slane %v8521, 1
        %v8524 = vor.u32 %v8519, %v8523
        %v8526 = vshll.u32 %v8430, 16
        %v8528 = vrot.slane %v8526, 1
        %v8529 = vsel %vm8433, %v8524, %v8528
        %v8531 = vshrl.u32 %v8391, 16
        %v8533 = vshll.u32 %v8391, 16
        %v8535 = vrot.slane %v8533, 1
        %v8536 = vor.u32 %v8531, %v8535
        %v8538 = vshll.u32 %v8431, 16
        %v8540 = vrot.slane %v8538, 1
        %v8541 = vsel %vm8433, %v8536, %v8540
        %v8543 = vshrl.u32 %v8392, 16
        %v8545 = vshll.u32 %v8392, 16
        %v8547 = vrot.slane %v8545, 1
        %v8548 = vor.u32 %v8543, %v8547
        %v8550 = vshll.u32 %v8432, 16
        %v8552 = vrot.slane %v8550, 1
        %v8553 = vsel %vm8433, %v8548, %v8552
        %vm8564 = vcmask 1046528
        %v8565 = vrot.slane %v8383, 1
        %v8566 = vrot.slane %v8423, 1
        %v8567 = vsel %vm8564, %v8565, %v8566
        %v8568 = vrot.slane %v8384, 1
        %v8569 = vrot.slane %v8424, 1
        %v8570 = vsel %vm8564, %v8568, %v8569
        %v8571 = vrot.slane %v8385, 1
        %v8572 = vrot.slane %v8425, 1
        %v8573 = vsel %vm8564, %v8571, %v8572
        %v8574 = vrot.slane %v8386, 1
        %v8575 = vrot.slane %v8426, 1
        %v8576 = vsel %vm8564, %v8574, %v8575
        %v8577 = vrot.slane %v8387, 1
        %v8578 = vrot.slane %v8427, 1
        %v8579 = vsel %vm8564, %v8577, %v8578
        %v8580 = vrot.slane %v8388, 1
        %v8581 = vrot.slane %v8428, 1
        %v8582 = vsel %vm8564, %v8580, %v8581
        %v8583 = vrot.slane %v8389, 1
        %v8584 = vrot.slane %v8429, 1
        %v8585 = vsel %vm8564, %v8583, %v8584
        %v8586 = vrot.slane %v8390, 1
        %v8587 = vrot.slane %v8430, 1
        %v8588 = vsel %vm8564, %v8586, %v8587
        %v8589 = vrot.slane %v8391, 1
        %v8590 = vrot.slane %v8431, 1
        %v8591 = vsel %vm8564, %v8589, %v8590
        %v8592 = vrot.slane %v8392, 1
        %v8593 = vrot.slane %v8432, 1
        %v8594 = vsel %vm8564, %v8592, %v8593
        %v8605 = vld [vmem:[#allocation3] sm:$0xf]
        %v8606 = vld [vmem:[#allocation3 + $0x4] sm:$0xf]
        %v8607 = vld [vmem:[#allocation3 + $0x8] sm:$0xf]
        %v8608 = vld [vmem:[#allocation3 + $0xc] sm:$0xf]
        %v8609 = vld [vmem:[#allocation3 + $0x10] sm:$0xf]
        %v8610 = vld [vmem:[#allocation3 + $0x14] sm:$0xf]
        %v8611 = vld [vmem:[#allocation3 + $0x18] sm:$0xf]
        %v8612 = vld [vmem:[#allocation3 + $0x1c] sm:$0xf]
        %v8613 = vld [vmem:[#allocation3 + $0x20] sm:$0xf]
        %v8614 = vld [vmem:[#allocation3 + $0x24] sm:$0xf]
        %v8615 = vld [vmem:[#allocation3 + $0x28] sm:$0xf]
        %v8616 = vld [vmem:[#allocation3 + $0x2c] sm:$0xf]
        %v8617 = vld [vmem:[#allocation3 + $0x30] sm:$0xf]
        %v8618 = vld [vmem:[#allocation3 + $0x34] sm:$0xf]
        %v8619 = vld [vmem:[#allocation3 + $0x38] sm:$0xf]
        %v8620 = vld [vmem:[#allocation3 + $0x3c] sm:$0xf]
        %v8621 = vld [vmem:[#allocation3 + $0x40] sm:$0xf]
        %v8622 = vld [vmem:[#allocation3 + $0x44] sm:$0xf]
        %v8623 = vld [vmem:[#allocation3 + $0x48] sm:$0xf]
        %v8624 = vld [vmem:[#allocation3 + $0x4c] sm:$0xf]
        %v8625 = vld [vmem:[#allocation3 + $0x50] sm:$0xf]
        %v8626 = vld [vmem:[#allocation3 + $0x54] sm:$0xf]
        %v8627 = vld [vmem:[#allocation3 + $0x58] sm:$0xf]
        %v8628 = vld [vmem:[#allocation3 + $0x5c] sm:$0xf]
        %v8629 = vld [vmem:[#allocation3 + $0x60] sm:$0xf]
        %v8630 = vld [vmem:[#allocation3 + $0x64] sm:$0xf]
        %v8631 = vld [vmem:[#allocation3 + $0x68] sm:$0xf]
        %v8632 = vld [vmem:[#allocation3 + $0x6c] sm:$0xf]
        %v8633 = vld [vmem:[#allocation3 + $0x70] sm:$0xf]
        %v8634 = vld [vmem:[#allocation3 + $0x74] sm:$0xf]
        %v8635 = vld [vmem:[#allocation3 + $0x78] sm:$0xf]
        %v8636 = vld [vmem:[#allocation3 + $0x7c] sm:$0xf]
        %v8637 = vld [vmem:[#allocation3 + $0x80] sm:$0xf]
        %v8638 = vld [vmem:[#allocation3 + $0x84] sm:$0xf]
        %v8639 = vld [vmem:[#allocation3 + $0x88] sm:$0xf]
        %v8640 = vld [vmem:[#allocation3 + $0x8c] sm:$0xf]
        %v8641 = vld [vmem:[#allocation3 + $0x90] sm:$0xf]
        %v8642 = vld [vmem:[#allocation3 + $0x94] sm:$0xf]
        %v8643 = vld [vmem:[#allocation3 + $0x98] sm:$0xf]
        %v8644 = vld [vmem:[#allocation3 + $0x9c] sm:$0xf]
        %v8645 = vld [vmem:[#allocation3 + $0xa0] sm:$0xf]
        %v8646 = vld [vmem:[#allocation3 + $0xa4] sm:$0xf]
        %v8647 = vld [vmem:[#allocation3 + $0xa8] sm:$0xf]
        %v8648 = vld [vmem:[#allocation3 + $0xac] sm:$0xf]
        %v8649 = vld [vmem:[#allocation3 + $0xb0] sm:$0xf]
        %v8650 = vld [vmem:[#allocation3 + $0xb4] sm:$0xf]
        %v8651 = vld [vmem:[#allocation3 + $0xb8] sm:$0xf]
        %v8652 = vld [vmem:[#allocation3 + $0xbc] sm:$0xf]
        %s8653 = scalar_lea.vmem [#allocation3], 192
        %v8654 = vld [vmem:[%s8653] sm:$0xf]
        %v8655 = vld [vmem:[%s8653 + $0x4] sm:$0xf]
        %v8656 = vld [vmem:[%s8653 + $0x8] sm:$0xf]
        %v8657 = vld [vmem:[%s8653 + $0xc] sm:$0xf]
        %v8658 = vld [vmem:[%s8653 + $0x10] sm:$0xf]
        %v8659 = vld [vmem:[%s8653 + $0x14] sm:$0xf]
        %v8660 = vld [vmem:[%s8653 + $0x18] sm:$0xf]
        %v8661 = vld [vmem:[%s8653 + $0x1c] sm:$0xf]
        %v8662 = vld [vmem:[%s8653 + $0x20] sm:$0xf]
        %v8663 = vld [vmem:[%s8653 + $0x24] sm:$0xf]
        %v8664 = vld [vmem:[%s8653 + $0x28] sm:$0xf]
        %v8665 = vld [vmem:[%s8653 + $0x2c] sm:$0xf]
        %v8666 = vld [vmem:[%s8653 + $0x30] sm:$0xf]
        %v8667 = vld [vmem:[%s8653 + $0x34] sm:$0xf]
        %v8668 = vld [vmem:[%s8653 + $0x38] sm:$0xf]
        %v8669 = vld [vmem:[%s8653 + $0x3c] sm:$0xf]
        %v8670 = vld [vmem:[%s8653 + $0x40] sm:$0xf]
        %v8671 = vld [vmem:[%s8653 + $0x44] sm:$0xf]
        %v8672 = vld [vmem:[%s8653 + $0x48] sm:$0xf]
        %v8673 = vld [vmem:[%s8653 + $0x4c] sm:$0xf]
        %v8674 = vld [vmem:[%s8653 + $0x50] sm:$0xf]
        %v8675 = vld [vmem:[%s8653 + $0x54] sm:$0xf]
        %v8676 = vld [vmem:[%s8653 + $0x58] sm:$0xf]
        %v8677 = vld [vmem:[%s8653 + $0x5c] sm:$0xf]
        %v8678 = vld [vmem:[%s8653 + $0x60] sm:$0xf]
        %v8679 = vld [vmem:[%s8653 + $0x64] sm:$0xf]
        %v8680 = vld [vmem:[%s8653 + $0x68] sm:$0xf]
        %v8681 = vld [vmem:[%s8653 + $0x6c] sm:$0xf]
        %v8682 = vld [vmem:[%s8653 + $0x70] sm:$0xf]
        %v8683 = vld [vmem:[%s8653 + $0x74] sm:$0xf]
        %v8684 = vld [vmem:[%s8653 + $0x78] sm:$0xf]
        %v8685 = vld [vmem:[%s8653 + $0x7c] sm:$0xf]
        %v8686 = vld [vmem:[%s8653 + $0x80] sm:$0xf]
        %v8687 = vld [vmem:[%s8653 + $0x84] sm:$0xf]
        %v8688 = vld [vmem:[%s8653 + $0x88] sm:$0xf]
        %v8689 = vld [vmem:[%s8653 + $0x8c] sm:$0xf]
        %v8690 = vld [vmem:[%s8653 + $0x90] sm:$0xf]
        %v8691 = vld [vmem:[%s8653 + $0x94] sm:$0xf]
        %v8692 = vld [vmem:[%s8653 + $0x98] sm:$0xf]
        %v8693 = vld [vmem:[%s8653 + $0x9c] sm:$0xf]
        %v8694 = vld [vmem:[%s8653 + $0xa0] sm:$0xf]
        %v8695 = vld [vmem:[%s8653 + $0xa4] sm:$0xf]
        %v8696 = vld [vmem:[%s8653 + $0xa8] sm:$0xf]
        %v8697 = vld [vmem:[%s8653 + $0xac] sm:$0xf]
        %v8698 = vld [vmem:[%s8653 + $0xb0] sm:$0xf]
        %v8699 = vld [vmem:[%s8653 + $0xb4] sm:$0xf]
        %v8700 = vld [vmem:[%s8653 + $0xb8] sm:$0xf]
        %v8701 = vld [vmem:[%s8653 + $0xbc] sm:$0xf]
        %v8750 = vunpack.c.l.b16 %v8654
        %v8751 = vunpack.c.l.b16 %v8655
        %v8752 = vunpack.c.l.b16 %v8656
        %v8753 = vunpack.c.l.b16 %v8657
        %v8754 = vunpack.c.l.b16 %v8658
        %v8755 = vunpack.c.l.b16 %v8659
        %v8756 = vunpack.c.l.b16 %v8660
        %v8757 = vunpack.c.l.b16 %v8661
        %v8758 = vunpack.c.l.b16 %v8662
        %v8759 = vunpack.c.l.b16 %v8663
        %v8760 = vunpack.c.l.b16 %v8664
        %v8761 = vunpack.c.l.b16 %v8665
        %v8762 = vunpack.c.l.b16 %v8666
        %v8763 = vunpack.c.l.b16 %v8667
        %v8764 = vunpack.c.l.b16 %v8668
        %v8765 = vunpack.c.l.b16 %v8669
        %v8766 = vunpack.c.l.b16 %v8670
        %v8767 = vunpack.c.l.b16 %v8671
        %v8768 = vunpack.c.l.b16 %v8672
        %v8769 = vunpack.c.l.b16 %v8673
        %v8770 = vunpack.c.l.b16 %v8674
        %v8771 = vunpack.c.l.b16 %v8675
        %v8772 = vunpack.c.l.b16 %v8676
        %v8773 = vunpack.c.l.b16 %v8677
        %v8774 = vunpack.c.l.b16 %v8678
        %v8775 = vunpack.c.l.b16 %v8679
        %v8776 = vunpack.c.l.b16 %v8680
        %v8777 = vunpack.c.l.b16 %v8681
        %v8778 = vunpack.c.l.b16 %v8682
        %v8779 = vunpack.c.l.b16 %v8683
        %v8780 = vunpack.c.l.b16 %v8684
        %v8781 = vunpack.c.l.b16 %v8685
        %v8782 = vunpack.c.l.b16 %v8686
        %v8783 = vunpack.c.l.b16 %v8687
        %v8784 = vunpack.c.l.b16 %v8688
        %v8785 = vunpack.c.l.b16 %v8689
        %v8786 = vunpack.c.l.b16 %v8690
        %v8787 = vunpack.c.l.b16 %v8691
        %v8788 = vunpack.c.l.b16 %v8692
        %v8789 = vunpack.c.l.b16 %v8693
        %v8790 = vunpack.c.l.b16 %v8694
        %v8791 = vunpack.c.l.b16 %v8695
        %v8792 = vunpack.c.l.b16 %v8696
        %v8793 = vunpack.c.l.b16 %v8697
        %v8794 = vunpack.c.l.b16 %v8698
        %v8795 = vunpack.c.l.b16 %v8699
        %v8796 = vunpack.c.l.b16 %v8700
        %v8797 = vunpack.c.l.b16 %v8701
        %v8798 = vpack.c.b16 %v8751, %v8750
        %v8799 = vpack.c.b16 %v8753, %v8752
        %v8800 = vpack.c.b16 %v8755, %v8754
        %v8801 = vpack.c.b16 %v8757, %v8756
        %v8802 = vpack.c.b16 %v8759, %v8758
        %v8803 = vpack.c.b16 %v8761, %v8760
        %v8804 = vpack.c.b16 %v8763, %v8762
        %v8805 = vpack.c.b16 %v8765, %v8764
        %v8806 = vpack.c.b16 %v8767, %v8766
        %v8807 = vpack.c.b16 %v8769, %v8768
        %v8808 = vpack.c.b16 %v8771, %v8770
        %v8809 = vpack.c.b16 %v8773, %v8772
        %v8810 = vpack.c.b16 %v8775, %v8774
        %v8811 = vpack.c.b16 %v8777, %v8776
        %v8812 = vpack.c.b16 %v8779, %v8778
        %v8813 = vpack.c.b16 %v8781, %v8780
        %v8814 = vpack.c.b16 %v8783, %v8782
        %v8815 = vpack.c.b16 %v8785, %v8784
        %v8816 = vpack.c.b16 %v8787, %v8786
        %v8817 = vpack.c.b16 %v8789, %v8788
        %v8818 = vpack.c.b16 %v8791, %v8790
        %v8819 = vpack.c.b16 %v8793, %v8792
        %v8820 = vpack.c.b16 %v8795, %v8794
        %v8821 = vpack.c.b16 %v8797, %v8796
        %8846 = vmatprep.subr.bf16.mxu0 0
        %8847 = vmatpush1.bf16.msra.mxu0 %v8805
        %8848 = vmatprep.subr.bf16.mxu0 0
        %8849 = vmatpush1.bf16.msra.mxu0 %v8804
        %8850 = vmatprep.subr.bf16.mxu0 0
        %8851 = vmatpush1.bf16.msra.mxu0 %v8803
        %8852 = vmatprep.subr.bf16.mxu0 0
        %8853 = vmatpush1.bf16.msra.mxu0 %v8802
        %8854 = vmatprep.subr.bf16.mxu0 0
        %8855 = vmatpush1.bf16.msra.mxu0 %v8801
        %8856 = vmatprep.subr.bf16.mxu0 0
        %8857 = vmatpush1.bf16.msra.mxu0 %v8800
        %8858 = vmatprep.subr.bf16.mxu0 0
        %8859 = vmatpush1.bf16.msra.mxu0 %v8799
        %8860 = vmatprep.subr.bf16.mxu0 0
        %8861 = vmatpush1.bf16.msra.mxu0 %v8798
        %8862 = vmatprep.subr.bf16.mxu0 0
        %8863 = vmatpush2.bf16.msra.mxu0 %v8813
        %8864 = vmatprep.subr.bf16.mxu0 0
        %8865 = vmatpush2.bf16.msra.mxu0 %v8812
        %8866 = vmatprep.subr.bf16.mxu0 0
        %8867 = vmatpush2.bf16.msra.mxu0 %v8811
        %8868 = vmatprep.subr.bf16.mxu0 0
        %8869 = vmatpush2.bf16.msra.mxu0 %v8810
        %8870 = vmatprep.subr.bf16.mxu0 0
        %8871 = vmatpush2.bf16.msra.mxu0 %v8809
        %8872 = vmatprep.subr.bf16.mxu0 0
        %8873 = vmatpush2.bf16.msra.mxu0 %v8808
        %8874 = vmatprep.subr.bf16.mxu0 0
        %8875 = vmatpush2.bf16.msra.mxu0 %v8807
        %8876 = vmatprep.subr.bf16.mxu0 0
        %8877 = vmatpush2.bf16.msra.mxu0 %v8806
        %8878 = vmatprep.mubr.bf16.mxu0 %v8457
        %8879 = vmatmul.mubr.bf16.gmra.mxu0 %v8384
        %v8880 = vpop.f32.mrf.mxu0
        %v8881 = vadd.f32 0.0, %v8880
        %v8882 = vpop.f32.mrf.mxu0
        %v8883 = vpop.f32.mrf.mxu0
        %v8884 = vadd.f32 0.0, %v8883
        %v8885 = vpop.f32.mrf.mxu0
        %8886 = vmatprep.mubr.bf16.mxu0 %v8469
        %8887 = vmatmul.mubr.bf16.gmra.mxu0 %v8385
        %v8888 = vpop.f32.mrf.mxu0
        %v8889 = vadd.f32 0.0, %v8888
        %v8890 = vpop.f32.mrf.mxu0
        %v8891 = vpop.f32.mrf.mxu0
        %v8892 = vadd.f32 0.0, %v8891
        %v8893 = vpop.f32.mrf.mxu0
        %8894 = vmatprep.mubr.bf16.mxu0 %v8481
        %8895 = vmatmul.mubr.bf16.gmra.mxu0 %v8386
        %v8896 = vpop.f32.mrf.mxu0
        %v8897 = vadd.f32 0.0, %v8896
        %v8898 = vpop.f32.mrf.mxu0
        %v8899 = vpop.f32.mrf.mxu0
        %v8900 = vadd.f32 0.0, %v8899
        %v8901 = vpop.f32.mrf.mxu0
        %8902 = vmatprep.mubr.bf16.mxu0 %v8493
        %8903 = vmatmul.mubr.bf16.gmra.mxu0 %v8387
        %v8904 = vpop.f32.mrf.mxu0
        %v8905 = vadd.f32 0.0, %v8904
        %v8906 = vpop.f32.mrf.mxu0
        %v8907 = vpop.f32.mrf.mxu0
        %v8908 = vadd.f32 0.0, %v8907
        %v8909 = vpop.f32.mrf.mxu0
        %8910 = vmatprep.mubr.bf16.mxu0 %v8505
        %8911 = vmatmul.mubr.bf16.gmra.mxu0 %v8388
        %v8912 = vpop.f32.mrf.mxu0
        %v8913 = vadd.f32 0.0, %v8912
        %v8914 = vpop.f32.mrf.mxu0
        %v8915 = vpop.f32.mrf.mxu0
        %v8916 = vadd.f32 0.0, %v8915
        %v8917 = vpop.f32.mrf.mxu0
        %8918 = vmatprep.mubr.bf16.mxu0 %v8517
        %8919 = vmatmul.mubr.bf16.gmra.mxu0 %v8389
        %v8920 = vpop.f32.mrf.mxu0
        %v8921 = vadd.f32 0.0, %v8920
        %v8922 = vpop.f32.mrf.mxu0
        %v8923 = vpop.f32.mrf.mxu0
        %v8924 = vadd.f32 0.0, %v8923
        %v8925 = vpop.f32.mrf.mxu0
        %8926 = vmatprep.mubr.bf16.mxu0 %v8529
        %8927 = vmatmul.mubr.bf16.gmra.mxu0 %v8390
        %v8928 = vpop.f32.mrf.mxu0
        %v8929 = vadd.f32 0.0, %v8928
        %v8930 = vpop.f32.mrf.mxu0
        %v8931 = vpop.f32.mrf.mxu0
        %v8932 = vadd.f32 0.0, %v8931
        %v8933 = vpop.f32.mrf.mxu0
        %8934 = vmatprep.mubr.bf16.mxu0 %v8541
        %8935 = vmatmul.mubr.bf16.gmra.mxu0 %v8391
        %v8936 = vpop.f32.mrf.mxu0
        %v8937 = vadd.f32 0.0, %v8936
        %v8938 = vpop.f32.mrf.mxu0
        %v8939 = vpop.f32.mrf.mxu0
        %v8940 = vadd.f32 0.0, %v8939
        %v8941 = vpop.f32.mrf.mxu0
        %8942 = vdwg.mxu0
        %8943 = vmatprep.subr.bf16.mxu0 0
        %8944 = vmatpush1.bf16.msra.mxu0 %v8821
        %8945 = vmatprep.subr.bf16.mxu0 0
        %8946 = vmatpush1.bf16.msra.mxu0 %v8820
        %8947 = vmatprep.subr.bf16.mxu0 0
        %8948 = vmatpush1.bf16.msra.mxu0 %v8819
        %8949 = vmatprep.subr.bf16.mxu0 0
        %8950 = vmatpush1.bf16.msra.mxu0 %v8818
        %8951 = vmatprep.subr.bf16.mxu0 0
        %8952 = vmatpush1.bf16.msra.mxu0 %v8817
        %8953 = vmatprep.subr.bf16.mxu0 0
        %8954 = vmatpush1.bf16.msra.mxu0 %v8816
        %8955 = vmatprep.subr.bf16.mxu0 0
        %8956 = vmatpush1.bf16.msra.mxu0 %v8815
        %8957 = vmatprep.subr.bf16.mxu0 0
        %8958 = vmatpush1.bf16.msra.mxu0 %v8814
        %8959 = vmatprep.subr.bf16.mxu0 0
        %8960 = vmatpush2.bf16.msra.mxu0 0
        %8961 = vmatprep.subr.bf16.mxu0 0
        %8962 = vmatpush2.bf16.msra.mxu0 0
        %8963 = vmatprep.subr.bf16.mxu0 0
        %8964 = vmatpush2.bf16.msra.mxu0 0
        %8965 = vmatprep.subr.bf16.mxu0 0
        %8966 = vmatpush2.bf16.msra.mxu0 0
        %8967 = vmatprep.subr.bf16.mxu0 0
        %8968 = vmatpush2.bf16.msra.mxu0 0
        %8969 = vmatprep.subr.bf16.mxu0 0
        %8970 = vmatpush2.bf16.msra.mxu0 0
        %8971 = vmatprep.subr.bf16.mxu0 0
        %8972 = vmatpush2.bf16.msra.mxu0 0
        %8973 = vmatprep.subr.bf16.mxu0 0
        %8974 = vmatpush2.bf16.msra.mxu0 0
        %8975 = vmatprep.mubr.bf16.mxu0 0
        %8976 = vmatmul.mubr.bf16.gmra.mxu0 %v8570
        %v8977 = vpop.f32.mrf.mxu0
        %v8978 = vadd.f32 %v8881, %v8977
        %v8979 = vpop.f32.mrf.mxu0
        %v8980 = vpop.f32.mrf.mxu0
        %v8981 = vadd.f32 %v8884, %v8980
        %v8982 = vpop.f32.mrf.mxu0
        %8983 = vmatprep.mubr.bf16.mxu0 0
        %8984 = vmatmul.mubr.bf16.gmra.mxu0 %v8573
        %v8985 = vpop.f32.mrf.mxu0
        %v8986 = vadd.f32 %v8889, %v8985
        %v8987 = vpop.f32.mrf.mxu0
        %v8988 = vpop.f32.mrf.mxu0
        %v8989 = vadd.f32 %v8892, %v8988
        %v8990 = vpop.f32.mrf.mxu0
        %8991 = vmatprep.mubr.bf16.mxu0 0
        %8992 = vmatmul.mubr.bf16.gmra.mxu0 %v8576
        %v8993 = vpop.f32.mrf.mxu0
        %v8994 = vadd.f32 %v8897, %v8993
        %v8995 = vpop.f32.mrf.mxu0
        %v8996 = vpop.f32.mrf.mxu0
        %v8997 = vadd.f32 %v8900, %v8996
        %v8998 = vpop.f32.mrf.mxu0
        %8999 = vmatprep.mubr.bf16.mxu0 0
        %9000 = vmatmul.mubr.bf16.gmra.mxu0 %v8579
        %v9001 = vpop.f32.mrf.mxu0
        %v9002 = vadd.f32 %v8905, %v9001
        %v9003 = vpop.f32.mrf.mxu0
        %v9004 = vpop.f32.mrf.mxu0
        %v9005 = vadd.f32 %v8908, %v9004
        %v9006 = vpop.f32.mrf.mxu0
        %9007 = vmatprep.mubr.bf16.mxu0 0
        %9008 = vmatmul.mubr.bf16.gmra.mxu0 %v8582
        %v9009 = vpop.f32.mrf.mxu0
        %v9010 = vadd.f32 %v8913, %v9009
        %v9011 = vpop.f32.mrf.mxu0
        %v9012 = vpop.f32.mrf.mxu0
        %v9013 = vadd.f32 %v8916, %v9012
        %v9014 = vpop.f32.mrf.mxu0
        %9015 = vmatprep.mubr.bf16.mxu0 0
        %9016 = vmatmul.mubr.bf16.gmra.mxu0 %v8585
        %v9017 = vpop.f32.mrf.mxu0
        %v9018 = vadd.f32 %v8921, %v9017
        %v9019 = vpop.f32.mrf.mxu0
        %v9020 = vpop.f32.mrf.mxu0
        %v9021 = vadd.f32 %v8924, %v9020
        %v9022 = vpop.f32.mrf.mxu0
        %9023 = vmatprep.mubr.bf16.mxu0 0
        %9024 = vmatmul.mubr.bf16.gmra.mxu0 %v8588
        %v9025 = vpop.f32.mrf.mxu0
        %v9026 = vadd.f32 %v8929, %v9025
        %v9027 = vpop.f32.mrf.mxu0
        %v9028 = vpop.f32.mrf.mxu0
        %v9029 = vadd.f32 %v8932, %v9028
        %v9030 = vpop.f32.mrf.mxu0
        %9031 = vmatprep.mubr.bf16.mxu0 0
        %9032 = vmatmul.mubr.bf16.gmra.mxu0 %v8591
        %v9033 = vpop.f32.mrf.mxu0
        %v9034 = vadd.f32 %v8937, %v9033
        %v9035 = vpop.f32.mrf.mxu0
        %v9036 = vpop.f32.mrf.mxu0
        %v9037 = vadd.f32 %v8940, %v9036
        %v9038 = vpop.f32.mrf.mxu0
        %9039 = vdwg.mxu0
        %v9088 = vunpack.c.l.b16 %v8605
        %v9089 = vunpack.c.l.b16 %v8606
        %v9090 = vunpack.c.l.b16 %v8607
        %v9091 = vunpack.c.l.b16 %v8608
        %v9092 = vunpack.c.l.b16 %v8609
        %v9093 = vunpack.c.l.b16 %v8610
        %v9094 = vunpack.c.l.b16 %v8611
        %v9095 = vunpack.c.l.b16 %v8612
        %v9096 = vunpack.c.l.b16 %v8613
        %v9097 = vunpack.c.l.b16 %v8614
        %v9098 = vunpack.c.l.b16 %v8615
        %v9099 = vunpack.c.l.b16 %v8616
        %v9100 = vunpack.c.l.b16 %v8617
        %v9101 = vunpack.c.l.b16 %v8618
        %v9102 = vunpack.c.l.b16 %v8619
        %v9103 = vunpack.c.l.b16 %v8620
        %v9104 = vunpack.c.l.b16 %v8621
        %v9105 = vunpack.c.l.b16 %v8622
        %v9106 = vunpack.c.l.b16 %v8623
        %v9107 = vunpack.c.l.b16 %v8624
        %v9108 = vunpack.c.l.b16 %v8625
        %v9109 = vunpack.c.l.b16 %v8626
        %v9110 = vunpack.c.l.b16 %v8627
        %v9111 = vunpack.c.l.b16 %v8628
        %v9112 = vunpack.c.l.b16 %v8629
        %v9113 = vunpack.c.l.b16 %v8630
        %v9114 = vunpack.c.l.b16 %v8631
        %v9115 = vunpack.c.l.b16 %v8632
        %v9116 = vunpack.c.l.b16 %v8633
        %v9117 = vunpack.c.l.b16 %v8634
        %v9118 = vunpack.c.l.b16 %v8635
        %v9119 = vunpack.c.l.b16 %v8636
        %v9120 = vunpack.c.l.b16 %v8637
        %v9121 = vunpack.c.l.b16 %v8638
        %v9122 = vunpack.c.l.b16 %v8639
        %v9123 = vunpack.c.l.b16 %v8640
        %v9124 = vunpack.c.l.b16 %v8641
        %v9125 = vunpack.c.l.b16 %v8642
        %v9126 = vunpack.c.l.b16 %v8643
        %v9127 = vunpack.c.l.b16 %v8644
        %v9128 = vunpack.c.l.b16 %v8645
        %v9129 = vunpack.c.l.b16 %v8646
        %v9130 = vunpack.c.l.b16 %v8647
        %v9131 = vunpack.c.l.b16 %v8648
        %v9132 = vunpack.c.l.b16 %v8649
        %v9133 = vunpack.c.l.b16 %v8650
        %v9134 = vunpack.c.l.b16 %v8651
        %v9135 = vunpack.c.l.b16 %v8652
        %v9136 = vpack.c.b16 %v9089, %v9088
        %v9137 = vpack.c.b16 %v9091, %v9090
        %v9138 = vpack.c.b16 %v9093, %v9092
        %v9139 = vpack.c.b16 %v9095, %v9094
        %v9140 = vpack.c.b16 %v9097, %v9096
        %v9141 = vpack.c.b16 %v9099, %v9098
        %v9142 = vpack.c.b16 %v9101, %v9100
        %v9143 = vpack.c.b16 %v9103, %v9102
        %v9144 = vpack.c.b16 %v9105, %v9104
        %v9145 = vpack.c.b16 %v9107, %v9106
        %v9146 = vpack.c.b16 %v9109, %v9108
        %v9147 = vpack.c.b16 %v9111, %v9110
        %v9148 = vpack.c.b16 %v9113, %v9112
        %v9149 = vpack.c.b16 %v9115, %v9114
        %v9150 = vpack.c.b16 %v9117, %v9116
        %v9151 = vpack.c.b16 %v9119, %v9118
        %v9152 = vpack.c.b16 %v9121, %v9120
        %v9153 = vpack.c.b16 %v9123, %v9122
        %v9154 = vpack.c.b16 %v9125, %v9124
        %v9155 = vpack.c.b16 %v9127, %v9126
        %v9156 = vpack.c.b16 %v9129, %v9128
        %v9157 = vpack.c.b16 %v9131, %v9130
        %v9158 = vpack.c.b16 %v9133, %v9132
        %v9159 = vpack.c.b16 %v9135, %v9134
        %9184 = vmatprep.subr.bf16.mxu0 0
        %9185 = vmatpush1.bf16.msra.mxu0 %v9143
        %9186 = vmatprep.subr.bf16.mxu0 0
        %9187 = vmatpush1.bf16.msra.mxu0 %v9142
        %9188 = vmatprep.subr.bf16.mxu0 0
        %9189 = vmatpush1.bf16.msra.mxu0 %v9141
        %9190 = vmatprep.subr.bf16.mxu0 0
        %9191 = vmatpush1.bf16.msra.mxu0 %v9140
        %9192 = vmatprep.subr.bf16.mxu0 0
        %9193 = vmatpush1.bf16.msra.mxu0 %v9139
        %9194 = vmatprep.subr.bf16.mxu0 0
        %9195 = vmatpush1.bf16.msra.mxu0 %v9138
        %9196 = vmatprep.subr.bf16.mxu0 0
        %9197 = vmatpush1.bf16.msra.mxu0 %v9137
        %9198 = vmatprep.subr.bf16.mxu0 0
        %9199 = vmatpush1.bf16.msra.mxu0 %v9136
        %9200 = vmatprep.subr.bf16.mxu0 0
        %9201 = vmatpush2.bf16.msra.mxu0 %v9151
        %9202 = vmatprep.subr.bf16.mxu0 0
        %9203 = vmatpush2.bf16.msra.mxu0 %v9150
        %9204 = vmatprep.subr.bf16.mxu0 0
        %9205 = vmatpush2.bf16.msra.mxu0 %v9149
        %9206 = vmatprep.subr.bf16.mxu0 0
        %9207 = vmatpush2.bf16.msra.mxu0 %v9148
        %9208 = vmatprep.subr.bf16.mxu0 0
        %9209 = vmatpush2.bf16.msra.mxu0 %v9147
        %9210 = vmatprep.subr.bf16.mxu0 0
        %9211 = vmatpush2.bf16.msra.mxu0 %v9146
        %9212 = vmatprep.subr.bf16.mxu0 0
        %9213 = vmatpush2.bf16.msra.mxu0 %v9145
        %9214 = vmatprep.subr.bf16.mxu0 0
        %9215 = vmatpush2.bf16.msra.mxu0 %v9144
        %9216 = vmatprep.mubr.bf16.mxu0 %v8445
        %9217 = vmatmul.mubr.bf16.gmra.mxu0 %v8383
        %v9218 = vpop.f32.mrf.mxu0
        %v9219 = vadd.f32 %v8978, %v9218
        %v9220 = vpop.f32.mrf.mxu0
        %v9221 = vpop.f32.mrf.mxu0
        %v9222 = vadd.f32 %v8981, %v9221
        %v9223 = vpop.f32.mrf.mxu0
        %9224 = vmatprep.mubr.bf16.mxu0 %v8457
        %9225 = vmatmul.mubr.bf16.gmra.mxu0 %v8384
        %v9226 = vpop.f32.mrf.mxu0
        %v9227 = vadd.f32 %v8986, %v9226
        %v9228 = vpop.f32.mrf.mxu0
        %v9229 = vpop.f32.mrf.mxu0
        %v9230 = vadd.f32 %v8989, %v9229
        %v9231 = vpop.f32.mrf.mxu0
        %9232 = vmatprep.mubr.bf16.mxu0 %v8469
        %9233 = vmatmul.mubr.bf16.gmra.mxu0 %v8385
        %v9234 = vpop.f32.mrf.mxu0
        %v9235 = vadd.f32 %v8994, %v9234
        %v9236 = vpop.f32.mrf.mxu0
        %v9237 = vpop.f32.mrf.mxu0
        %v9238 = vadd.f32 %v8997, %v9237
        %v9239 = vpop.f32.mrf.mxu0
        %9240 = vmatprep.mubr.bf16.mxu0 %v8481
        %9241 = vmatmul.mubr.bf16.gmra.mxu0 %v8386
        %v9242 = vpop.f32.mrf.mxu0
        %v9243 = vadd.f32 %v9002, %v9242
        %v9244 = vpop.f32.mrf.mxu0
        %v9245 = vpop.f32.mrf.mxu0
        %v9246 = vadd.f32 %v9005, %v9245
        %v9247 = vpop.f32.mrf.mxu0
        %9248 = vmatprep.mubr.bf16.mxu0 %v8493
        %9249 = vmatmul.mubr.bf16.gmra.mxu0 %v8387
        %v9250 = vpop.f32.mrf.mxu0
        %v9251 = vadd.f32 %v9010, %v9250
        %v9252 = vpop.f32.mrf.mxu0
        %v9253 = vpop.f32.mrf.mxu0
        %v9254 = vadd.f32 %v9013, %v9253
        %v9255 = vpop.f32.mrf.mxu0
        %9256 = vmatprep.mubr.bf16.mxu0 %v8505
        %9257 = vmatmul.mubr.bf16.gmra.mxu0 %v8388
        %v9258 = vpop.f32.mrf.mxu0
        %v9259 = vadd.f32 %v9018, %v9258
        %v9260 = vpop.f32.mrf.mxu0
        %v9261 = vpop.f32.mrf.mxu0
        %v9262 = vadd.f32 %v9021, %v9261
        %v9263 = vpop.f32.mrf.mxu0
        %9264 = vmatprep.mubr.bf16.mxu0 %v8517
        %9265 = vmatmul.mubr.bf16.gmra.mxu0 %v8389
        %v9266 = vpop.f32.mrf.mxu0
        %v9267 = vadd.f32 %v9026, %v9266
        %v9268 = vpop.f32.mrf.mxu0
        %v9269 = vpop.f32.mrf.mxu0
        %v9270 = vadd.f32 %v9029, %v9269
        %v9271 = vpop.f32.mrf.mxu0
        %9272 = vmatprep.mubr.bf16.mxu0 %v8529
        %9273 = vmatmul.mubr.bf16.gmra.mxu0 %v8390
        %v9274 = vpop.f32.mrf.mxu0
        %v9275 = vadd.f32 %v9034, %v9274
        %v9276 = vpop.f32.mrf.mxu0
        %v9277 = vpop.f32.mrf.mxu0
        %v9278 = vadd.f32 %v9037, %v9277
        %v9279 = vpop.f32.mrf.mxu0
        %9280 = vdwg.mxu0
        %9281 = vmatprep.subr.bf16.mxu0 0
        %9282 = vmatpush1.bf16.msra.mxu0 %v9159
        %9283 = vmatprep.subr.bf16.mxu0 0
        %9284 = vmatpush1.bf16.msra.mxu0 %v9158
        %9285 = vmatprep.subr.bf16.mxu0 0
        %9286 = vmatpush1.bf16.msra.mxu0 %v9157
        %9287 = vmatprep.subr.bf16.mxu0 0
        %9288 = vmatpush1.bf16.msra.mxu0 %v9156
        %9289 = vmatprep.subr.bf16.mxu0 0
        %9290 = vmatpush1.bf16.msra.mxu0 %v9155
        %9291 = vmatprep.subr.bf16.mxu0 0
        %9292 = vmatpush1.bf16.msra.mxu0 %v9154
        %9293 = vmatprep.subr.bf16.mxu0 0
        %9294 = vmatpush1.bf16.msra.mxu0 %v9153
        %9295 = vmatprep.subr.bf16.mxu0 0
        %9296 = vmatpush1.bf16.msra.mxu0 %v9152
        %9297 = vmatprep.subr.bf16.mxu0 0
        %9298 = vmatpush2.bf16.msra.mxu0 0
        %9299 = vmatprep.subr.bf16.mxu0 0
        %9300 = vmatpush2.bf16.msra.mxu0 0
        %9301 = vmatprep.subr.bf16.mxu0 0
        %9302 = vmatpush2.bf16.msra.mxu0 0
        %9303 = vmatprep.subr.bf16.mxu0 0
        %9304 = vmatpush2.bf16.msra.mxu0 0
        %9305 = vmatprep.subr.bf16.mxu0 0
        %9306 = vmatpush2.bf16.msra.mxu0 0
        %9307 = vmatprep.subr.bf16.mxu0 0
        %9308 = vmatpush2.bf16.msra.mxu0 0
        %9309 = vmatprep.subr.bf16.mxu0 0
        %9310 = vmatpush2.bf16.msra.mxu0 0
        %9311 = vmatprep.subr.bf16.mxu0 0
        %9312 = vmatpush2.bf16.msra.mxu0 0
        %9313 = vmatprep.mubr.bf16.mxu0 0
        %9314 = vmatmul.mubr.bf16.gmra.mxu0 %v8567
        %v9315 = vpop.f32.mrf.mxu0
        %v9316 = vadd.f32 %v9219, %v9315
        %v9317 = vpop.f32.mrf.mxu0
        %v9318 = vpop.f32.mrf.mxu0
        %v9319 = vadd.f32 %v9222, %v9318
        %v9320 = vpop.f32.mrf.mxu0
        %9321 = vmatprep.mubr.bf16.mxu0 0
        %9322 = vmatmul.mubr.bf16.gmra.mxu0 %v8570
        %v9323 = vpop.f32.mrf.mxu0
        %v9324 = vadd.f32 %v9227, %v9323
        %v9325 = vpop.f32.mrf.mxu0
        %v9326 = vpop.f32.mrf.mxu0
        %v9327 = vadd.f32 %v9230, %v9326
        %v9328 = vpop.f32.mrf.mxu0
        %9329 = vmatprep.mubr.bf16.mxu0 0
        %9330 = vmatmul.mubr.bf16.gmra.mxu0 %v8573
        %v9331 = vpop.f32.mrf.mxu0
        %v9332 = vadd.f32 %v9235, %v9331
        %v9333 = vpop.f32.mrf.mxu0
        %v9334 = vpop.f32.mrf.mxu0
        %v9335 = vadd.f32 %v9238, %v9334
        %v9336 = vpop.f32.mrf.mxu0
        %9337 = vmatprep.mubr.bf16.mxu0 0
        %9338 = vmatmul.mubr.bf16.gmra.mxu0 %v8576
        %v9339 = vpop.f32.mrf.mxu0
        %v9340 = vadd.f32 %v9243, %v9339
        %v9341 = vpop.f32.mrf.mxu0
        %v9342 = vpop.f32.mrf.mxu0
        %v9343 = vadd.f32 %v9246, %v9342
        %v9344 = vpop.f32.mrf.mxu0
        %9345 = vmatprep.mubr.bf16.mxu0 0
        %9346 = vmatmul.mubr.bf16.gmra.mxu0 %v8579
        %v9347 = vpop.f32.mrf.mxu0
        %v9348 = vadd.f32 %v9251, %v9347
        %v9349 = vpop.f32.mrf.mxu0
        %v9350 = vpop.f32.mrf.mxu0
        %v9351 = vadd.f32 %v9254, %v9350
        %v9352 = vpop.f32.mrf.mxu0
        %9353 = vmatprep.mubr.bf16.mxu0 0
        %9354 = vmatmul.mubr.bf16.gmra.mxu0 %v8582
        %v9355 = vpop.f32.mrf.mxu0
        %v9356 = vadd.f32 %v9259, %v9355
        %v9357 = vpop.f32.mrf.mxu0
        %v9358 = vpop.f32.mrf.mxu0
        %v9359 = vadd.f32 %v9262, %v9358
        %v9360 = vpop.f32.mrf.mxu0
        %9361 = vmatprep.mubr.bf16.mxu0 0
        %9362 = vmatmul.mubr.bf16.gmra.mxu0 %v8585
        %v9363 = vpop.f32.mrf.mxu0
        %v9364 = vadd.f32 %v9267, %v9363
        %v9365 = vpop.f32.mrf.mxu0
        %v9366 = vpop.f32.mrf.mxu0
        %v9367 = vadd.f32 %v9270, %v9366
        %v9368 = vpop.f32.mrf.mxu0
        %9369 = vmatprep.mubr.bf16.mxu0 0
        %9370 = vmatmul.mubr.bf16.gmra.mxu0 %v8588
        %v9371 = vpop.f32.mrf.mxu0
        %v9372 = vadd.f32 %v9275, %v9371
        %v9373 = vpop.f32.mrf.mxu0
        %v9374 = vpop.f32.mrf.mxu0
        %v9375 = vadd.f32 %v9278, %v9374
        %v9376 = vpop.f32.mrf.mxu0
        %9377 = vdwg.mxu0
        %s9378 = scalar_lea.vmem [#allocation3], 384
        %v9379 = vld [vmem:[%s9378] sm:$0xf]
        %v9380 = vld [vmem:[%s9378 + $0x4] sm:$0xf]
        %v9381 = vld [vmem:[%s9378 + $0x8] sm:$0xf]
        %v9382 = vld [vmem:[%s9378 + $0xc] sm:$0xf]
        %v9383 = vld [vmem:[%s9378 + $0x10] sm:$0xf]
        %v9384 = vld [vmem:[%s9378 + $0x14] sm:$0xf]
        %v9385 = vld [vmem:[%s9378 + $0x18] sm:$0xf]
        %v9386 = vld [vmem:[%s9378 + $0x1c] sm:$0xf]
        %v9387 = vld [vmem:[%s9378 + $0x20] sm:$0xf]
        %v9388 = vld [vmem:[%s9378 + $0x24] sm:$0xf]
        %v9389 = vld [vmem:[%s9378 + $0x28] sm:$0xf]
        %v9390 = vld [vmem:[%s9378 + $0x2c] sm:$0xf]
        %v9391 = vld [vmem:[%s9378 + $0x30] sm:$0xf]
        %v9392 = vld [vmem:[%s9378 + $0x34] sm:$0xf]
        %v9393 = vld [vmem:[%s9378 + $0x38] sm:$0xf]
        %v9394 = vld [vmem:[%s9378 + $0x3c] sm:$0xf]
        %v9395 = vld [vmem:[%s9378 + $0x40] sm:$0xf]
        %v9396 = vld [vmem:[%s9378 + $0x44] sm:$0xf]
        %v9397 = vld [vmem:[%s9378 + $0x48] sm:$0xf]
        %v9398 = vld [vmem:[%s9378 + $0x4c] sm:$0xf]
        %v9399 = vld [vmem:[%s9378 + $0x50] sm:$0xf]
        %v9400 = vld [vmem:[%s9378 + $0x54] sm:$0xf]
        %v9401 = vld [vmem:[%s9378 + $0x58] sm:$0xf]
        %v9402 = vld [vmem:[%s9378 + $0x5c] sm:$0xf]
        %v9403 = vld [vmem:[%s9378 + $0x60] sm:$0xf]
        %v9404 = vld [vmem:[%s9378 + $0x64] sm:$0xf]
        %v9405 = vld [vmem:[%s9378 + $0x68] sm:$0xf]
        %v9406 = vld [vmem:[%s9378 + $0x6c] sm:$0xf]
        %v9407 = vld [vmem:[%s9378 + $0x70] sm:$0xf]
        %v9408 = vld [vmem:[%s9378 + $0x74] sm:$0xf]
        %v9409 = vld [vmem:[%s9378 + $0x78] sm:$0xf]
        %v9410 = vld [vmem:[%s9378 + $0x7c] sm:$0xf]
        %v9411 = vld [vmem:[%s9378 + $0x80] sm:$0xf]
        %v9412 = vld [vmem:[%s9378 + $0x84] sm:$0xf]
        %v9413 = vld [vmem:[%s9378 + $0x88] sm:$0xf]
        %v9414 = vld [vmem:[%s9378 + $0x8c] sm:$0xf]
        %v9415 = vld [vmem:[%s9378 + $0x90] sm:$0xf]
        %v9416 = vld [vmem:[%s9378 + $0x94] sm:$0xf]
        %v9417 = vld [vmem:[%s9378 + $0x98] sm:$0xf]
        %v9418 = vld [vmem:[%s9378 + $0x9c] sm:$0xf]
        %v9419 = vld [vmem:[%s9378 + $0xa0] sm:$0xf]
        %v9420 = vld [vmem:[%s9378 + $0xa4] sm:$0xf]
        %v9421 = vld [vmem:[%s9378 + $0xa8] sm:$0xf]
        %v9422 = vld [vmem:[%s9378 + $0xac] sm:$0xf]
        %v9423 = vld [vmem:[%s9378 + $0xb0] sm:$0xf]
        %v9424 = vld [vmem:[%s9378 + $0xb4] sm:$0xf]
        %v9425 = vld [vmem:[%s9378 + $0xb8] sm:$0xf]
        %v9426 = vld [vmem:[%s9378 + $0xbc] sm:$0xf]
        %v9475 = vunpack.c.l.b16 %v9379
        %v9476 = vunpack.c.l.b16 %v9380
        %v9477 = vunpack.c.l.b16 %v9381
        %v9478 = vunpack.c.l.b16 %v9382
        %v9479 = vunpack.c.l.b16 %v9383
        %v9480 = vunpack.c.l.b16 %v9384
        %v9481 = vunpack.c.l.b16 %v9385
        %v9482 = vunpack.c.l.b16 %v9386
        %v9483 = vunpack.c.l.b16 %v9387
        %v9484 = vunpack.c.l.b16 %v9388
        %v9485 = vunpack.c.l.b16 %v9389
        %v9486 = vunpack.c.l.b16 %v9390
        %v9487 = vunpack.c.l.b16 %v9391
        %v9488 = vunpack.c.l.b16 %v9392
        %v9489 = vunpack.c.l.b16 %v9393
        %v9490 = vunpack.c.l.b16 %v9394
        %v9491 = vunpack.c.l.b16 %v9395
        %v9492 = vunpack.c.l.b16 %v9396
        %v9493 = vunpack.c.l.b16 %v9397
        %v9494 = vunpack.c.l.b16 %v9398
        %v9495 = vunpack.c.l.b16 %v9399
        %v9496 = vunpack.c.l.b16 %v9400
        %v9497 = vunpack.c.l.b16 %v9401
        %v9498 = vunpack.c.l.b16 %v9402
        %v9499 = vunpack.c.l.b16 %v9403
        %v9500 = vunpack.c.l.b16 %v9404
        %v9501 = vunpack.c.l.b16 %v9405
        %v9502 = vunpack.c.l.b16 %v9406
        %v9503 = vunpack.c.l.b16 %v9407
        %v9504 = vunpack.c.l.b16 %v9408
        %v9505 = vunpack.c.l.b16 %v9409
        %v9506 = vunpack.c.l.b16 %v9410
        %v9507 = vunpack.c.l.b16 %v9411
        %v9508 = vunpack.c.l.b16 %v9412
        %v9509 = vunpack.c.l.b16 %v9413
        %v9510 = vunpack.c.l.b16 %v9414
        %v9511 = vunpack.c.l.b16 %v9415
        %v9512 = vunpack.c.l.b16 %v9416
        %v9513 = vunpack.c.l.b16 %v9417
        %v9514 = vunpack.c.l.b16 %v9418
        %v9515 = vunpack.c.l.b16 %v9419
        %v9516 = vunpack.c.l.b16 %v9420
        %v9517 = vunpack.c.l.b16 %v9421
        %v9518 = vunpack.c.l.b16 %v9422
        %v9519 = vunpack.c.l.b16 %v9423
        %v9520 = vunpack.c.l.b16 %v9424
        %v9521 = vunpack.c.l.b16 %v9425
        %v9522 = vunpack.c.l.b16 %v9426
        %v9523 = vpack.c.b16 %v9476, %v9475
        %v9524 = vpack.c.b16 %v9478, %v9477
        %v9525 = vpack.c.b16 %v9480, %v9479
        %v9526 = vpack.c.b16 %v9482, %v9481
        %v9527 = vpack.c.b16 %v9484, %v9483
        %v9528 = vpack.c.b16 %v9486, %v9485
        %v9529 = vpack.c.b16 %v9488, %v9487
        %v9530 = vpack.c.b16 %v9490, %v9489
        %v9531 = vpack.c.b16 %v9492, %v9491
        %v9532 = vpack.c.b16 %v9494, %v9493
        %v9533 = vpack.c.b16 %v9496, %v9495
        %v9534 = vpack.c.b16 %v9498, %v9497
        %v9535 = vpack.c.b16 %v9500, %v9499
        %v9536 = vpack.c.b16 %v9502, %v9501
        %v9537 = vpack.c.b16 %v9504, %v9503
        %v9538 = vpack.c.b16 %v9506, %v9505
        %v9539 = vpack.c.b16 %v9508, %v9507
        %v9540 = vpack.c.b16 %v9510, %v9509
        %v9541 = vpack.c.b16 %v9512, %v9511
        %v9542 = vpack.c.b16 %v9514, %v9513
        %v9543 = vpack.c.b16 %v9516, %v9515
        %v9544 = vpack.c.b16 %v9518, %v9517
        %v9545 = vpack.c.b16 %v9520, %v9519
        %v9546 = vpack.c.b16 %v9522, %v9521
        %9571 = vmatprep.subr.bf16.mxu0 0
        %9572 = vmatpush1.bf16.msra.mxu0 %v9530
        %9573 = vmatprep.subr.bf16.mxu0 0
        %9574 = vmatpush1.bf16.msra.mxu0 %v9529
        %9575 = vmatprep.subr.bf16.mxu0 0
        %9576 = vmatpush1.bf16.msra.mxu0 %v9528
        %9577 = vmatprep.subr.bf16.mxu0 0
        %9578 = vmatpush1.bf16.msra.mxu0 %v9527
        %9579 = vmatprep.subr.bf16.mxu0 0
        %9580 = vmatpush1.bf16.msra.mxu0 %v9526
        %9581 = vmatprep.subr.bf16.mxu0 0
        %9582 = vmatpush1.bf16.msra.mxu0 %v9525
        %9583 = vmatprep.subr.bf16.mxu0 0
        %9584 = vmatpush1.bf16.msra.mxu0 %v9524
        %9585 = vmatprep.subr.bf16.mxu0 0
        %9586 = vmatpush1.bf16.msra.mxu0 %v9523
        %9587 = vmatprep.subr.bf16.mxu0 0
        %9588 = vmatpush2.bf16.msra.mxu0 %v9538
        %9589 = vmatprep.subr.bf16.mxu0 0
        %9590 = vmatpush2.bf16.msra.mxu0 %v9537
        %9591 = vmatprep.subr.bf16.mxu0 0
        %9592 = vmatpush2.bf16.msra.mxu0 %v9536
        %9593 = vmatprep.subr.bf16.mxu0 0
        %9594 = vmatpush2.bf16.msra.mxu0 %v9535
        %9595 = vmatprep.subr.bf16.mxu0 0
        %9596 = vmatpush2.bf16.msra.mxu0 %v9534
        %9597 = vmatprep.subr.bf16.mxu0 0
        %9598 = vmatpush2.bf16.msra.mxu0 %v9533
        %9599 = vmatprep.subr.bf16.mxu0 0
        %9600 = vmatpush2.bf16.msra.mxu0 %v9532
        %9601 = vmatprep.subr.bf16.mxu0 0
        %9602 = vmatpush2.bf16.msra.mxu0 %v9531
        %9603 = vmatprep.mubr.bf16.mxu0 %v8469
        %9604 = vmatmul.mubr.bf16.gmra.mxu0 %v8385
        %v9605 = vpop.f32.mrf.mxu0
        %v9606 = vadd.f32 0.0, %v9605
        %v9607 = vpop.f32.mrf.mxu0
        %v9608 = vpop.f32.mrf.mxu0
        %v9609 = vadd.f32 0.0, %v9608
        %v9610 = vpop.f32.mrf.mxu0
        %9611 = vmatprep.mubr.bf16.mxu0 %v8481
        %9612 = vmatmul.mubr.bf16.gmra.mxu0 %v8386
        %v9613 = vpop.f32.mrf.mxu0
        %v9614 = vadd.f32 0.0, %v9613
        %v9615 = vpop.f32.mrf.mxu0
        %v9616 = vpop.f32.mrf.mxu0
        %v9617 = vadd.f32 0.0, %v9616
        %v9618 = vpop.f32.mrf.mxu0
        %9619 = vmatprep.mubr.bf16.mxu0 %v8493
        %9620 = vmatmul.mubr.bf16.gmra.mxu0 %v8387
        %v9621 = vpop.f32.mrf.mxu0
        %v9622 = vadd.f32 0.0, %v9621
        %v9623 = vpop.f32.mrf.mxu0
        %v9624 = vpop.f32.mrf.mxu0
        %v9625 = vadd.f32 0.0, %v9624
        %v9626 = vpop.f32.mrf.mxu0
        %9627 = vmatprep.mubr.bf16.mxu0 %v8505
        %9628 = vmatmul.mubr.bf16.gmra.mxu0 %v8388
        %v9629 = vpop.f32.mrf.mxu0
        %v9630 = vadd.f32 0.0, %v9629
        %v9631 = vpop.f32.mrf.mxu0
        %v9632 = vpop.f32.mrf.mxu0
        %v9633 = vadd.f32 0.0, %v9632
        %v9634 = vpop.f32.mrf.mxu0
        %9635 = vmatprep.mubr.bf16.mxu0 %v8517
        %9636 = vmatmul.mubr.bf16.gmra.mxu0 %v8389
        %v9637 = vpop.f32.mrf.mxu0
        %v9638 = vadd.f32 0.0, %v9637
        %v9639 = vpop.f32.mrf.mxu0
        %v9640 = vpop.f32.mrf.mxu0
        %v9641 = vadd.f32 0.0, %v9640
        %v9642 = vpop.f32.mrf.mxu0
        %9643 = vmatprep.mubr.bf16.mxu0 %v8529
        %9644 = vmatmul.mubr.bf16.gmra.mxu0 %v8390
        %v9645 = vpop.f32.mrf.mxu0
        %v9646 = vadd.f32 0.0, %v9645
        %v9647 = vpop.f32.mrf.mxu0
        %v9648 = vpop.f32.mrf.mxu0
        %v9649 = vadd.f32 0.0, %v9648
        %v9650 = vpop.f32.mrf.mxu0
        %9651 = vmatprep.mubr.bf16.mxu0 %v8541
        %9652 = vmatmul.mubr.bf16.gmra.mxu0 %v8391
        %v9653 = vpop.f32.mrf.mxu0
        %v9654 = vadd.f32 0.0, %v9653
        %v9655 = vpop.f32.mrf.mxu0
        %v9656 = vpop.f32.mrf.mxu0
        %v9657 = vadd.f32 0.0, %v9656
        %v9658 = vpop.f32.mrf.mxu0
        %9659 = vmatprep.mubr.bf16.mxu0 %v8553
        %9660 = vmatmul.mubr.bf16.gmra.mxu0 %v8392
        %v9661 = vpop.f32.mrf.mxu0
        %v9662 = vadd.f32 0.0, %v9661
        %v9663 = vpop.f32.mrf.mxu0
        %v9664 = vpop.f32.mrf.mxu0
        %v9665 = vadd.f32 0.0, %v9664
        %v9666 = vpop.f32.mrf.mxu0
        %9667 = vdwg.mxu0
        %9668 = vmatprep.subr.bf16.mxu0 0
        %9669 = vmatpush1.bf16.msra.mxu0 %v9546
        %9670 = vmatprep.subr.bf16.mxu0 0
        %9671 = vmatpush1.bf16.msra.mxu0 %v9545
        %9672 = vmatprep.subr.bf16.mxu0 0
        %9673 = vmatpush1.bf16.msra.mxu0 %v9544
        %9674 = vmatprep.subr.bf16.mxu0 0
        %9675 = vmatpush1.bf16.msra.mxu0 %v9543
        %9676 = vmatprep.subr.bf16.mxu0 0
        %9677 = vmatpush1.bf16.msra.mxu0 %v9542
        %9678 = vmatprep.subr.bf16.mxu0 0
        %9679 = vmatpush1.bf16.msra.mxu0 %v9541
        %9680 = vmatprep.subr.bf16.mxu0 0
        %9681 = vmatpush1.bf16.msra.mxu0 %v9540
        %9682 = vmatprep.subr.bf16.mxu0 0
        %9683 = vmatpush1.bf16.msra.mxu0 %v9539
        %9684 = vmatprep.subr.bf16.mxu0 0
        %9685 = vmatpush2.bf16.msra.mxu0 0
        %9686 = vmatprep.subr.bf16.mxu0 0
        %9687 = vmatpush2.bf16.msra.mxu0 0
        %9688 = vmatprep.subr.bf16.mxu0 0
        %9689 = vmatpush2.bf16.msra.mxu0 0
        %9690 = vmatprep.subr.bf16.mxu0 0
        %9691 = vmatpush2.bf16.msra.mxu0 0
        %9692 = vmatprep.subr.bf16.mxu0 0
        %9693 = vmatpush2.bf16.msra.mxu0 0
        %9694 = vmatprep.subr.bf16.mxu0 0
        %9695 = vmatpush2.bf16.msra.mxu0 0
        %9696 = vmatprep.subr.bf16.mxu0 0
        %9697 = vmatpush2.bf16.msra.mxu0 0
        %9698 = vmatprep.subr.bf16.mxu0 0
        %9699 = vmatpush2.bf16.msra.mxu0 0
        %9700 = vmatprep.mubr.bf16.mxu0 0
        %9701 = vmatmul.mubr.bf16.gmra.mxu0 %v8573
        %v9702 = vpop.f32.mrf.mxu0
        %v9703 = vadd.f32 %v9606, %v9702
        %v9704 = vpop.f32.mrf.mxu0
        %v9705 = vpop.f32.mrf.mxu0
        %v9706 = vadd.f32 %v9609, %v9705
        %v9707 = vpop.f32.mrf.mxu0
        %9708 = vmatprep.mubr.bf16.mxu0 0
        %9709 = vmatmul.mubr.bf16.gmra.mxu0 %v8576
        %v9710 = vpop.f32.mrf.mxu0
        %v9711 = vadd.f32 %v9614, %v9710
        %v9712 = vpop.f32.mrf.mxu0
        %v9713 = vpop.f32.mrf.mxu0
        %v9714 = vadd.f32 %v9617, %v9713
        %v9715 = vpop.f32.mrf.mxu0
        %9716 = vmatprep.mubr.bf16.mxu0 0
        %9717 = vmatmul.mubr.bf16.gmra.mxu0 %v8579
        %v9718 = vpop.f32.mrf.mxu0
        %v9719 = vadd.f32 %v9622, %v9718
        %v9720 = vpop.f32.mrf.mxu0
        %v9721 = vpop.f32.mrf.mxu0
        %v9722 = vadd.f32 %v9625, %v9721
        %v9723 = vpop.f32.mrf.mxu0
        %9724 = vmatprep.mubr.bf16.mxu0 0
        %9725 = vmatmul.mubr.bf16.gmra.mxu0 %v8582
        %v9726 = vpop.f32.mrf.mxu0
        %v9727 = vadd.f32 %v9630, %v9726
        %v9728 = vpop.f32.mrf.mxu0
        %v9729 = vpop.f32.mrf.mxu0
        %v9730 = vadd.f32 %v9633, %v9729
        %v9731 = vpop.f32.mrf.mxu0
        %9732 = vmatprep.mubr.bf16.mxu0 0
        %9733 = vmatmul.mubr.bf16.gmra.mxu0 %v8585
        %v9734 = vpop.f32.mrf.mxu0
        %v9735 = vadd.f32 %v9638, %v9734
        %v9736 = vpop.f32.mrf.mxu0
        %v9737 = vpop.f32.mrf.mxu0
        %v9738 = vadd.f32 %v9641, %v9737
        %v9739 = vpop.f32.mrf.mxu0
        %9740 = vmatprep.mubr.bf16.mxu0 0
        %9741 = vmatmul.mubr.bf16.gmra.mxu0 %v8588
        %v9742 = vpop.f32.mrf.mxu0
        %v9743 = vadd.f32 %v9646, %v9742
        %v9744 = vpop.f32.mrf.mxu0
        %v9745 = vpop.f32.mrf.mxu0
        %v9746 = vadd.f32 %v9649, %v9745
        %v9747 = vpop.f32.mrf.mxu0
        %9748 = vmatprep.mubr.bf16.mxu0 0
        %9749 = vmatmul.mubr.bf16.gmra.mxu0 %v8591
        %v9750 = vpop.f32.mrf.mxu0
        %v9751 = vadd.f32 %v9654, %v9750
        %v9752 = vpop.f32.mrf.mxu0
        %v9753 = vpop.f32.mrf.mxu0
        %v9754 = vadd.f32 %v9657, %v9753
        %v9755 = vpop.f32.mrf.mxu0
        %9756 = vmatprep.mubr.bf16.mxu0 0
        %9757 = vmatmul.mubr.bf16.gmra.mxu0 %v8594
        %v9758 = vpop.f32.mrf.mxu0
        %v9759 = vadd.f32 %v9662, %v9758
        %v9760 = vpop.f32.mrf.mxu0
        %v9761 = vpop.f32.mrf.mxu0
        %v9762 = vadd.f32 %v9665, %v9761
        %v9763 = vpop.f32.mrf.mxu0
        %9764 = vdwg.mxu0
        %v9765 = vadd.f32 %v9316, %v9703
        %v9766 = vadd.f32 %v9319, %v9706
        %v9767 = vadd.f32 %v9324, %v9711
        %v9768 = vadd.f32 %v9327, %v9714
        %v9769 = vadd.f32 %v9332, %v9719
        %v9770 = vadd.f32 %v9335, %v9722
        %v9771 = vadd.f32 %v9340, %v9727
        %v9772 = vadd.f32 %v9343, %v9730
        %v9773 = vadd.f32 %v9348, %v9735
        %v9774 = vadd.f32 %v9351, %v9738
        %v9775 = vadd.f32 %v9356, %v9743
        %v9776 = vadd.f32 %v9359, %v9746
        %v9777 = vadd.f32 %v9364, %v9751
        %v9778 = vadd.f32 %v9367, %v9754
        %v9779 = vadd.f32 %v9372, %v9759
        %v9780 = vadd.f32 %v9375, %v9762
        %v9781 = vld [vmem:[%s4] sm:$0x1]
        %v9783 = vlaneseq
        %v9784 = vshrl.u32 %v9783, 7
        %v9785 = vsub.s32 0, %v9784
        %v9786 = vrot.slane %v9781, %v9785
        %v9788 = vadd.f32 %v9765, %v9786
        %v9789 = vadd.f32 %v9766, %v9786
        %v9790 = vadd.f32 %v9767, %v9786
        %v9791 = vadd.f32 %v9768, %v9786
        %v9792 = vadd.f32 %v9769, %v9786
        %v9793 = vadd.f32 %v9770, %v9786
        %v9794 = vadd.f32 %v9771, %v9786
        %v9795 = vadd.f32 %v9772, %v9786
        %v9796 = vadd.f32 %v9773, %v9786
        %v9797 = vadd.f32 %v9774, %v9786
        %v9798 = vadd.f32 %v9775, %v9786
        %v9799 = vadd.f32 %v9776, %v9786
        %v9800 = vadd.f32 %v9777, %v9786
        %v9801 = vadd.f32 %v9778, %v9786
        %v9802 = vadd.f32 %v9779, %v9786
        %v9803 = vadd.f32 %v9780, %v9786
        %vm9804 = vcmask 1042432
        %vm9805 = vcmask 1046532
        %vm9806 = vmor %vm9804, %vm9805
        %v9807 = vrot.slane %v318, 5
        %v9808 = vrot.slane %v9807, 4
        %v9809 = vrot.slane %v319, 5
        %v9810 = vsel %vm9806, %v9808, %v9809
        %v9811 = vrot.slane %v9809, 4
        %v9812 = vrot.slane %v320, 5
        %v9813 = vsel %vm9806, %v9811, %v9812
        %v9814 = vrot.slane %v321, 5
        %v9815 = vrot.slane %v9814, 4
        %v9816 = vrot.slane %v322, 5
        %v9817 = vsel %vm9806, %v9815, %v9816
        %v9818 = vrot.slane %v9816, 4
        %v9819 = vrot.slane %v323, 5
        %v9820 = vsel %vm9806, %v9818, %v9819
        %v9821 = vrot.slane %v324, 5
        %v9822 = vrot.slane %v9821, 4
        %v9823 = vrot.slane %v325, 5
        %v9824 = vsel %vm9806, %v9822, %v9823
        %v9825 = vrot.slane %v9823, 4
        %v9826 = vrot.slane %v326, 5
        %v9827 = vsel %vm9806, %v9825, %v9826
        %v9828 = vrot.slane %v327, 5
        %v9829 = vrot.slane %v9828, 4
        %v9830 = vrot.slane %v328, 5
        %v9831 = vsel %vm9806, %v9829, %v9830
        %v9832 = vrot.slane %v9830, 4
        %v9833 = vrot.slane %v329, 5
        %v9834 = vsel %vm9806, %v9832, %v9833
        %v9835 = vrot.slane %v330, 5
        %v9836 = vrot.slane %v9835, 4
        %v9837 = vrot.slane %v331, 5
        %v9838 = vsel %vm9806, %v9836, %v9837
        %v9839 = vrot.slane %v9837, 4
        %v9840 = vrot.slane %v332, 5
        %v9841 = vsel %vm9806, %v9839, %v9840
        %v9842 = vrot.slane %v333, 5
        %v9843 = vrot.slane %v9842, 4
        %v9844 = vrot.slane %v334, 5
        %v9845 = vsel %vm9806, %v9843, %v9844
        %v9846 = vrot.slane %v9844, 4
        %v9847 = vrot.slane %v335, 5
        %v9848 = vsel %vm9806, %v9846, %v9847
        %v9849 = vrot.slane %v336, 5
        %v9850 = vrot.slane %v9849, 4
        %v9851 = vrot.slane %v337, 5
        %v9852 = vsel %vm9806, %v9850, %v9851
        %v9853 = vrot.slane %v9851, 4
        %v9854 = vrot.slane %v338, 5
        %v9855 = vsel %vm9806, %v9853, %v9854
        %v9856 = vrot.slane %v339, 5
        %v9857 = vrot.slane %v9856, 4
        %v9858 = vrot.slane %v340, 5
        %v9859 = vsel %vm9806, %v9857, %v9858
        %v9860 = vrot.slane %v9858, 4
        %v9861 = vrot.slane %v341, 5
        %v9862 = vsel %vm9806, %v9860, %v9861
        %v9863 = vld [vmem:[%s5] sm:$0x3]
        %v9864 = vld [vmem:[%s6] sm:$0x1]
        %v9866 = vlaneseq
        %v9867 = vshrl.u32 %v9866, 7
        %v9868 = vsub.s32 0, %v9867
        %v9869 = vrot.slane %v9864, %v9868
        %v9871 = vunpack.c.l.b16 %v9810
        %v9872 = vunpack.c.l.b16 %v9813
        %v9873 = vunpack.c.l.b16 %v9817
        %v9874 = vunpack.c.l.b16 %v9820
        %v9875 = vunpack.c.l.b16 %v9824
        %v9876 = vunpack.c.l.b16 %v9827
        %v9877 = vunpack.c.l.b16 %v9831
        %v9878 = vunpack.c.l.b16 %v9834
        %v9879 = vunpack.c.l.b16 %v9838
        %v9880 = vunpack.c.l.b16 %v9841
        %v9881 = vunpack.c.l.b16 %v9845
        %v9882 = vunpack.c.l.b16 %v9848
        %v9883 = vunpack.c.l.b16 %v9852
        %v9884 = vunpack.c.l.b16 %v9855
        %v9885 = vunpack.c.l.b16 %v9859
        %v9886 = vunpack.c.l.b16 %v9862
        %v9887 = vpack.c.b16 %v9872, %v9871
        %v9888 = vpack.c.b16 %v9874, %v9873
        %v9889 = vpack.c.b16 %v9876, %v9875
        %v9890 = vpack.c.b16 %v9878, %v9877
        %v9891 = vpack.c.b16 %v9880, %v9879
        %v9892 = vpack.c.b16 %v9882, %v9881
        %v9893 = vpack.c.b16 %v9884, %v9883
        %v9894 = vpack.c.b16 %v9886, %v9885
        %v9896 = vsel %vm2380, %v9887, 0
        %v9899 = vsel %vm2380, %v9888, 0
        %v9902 = vsel %vm2380, %v9889, 0
        %v9905 = vsel %vm2380, %v9890, 0
        %v9908 = vsel %vm2380, %v9891, 0
        %v9911 = vsel %vm2380, %v9892, 0
        %v9914 = vsel %vm2380, %v9893, 0
        %v9917 = vsel %vm2380, %v9894, 0
        %v9920 = vsel %vm2417, %v9863, 0
        %9922 = vmatprep.subr.bf16.mxu0 0
        %9923 = vmatpush1.bf16.msra.mxu0 0
        %9924 = vmatprep.subr.bf16.mxu0 0
        %9925 = vmatpush1.bf16.msra.mxu0 0
        %9926 = vmatprep.subr.bf16.mxu0 0
        %9927 = vmatpush1.bf16.msra.mxu0 0
        %9928 = vmatprep.subr.bf16.mxu0 0
        %9929 = vmatpush1.bf16.msra.mxu0 0
        %9930 = vmatprep.subr.bf16.mxu0 0
        %9931 = vmatpush1.bf16.msra.mxu0 0
        %9932 = vmatprep.subr.bf16.mxu0 0
        %9933 = vmatpush1.bf16.msra.mxu0 0
        %9934 = vmatprep.subr.bf16.mxu0 0
        %9935 = vmatpush1.bf16.msra.mxu0 0
        %9936 = vmatprep.subr.bf16.mxu0 0
        %9937 = vmatpush1.bf16.msra.mxu0 %v9920
        %9938 = vmatprep.subr.bf16.mxu0 0
        %9939 = vmatpush2.bf16.msra.mxu0 0
        %9940 = vmatprep.subr.bf16.mxu0 0
        %9941 = vmatpush2.bf16.msra.mxu0 0
        %9942 = vmatprep.subr.bf16.mxu0 0
        %9943 = vmatpush2.bf16.msra.mxu0 0
        %9944 = vmatprep.subr.bf16.mxu0 0
        %9945 = vmatpush2.bf16.msra.mxu0 0
        %9946 = vmatprep.subr.bf16.mxu0 0
        %9947 = vmatpush2.bf16.msra.mxu0 0
        %9948 = vmatprep.subr.bf16.mxu0 0
        %9949 = vmatpush2.bf16.msra.mxu0 0
        %9950 = vmatprep.subr.bf16.mxu0 0
        %9951 = vmatpush2.bf16.msra.mxu0 0
        %9952 = vmatprep.subr.bf16.mxu0 0
        %9953 = vmatpush2.bf16.msra.mxu0 0
        %9954 = vmatprep.mubr.bf16.mxu0 0
        %9955 = vmatmul.mubr.bf16.gmra.mxu0 %v9896
        %v9956 = vpop.f32.mrf.mxu0
        %v9957 = vadd.f32 %v9869, %v9956
        %v9958 = vpop.f32.mrf.mxu0
        %v9959 = vpop.f32.mrf.mxu0
        %v9960 = vadd.f32 %v9869, %v9959
        %v9961 = vpop.f32.mrf.mxu0
        %9962 = vmatprep.mubr.bf16.mxu0 0
        %9963 = vmatmul.mubr.bf16.gmra.mxu0 %v9899
        %v9964 = vpop.f32.mrf.mxu0
        %v9965 = vadd.f32 %v9869, %v9964
        %v9966 = vpop.f32.mrf.mxu0
        %v9967 = vpop.f32.mrf.mxu0
        %v9968 = vadd.f32 %v9869, %v9967
        %v9969 = vpop.f32.mrf.mxu0
        %9970 = vmatprep.mubr.bf16.mxu0 0
        %9971 = vmatmul.mubr.bf16.gmra.mxu0 %v9902
        %v9972 = vpop.f32.mrf.mxu0
        %v9973 = vadd.f32 %v9869, %v9972
        %v9974 = vpop.f32.mrf.mxu0
        %v9975 = vpop.f32.mrf.mxu0
        %v9976 = vadd.f32 %v9869, %v9975
        %v9977 = vpop.f32.mrf.mxu0
        %9978 = vmatprep.mubr.bf16.mxu0 0
        %9979 = vmatmul.mubr.bf16.gmra.mxu0 %v9905
        %v9980 = vpop.f32.mrf.mxu0
        %v9981 = vadd.f32 %v9869, %v9980
        %v9982 = vpop.f32.mrf.mxu0
        %v9983 = vpop.f32.mrf.mxu0
        %v9984 = vadd.f32 %v9869, %v9983
        %v9985 = vpop.f32.mrf.mxu0
        %9986 = vmatprep.mubr.bf16.mxu0 0
        %9987 = vmatmul.mubr.bf16.gmra.mxu0 %v9908
        %v9988 = vpop.f32.mrf.mxu0
        %v9989 = vadd.f32 %v9869, %v9988
        %v9990 = vpop.f32.mrf.mxu0
        %v9991 = vpop.f32.mrf.mxu0
        %v9992 = vadd.f32 %v9869, %v9991
        %v9993 = vpop.f32.mrf.mxu0
        %9994 = vmatprep.mubr.bf16.mxu0 0
        %9995 = vmatmul.mubr.bf16.gmra.mxu0 %v9911
        %v9996 = vpop.f32.mrf.mxu0
        %v9997 = vadd.f32 %v9869, %v9996
        %v9998 = vpop.f32.mrf.mxu0
        %v9999 = vpop.f32.mrf.mxu0
        %v10000 = vadd.f32 %v9869, %v9999
        %v10001 = vpop.f32.mrf.mxu0
        %10002 = vmatprep.mubr.bf16.mxu0 0
        %10003 = vmatmul.mubr.bf16.gmra.mxu0 %v9914
        %v10004 = vpop.f32.mrf.mxu0
        %v10005 = vadd.f32 %v9869, %v10004
        %v10006 = vpop.f32.mrf.mxu0
        %v10007 = vpop.f32.mrf.mxu0
        %v10008 = vadd.f32 %v9869, %v10007
        %v10009 = vpop.f32.mrf.mxu0
        %10010 = vmatprep.mubr.bf16.mxu0 0
        %10011 = vmatmul.mubr.bf16.gmra.mxu0 %v9917
        %v10012 = vpop.f32.mrf.mxu0
        %v10013 = vadd.f32 %v9869, %v10012
        %v10014 = vpop.f32.mrf.mxu0
        %v10015 = vpop.f32.mrf.mxu0
        %v10016 = vadd.f32 %v9869, %v10015
        %v10017 = vpop.f32.mrf.mxu0
        %10018 = vdwg.mxu0
        %v10019 = vadd.f32 %v9788, %v9957
        %v10020 = vadd.f32 %v9789, %v9960
        %v10021 = vadd.f32 %v9790, %v9965
        %v10022 = vadd.f32 %v9791, %v9968
        %v10023 = vadd.f32 %v9792, %v9973
        %v10024 = vadd.f32 %v9793, %v9976
        %v10025 = vadd.f32 %v9794, %v9981
        %v10026 = vadd.f32 %v9795, %v9984
        %v10027 = vadd.f32 %v9796, %v9989
        %v10028 = vadd.f32 %v9797, %v9992
        %v10029 = vadd.f32 %v9798, %v9997
        %v10030 = vadd.f32 %v9799, %v10000
        %v10031 = vadd.f32 %v9800, %v10005
        %v10032 = vadd.f32 %v9801, %v10008
        %v10033 = vadd.f32 %v9802, %v10013
        %v10034 = vadd.f32 %v9803, %v10016
        %v10035 = vmax.f32 %v10019, 0.0
        %v10036 = vmax.f32 %v10020, 0.0
        %v10037 = vmax.f32 %v10021, 0.0
        %v10038 = vmax.f32 %v10022, 0.0
        %v10039 = vmax.f32 %v10023, 0.0
        %v10040 = vmax.f32 %v10024, 0.0
        %v10041 = vmax.f32 %v10025, 0.0
        %v10042 = vmax.f32 %v10026, 0.0
        %v10043 = vmax.f32 %v10027, 0.0
        %v10044 = vmax.f32 %v10028, 0.0
        %v10045 = vmax.f32 %v10029, 0.0
        %v10046 = vmax.f32 %v10030, 0.0
        %v10047 = vmax.f32 %v10031, 0.0
        %v10048 = vmax.f32 %v10032, 0.0
        %v10049 = vmax.f32 %v10033, 0.0
        %v10050 = vmax.f32 %v10034, 0.0
        %10051 = vst [vmem:[%s300] sm:$0xff] %v10035
        %10052 = vst [vmem:[%s300 + $0x8] sm:$0xff] %v10036
        %10053 = vst [vmem:[%s300 + $0x10] sm:$0xff] %v10037
        %10054 = vst [vmem:[%s300 + $0x18] sm:$0xff] %v10038
        %10055 = vst [vmem:[%s300 + $0x20] sm:$0xff] %v10039
        %10056 = vst [vmem:[%s300 + $0x28] sm:$0xff] %v10040
        %10057 = vst [vmem:[%s300 + $0x30] sm:$0xff] %v10041
        %10058 = vst [vmem:[%s300 + $0x38] sm:$0xff] %v10042
        %10059 = vst [vmem:[%s300 + $0x40] sm:$0xff] %v10043
        %10060 = vst [vmem:[%s300 + $0x48] sm:$0xff] %v10044
        %10061 = vst [vmem:[%s300 + $0x50] sm:$0xff] %v10045
        %10062 = vst [vmem:[%s300 + $0x58] sm:$0xff] %v10046
        %10063 = vst [vmem:[%s300 + $0x60] sm:$0xff] %v10047
        %10064 = vst [vmem:[%s300 + $0x68] sm:$0xff] %v10048
        %10065 = vst [vmem:[%s300 + $0x70] sm:$0xff] %v10049
        %10066 = vst [vmem:[%s300 + $0x78] sm:$0xff] %v10050
        %s10067 = sand.u32 %s196, 1
        %s10068 = scalar_lea.sflag [#allocation5], %s10067
        %s10069 = sand.u32 %s196, 1
        %s10070 = smul.addr %s10069, 128
        %s10071 = scalar_lea.vmem [#allocation6], %s10070
        // Predicated region
        $region61: #{tpu_custom_call.1} parent=47 // pred_check
          %p10072 = pneg %p206
        $region62: #{tpu_custom_call.1} parent=47 // pred_check_branch
          %10074 = sbr.rel (%p10072) target = $region64
        $region63: #{tpu_custom_call.1} parent=47 // pred_region
          %s10075 = smul.u32 8, %s27
          %s10077 = ssub.s32 2048, 2048
          %10078 = vsyncadd %s10068, %s10077
          %s10079 = smul.addr %s10075, 2
          %s10080 = smul.addr %s26, 32
          %s10081 = sadd.s32 %s10079, %s10080
          %s10082 = smul.addr %s10081, 128
          %s10083 = scalar_lea.hbm %s7, %s10082
          %s10084 = sshll.u32 %s10071, 4
          %s10085 = int_to_ptr.vmem [resolvable:$true] %s10084
          %10090 = dma.vmem_to_hbm [thread:$0]  %s10085, 2048, %s10083, %s10068, 128, 128, 8
        $region64: #{tpu_custom_call.1} parent=47 // pred_fallthru
          _
      $region48: #{tpu_custom_call.1} parent=5 // pred_fallthru
        _
      %p10091 = scmp.le.s32.totalorder 2, %s17
      // Predicated region
      $region65: #{tpu_custom_call.1} parent=5 // pred_check
        %p10092 = pneg %p10091
      $region66: #{tpu_custom_call.1} parent=5 // pred_check_branch
        %10094 = sbr.rel (%p10092) target = $region68
      $region67: #{tpu_custom_call.1} parent=5 // pred_region
        %s10095 = ssub.s32 %s17, 2
        // Predicated region
        $region69: #{tpu_custom_call.1} parent=67 // pred_check
          %p10096 = pneg %p212
        $region70: #{tpu_custom_call.1} parent=67 // pred_check_branch
          %10098 = sbr.rel (%p10096) target = $region72
        $region71: #{tpu_custom_call.1} parent=67 // pred_region
          %s10099 = sand.u32 %s197, 1
          %s10100 = scalar_lea.sflag [#allocation5], %s10099
          %s10101 = sand.u32 %s197, 1
          %s10102 = smul.addr %s10101, 128
          %s10103 = scalar_lea.vmem [#allocation6], %s10102
          %10104 = dma.done %s10100, 2048
        $region72: #{tpu_custom_call.1} parent=67 // pred_fallthru
          _
      $region68: #{tpu_custom_call.1} parent=5 // pred_fallthru
        _
    $region6: #{tpu_custom_call.1} parent=1 // loop_footer
      %s21 = sadd.s32 1, %s17
    $region7: #{tpu_custom_call.1} parent=1 // loop_footer_branch
      %16 = sbr.rel target = $region3
    $region8: #{tpu_custom_call.1} parent=1 // loop_exit
      _
    %10105 = vsyncpa [#allocation4], 1
    %s10106 = scalar_lea.sflag [#allocation4], 1
    %10107 = vsyncpa %s10106, 1
    %10108 = vsyncpa [#allocation5], 1
    %s10109 = scalar_lea.sflag [#allocation5], 1
    %10110 = vsyncpa %s10109, 1

</llo_original>
